<compile_context>
chip_gen: v7x
topology: tpu7x:2x2x1
jax: 0.10.0
libtpu: 0.0.40
codegen_flags: <defaults>
</compile_context>

<pallas_src>
import functools
import math

import jax
import jax.numpy as jnp
from jax import lax
from jax.experimental import pallas as pl
from jax.experimental.pallas import tpu as pltpu


def _round_up(x: int, mult: int) -> int:
    return ((x + mult - 1) // mult) * mult


def _round_down(x: int, mult: int) -> int:
    return (x // mult) * mult


def _log_standardize_kernel(*refs, n_obs: int, m_out: int):
    """Fused Log + Standardize on one lane-dense [b_blk, n*m] row block.

    refs = (y_ref, [sel_ref, selt_ref,] o_ref).  Each row holds one batch
    element's flattened [n, m] targets in native row-major order, so element
    k of a row belongs to outcome k % m_out.  Per-outcome statistics are
    formed with selector matmuls on the otherwise-idle MXU (m_out == 1 skips
    them entirely).
    """
    y_ref = refs[0]
    o_ref = refs[-1]

    x = y_ref[...].astype(jnp.float32)        # [b_blk, n*m], lane-dense
    logx = jnp.log(x)                         # Log outcome transform (EUP)
    inv_n = 1.0 / n_obs

    if m_out == 1:
        # Single outcome: the whole row is one series -> plain lane reduce.
        mean = jnp.sum(logx, axis=-1, keepdims=True) * inv_n
        if n_obs > 1:
            var = jnp.sum((logx - mean) ** 2, axis=-1, keepdims=True) * (
                1.0 / (n_obs - 1)
            )
            inv_std = jnp.where(var >= 1e-16, lax.rsqrt(var), 1.0)
            out = (logx - mean) * inv_std     # recompute centered value
        else:
            out = logx - mean                 # n == 1 -> stdvs := 1 -> zeros
    else:
        sel_ref, selt_ref = refs[1], refs[2]
        sel = sel_ref[...]                    # [n*m, m_pad], sel[k,j] = (k%m == j)
        selt = selt_ref[...]                  # [m_pad, n*m], transposed selector
        hp = lax.Precision.HIGHEST            # f32-accurate MXU passes

        # Per-outcome sums / means: the stride-m reduction as a matmul.
        sums = jnp.dot(logx, sel, precision=hp,
                       preferred_element_type=jnp.float32)
        mean = sums * inv_n                   # [b_blk, m_pad]
        # Broadcast each outcome's mean back to every one of its positions.
        mean_b = jnp.dot(mean, selt, precision=hp,
                         preferred_element_type=jnp.float32)
        if n_obs > 1:
            sq = jnp.dot((logx - mean_b) ** 2, sel, precision=hp,
                         preferred_element_type=jnp.float32)
            var = sq * (1.0 / (n_obs - 1))    # unbiased per-outcome variance
            inv_std = jnp.where(var >= 1e-16, lax.rsqrt(var), 1.0)
            inv_b = jnp.dot(inv_std, selt, precision=hp,
                            preferred_element_type=jnp.float32)
            out = (logx - mean_b) * inv_b     # recompute centered value
        else:
            out = logx - mean_b               # n == 1 -> zeros

    o_ref[...] = out.astype(o_ref.dtype)


def _chip_budgets():
    """(target f32 block bytes, vmem_limit_bytes, min grid steps) per chip."""
    vmem_cap = 64 * 1024 * 1024               # conservative default (v7x-class)
    try:
        vmem_cap = int(pltpu.get_tpu_info().vmem_capacity_bytes)
    except Exception:
        pass
    if vmem_cap <= 64 * 1024 * 1024:
        # v7x: 64 MiB VMEM, 2 TensorCores.  2x double-buffered in + 2x out +
        # ~3x f32 temps + selector constants around a ~3 MiB block.
        return 3 * 1024 * 1024, 44 * 1024 * 1024, 8
    # v5e / v6e: 128 MiB VMEM -> bigger blocks amortize ~0.35 us/step overhead.
    return 6 * 1024 * 1024, 96 * 1024 * 1024, 4


def chained_log_standardize(Y, Yvar=None):
    """Forward of ChainedOutcomeTransform(log=Log(), standardize=Standardize(m)).

    Args:
        Y:    [*batch_shape, n, m] training targets (must be > 0 for Log;
              non-positive entries produce NaN/-Inf exactly as in BoTorch).
        Yvar: observation noise -- unsupported by Log(), must be None.

    Returns:
        (Y_transformed, None) with Y_transformed.shape == Y.shape.
    """
    if Yvar is not None:
        # BoTorch's Log transform raises on observation noise; mirror that.
        raise NotImplementedError(
            "Log outcome transform does not support observation noise (Yvar)."
        )

    batch_shape = Y.shape[:-2]
    n, m = Y.shape[-2], Y.shape[-1]
    B = math.prod(batch_shape) if batch_shape else 1
    nm = n * m

    # Free row-major collapse: no HBM transpose/copy around the kernel.
    Yf = Y.reshape(B, nm)

    tgt_block_bytes, vmem_limit, min_steps = _chip_budgets()

    # Row-block sizing: big enough to amortize per-step overhead, small enough
    # to (a) fit the per-generation VMEM budget and (b) keep >= min_steps grid
    # steps for software pipelining / v7x dual-TensorCore use.  Multiple of 16
    # keeps bf16 inputs on native packed-sublane tile boundaries.
    bytes_per_row_f32 = _round_up(nm, 128) * 4
    vmem_rows = max(16, _round_down(tgt_block_bytes // bytes_per_row_f32, 16))
    steps_rows = _round_up(max(1, pl.cdiv(B, min_steps)), 16)
    b_blk = min(vmem_rows, steps_rows)
    if b_blk >= B:
        b_blk = B          # block == full dim is always layout-legal
    grid = (pl.cdiv(B, b_blk),)
    # TODO(synk): for very large n*m (where even a 16-row block exceeds the
    # VMEM budget) tile n on a second "arbitrary" grid axis with f32 sum/sumsq
    # accumulators plus a second normalize pass, instead of oversubscribing VMEM.

    y_spec = pl.BlockSpec((b_blk, nm), lambda i: (i, 0))
    out_spec = pl.BlockSpec((b_blk, nm), lambda i: (i, 0))

    inputs = [Yf]
    in_specs = [y_spec]
    if m > 1:
        # Constant selector matrices (compile-time constants; their index_map
        # never changes so Pallas DMAs them into VMEM once and keeps them
        # resident across grid steps).
        m_pad = _round_up(m, 128)
        col = jnp.arange(nm, dtype=jnp.int32) % m
        sel = (
            col[:, None] == jnp.arange(m_pad, dtype=jnp.int32)[None, :]
        ).astype(jnp.float32)                 # [nm, m_pad]
        selt = sel.T                          # [m_pad, nm]
        inputs += [sel, selt]
        in_specs += [
            pl.BlockSpec((nm, m_pad), lambda i: (0, 0)),
            pl.BlockSpec((m_pad, nm), lambda i: (0, 0)),
        ]

    out_flat = pl.pallas_call(
        functools.partial(_log_standardize_kernel, n_obs=n, m_out=m),
        grid=grid,
        in_specs=in_specs,
        out_specs=out_spec,
        out_shape=jax.ShapeDtypeStruct((B, nm), Y.dtype),
        # No input_output_aliases: Y is not donated; aliasing a non-donated
        # buffer would force XLA to insert a defensive full copy of Y.
        compiler_params=pltpu.CompilerParams(
            dimension_semantics=("parallel",),   # row blocks are independent
            vmem_limit_bytes=vmem_limit,
        ),
    )(*inputs)
    # NOTE: if v7x profiling shows exposed DMA between steps, add
    # pipeline_mode=pl.Buffered(3) to y_spec / out_spec (cheap sweep).

    return out_flat.reshape(Y.shape), None


def reference_log_standardize(Y):
    """Pure-JAX reference of the chained transform (for verification)."""
    logY = jnp.log(Y.astype(jnp.float32))
    mean = jnp.mean(logY, axis=-2, keepdims=True)
    n = Y.shape[-2]
    if n == 1:
        stdvs = jnp.ones_like(mean)
    else:
        std = jnp.std(logY, axis=-2, keepdims=True, ddof=1)
        stdvs = jnp.where(std >= 1e-8, std, 1.0)
    return ((logY - mean) / stdvs).astype(Y.dtype)


if __name__ == "__main__":
    key = jax.random.PRNGKey(0)
    k1, k2 = jax.random.split(key)

    # Multi-outcome case: batch_shape = (4, 16), n = 128 observations, m = 4
    # outcomes (exercises the selector-matmul path and a multi-step grid).
    Y = jax.random.uniform(
        k1, (4, 16, 128, 4), minval=0.5, maxval=3.0, dtype=jnp.float32
    )
    expected = jax.block_until_ready(reference_log_standardize(Y))
    Y_tf, Yvar_tf = jax.jit(chained_log_standardize)(Y)
    Y_tf = jax.block_until_ready(Y_tf)
    assert Yvar_tf is None
    assert Y_tf.shape == Y.shape and Y_tf.dtype == Y.dtype
    err = float(jnp.max(jnp.abs(Y_tf - expected)))
    if err > 1e-4:
        raise AssertionError(f"m=4 mismatch vs reference: max abs err = {err}")

    # Single-outcome case (m = 1): exercises the selector-free fast path.
    Y1 = jax.random.uniform(
        k2, (16, 64, 1), minval=0.5, maxval=3.0, dtype=jnp.float32
    )
    expected1 = jax.block_until_ready(reference_log_standardize(Y1))
    Y1_tf, _ = jax.jit(chained_log_standardize)(Y1)
    Y1_tf = jax.block_until_ready(Y1_tf)
    err1 = float(jnp.max(jnp.abs(Y1_tf - expected1)))
    if err1 > 1e-4:
        raise AssertionError(f"m=1 mismatch vs reference: max abs err = {err1}")

    print("KERNEL_OK")
</pallas_src>

<mosaic_0001>
module attributes {stable_mosaic.version = 11 : i64} {
  func.func @_log_standardize_kernel(%arg0: i32, %arg1: memref<16x512xf32, #tpu.memory_space<vmem>>, %arg2: memref<512x128xf32, #tpu.memory_space<vmem>>, %arg3: memref<128x512xf32, #tpu.memory_space<vmem>>, %arg4: memref<16x512xf32, #tpu.memory_space<vmem>>) attributes {dimension_semantics = [#tpu.dimension_semantics<parallel>], iteration_bounds = array<i64: 4>, scalar_prefetch = 0 : i64, scratch_operands = 0 : i64, tpu.core_type = #tpu.core_type<tc>, window_params = [{transform_indices = @transform_0, window_bounds = array<i64: 16, 512>}, {pipeline_mode = #tpu.pipeline_mode<synchronous>, transform_indices = @transform_1, window_bounds = array<i64: 512, 128>}, {pipeline_mode = #tpu.pipeline_mode<synchronous>, transform_indices = @transform_2, window_bounds = array<i64: 128, 512>}, {transform_indices = @transform_3, window_bounds = array<i64: 16, 512>}]} {
    %c0 = arith.constant 0 : index
    %c0_0 = arith.constant 0 : index
    %0 = vector.load %arg1[%c0, %c0_0] : memref<16x512xf32, #tpu.memory_space<vmem>>, vector<16x512xf32>
    %1 = math.log %0 : vector<16x512xf32>
    %c0_1 = arith.constant 0 : index
    %c0_2 = arith.constant 0 : index
    %2 = vector.load %arg2[%c0_1, %c0_2] : memref<512x128xf32, #tpu.memory_space<vmem>>, vector<512x128xf32>
    %c0_3 = arith.constant 0 : index
    %c0_4 = arith.constant 0 : index
    %3 = vector.load %arg3[%c0_3, %c0_4] : memref<128x512xf32, #tpu.memory_space<vmem>>, vector<128x512xf32>
    %cst = arith.constant dense<0.000000e+00> : vector<16x128xf32>
    %4 = tpu.matmul %1, %2, %cst {dimension_numbers = #tpu.dot_dimension_numbers<[1], [0], [0], [1], [0, 0, 1, 1], [], []>, precision = #tpu.contract_precision<fp32>} : vector<16x512xf32>, vector<512x128xf32>, vector<16x128xf32> -> vector<16x128xf32>
    %cst_5 = arith.constant 7.812500e-03 : f32
    %5 = vector.broadcast %cst_5 : f32 to vector<16x128xf32>
    %6 = arith.mulf %4, %5 : vector<16x128xf32>
    %cst_6 = arith.constant dense<0.000000e+00> : vector<16x512xf32>
    %7 = tpu.matmul %6, %3, %cst_6 {dimension_numbers = #tpu.dot_dimension_numbers<[1], [0], [0], [1], [0, 0, 1, 1], [], []>, precision = #tpu.contract_precision<fp32>} : vector<16x128xf32>, vector<128x512xf32>, vector<16x512xf32> -> vector<16x512xf32>
    %8 = arith.subf %1, %7 : vector<16x512xf32>
    %9 = arith.mulf %8, %8 : vector<16x512xf32>
    %cst_7 = arith.constant dense<0.000000e+00> : vector<16x128xf32>
    %10 = tpu.matmul %9, %2, %cst_7 {dimension_numbers = #tpu.dot_dimension_numbers<[1], [0], [0], [1], [0, 0, 1, 1], [], []>, precision = #tpu.contract_precision<fp32>} : vector<16x512xf32>, vector<512x128xf32>, vector<16x128xf32> -> vector<16x128xf32>
    %cst_8 = arith.constant 0.00787401571 : f32
    %11 = vector.broadcast %cst_8 : f32 to vector<16x128xf32>
    %12 = arith.mulf %10, %11 : vector<16x128xf32>
    %cst_9 = arith.constant 1.000000e-16 : f32
    %13 = vector.broadcast %cst_9 : f32 to vector<16x128xf32>
    %14 = arith.cmpf oge, %12, %13 : vector<16x128xf32>
    %15 = math.rsqrt %12 : vector<16x128xf32>
    %cst_10 = arith.constant 1.000000e+00 : f32
    %16 = vector.broadcast %cst_10 : f32 to vector<16x128xf32>
    %17 = arith.select %14, %15, %16 : vector<16x128xi1>, vector<16x128xf32>
    %cst_11 = arith.constant dense<0.000000e+00> : vector<16x512xf32>
    %18 = tpu.matmul %17, %3, %cst_11 {dimension_numbers = #tpu.dot_dimension_numbers<[1], [0], [0], [1], [0, 0, 1, 1], [], []>, precision = #tpu.contract_precision<fp32>} : vector<16x128xf32>, vector<128x512xf32>, vector<16x512xf32> -> vector<16x512xf32>
    %19 = arith.subf %1, %7 : vector<16x512xf32>
    %20 = arith.mulf %19, %18 : vector<16x512xf32>
    %c0_12 = arith.constant 0 : index
    %c0_13 = arith.constant 0 : index
    %21 = vector.load %arg4[%c0_12, %c0_13] : memref<16x512xf32, #tpu.memory_space<vmem>>, vector<16x512xf32>
    tpu.vector_store %arg4[%c0_12, %c0_13], %20 {strides = array<i32>} : memref<16x512xf32, #tpu.memory_space<vmem>>, vector<16x512xf32>,
    return
  }
  func.func @transform_0(%arg0: i32) -> (i32, i32) {
    %c0_i32 = arith.constant 0 : i32
    %c0_i32_0 = arith.constant 0 : i32
    return %arg0, %c0_i32 : i32, i32
  }
  func.func @transform_1(%arg0: i32) -> (i32, i32) {
    %c0_i32 = arith.constant 0 : i32
    %c0_i32_0 = arith.constant 0 : i32
    %c0_i32_1 = arith.constant 0 : i32
    return %c0_i32, %c0_i32_0 : i32, i32
  }
  func.func @transform_2(%arg0: i32) -> (i32, i32) {
    %c0_i32 = arith.constant 0 : i32
    %c0_i32_0 = arith.constant 0 : i32
    %c0_i32_1 = arith.constant 0 : i32
    return %c0_i32, %c0_i32_0 : i32, i32
  }
  func.func @transform_3(%arg0: i32) -> (i32, i32) {
    %c0_i32 = arith.constant 0 : i32
    %c0_i32_0 = arith.constant 0 : i32
    return %arg0, %c0_i32 : i32, i32
  }
}

</mosaic_0001>

<llo_original>
// kernel: chained_log_standardize.1
$region0: #{chained_log_standardize.1}
  #allocation0 [shape = 'u32[]', space=smem, size = 0x4, offset = 0x4, fixed_abs, tag = 'smem constant byte address 0x4 - core index']
  #allocation1 [shape = 'u32[144,128]{1,0:T(1,128)}', space=vmem, size = 0x12000, scoped, tag = 'internal scratch']
  %s0 = inlined_call_operand.vmem [shape: f32[64,512], index: 0, kind: input, shape index: {}]
  %s1 = inlined_call_operand.vmem [shape: f32[512,128], index: 1, kind: input, shape index: {}]
  %s2 = inlined_call_operand.vmem [shape: f32[128,512], index: 2, kind: input, shape index: {}]
  %s3 = inlined_call_operand.vmem [shape: f32[64,512], index: 3, kind: output, shape index: {}]
  %s4 = sld [smem:[#allocation0]]
  $region45: #{chained_log_standardize.1} parent=0
    _
  %s6 = ssub.s32 1, %s4
  %s7 = scalar_select 0, %s6, %s4
  loop: start=0, step=1, limit=6
  $region2: #{chained_log_standardize.1} parent=0 // loop_pre_header
    _
  $region3: #{chained_log_standardize.1} parent=0 // loop_header
    %s9 = sphi 0, %s13
    %p10 = scmp.ge.s32.totalorder %s9, 6
    %s19 = sphi 0, %s21
    %s22 = sphi 0, %s19
    %s23 = sphi 0, %s22
    %s39 = sphi 0, %s23
    %s43 = sphi 0, %s43
    %s45 = sphi 0, %s43
    %s46 = sphi 0, %s45
    %s60 = sphi 0, %s46
    %s64 = sphi 0, %s64
    %s66 = sphi 0, %s64
    %s67 = sphi 0, %s66
    %s81 = sphi 0, %s67
    %s87 = sphi 0, %s89
    %s90 = sphi 0, %s87
    %s91 = sphi 0, %s90
    %s107 = sphi 0, %s91
  $region4: #{chained_log_standardize.1} parent=0 // loop_header_branch
    %12 = sbr.rel (%p10) target = $region8
  $region5: #{chained_log_standardize.1} parent=0 // loop_body
    %s14 = ssub.s32 %s9, 1
    %s15 = ssub.s32 %s9, 2
    %s16 = sadd.s32 %s9, 1
    %s17 = ssub.s32 %s9, %s16
    %p18 = scmp.eq.s32.totalorder %s17, 0
    %s20 = sadd.s32 %s19, 1
    %s21 = scalar_select %p18, %s19, %s20
    %p24 = pneg %p18
    %p25 = scmp.eq.s32.totalorder %s9, 3
    %p26 = por %p24, %p25
    %p27 = scmp.ne.s32.totalorder %s19, %s22
    %p28 = scmp.eq.s32.totalorder %s9, 0
    %p29 = por %p27, %p28
    %p30 = scmp.ne.s32.totalorder %s19, %s22
    %p31 = scmp.eq.s32.totalorder %s14, 3
    %p32 = por %p30, %p31
    %p33 = scmp.ne.s32.totalorder %s22, %s23
    %p34 = scmp.eq.s32.totalorder %s14, 0
    %p35 = por %p33, %p34
    %p36 = scmp.ne.s32.totalorder %s22, %s23
    %p37 = scmp.eq.s32.totalorder %s15, 3
    %p38 = por %p36, %p37
    %p40 = scmp.ne.s32.totalorder %s23, %s39
    %p41 = scmp.eq.s32.totalorder %s15, 0
    %p42 = por %p40, %p41
    %s44 = sadd.s32 %s43, 1
    %p47 = scmp.eq.s32.totalorder %s9, 3
    %p48 = scmp.ne.s32.totalorder %s43, %s45
    %p49 = scmp.eq.s32.totalorder %s9, 0
    %p50 = por %p48, %p49
    %p51 = scmp.ne.s32.totalorder %s43, %s45
    %p52 = scmp.eq.s32.totalorder %s14, 3
    %p53 = por %p51, %p52
    %p54 = scmp.ne.s32.totalorder %s45, %s46
    %p55 = scmp.eq.s32.totalorder %s14, 0
    %p56 = por %p54, %p55
    %p57 = scmp.ne.s32.totalorder %s45, %s46
    %p58 = scmp.eq.s32.totalorder %s15, 3
    %p59 = por %p57, %p58
    %p61 = scmp.ne.s32.totalorder %s46, %s60
    %p62 = scmp.eq.s32.totalorder %s15, 0
    %p63 = por %p61, %p62
    %s65 = sadd.s32 %s64, 1
    %p68 = scmp.eq.s32.totalorder %s9, 3
    %p69 = scmp.ne.s32.totalorder %s64, %s66
    %p70 = scmp.eq.s32.totalorder %s9, 0
    %p71 = por %p69, %p70
    %p72 = scmp.ne.s32.totalorder %s64, %s66
    %p73 = scmp.eq.s32.totalorder %s14, 3
    %p74 = por %p72, %p73
    %p75 = scmp.ne.s32.totalorder %s66, %s67
    %p76 = scmp.eq.s32.totalorder %s14, 0
    %p77 = por %p75, %p76
    %p78 = scmp.ne.s32.totalorder %s66, %s67
    %p79 = scmp.eq.s32.totalorder %s15, 3
    %p80 = por %p78, %p79
    %p82 = scmp.ne.s32.totalorder %s67, %s81
    %p83 = scmp.eq.s32.totalorder %s15, 0
    %p84 = por %p82, %p83
    %s85 = ssub.s32 %s9, %s16
    %p86 = scmp.eq.s32.totalorder %s85, 0
    %s88 = sadd.s32 %s87, 1
    %s89 = scalar_select %p86, %s87, %s88
    %p92 = pneg %p86
    %p93 = scmp.eq.s32.totalorder %s9, 3
    %p94 = por %p92, %p93
    %p95 = scmp.ne.s32.totalorder %s87, %s90
    %p96 = scmp.eq.s32.totalorder %s9, 0
    %p97 = por %p95, %p96
    %p98 = scmp.ne.s32.totalorder %s87, %s90
    %p99 = scmp.eq.s32.totalorder %s14, 3
    %p100 = por %p98, %p99
    %p101 = scmp.ne.s32.totalorder %s90, %s91
    %p102 = scmp.eq.s32.totalorder %s14, 0
    %p103 = por %p101, %p102
    %p104 = scmp.ne.s32.totalorder %s90, %s91
    %p105 = scmp.eq.s32.totalorder %s15, 3
    %p106 = por %p104, %p105
    %p108 = scmp.ne.s32.totalorder %s91, %s107
    %p109 = scmp.eq.s32.totalorder %s15, 0
    %p110 = por %p108, %p109
    %p111 = scmp.le.s32.totalorder 1, %s9
    %p112 = scmp.lt.s32.totalorder %s9, 5
    %p113 = pnand %p111, %p112
    %p114 = pneg %p113
    // Predicated region
    $region9: #{chained_log_standardize.1} parent=5 // pred_check
      _
    $region10: #{chained_log_standardize.1} parent=5 // pred_check_branch
      %116 = sbr.rel (%p113) target = $region12
    $region11: #{chained_log_standardize.1} parent=5 // pred_region
      %s117 = ssub.s32 %s9, 1
      // Predicated region
      $region13: #{chained_log_standardize.1} parent=11 // pred_check
        %p118 = pneg %p56
      $region14: #{chained_log_standardize.1} parent=11 // pred_check_branch
        %120 = sbr.rel (%p118) target = $region16
      $region15: #{chained_log_standardize.1} parent=11 // pred_region
        _
      $region16: #{chained_log_standardize.1} parent=11 // pred_fallthru
        _
      // Predicated region
      $region17: #{chained_log_standardize.1} parent=11 // pred_check
        %p121 = pneg %p77
      $region18: #{chained_log_standardize.1} parent=11 // pred_check_branch
        %123 = sbr.rel (%p121) target = $region20
      $region19: #{chained_log_standardize.1} parent=11 // pred_region
        _
      $region20: #{chained_log_standardize.1} parent=11 // pred_fallthru
        _
    $region12: #{chained_log_standardize.1} parent=5 // pred_fallthru
      _
    %p124 = scmp.lt.s32.totalorder %s9, 4
    // Predicated region
    $region21: #{chained_log_standardize.1} parent=5 // pred_check
      %p125 = pneg %p124
    $region22: #{chained_log_standardize.1} parent=5 // pred_check_branch
      %127 = sbr.rel (%p125) target = $region24
    $region23: #{chained_log_standardize.1} parent=5 // pred_region
      // Predicated region
      $region25: #{chained_log_standardize.1} parent=23 // pred_check
        %p128 = pneg %p29
      $region26: #{chained_log_standardize.1} parent=23 // pred_check_branch
        %130 = sbr.rel (%p128) target = $region28
      $region27: #{chained_log_standardize.1} parent=23 // pred_region
        %s131 = smul.u32 2, %s9
        %p132 = scmp.lt.s32.totalorder %s131, 7
        %s133 = scalar_select %p132, %s131, 7
        %s134 = smul.addr %s133, 4
        %s135 = smul.addr %s134, 8
        %s136 = scalar_lea.vmem %s0, %s135
        %s137 = smul.u32 2, %s9
      $region28: #{chained_log_standardize.1} parent=23 // pred_fallthru
        _
    $region24: #{chained_log_standardize.1} parent=5 // pred_fallthru
      _
    %p138 = scmp.le.s32.totalorder 1, %s9
    %p139 = scmp.lt.s32.totalorder %s9, 5
    %p140 = pnand %p138, %p139
    %p141 = pneg %p140
    // Predicated region
    $region29: #{chained_log_standardize.1} parent=5 // pred_check
      _
    $region30: #{chained_log_standardize.1} parent=5 // pred_check_branch
      %143 = sbr.rel (%p140) target = $region32
    $region31: #{chained_log_standardize.1} parent=5 // pred_region
      %s144 = ssub.s32 %s9, 1
      %s145 = smul.u32 2, %s14
      %p146 = scmp.lt.s32.totalorder %s145, 7
      %s147 = scalar_select %p146, %s145, 7
      %s148 = smul.addr %s147, 4
      %s149 = smul.addr %s148, 8
      %s150 = scalar_lea.vmem %s0, %s149
      %p151 = pneg %p35
      %p152 = pneg %p32
      %p153 = pneg %p56
      %p154 = pneg %p53
      %p155 = pneg %p77
      %p156 = pneg %p74
      %p157 = pneg %p103
      %p158 = pneg %p100
      %s159 = smul.u32 2, %s14
      %p160 = scmp.lt.s32.totalorder %s159, 7
      %s161 = scalar_select %p160, %s159, 7
      %s162 = smul.addr %s161, 4
      %s163 = smul.addr %s162, 8
      %s164 = scalar_lea.vmem %s3, %s163
      %s165 = smul.u32 2, %s14
      %p166 = scmp.lt.s32.totalorder %s165, 7
      %s167 = scalar_select %p166, %s165, 7
      %s168 = smul.addr %s167, 4
      %s169 = smul.addr %s168, 8
      %s170 = scalar_lea.vmem %s0, %s169
      %s171 = smul.u32 2, %s14
      %s172 = smul.u32 2, %s14
      %p173 = scmp.lt.s32.totalorder %s172, 7
      %s174 = scalar_select %p173, %s172, 7
      %s175 = smul.addr %s174, 4
      %s176 = smul.addr %s175, 8
      %s177 = scalar_lea.vmem %s3, %s176
      %s178 = smul.u32 2, %s14
      %v179 = vld [vmem:[%s170] sm:$0xff]
      %v180 = vld [vmem:[%s170 + $0x8] sm:$0xff]
      %v181 = vld [vmem:[%s170 + $0x10] sm:$0xff]
      %v182 = vld [vmem:[%s170 + $0x18] sm:$0xff]
      %v183 = vld [vmem:[%s170 + $0x20] sm:$0xff]
      %v184 = vld [vmem:[%s170 + $0x28] sm:$0xff]
      %v185 = vld [vmem:[%s170 + $0x30] sm:$0xff]
      %v186 = vld [vmem:[%s170 + $0x38] sm:$0xff]
      %v187 = vlog2.pop %v179
      %v188 = vmul.f32 %v187, 0.6931472
      %v189 = vlog2.pop %v180
      %v190 = vmul.f32 %v189, 0.6931472
      %v191 = vlog2.pop %v181
      %v192 = vmul.f32 %v191, 0.6931472
      %v193 = vlog2.pop %v182
      %v194 = vmul.f32 %v193, 0.6931472
      %v195 = vlog2.pop %v183
      %v196 = vmul.f32 %v195, 0.6931472
      %v197 = vlog2.pop %v184
      %v198 = vmul.f32 %v197, 0.6931472
      %v199 = vlog2.pop %v185
      %v200 = vmul.f32 %v199, 0.6931472
      %v201 = vlog2.pop %v186
      %v202 = vmul.f32 %v201, 0.6931472
      %v203 = vld [vmem:[%s1] sm:$0xff]
      %v204 = vld [vmem:[%s1 + $0x8] sm:$0xff]
      %v205 = vld [vmem:[%s1 + $0x10] sm:$0xff]
      %v206 = vld [vmem:[%s1 + $0x18] sm:$0xff]
      %v207 = vld [vmem:[%s1 + $0x20] sm:$0xff]
      %v208 = vld [vmem:[%s1 + $0x28] sm:$0xff]
      %v209 = vld [vmem:[%s1 + $0x30] sm:$0xff]
      %v210 = vld [vmem:[%s1 + $0x38] sm:$0xff]
      %v211 = vld [vmem:[%s1 + $0x40] sm:$0xff]
      %v212 = vld [vmem:[%s1 + $0x48] sm:$0xff]
      %v213 = vld [vmem:[%s1 + $0x50] sm:$0xff]
      %v214 = vld [vmem:[%s1 + $0x58] sm:$0xff]
      %v215 = vld [vmem:[%s1 + $0x60] sm:$0xff]
      %v216 = vld [vmem:[%s1 + $0x68] sm:$0xff]
      %v217 = vld [vmem:[%s1 + $0x70] sm:$0xff]
      %v218 = vld [vmem:[%s1 + $0x78] sm:$0xff]
      %v219 = vld [vmem:[%s1 + $0x80] sm:$0xff]
      %v220 = vld [vmem:[%s1 + $0x88] sm:$0xff]
      %v221 = vld [vmem:[%s1 + $0x90] sm:$0xff]
      %v222 = vld [vmem:[%s1 + $0x98] sm:$0xff]
      %v223 = vld [vmem:[%s1 + $0xa0] sm:$0xff]
      %v224 = vld [vmem:[%s1 + $0xa8] sm:$0xff]
      %v225 = vld [vmem:[%s1 + $0xb0] sm:$0xff]
      %v226 = vld [vmem:[%s1 + $0xb8] sm:$0xff]
      %v227 = vld [vmem:[%s1 + $0xc0] sm:$0xff]
      %v228 = vld [vmem:[%s1 + $0xc8] sm:$0xff]
      %v229 = vld [vmem:[%s1 + $0xd0] sm:$0xff]
      %v230 = vld [vmem:[%s1 + $0xd8] sm:$0xff]
      %v231 = vld [vmem:[%s1 + $0xe0] sm:$0xff]
      %v232 = vld [vmem:[%s1 + $0xe8] sm:$0xff]
      %v233 = vld [vmem:[%s1 + $0xf0] sm:$0xff]
      %v234 = vld [vmem:[%s1 + $0xf8] sm:$0xff]
      %v235 = vld [vmem:[%s1 + $0x100] sm:$0xff]
      %v236 = vld [vmem:[%s1 + $0x108] sm:$0xff]
      %v237 = vld [vmem:[%s1 + $0x110] sm:$0xff]
      %v238 = vld [vmem:[%s1 + $0x118] sm:$0xff]
      %v239 = vld [vmem:[%s1 + $0x120] sm:$0xff]
      %v240 = vld [vmem:[%s1 + $0x128] sm:$0xff]
      %v241 = vld [vmem:[%s1 + $0x130] sm:$0xff]
      %v242 = vld [vmem:[%s1 + $0x138] sm:$0xff]
      %v243 = vld [vmem:[%s1 + $0x140] sm:$0xff]
      %v244 = vld [vmem:[%s1 + $0x148] sm:$0xff]
      %v245 = vld [vmem:[%s1 + $0x150] sm:$0xff]
      %v246 = vld [vmem:[%s1 + $0x158] sm:$0xff]
      %v247 = vld [vmem:[%s1 + $0x160] sm:$0xff]
      %v248 = vld [vmem:[%s1 + $0x168] sm:$0xff]
      %v249 = vld [vmem:[%s1 + $0x170] sm:$0xff]
      %v250 = vld [vmem:[%s1 + $0x178] sm:$0xff]
      %v251 = vld [vmem:[%s1 + $0x180] sm:$0xff]
      %v252 = vld [vmem:[%s1 + $0x188] sm:$0xff]
      %v253 = vld [vmem:[%s1 + $0x190] sm:$0xff]
      %v254 = vld [vmem:[%s1 + $0x198] sm:$0xff]
      %v255 = vld [vmem:[%s1 + $0x1a0] sm:$0xff]
      %v256 = vld [vmem:[%s1 + $0x1a8] sm:$0xff]
      %v257 = vld [vmem:[%s1 + $0x1b0] sm:$0xff]
      %v258 = vld [vmem:[%s1 + $0x1b8] sm:$0xff]
      %v259 = vld [vmem:[%s1 + $0x1c0] sm:$0xff]
      %v260 = vld [vmem:[%s1 + $0x1c8] sm:$0xff]
      %v261 = vld [vmem:[%s1 + $0x1d0] sm:$0xff]
      %v262 = vld [vmem:[%s1 + $0x1d8] sm:$0xff]
      %v263 = vld [vmem:[%s1 + $0x1e0] sm:$0xff]
      %v264 = vld [vmem:[%s1 + $0x1e8] sm:$0xff]
      %v265 = vld [vmem:[%s1 + $0x1f0] sm:$0xff]
      %v266 = vld [vmem:[%s1 + $0x1f8] sm:$0xff]
      %v267 = vld [vmem:[%s2] sm:$0xff]
      %v268 = vld [vmem:[%s2 + $0x8] sm:$0xff]
      %v269 = vld [vmem:[%s2 + $0x10] sm:$0xff]
      %v270 = vld [vmem:[%s2 + $0x18] sm:$0xff]
      %v271 = vld [vmem:[%s2 + $0x20] sm:$0xff]
      %v272 = vld [vmem:[%s2 + $0x28] sm:$0xff]
      %v273 = vld [vmem:[%s2 + $0x30] sm:$0xff]
      %v274 = vld [vmem:[%s2 + $0x38] sm:$0xff]
      %v275 = vld [vmem:[%s2 + $0x40] sm:$0xff]
      %v276 = vld [vmem:[%s2 + $0x48] sm:$0xff]
      %v277 = vld [vmem:[%s2 + $0x50] sm:$0xff]
      %v278 = vld [vmem:[%s2 + $0x58] sm:$0xff]
      %v279 = vld [vmem:[%s2 + $0x60] sm:$0xff]
      %v280 = vld [vmem:[%s2 + $0x68] sm:$0xff]
      %v281 = vld [vmem:[%s2 + $0x70] sm:$0xff]
      %v282 = vld [vmem:[%s2 + $0x78] sm:$0xff]
      %v283 = vld [vmem:[%s2 + $0x80] sm:$0xff]
      %v284 = vld [vmem:[%s2 + $0x88] sm:$0xff]
      %v285 = vld [vmem:[%s2 + $0x90] sm:$0xff]
      %v286 = vld [vmem:[%s2 + $0x98] sm:$0xff]
      %v287 = vld [vmem:[%s2 + $0xa0] sm:$0xff]
      %v288 = vld [vmem:[%s2 + $0xa8] sm:$0xff]
      %v289 = vld [vmem:[%s2 + $0xb0] sm:$0xff]
      %v290 = vld [vmem:[%s2 + $0xb8] sm:$0xff]
      %v291 = vld [vmem:[%s2 + $0xc0] sm:$0xff]
      %v292 = vld [vmem:[%s2 + $0xc8] sm:$0xff]
      %v293 = vld [vmem:[%s2 + $0xd0] sm:$0xff]
      %v294 = vld [vmem:[%s2 + $0xd8] sm:$0xff]
      %v295 = vld [vmem:[%s2 + $0xe0] sm:$0xff]
      %v296 = vld [vmem:[%s2 + $0xe8] sm:$0xff]
      %v297 = vld [vmem:[%s2 + $0xf0] sm:$0xff]
      %v298 = vld [vmem:[%s2 + $0xf8] sm:$0xff]
      %v299 = vld [vmem:[%s2 + $0x100] sm:$0xff]
      %v300 = vld [vmem:[%s2 + $0x108] sm:$0xff]
      %v301 = vld [vmem:[%s2 + $0x110] sm:$0xff]
      %v302 = vld [vmem:[%s2 + $0x118] sm:$0xff]
      %v303 = vld [vmem:[%s2 + $0x120] sm:$0xff]
      %v304 = vld [vmem:[%s2 + $0x128] sm:$0xff]
      %v305 = vld [vmem:[%s2 + $0x130] sm:$0xff]
      %v306 = vld [vmem:[%s2 + $0x138] sm:$0xff]
      %v307 = vld [vmem:[%s2 + $0x140] sm:$0xff]
      %v308 = vld [vmem:[%s2 + $0x148] sm:$0xff]
      %v309 = vld [vmem:[%s2 + $0x150] sm:$0xff]
      %v310 = vld [vmem:[%s2 + $0x158] sm:$0xff]
      %v311 = vld [vmem:[%s2 + $0x160] sm:$0xff]
      %v312 = vld [vmem:[%s2 + $0x168] sm:$0xff]
      %v313 = vld [vmem:[%s2 + $0x170] sm:$0xff]
      %v314 = vld [vmem:[%s2 + $0x178] sm:$0xff]
      %v315 = vld [vmem:[%s2 + $0x180] sm:$0xff]
      %v316 = vld [vmem:[%s2 + $0x188] sm:$0xff]
      %v317 = vld [vmem:[%s2 + $0x190] sm:$0xff]
      %v318 = vld [vmem:[%s2 + $0x198] sm:$0xff]
      %v319 = vld [vmem:[%s2 + $0x1a0] sm:$0xff]
      %v320 = vld [vmem:[%s2 + $0x1a8] sm:$0xff]
      %v321 = vld [vmem:[%s2 + $0x1b0] sm:$0xff]
      %v322 = vld [vmem:[%s2 + $0x1b8] sm:$0xff]
      %v323 = vld [vmem:[%s2 + $0x1c0] sm:$0xff]
      %v324 = vld [vmem:[%s2 + $0x1c8] sm:$0xff]
      %v325 = vld [vmem:[%s2 + $0x1d0] sm:$0xff]
      %v326 = vld [vmem:[%s2 + $0x1d8] sm:$0xff]
      %v327 = vld [vmem:[%s2 + $0x1e0] sm:$0xff]
      %v328 = vld [vmem:[%s2 + $0x1e8] sm:$0xff]
      %v329 = vld [vmem:[%s2 + $0x1f0] sm:$0xff]
      %v330 = vld [vmem:[%s2 + $0x1f8] sm:$0xff]
      %331 = vmatprep.subr.mxu0 0.0
      %v332 = vand.u32 %v203, 4294901760
      %333 = vmatpush1.msra.mxu0 %v332
      %334 = vmatprep.subr.mxu0 0.0
      %v335 = vand.u32 %v204, 4294901760
      %336 = vmatpush1.msra.mxu0 %v335
      %337 = vmatprep.subr.mxu0 0.0
      %v338 = vand.u32 %v205, 4294901760
      %339 = vmatpush1.msra.mxu0 %v338
      %340 = vmatprep.subr.mxu0 0.0
      %v341 = vand.u32 %v206, 4294901760
      %342 = vmatpush1.msra.mxu0 %v341
      %343 = vmatprep.subr.mxu0 0.0
      %v344 = vand.u32 %v207, 4294901760
      %345 = vmatpush1.msra.mxu0 %v344
      %346 = vmatprep.subr.mxu0 0.0
      %v347 = vand.u32 %v208, 4294901760
      %348 = vmatpush1.msra.mxu0 %v347
      %349 = vmatprep.subr.mxu0 0.0
      %v350 = vand.u32 %v209, 4294901760
      %351 = vmatpush1.msra.mxu0 %v350
      %352 = vmatprep.subr.mxu0 0.0
      %v353 = vand.u32 %v210, 4294901760
      %354 = vmatpush1.msra.mxu0 %v353
      %355 = vmatprep.subr.mxu0 0.0
      %v356 = vand.u32 %v211, 4294901760
      %357 = vmatpush1.msra.mxu0 %v356
      %358 = vmatprep.subr.mxu0 0.0
      %v359 = vand.u32 %v212, 4294901760
      %360 = vmatpush1.msra.mxu0 %v359
      %361 = vmatprep.subr.mxu0 0.0
      %v362 = vand.u32 %v213, 4294901760
      %363 = vmatpush1.msra.mxu0 %v362
      %364 = vmatprep.subr.mxu0 0.0
      %v365 = vand.u32 %v214, 4294901760
      %366 = vmatpush1.msra.mxu0 %v365
      %367 = vmatprep.subr.mxu0 0.0
      %v368 = vand.u32 %v215, 4294901760
      %369 = vmatpush1.msra.mxu0 %v368
      %370 = vmatprep.subr.mxu0 0.0
      %v371 = vand.u32 %v216, 4294901760
      %372 = vmatpush1.msra.mxu0 %v371
      %373 = vmatprep.subr.mxu0 0.0
      %v374 = vand.u32 %v217, 4294901760
      %375 = vmatpush1.msra.mxu0 %v374
      %376 = vmatprep.subr.mxu0 0.0
      %v377 = vand.u32 %v218, 4294901760
      %378 = vmatpush1.msra.mxu0 %v377
      %379 = vmatprep.subr.mxu0 0.0
      %v380 = vand.u32 %v219, 4294901760
      %381 = vmatpush1.msra.mxu0 %v380
      %382 = vmatprep.subr.mxu0 0.0
      %v383 = vand.u32 %v220, 4294901760
      %384 = vmatpush1.msra.mxu0 %v383
      %385 = vmatprep.subr.mxu0 0.0
      %v386 = vand.u32 %v221, 4294901760
      %387 = vmatpush1.msra.mxu0 %v386
      %388 = vmatprep.subr.mxu0 0.0
      %v389 = vand.u32 %v222, 4294901760
      %390 = vmatpush1.msra.mxu0 %v389
      %391 = vmatprep.subr.mxu0 0.0
      %v392 = vand.u32 %v223, 4294901760
      %393 = vmatpush1.msra.mxu0 %v392
      %394 = vmatprep.subr.mxu0 0.0
      %v395 = vand.u32 %v224, 4294901760
      %396 = vmatpush1.msra.mxu0 %v395
      %397 = vmatprep.subr.mxu0 0.0
      %v398 = vand.u32 %v225, 4294901760
      %399 = vmatpush1.msra.mxu0 %v398
      %400 = vmatprep.subr.mxu0 0.0
      %v401 = vand.u32 %v226, 4294901760
      %402 = vmatpush1.msra.mxu0 %v401
      %403 = vmatprep.subr.mxu0 0.0
      %v404 = vand.u32 %v227, 4294901760
      %405 = vmatpush1.msra.mxu0 %v404
      %406 = vmatprep.subr.mxu0 0.0
      %v407 = vand.u32 %v228, 4294901760
      %408 = vmatpush1.msra.mxu0 %v407
      %409 = vmatprep.subr.mxu0 0.0
      %v410 = vand.u32 %v229, 4294901760
      %411 = vmatpush1.msra.mxu0 %v410
      %412 = vmatprep.subr.mxu0 0.0
      %v413 = vand.u32 %v230, 4294901760
      %414 = vmatpush1.msra.mxu0 %v413
      %415 = vmatprep.subr.mxu0 0.0
      %v416 = vand.u32 %v231, 4294901760
      %417 = vmatpush1.msra.mxu0 %v416
      %418 = vmatprep.subr.mxu0 0.0
      %v419 = vand.u32 %v232, 4294901760
      %420 = vmatpush1.msra.mxu0 %v419
      %421 = vmatprep.subr.mxu0 0.0
      %v422 = vand.u32 %v233, 4294901760
      %423 = vmatpush1.msra.mxu0 %v422
      %424 = vmatprep.subr.mxu0 0.0
      %v425 = vand.u32 %v234, 4294901760
      %426 = vmatpush1.msra.mxu0 %v425
      %v427 = vand.u32 %v190, 4294901760
      %v428 = vsub.f32 %v190, %v427
      %v429 = vand.u32 %v428, 4294901760
      %v430 = vsub.f32 %v428, %v429
      %v431 = vand.u32 %v430, 4294901760
      %432 = vmatprep.mubr.f32.mxu0 %v431
      %v433 = vand.u32 %v188, 4294901760
      %v434 = vsub.f32 %v188, %v433
      %v435 = vand.u32 %v434, 4294901760
      %v436 = vsub.f32 %v434, %v435
      %v437 = vand.u32 %v436, 4294901760
      %438 = vmatmul.mubr.f32.gmra.mrb[0].mxu0 %v437
      %v439 = vpop.f32.mrb[0].mxu0
      %v440 = vadd.f32 0.0, %v439
      %v441 = vpop.f32.mrb[0].mxu0
      %v442 = vand.u32 %v198, 4294901760
      %v443 = vsub.f32 %v198, %v442
      %v444 = vand.u32 %v443, 4294901760
      %v445 = vsub.f32 %v443, %v444
      %v446 = vand.u32 %v445, 4294901760
      %447 = vmatprep.mubr.f32.mxu0 %v446
      %v448 = vand.u32 %v196, 4294901760
      %v449 = vsub.f32 %v196, %v448
      %v450 = vand.u32 %v449, 4294901760
      %v451 = vsub.f32 %v449, %v450
      %v452 = vand.u32 %v451, 4294901760
      %453 = vmatmul.mubr.f32.gmra.mrb[0].mxu0 %v452
      %v454 = vpop.f32.mrb[0].mxu0
      %v455 = vadd.f32 0.0, %v454
      %v456 = vpop.f32.mrb[0].mxu0
      %457 = vdwg.mxu0
      %458 = vmatprep.subr.mxu0 0.0
      %v459 = vand.u32 %v203, 4294901760
      %v460 = vsub.f32 %v203, %v459
      %v461 = vand.u32 %v460, 4294901760
      %v462 = vsub.f32 %v460, %v461
      %v463 = vand.u32 %v462, 4294901760
      %464 = vmatpush1.msra.mxu0 %v463
      %465 = vmatprep.subr.mxu0 0.0
      %v466 = vand.u32 %v204, 4294901760
      %v467 = vsub.f32 %v204, %v466
      %v468 = vand.u32 %v467, 4294901760
      %v469 = vsub.f32 %v467, %v468
      %v470 = vand.u32 %v469, 4294901760
      %471 = vmatpush1.msra.mxu0 %v470
      %472 = vmatprep.subr.mxu0 0.0
      %v473 = vand.u32 %v205, 4294901760
      %v474 = vsub.f32 %v205, %v473
      %v475 = vand.u32 %v474, 4294901760
      %v476 = vsub.f32 %v474, %v475
      %v477 = vand.u32 %v476, 4294901760
      %478 = vmatpush1.msra.mxu0 %v477
      %479 = vmatprep.subr.mxu0 0.0
      %v480 = vand.u32 %v206, 4294901760
      %v481 = vsub.f32 %v206, %v480
      %v482 = vand.u32 %v481, 4294901760
      %v483 = vsub.f32 %v481, %v482
      %v484 = vand.u32 %v483, 4294901760
      %485 = vmatpush1.msra.mxu0 %v484
      %486 = vmatprep.subr.mxu0 0.0
      %v487 = vand.u32 %v207, 4294901760
      %v488 = vsub.f32 %v207, %v487
      %v489 = vand.u32 %v488, 4294901760
      %v490 = vsub.f32 %v488, %v489
      %v491 = vand.u32 %v490, 4294901760
      %492 = vmatpush1.msra.mxu0 %v491
      %493 = vmatprep.subr.mxu0 0.0
      %v494 = vand.u32 %v208, 4294901760
      %v495 = vsub.f32 %v208, %v494
      %v496 = vand.u32 %v495, 4294901760
      %v497 = vsub.f32 %v495, %v496
      %v498 = vand.u32 %v497, 4294901760
      %499 = vmatpush1.msra.mxu0 %v498
      %500 = vmatprep.subr.mxu0 0.0
      %v501 = vand.u32 %v209, 4294901760
      %v502 = vsub.f32 %v209, %v501
      %v503 = vand.u32 %v502, 4294901760
      %v504 = vsub.f32 %v502, %v503
      %v505 = vand.u32 %v504, 4294901760
      %506 = vmatpush1.msra.mxu0 %v505
      %507 = vmatprep.subr.mxu0 0.0
      %v508 = vand.u32 %v210, 4294901760
      %v509 = vsub.f32 %v210, %v508
      %v510 = vand.u32 %v509, 4294901760
      %v511 = vsub.f32 %v509, %v510
      %v512 = vand.u32 %v511, 4294901760
      %513 = vmatpush1.msra.mxu0 %v512
      %514 = vmatprep.subr.mxu0 0.0
      %v515 = vand.u32 %v211, 4294901760
      %v516 = vsub.f32 %v211, %v515
      %v517 = vand.u32 %v516, 4294901760
      %v518 = vsub.f32 %v516, %v517
      %v519 = vand.u32 %v518, 4294901760
      %520 = vmatpush1.msra.mxu0 %v519
      %521 = vmatprep.subr.mxu0 0.0
      %v522 = vand.u32 %v212, 4294901760
      %v523 = vsub.f32 %v212, %v522
      %v524 = vand.u32 %v523, 4294901760
      %v525 = vsub.f32 %v523, %v524
      %v526 = vand.u32 %v525, 4294901760
      %527 = vmatpush1.msra.mxu0 %v526
      %528 = vmatprep.subr.mxu0 0.0
      %v529 = vand.u32 %v213, 4294901760
      %v530 = vsub.f32 %v213, %v529
      %v531 = vand.u32 %v530, 4294901760
      %v532 = vsub.f32 %v530, %v531
      %v533 = vand.u32 %v532, 4294901760
      %534 = vmatpush1.msra.mxu0 %v533
      %535 = vmatprep.subr.mxu0 0.0
      %v536 = vand.u32 %v214, 4294901760
      %v537 = vsub.f32 %v214, %v536
      %v538 = vand.u32 %v537, 4294901760
      %v539 = vsub.f32 %v537, %v538
      %v540 = vand.u32 %v539, 4294901760
      %541 = vmatpush1.msra.mxu0 %v540
      %542 = vmatprep.subr.mxu0 0.0
      %v543 = vand.u32 %v215, 4294901760
      %v544 = vsub.f32 %v215, %v543
      %v545 = vand.u32 %v544, 4294901760
      %v546 = vsub.f32 %v544, %v545
      %v547 = vand.u32 %v546, 4294901760
      %548 = vmatpush1.msra.mxu0 %v547
      %549 = vmatprep.subr.mxu0 0.0
      %v550 = vand.u32 %v216, 4294901760
      %v551 = vsub.f32 %v216, %v550
      %v552 = vand.u32 %v551, 4294901760
      %v553 = vsub.f32 %v551, %v552
      %v554 = vand.u32 %v553, 4294901760
      %555 = vmatpush1.msra.mxu0 %v554
      %556 = vmatprep.subr.mxu0 0.0
      %v557 = vand.u32 %v217, 4294901760
      %v558 = vsub.f32 %v217, %v557
      %v559 = vand.u32 %v558, 4294901760
      %v560 = vsub.f32 %v558, %v559
      %v561 = vand.u32 %v560, 4294901760
      %562 = vmatpush1.msra.mxu0 %v561
      %563 = vmatprep.subr.mxu0 0.0
      %v564 = vand.u32 %v218, 4294901760
      %v565 = vsub.f32 %v218, %v564
      %v566 = vand.u32 %v565, 4294901760
      %v567 = vsub.f32 %v565, %v566
      %v568 = vand.u32 %v567, 4294901760
      %569 = vmatpush1.msra.mxu0 %v568
      %570 = vmatprep.subr.mxu0 0.0
      %v571 = vand.u32 %v219, 4294901760
      %v572 = vsub.f32 %v219, %v571
      %v573 = vand.u32 %v572, 4294901760
      %v574 = vsub.f32 %v572, %v573
      %v575 = vand.u32 %v574, 4294901760
      %576 = vmatpush1.msra.mxu0 %v575
      %577 = vmatprep.subr.mxu0 0.0
      %v578 = vand.u32 %v220, 4294901760
      %v579 = vsub.f32 %v220, %v578
      %v580 = vand.u32 %v579, 4294901760
      %v581 = vsub.f32 %v579, %v580
      %v582 = vand.u32 %v581, 4294901760
      %583 = vmatpush1.msra.mxu0 %v582
      %584 = vmatprep.subr.mxu0 0.0
      %v585 = vand.u32 %v221, 4294901760
      %v586 = vsub.f32 %v221, %v585
      %v587 = vand.u32 %v586, 4294901760
      %v588 = vsub.f32 %v586, %v587
      %v589 = vand.u32 %v588, 4294901760
      %590 = vmatpush1.msra.mxu0 %v589
      %591 = vmatprep.subr.mxu0 0.0
      %v592 = vand.u32 %v222, 4294901760
      %v593 = vsub.f32 %v222, %v592
      %v594 = vand.u32 %v593, 4294901760
      %v595 = vsub.f32 %v593, %v594
      %v596 = vand.u32 %v595, 4294901760
      %597 = vmatpush1.msra.mxu0 %v596
      %598 = vmatprep.subr.mxu0 0.0
      %v599 = vand.u32 %v223, 4294901760
      %v600 = vsub.f32 %v223, %v599
      %v601 = vand.u32 %v600, 4294901760
      %v602 = vsub.f32 %v600, %v601
      %v603 = vand.u32 %v602, 4294901760
      %604 = vmatpush1.msra.mxu0 %v603
      %605 = vmatprep.subr.mxu0 0.0
      %v606 = vand.u32 %v224, 4294901760
      %v607 = vsub.f32 %v224, %v606
      %v608 = vand.u32 %v607, 4294901760
      %v609 = vsub.f32 %v607, %v608
      %v610 = vand.u32 %v609, 4294901760
      %611 = vmatpush1.msra.mxu0 %v610
      %612 = vmatprep.subr.mxu0 0.0
      %v613 = vand.u32 %v225, 4294901760
      %v614 = vsub.f32 %v225, %v613
      %v615 = vand.u32 %v614, 4294901760
      %v616 = vsub.f32 %v614, %v615
      %v617 = vand.u32 %v616, 4294901760
      %618 = vmatpush1.msra.mxu0 %v617
      %619 = vmatprep.subr.mxu0 0.0
      %v620 = vand.u32 %v226, 4294901760
      %v621 = vsub.f32 %v226, %v620
      %v622 = vand.u32 %v621, 4294901760
      %v623 = vsub.f32 %v621, %v622
      %v624 = vand.u32 %v623, 4294901760
      %625 = vmatpush1.msra.mxu0 %v624
      %626 = vmatprep.subr.mxu0 0.0
      %v627 = vand.u32 %v227, 4294901760
      %v628 = vsub.f32 %v227, %v627
      %v629 = vand.u32 %v628, 4294901760
      %v630 = vsub.f32 %v628, %v629
      %v631 = vand.u32 %v630, 4294901760
      %632 = vmatpush1.msra.mxu0 %v631
      %633 = vmatprep.subr.mxu0 0.0
      %v634 = vand.u32 %v228, 4294901760
      %v635 = vsub.f32 %v228, %v634
      %v636 = vand.u32 %v635, 4294901760
      %v637 = vsub.f32 %v635, %v636
      %v638 = vand.u32 %v637, 4294901760
      %639 = vmatpush1.msra.mxu0 %v638
      %640 = vmatprep.subr.mxu0 0.0
      %v641 = vand.u32 %v229, 4294901760
      %v642 = vsub.f32 %v229, %v641
      %v643 = vand.u32 %v642, 4294901760
      %v644 = vsub.f32 %v642, %v643
      %v645 = vand.u32 %v644, 4294901760
      %646 = vmatpush1.msra.mxu0 %v645
      %647 = vmatprep.subr.mxu0 0.0
      %v648 = vand.u32 %v230, 4294901760
      %v649 = vsub.f32 %v230, %v648
      %v650 = vand.u32 %v649, 4294901760
      %v651 = vsub.f32 %v649, %v650
      %v652 = vand.u32 %v651, 4294901760
      %653 = vmatpush1.msra.mxu0 %v652
      %654 = vmatprep.subr.mxu0 0.0
      %v655 = vand.u32 %v231, 4294901760
      %v656 = vsub.f32 %v231, %v655
      %v657 = vand.u32 %v656, 4294901760
      %v658 = vsub.f32 %v656, %v657
      %v659 = vand.u32 %v658, 4294901760
      %660 = vmatpush1.msra.mxu0 %v659
      %661 = vmatprep.subr.mxu0 0.0
      %v662 = vand.u32 %v232, 4294901760
      %v663 = vsub.f32 %v232, %v662
      %v664 = vand.u32 %v663, 4294901760
      %v665 = vsub.f32 %v663, %v664
      %v666 = vand.u32 %v665, 4294901760
      %667 = vmatpush1.msra.mxu0 %v666
      %668 = vmatprep.subr.mxu0 0.0
      %v669 = vand.u32 %v233, 4294901760
      %v670 = vsub.f32 %v233, %v669
      %v671 = vand.u32 %v670, 4294901760
      %v672 = vsub.f32 %v670, %v671
      %v673 = vand.u32 %v672, 4294901760
      %674 = vmatpush1.msra.mxu0 %v673
      %675 = vmatprep.subr.mxu0 0.0
      %v676 = vand.u32 %v234, 4294901760
      %v677 = vsub.f32 %v234, %v676
      %v678 = vand.u32 %v677, 4294901760
      %v679 = vsub.f32 %v677, %v678
      %v680 = vand.u32 %v679, 4294901760
      %681 = vmatpush1.msra.mxu0 %v680
      %v682 = vand.u32 %v190, 4294901760
      %683 = vmatprep.mubr.f32.mxu0 %v682
      %v684 = vand.u32 %v188, 4294901760
      %685 = vmatmul.mubr.f32.gmra.mrb[0].mxu0 %v684
      %v686 = vpop.f32.mrb[0].mxu0
      %v687 = vadd.f32 %v440, %v686
      %v688 = vpop.f32.mrb[0].mxu0
      %v689 = vand.u32 %v198, 4294901760
      %690 = vmatprep.mubr.f32.mxu0 %v689
      %v691 = vand.u32 %v196, 4294901760
      %692 = vmatmul.mubr.f32.gmra.mrb[0].mxu0 %v691
      %v693 = vpop.f32.mrb[0].mxu0
      %v694 = vadd.f32 %v455, %v693
      %v695 = vpop.f32.mrb[0].mxu0
      %696 = vdwg.mxu0
      %697 = vmatprep.subr.mxu0 0.0
      %v698 = vand.u32 %v203, 4294901760
      %v699 = vsub.f32 %v203, %v698
      %700 = vmatpush1.msra.mxu0 %v699
      %701 = vmatprep.subr.mxu0 0.0
      %v702 = vand.u32 %v204, 4294901760
      %v703 = vsub.f32 %v204, %v702
      %704 = vmatpush1.msra.mxu0 %v703
      %705 = vmatprep.subr.mxu0 0.0
      %v706 = vand.u32 %v205, 4294901760
      %v707 = vsub.f32 %v205, %v706
      %708 = vmatpush1.msra.mxu0 %v707
      %709 = vmatprep.subr.mxu0 0.0
      %v710 = vand.u32 %v206, 4294901760
      %v711 = vsub.f32 %v206, %v710
      %712 = vmatpush1.msra.mxu0 %v711
      %713 = vmatprep.subr.mxu0 0.0
      %v714 = vand.u32 %v207, 4294901760
      %v715 = vsub.f32 %v207, %v714
      %716 = vmatpush1.msra.mxu0 %v715
      %717 = vmatprep.subr.mxu0 0.0
      %v718 = vand.u32 %v208, 4294901760
      %v719 = vsub.f32 %v208, %v718
      %720 = vmatpush1.msra.mxu0 %v719
      %721 = vmatprep.subr.mxu0 0.0
      %v722 = vand.u32 %v209, 4294901760
      %v723 = vsub.f32 %v209, %v722
      %724 = vmatpush1.msra.mxu0 %v723
      %725 = vmatprep.subr.mxu0 0.0
      %v726 = vand.u32 %v210, 4294901760
      %v727 = vsub.f32 %v210, %v726
      %728 = vmatpush1.msra.mxu0 %v727
      %729 = vmatprep.subr.mxu0 0.0
      %v730 = vand.u32 %v211, 4294901760
      %v731 = vsub.f32 %v211, %v730
      %732 = vmatpush1.msra.mxu0 %v731
      %733 = vmatprep.subr.mxu0 0.0
      %v734 = vand.u32 %v212, 4294901760
      %v735 = vsub.f32 %v212, %v734
      %736 = vmatpush1.msra.mxu0 %v735
      %737 = vmatprep.subr.mxu0 0.0
      %v738 = vand.u32 %v213, 4294901760
      %v739 = vsub.f32 %v213, %v738
      %740 = vmatpush1.msra.mxu0 %v739
      %741 = vmatprep.subr.mxu0 0.0
      %v742 = vand.u32 %v214, 4294901760
      %v743 = vsub.f32 %v214, %v742
      %744 = vmatpush1.msra.mxu0 %v743
      %745 = vmatprep.subr.mxu0 0.0
      %v746 = vand.u32 %v215, 4294901760
      %v747 = vsub.f32 %v215, %v746
      %748 = vmatpush1.msra.mxu0 %v747
      %749 = vmatprep.subr.mxu0 0.0
      %v750 = vand.u32 %v216, 4294901760
      %v751 = vsub.f32 %v216, %v750
      %752 = vmatpush1.msra.mxu0 %v751
      %753 = vmatprep.subr.mxu0 0.0
      %v754 = vand.u32 %v217, 4294901760
      %v755 = vsub.f32 %v217, %v754
      %756 = vmatpush1.msra.mxu0 %v755
      %757 = vmatprep.subr.mxu0 0.0
      %v758 = vand.u32 %v218, 4294901760
      %v759 = vsub.f32 %v218, %v758
      %760 = vmatpush1.msra.mxu0 %v759
      %761 = vmatprep.subr.mxu0 0.0
      %v762 = vand.u32 %v219, 4294901760
      %v763 = vsub.f32 %v219, %v762
      %764 = vmatpush1.msra.mxu0 %v763
      %765 = vmatprep.subr.mxu0 0.0
      %v766 = vand.u32 %v220, 4294901760
      %v767 = vsub.f32 %v220, %v766
      %768 = vmatpush1.msra.mxu0 %v767
      %769 = vmatprep.subr.mxu0 0.0
      %v770 = vand.u32 %v221, 4294901760
      %v771 = vsub.f32 %v221, %v770
      %772 = vmatpush1.msra.mxu0 %v771
      %773 = vmatprep.subr.mxu0 0.0
      %v774 = vand.u32 %v222, 4294901760
      %v775 = vsub.f32 %v222, %v774
      %776 = vmatpush1.msra.mxu0 %v775
      %777 = vmatprep.subr.mxu0 0.0
      %v778 = vand.u32 %v223, 4294901760
      %v779 = vsub.f32 %v223, %v778
      %780 = vmatpush1.msra.mxu0 %v779
      %781 = vmatprep.subr.mxu0 0.0
      %v782 = vand.u32 %v224, 4294901760
      %v783 = vsub.f32 %v224, %v782
      %784 = vmatpush1.msra.mxu0 %v783
      %785 = vmatprep.subr.mxu0 0.0
      %v786 = vand.u32 %v225, 4294901760
      %v787 = vsub.f32 %v225, %v786
      %788 = vmatpush1.msra.mxu0 %v787
      %789 = vmatprep.subr.mxu0 0.0
      %v790 = vand.u32 %v226, 4294901760
      %v791 = vsub.f32 %v226, %v790
      %792 = vmatpush1.msra.mxu0 %v791
      %793 = vmatprep.subr.mxu0 0.0
      %v794 = vand.u32 %v227, 4294901760
      %v795 = vsub.f32 %v227, %v794
      %796 = vmatpush1.msra.mxu0 %v795
      %797 = vmatprep.subr.mxu0 0.0
      %v798 = vand.u32 %v228, 4294901760
      %v799 = vsub.f32 %v228, %v798
      %800 = vmatpush1.msra.mxu0 %v799
      %801 = vmatprep.subr.mxu0 0.0
      %v802 = vand.u32 %v229, 4294901760
      %v803 = vsub.f32 %v229, %v802
      %804 = vmatpush1.msra.mxu0 %v803
      %805 = vmatprep.subr.mxu0 0.0
      %v806 = vand.u32 %v230, 4294901760
      %v807 = vsub.f32 %v230, %v806
      %808 = vmatpush1.msra.mxu0 %v807
      %809 = vmatprep.subr.mxu0 0.0
      %v810 = vand.u32 %v231, 4294901760
      %v811 = vsub.f32 %v231, %v810
      %812 = vmatpush1.msra.mxu0 %v811
      %813 = vmatprep.subr.mxu0 0.0
      %v814 = vand.u32 %v232, 4294901760
      %v815 = vsub.f32 %v232, %v814
      %816 = vmatpush1.msra.mxu0 %v815
      %817 = vmatprep.subr.mxu0 0.0
      %v818 = vand.u32 %v233, 4294901760
      %v819 = vsub.f32 %v233, %v818
      %820 = vmatpush1.msra.mxu0 %v819
      %821 = vmatprep.subr.mxu0 0.0
      %v822 = vand.u32 %v234, 4294901760
      %v823 = vsub.f32 %v234, %v822
      %824 = vmatpush1.msra.mxu0 %v823
      %v825 = vand.u32 %v190, 4294901760
      %v826 = vsub.f32 %v190, %v825
      %827 = vmatprep.mubr.f32.mxu0 %v826
      %v828 = vand.u32 %v188, 4294901760
      %v829 = vsub.f32 %v188, %v828
      %830 = vmatmul.mubr.f32.gmra.mrb[0].mxu0 %v829
      %v831 = vpop.f32.mrb[0].mxu0
      %v832 = vadd.f32 %v687, %v831
      %v833 = vpop.f32.mrb[0].mxu0
      %v834 = vand.u32 %v198, 4294901760
      %v835 = vsub.f32 %v198, %v834
      %836 = vmatprep.mubr.f32.mxu0 %v835
      %v837 = vand.u32 %v196, 4294901760
      %v838 = vsub.f32 %v196, %v837
      %839 = vmatmul.mubr.f32.gmra.mrb[0].mxu0 %v838
      %v840 = vpop.f32.mrb[0].mxu0
      %v841 = vadd.f32 %v694, %v840
      %v842 = vpop.f32.mrb[0].mxu0
      %843 = vdwg.mxu0
      %844 = vmatprep.subr.mxu0 0.0
      %v845 = vand.u32 %v203, 4294901760
      %846 = vmatpush1.msra.mxu0 %v845
      %847 = vmatprep.subr.mxu0 0.0
      %v848 = vand.u32 %v204, 4294901760
      %849 = vmatpush1.msra.mxu0 %v848
      %850 = vmatprep.subr.mxu0 0.0
      %v851 = vand.u32 %v205, 4294901760
      %852 = vmatpush1.msra.mxu0 %v851
      %853 = vmatprep.subr.mxu0 0.0
      %v854 = vand.u32 %v206, 4294901760
      %855 = vmatpush1.msra.mxu0 %v854
      %856 = vmatprep.subr.mxu0 0.0
      %v857 = vand.u32 %v207, 4294901760
      %858 = vmatpush1.msra.mxu0 %v857
      %859 = vmatprep.subr.mxu0 0.0
      %v860 = vand.u32 %v208, 4294901760
      %861 = vmatpush1.msra.mxu0 %v860
      %862 = vmatprep.subr.mxu0 0.0
      %v863 = vand.u32 %v209, 4294901760
      %864 = vmatpush1.msra.mxu0 %v863
      %865 = vmatprep.subr.mxu0 0.0
      %v866 = vand.u32 %v210, 4294901760
      %867 = vmatpush1.msra.mxu0 %v866
      %868 = vmatprep.subr.mxu0 0.0
      %v869 = vand.u32 %v211, 4294901760
      %870 = vmatpush1.msra.mxu0 %v869
      %871 = vmatprep.subr.mxu0 0.0
      %v872 = vand.u32 %v212, 4294901760
      %873 = vmatpush1.msra.mxu0 %v872
      %874 = vmatprep.subr.mxu0 0.0
      %v875 = vand.u32 %v213, 4294901760
      %876 = vmatpush1.msra.mxu0 %v875
      %877 = vmatprep.subr.mxu0 0.0
      %v878 = vand.u32 %v214, 4294901760
      %879 = vmatpush1.msra.mxu0 %v878
      %880 = vmatprep.subr.mxu0 0.0
      %v881 = vand.u32 %v215, 4294901760
      %882 = vmatpush1.msra.mxu0 %v881
      %883 = vmatprep.subr.mxu0 0.0
      %v884 = vand.u32 %v216, 4294901760
      %885 = vmatpush1.msra.mxu0 %v884
      %886 = vmatprep.subr.mxu0 0.0
      %v887 = vand.u32 %v217, 4294901760
      %888 = vmatpush1.msra.mxu0 %v887
      %889 = vmatprep.subr.mxu0 0.0
      %v890 = vand.u32 %v218, 4294901760
      %891 = vmatpush1.msra.mxu0 %v890
      %892 = vmatprep.subr.mxu0 0.0
      %v893 = vand.u32 %v219, 4294901760
      %894 = vmatpush1.msra.mxu0 %v893
      %895 = vmatprep.subr.mxu0 0.0
      %v896 = vand.u32 %v220, 4294901760
      %897 = vmatpush1.msra.mxu0 %v896
      %898 = vmatprep.subr.mxu0 0.0
      %v899 = vand.u32 %v221, 4294901760
      %900 = vmatpush1.msra.mxu0 %v899
      %901 = vmatprep.subr.mxu0 0.0
      %v902 = vand.u32 %v222, 4294901760
      %903 = vmatpush1.msra.mxu0 %v902
      %904 = vmatprep.subr.mxu0 0.0
      %v905 = vand.u32 %v223, 4294901760
      %906 = vmatpush1.msra.mxu0 %v905
      %907 = vmatprep.subr.mxu0 0.0
      %v908 = vand.u32 %v224, 4294901760
      %909 = vmatpush1.msra.mxu0 %v908
      %910 = vmatprep.subr.mxu0 0.0
      %v911 = vand.u32 %v225, 4294901760
      %912 = vmatpush1.msra.mxu0 %v911
      %913 = vmatprep.subr.mxu0 0.0
      %v914 = vand.u32 %v226, 4294901760
      %915 = vmatpush1.msra.mxu0 %v914
      %916 = vmatprep.subr.mxu0 0.0
      %v917 = vand.u32 %v227, 4294901760
      %918 = vmatpush1.msra.mxu0 %v917
      %919 = vmatprep.subr.mxu0 0.0
      %v920 = vand.u32 %v228, 4294901760
      %921 = vmatpush1.msra.mxu0 %v920
      %922 = vmatprep.subr.mxu0 0.0
      %v923 = vand.u32 %v229, 4294901760
      %924 = vmatpush1.msra.mxu0 %v923
      %925 = vmatprep.subr.mxu0 0.0
      %v926 = vand.u32 %v230, 4294901760
      %927 = vmatpush1.msra.mxu0 %v926
      %928 = vmatprep.subr.mxu0 0.0
      %v929 = vand.u32 %v231, 4294901760
      %930 = vmatpush1.msra.mxu0 %v929
      %931 = vmatprep.subr.mxu0 0.0
      %v932 = vand.u32 %v232, 4294901760
      %933 = vmatpush1.msra.mxu0 %v932
      %934 = vmatprep.subr.mxu0 0.0
      %v935 = vand.u32 %v233, 4294901760
      %936 = vmatpush1.msra.mxu0 %v935
      %937 = vmatprep.subr.mxu0 0.0
      %v938 = vand.u32 %v234, 4294901760
      %939 = vmatpush1.msra.mxu0 %v938
      %v940 = vand.u32 %v190, 4294901760
      %v941 = vsub.f32 %v190, %v940
      %v942 = vand.u32 %v941, 4294901760
      %943 = vmatprep.mubr.f32.mxu0 %v942
      %v944 = vand.u32 %v188, 4294901760
      %v945 = vsub.f32 %v188, %v944
      %v946 = vand.u32 %v945, 4294901760
      %947 = vmatmul.mubr.f32.gmra.mrb[0].mxu0 %v946
      %v948 = vpop.f32.mrb[0].mxu0
      %v949 = vadd.f32 %v832, %v948
      %v950 = vpop.f32.mrb[0].mxu0
      %v951 = vand.u32 %v198, 4294901760
      %v952 = vsub.f32 %v198, %v951
      %v953 = vand.u32 %v952, 4294901760
      %954 = vmatprep.mubr.f32.mxu0 %v953
      %v955 = vand.u32 %v196, 4294901760
      %v956 = vsub.f32 %v196, %v955
      %v957 = vand.u32 %v956, 4294901760
      %958 = vmatmul.mubr.f32.gmra.mrb[0].mxu0 %v957
      %v959 = vpop.f32.mrb[0].mxu0
      %v960 = vadd.f32 %v841, %v959
      %v961 = vpop.f32.mrb[0].mxu0
      %962 = vdwg.mxu0
      %963 = vmatprep.subr.mxu0 0.0
      %v964 = vand.u32 %v203, 4294901760
      %v965 = vsub.f32 %v203, %v964
      %v966 = vand.u32 %v965, 4294901760
      %967 = vmatpush1.msra.mxu0 %v966
      %968 = vmatprep.subr.mxu0 0.0
      %v969 = vand.u32 %v204, 4294901760
      %v970 = vsub.f32 %v204, %v969
      %v971 = vand.u32 %v970, 4294901760
      %972 = vmatpush1.msra.mxu0 %v971
      %973 = vmatprep.subr.mxu0 0.0
      %v974 = vand.u32 %v205, 4294901760
      %v975 = vsub.f32 %v205, %v974
      %v976 = vand.u32 %v975, 4294901760
      %977 = vmatpush1.msra.mxu0 %v976
      %978 = vmatprep.subr.mxu0 0.0
      %v979 = vand.u32 %v206, 4294901760
      %v980 = vsub.f32 %v206, %v979
      %v981 = vand.u32 %v980, 4294901760
      %982 = vmatpush1.msra.mxu0 %v981
      %983 = vmatprep.subr.mxu0 0.0
      %v984 = vand.u32 %v207, 4294901760
      %v985 = vsub.f32 %v207, %v984
      %v986 = vand.u32 %v985, 4294901760
      %987 = vmatpush1.msra.mxu0 %v986
      %988 = vmatprep.subr.mxu0 0.0
      %v989 = vand.u32 %v208, 4294901760
      %v990 = vsub.f32 %v208, %v989
      %v991 = vand.u32 %v990, 4294901760
      %992 = vmatpush1.msra.mxu0 %v991
      %993 = vmatprep.subr.mxu0 0.0
      %v994 = vand.u32 %v209, 4294901760
      %v995 = vsub.f32 %v209, %v994
      %v996 = vand.u32 %v995, 4294901760
      %997 = vmatpush1.msra.mxu0 %v996
      %998 = vmatprep.subr.mxu0 0.0
      %v999 = vand.u32 %v210, 4294901760
      %v1000 = vsub.f32 %v210, %v999
      %v1001 = vand.u32 %v1000, 4294901760
      %1002 = vmatpush1.msra.mxu0 %v1001
      %1003 = vmatprep.subr.mxu0 0.0
      %v1004 = vand.u32 %v211, 4294901760
      %v1005 = vsub.f32 %v211, %v1004
      %v1006 = vand.u32 %v1005, 4294901760
      %1007 = vmatpush1.msra.mxu0 %v1006
      %1008 = vmatprep.subr.mxu0 0.0
      %v1009 = vand.u32 %v212, 4294901760
      %v1010 = vsub.f32 %v212, %v1009
      %v1011 = vand.u32 %v1010, 4294901760
      %1012 = vmatpush1.msra.mxu0 %v1011
      %1013 = vmatprep.subr.mxu0 0.0
      %v1014 = vand.u32 %v213, 4294901760
      %v1015 = vsub.f32 %v213, %v1014
      %v1016 = vand.u32 %v1015, 4294901760
      %1017 = vmatpush1.msra.mxu0 %v1016
      %1018 = vmatprep.subr.mxu0 0.0
      %v1019 = vand.u32 %v214, 4294901760
      %v1020 = vsub.f32 %v214, %v1019
      %v1021 = vand.u32 %v1020, 4294901760
      %1022 = vmatpush1.msra.mxu0 %v1021
      %1023 = vmatprep.subr.mxu0 0.0
      %v1024 = vand.u32 %v215, 4294901760
      %v1025 = vsub.f32 %v215, %v1024
      %v1026 = vand.u32 %v1025, 4294901760
      %1027 = vmatpush1.msra.mxu0 %v1026
      %1028 = vmatprep.subr.mxu0 0.0
      %v1029 = vand.u32 %v216, 4294901760
      %v1030 = vsub.f32 %v216, %v1029
      %v1031 = vand.u32 %v1030, 4294901760
      %1032 = vmatpush1.msra.mxu0 %v1031
      %1033 = vmatprep.subr.mxu0 0.0
      %v1034 = vand.u32 %v217, 4294901760
      %v1035 = vsub.f32 %v217, %v1034
      %v1036 = vand.u32 %v1035, 4294901760
      %1037 = vmatpush1.msra.mxu0 %v1036
      %1038 = vmatprep.subr.mxu0 0.0
      %v1039 = vand.u32 %v218, 4294901760
      %v1040 = vsub.f32 %v218, %v1039
      %v1041 = vand.u32 %v1040, 4294901760
      %1042 = vmatpush1.msra.mxu0 %v1041
      %1043 = vmatprep.subr.mxu0 0.0
      %v1044 = vand.u32 %v219, 4294901760
      %v1045 = vsub.f32 %v219, %v1044
      %v1046 = vand.u32 %v1045, 4294901760
      %1047 = vmatpush1.msra.mxu0 %v1046
      %1048 = vmatprep.subr.mxu0 0.0
      %v1049 = vand.u32 %v220, 4294901760
      %v1050 = vsub.f32 %v220, %v1049
      %v1051 = vand.u32 %v1050, 4294901760
      %1052 = vmatpush1.msra.mxu0 %v1051
      %1053 = vmatprep.subr.mxu0 0.0
      %v1054 = vand.u32 %v221, 4294901760
      %v1055 = vsub.f32 %v221, %v1054
      %v1056 = vand.u32 %v1055, 4294901760
      %1057 = vmatpush1.msra.mxu0 %v1056
      %1058 = vmatprep.subr.mxu0 0.0
      %v1059 = vand.u32 %v222, 4294901760
      %v1060 = vsub.f32 %v222, %v1059
      %v1061 = vand.u32 %v1060, 4294901760
      %1062 = vmatpush1.msra.mxu0 %v1061
      %1063 = vmatprep.subr.mxu0 0.0
      %v1064 = vand.u32 %v223, 4294901760
      %v1065 = vsub.f32 %v223, %v1064
      %v1066 = vand.u32 %v1065, 4294901760
      %1067 = vmatpush1.msra.mxu0 %v1066
      %1068 = vmatprep.subr.mxu0 0.0
      %v1069 = vand.u32 %v224, 4294901760
      %v1070 = vsub.f32 %v224, %v1069
      %v1071 = vand.u32 %v1070, 4294901760
      %1072 = vmatpush1.msra.mxu0 %v1071
      %1073 = vmatprep.subr.mxu0 0.0
      %v1074 = vand.u32 %v225, 4294901760
      %v1075 = vsub.f32 %v225, %v1074
      %v1076 = vand.u32 %v1075, 4294901760
      %1077 = vmatpush1.msra.mxu0 %v1076
      %1078 = vmatprep.subr.mxu0 0.0
      %v1079 = vand.u32 %v226, 4294901760
      %v1080 = vsub.f32 %v226, %v1079
      %v1081 = vand.u32 %v1080, 4294901760
      %1082 = vmatpush1.msra.mxu0 %v1081
      %1083 = vmatprep.subr.mxu0 0.0
      %v1084 = vand.u32 %v227, 4294901760
      %v1085 = vsub.f32 %v227, %v1084
      %v1086 = vand.u32 %v1085, 4294901760
      %1087 = vmatpush1.msra.mxu0 %v1086
      %1088 = vmatprep.subr.mxu0 0.0
      %v1089 = vand.u32 %v228, 4294901760
      %v1090 = vsub.f32 %v228, %v1089
      %v1091 = vand.u32 %v1090, 4294901760
      %1092 = vmatpush1.msra.mxu0 %v1091
      %1093 = vmatprep.subr.mxu0 0.0
      %v1094 = vand.u32 %v229, 4294901760
      %v1095 = vsub.f32 %v229, %v1094
      %v1096 = vand.u32 %v1095, 4294901760
      %1097 = vmatpush1.msra.mxu0 %v1096
      %1098 = vmatprep.subr.mxu0 0.0
      %v1099 = vand.u32 %v230, 4294901760
      %v1100 = vsub.f32 %v230, %v1099
      %v1101 = vand.u32 %v1100, 4294901760
      %1102 = vmatpush1.msra.mxu0 %v1101
      %1103 = vmatprep.subr.mxu0 0.0
      %v1104 = vand.u32 %v231, 4294901760
      %v1105 = vsub.f32 %v231, %v1104
      %v1106 = vand.u32 %v1105, 4294901760
      %1107 = vmatpush1.msra.mxu0 %v1106
      %1108 = vmatprep.subr.mxu0 0.0
      %v1109 = vand.u32 %v232, 4294901760
      %v1110 = vsub.f32 %v232, %v1109
      %v1111 = vand.u32 %v1110, 4294901760
      %1112 = vmatpush1.msra.mxu0 %v1111
      %1113 = vmatprep.subr.mxu0 0.0
      %v1114 = vand.u32 %v233, 4294901760
      %v1115 = vsub.f32 %v233, %v1114
      %v1116 = vand.u32 %v1115, 4294901760
      %1117 = vmatpush1.msra.mxu0 %v1116
      %1118 = vmatprep.subr.mxu0 0.0
      %v1119 = vand.u32 %v234, 4294901760
      %v1120 = vsub.f32 %v234, %v1119
      %v1121 = vand.u32 %v1120, 4294901760
      %1122 = vmatpush1.msra.mxu0 %v1121
      %v1123 = vand.u32 %v190, 4294901760
      %1124 = vmatprep.mubr.f32.mxu0 %v1123
      %v1125 = vand.u32 %v188, 4294901760
      %1126 = vmatmul.mubr.f32.gmra.mrb[0].mxu0 %v1125
      %v1127 = vpop.f32.mrb[0].mxu0
      %v1128 = vadd.f32 %v949, %v1127
      %v1129 = vpop.f32.mrb[0].mxu0
      %v1130 = vand.u32 %v198, 4294901760
      %1131 = vmatprep.mubr.f32.mxu0 %v1130
      %v1132 = vand.u32 %v196, 4294901760
      %1133 = vmatmul.mubr.f32.gmra.mrb[0].mxu0 %v1132
      %v1134 = vpop.f32.mrb[0].mxu0
      %v1135 = vadd.f32 %v960, %v1134
      %v1136 = vpop.f32.mrb[0].mxu0
      %1137 = vdwg.mxu0
      %1138 = vmatprep.subr.mxu0 0.0
      %v1139 = vand.u32 %v203, 4294901760
      %1140 = vmatpush1.msra.mxu0 %v1139
      %1141 = vmatprep.subr.mxu0 0.0
      %v1142 = vand.u32 %v204, 4294901760
      %1143 = vmatpush1.msra.mxu0 %v1142
      %1144 = vmatprep.subr.mxu0 0.0
      %v1145 = vand.u32 %v205, 4294901760
      %1146 = vmatpush1.msra.mxu0 %v1145
      %1147 = vmatprep.subr.mxu0 0.0
      %v1148 = vand.u32 %v206, 4294901760
      %1149 = vmatpush1.msra.mxu0 %v1148
      %1150 = vmatprep.subr.mxu0 0.0
      %v1151 = vand.u32 %v207, 4294901760
      %1152 = vmatpush1.msra.mxu0 %v1151
      %1153 = vmatprep.subr.mxu0 0.0
      %v1154 = vand.u32 %v208, 4294901760
      %1155 = vmatpush1.msra.mxu0 %v1154
      %1156 = vmatprep.subr.mxu0 0.0
      %v1157 = vand.u32 %v209, 4294901760
      %1158 = vmatpush1.msra.mxu0 %v1157
      %1159 = vmatprep.subr.mxu0 0.0
      %v1160 = vand.u32 %v210, 4294901760
      %1161 = vmatpush1.msra.mxu0 %v1160
      %1162 = vmatprep.subr.mxu0 0.0
      %v1163 = vand.u32 %v211, 4294901760
      %1164 = vmatpush1.msra.mxu0 %v1163
      %1165 = vmatprep.subr.mxu0 0.0
      %v1166 = vand.u32 %v212, 4294901760
      %1167 = vmatpush1.msra.mxu0 %v1166
      %1168 = vmatprep.subr.mxu0 0.0
      %v1169 = vand.u32 %v213, 4294901760
      %1170 = vmatpush1.msra.mxu0 %v1169
      %1171 = vmatprep.subr.mxu0 0.0
      %v1172 = vand.u32 %v214, 4294901760
      %1173 = vmatpush1.msra.mxu0 %v1172
      %1174 = vmatprep.subr.mxu0 0.0
      %v1175 = vand.u32 %v215, 4294901760
      %1176 = vmatpush1.msra.mxu0 %v1175
      %1177 = vmatprep.subr.mxu0 0.0
      %v1178 = vand.u32 %v216, 4294901760
      %1179 = vmatpush1.msra.mxu0 %v1178
      %1180 = vmatprep.subr.mxu0 0.0
      %v1181 = vand.u32 %v217, 4294901760
      %1182 = vmatpush1.msra.mxu0 %v1181
      %1183 = vmatprep.subr.mxu0 0.0
      %v1184 = vand.u32 %v218, 4294901760
      %1185 = vmatpush1.msra.mxu0 %v1184
      %1186 = vmatprep.subr.mxu0 0.0
      %v1187 = vand.u32 %v219, 4294901760
      %1188 = vmatpush1.msra.mxu0 %v1187
      %1189 = vmatprep.subr.mxu0 0.0
      %v1190 = vand.u32 %v220, 4294901760
      %1191 = vmatpush1.msra.mxu0 %v1190
      %1192 = vmatprep.subr.mxu0 0.0
      %v1193 = vand.u32 %v221, 4294901760
      %1194 = vmatpush1.msra.mxu0 %v1193
      %1195 = vmatprep.subr.mxu0 0.0
      %v1196 = vand.u32 %v222, 4294901760
      %1197 = vmatpush1.msra.mxu0 %v1196
      %1198 = vmatprep.subr.mxu0 0.0
      %v1199 = vand.u32 %v223, 4294901760
      %1200 = vmatpush1.msra.mxu0 %v1199
      %1201 = vmatprep.subr.mxu0 0.0
      %v1202 = vand.u32 %v224, 4294901760
      %1203 = vmatpush1.msra.mxu0 %v1202
      %1204 = vmatprep.subr.mxu0 0.0
      %v1205 = vand.u32 %v225, 4294901760
      %1206 = vmatpush1.msra.mxu0 %v1205
      %1207 = vmatprep.subr.mxu0 0.0
      %v1208 = vand.u32 %v226, 4294901760
      %1209 = vmatpush1.msra.mxu0 %v1208
      %1210 = vmatprep.subr.mxu0 0.0
      %v1211 = vand.u32 %v227, 4294901760
      %1212 = vmatpush1.msra.mxu0 %v1211
      %1213 = vmatprep.subr.mxu0 0.0
      %v1214 = vand.u32 %v228, 4294901760
      %1215 = vmatpush1.msra.mxu0 %v1214
      %1216 = vmatprep.subr.mxu0 0.0
      %v1217 = vand.u32 %v229, 4294901760
      %1218 = vmatpush1.msra.mxu0 %v1217
      %1219 = vmatprep.subr.mxu0 0.0
      %v1220 = vand.u32 %v230, 4294901760
      %1221 = vmatpush1.msra.mxu0 %v1220
      %1222 = vmatprep.subr.mxu0 0.0
      %v1223 = vand.u32 %v231, 4294901760
      %1224 = vmatpush1.msra.mxu0 %v1223
      %1225 = vmatprep.subr.mxu0 0.0
      %v1226 = vand.u32 %v232, 4294901760
      %1227 = vmatpush1.msra.mxu0 %v1226
      %1228 = vmatprep.subr.mxu0 0.0
      %v1229 = vand.u32 %v233, 4294901760
      %1230 = vmatpush1.msra.mxu0 %v1229
      %1231 = vmatprep.subr.mxu0 0.0
      %v1232 = vand.u32 %v234, 4294901760
      %1233 = vmatpush1.msra.mxu0 %v1232
      %v1234 = vand.u32 %v190, 4294901760
      %1235 = vmatprep.mubr.f32.mxu0 %v1234
      %v1236 = vand.u32 %v188, 4294901760
      %1237 = vmatmul.mubr.f32.gmra.mrb[0].mxu0 %v1236
      %v1238 = vpop.f32.mrb[0].mxu0
      %v1239 = vadd.f32 %v1128, %v1238
      %v1240 = vpop.f32.mrb[0].mxu0
      %v1241 = vand.u32 %v198, 4294901760
      %1242 = vmatprep.mubr.f32.mxu0 %v1241
      %v1243 = vand.u32 %v196, 4294901760
      %1244 = vmatmul.mubr.f32.gmra.mrb[0].mxu0 %v1243
      %v1245 = vpop.f32.mrb[0].mxu0
      %v1246 = vadd.f32 %v1135, %v1245
      %v1247 = vpop.f32.mrb[0].mxu0
      %1248 = vdwg.mxu0
      %1249 = vmatprep.subr.mxu0 0.0
      %v1250 = vand.u32 %v235, 4294901760
      %1251 = vmatpush1.msra.mxu0 %v1250
      %1252 = vmatprep.subr.mxu0 0.0
      %v1253 = vand.u32 %v236, 4294901760
      %1254 = vmatpush1.msra.mxu0 %v1253
      %1255 = vmatprep.subr.mxu0 0.0
      %v1256 = vand.u32 %v237, 4294901760
      %1257 = vmatpush1.msra.mxu0 %v1256
      %1258 = vmatprep.subr.mxu0 0.0
      %v1259 = vand.u32 %v238, 4294901760
      %1260 = vmatpush1.msra.mxu0 %v1259
      %1261 = vmatprep.subr.mxu0 0.0
      %v1262 = vand.u32 %v239, 4294901760
      %1263 = vmatpush1.msra.mxu0 %v1262
      %1264 = vmatprep.subr.mxu0 0.0
      %v1265 = vand.u32 %v240, 4294901760
      %1266 = vmatpush1.msra.mxu0 %v1265
      %1267 = vmatprep.subr.mxu0 0.0
      %v1268 = vand.u32 %v241, 4294901760
      %1269 = vmatpush1.msra.mxu0 %v1268
      %1270 = vmatprep.subr.mxu0 0.0
      %v1271 = vand.u32 %v242, 4294901760
      %1272 = vmatpush1.msra.mxu0 %v1271
      %1273 = vmatprep.subr.mxu0 0.0
      %v1274 = vand.u32 %v243, 4294901760
      %1275 = vmatpush1.msra.mxu0 %v1274
      %1276 = vmatprep.subr.mxu0 0.0
      %v1277 = vand.u32 %v244, 4294901760
      %1278 = vmatpush1.msra.mxu0 %v1277
      %1279 = vmatprep.subr.mxu0 0.0
      %v1280 = vand.u32 %v245, 4294901760
      %1281 = vmatpush1.msra.mxu0 %v1280
      %1282 = vmatprep.subr.mxu0 0.0
      %v1283 = vand.u32 %v246, 4294901760
      %1284 = vmatpush1.msra.mxu0 %v1283
      %1285 = vmatprep.subr.mxu0 0.0
      %v1286 = vand.u32 %v247, 4294901760
      %1287 = vmatpush1.msra.mxu0 %v1286
      %1288 = vmatprep.subr.mxu0 0.0
      %v1289 = vand.u32 %v248, 4294901760
      %1290 = vmatpush1.msra.mxu0 %v1289
      %1291 = vmatprep.subr.mxu0 0.0
      %v1292 = vand.u32 %v249, 4294901760
      %1293 = vmatpush1.msra.mxu0 %v1292
      %1294 = vmatprep.subr.mxu0 0.0
      %v1295 = vand.u32 %v250, 4294901760
      %1296 = vmatpush1.msra.mxu0 %v1295
      %1297 = vmatprep.subr.mxu0 0.0
      %v1298 = vand.u32 %v251, 4294901760
      %1299 = vmatpush1.msra.mxu0 %v1298
      %1300 = vmatprep.subr.mxu0 0.0
      %v1301 = vand.u32 %v252, 4294901760
      %1302 = vmatpush1.msra.mxu0 %v1301
      %1303 = vmatprep.subr.mxu0 0.0
      %v1304 = vand.u32 %v253, 4294901760
      %1305 = vmatpush1.msra.mxu0 %v1304
      %1306 = vmatprep.subr.mxu0 0.0
      %v1307 = vand.u32 %v254, 4294901760
      %1308 = vmatpush1.msra.mxu0 %v1307
      %1309 = vmatprep.subr.mxu0 0.0
      %v1310 = vand.u32 %v255, 4294901760
      %1311 = vmatpush1.msra.mxu0 %v1310
      %1312 = vmatprep.subr.mxu0 0.0
      %v1313 = vand.u32 %v256, 4294901760
      %1314 = vmatpush1.msra.mxu0 %v1313
      %1315 = vmatprep.subr.mxu0 0.0
      %v1316 = vand.u32 %v257, 4294901760
      %1317 = vmatpush1.msra.mxu0 %v1316
      %1318 = vmatprep.subr.mxu0 0.0
      %v1319 = vand.u32 %v258, 4294901760
      %1320 = vmatpush1.msra.mxu0 %v1319
      %1321 = vmatprep.subr.mxu0 0.0
      %v1322 = vand.u32 %v259, 4294901760
      %1323 = vmatpush1.msra.mxu0 %v1322
      %1324 = vmatprep.subr.mxu0 0.0
      %v1325 = vand.u32 %v260, 4294901760
      %1326 = vmatpush1.msra.mxu0 %v1325
      %1327 = vmatprep.subr.mxu0 0.0
      %v1328 = vand.u32 %v261, 4294901760
      %1329 = vmatpush1.msra.mxu0 %v1328
      %1330 = vmatprep.subr.mxu0 0.0
      %v1331 = vand.u32 %v262, 4294901760
      %1332 = vmatpush1.msra.mxu0 %v1331
      %1333 = vmatprep.subr.mxu0 0.0
      %v1334 = vand.u32 %v263, 4294901760
      %1335 = vmatpush1.msra.mxu0 %v1334
      %1336 = vmatprep.subr.mxu0 0.0
      %v1337 = vand.u32 %v264, 4294901760
      %1338 = vmatpush1.msra.mxu0 %v1337
      %1339 = vmatprep.subr.mxu0 0.0
      %v1340 = vand.u32 %v265, 4294901760
      %1341 = vmatpush1.msra.mxu0 %v1340
      %1342 = vmatprep.subr.mxu0 0.0
      %v1343 = vand.u32 %v266, 4294901760
      %1344 = vmatpush1.msra.mxu0 %v1343
      %v1345 = vand.u32 %v194, 4294901760
      %v1346 = vsub.f32 %v194, %v1345
      %v1347 = vand.u32 %v1346, 4294901760
      %v1348 = vsub.f32 %v1346, %v1347
      %v1349 = vand.u32 %v1348, 4294901760
      %1350 = vmatprep.mubr.f32.mxu0 %v1349
      %v1351 = vand.u32 %v192, 4294901760
      %v1352 = vsub.f32 %v192, %v1351
      %v1353 = vand.u32 %v1352, 4294901760
      %v1354 = vsub.f32 %v1352, %v1353
      %v1355 = vand.u32 %v1354, 4294901760
      %1356 = vmatmul.mubr.f32.gmra.mrb[0].mxu0 %v1355
      %v1357 = vpop.f32.mrb[0].mxu0
      %v1358 = vadd.f32 %v1239, %v1357
      %v1359 = vpop.f32.mrb[0].mxu0
      %v1360 = vand.u32 %v202, 4294901760
      %v1361 = vsub.f32 %v202, %v1360
      %v1362 = vand.u32 %v1361, 4294901760
      %v1363 = vsub.f32 %v1361, %v1362
      %v1364 = vand.u32 %v1363, 4294901760
      %1365 = vmatprep.mubr.f32.mxu0 %v1364
      %v1366 = vand.u32 %v200, 4294901760
      %v1367 = vsub.f32 %v200, %v1366
      %v1368 = vand.u32 %v1367, 4294901760
      %v1369 = vsub.f32 %v1367, %v1368
      %v1370 = vand.u32 %v1369, 4294901760
      %1371 = vmatmul.mubr.f32.gmra.mrb[0].mxu0 %v1370
      %v1372 = vpop.f32.mrb[0].mxu0
      %v1373 = vadd.f32 %v1246, %v1372
      %v1374 = vpop.f32.mrb[0].mxu0
      %1375 = vdwg.mxu0
      %1376 = vmatprep.subr.mxu0 0.0
      %v1377 = vand.u32 %v235, 4294901760
      %v1378 = vsub.f32 %v235, %v1377
      %v1379 = vand.u32 %v1378, 4294901760
      %v1380 = vsub.f32 %v1378, %v1379
      %v1381 = vand.u32 %v1380, 4294901760
      %1382 = vmatpush1.msra.mxu0 %v1381
      %1383 = vmatprep.subr.mxu0 0.0
      %v1384 = vand.u32 %v236, 4294901760
      %v1385 = vsub.f32 %v236, %v1384
      %v1386 = vand.u32 %v1385, 4294901760
      %v1387 = vsub.f32 %v1385, %v1386
      %v1388 = vand.u32 %v1387, 4294901760
      %1389 = vmatpush1.msra.mxu0 %v1388
      %1390 = vmatprep.subr.mxu0 0.0
      %v1391 = vand.u32 %v237, 4294901760
      %v1392 = vsub.f32 %v237, %v1391
      %v1393 = vand.u32 %v1392, 4294901760
      %v1394 = vsub.f32 %v1392, %v1393
      %v1395 = vand.u32 %v1394, 4294901760
      %1396 = vmatpush1.msra.mxu0 %v1395
      %1397 = vmatprep.subr.mxu0 0.0
      %v1398 = vand.u32 %v238, 4294901760
      %v1399 = vsub.f32 %v238, %v1398
      %v1400 = vand.u32 %v1399, 4294901760
      %v1401 = vsub.f32 %v1399, %v1400
      %v1402 = vand.u32 %v1401, 4294901760
      %1403 = vmatpush1.msra.mxu0 %v1402
      %1404 = vmatprep.subr.mxu0 0.0
      %v1405 = vand.u32 %v239, 4294901760
      %v1406 = vsub.f32 %v239, %v1405
      %v1407 = vand.u32 %v1406, 4294901760
      %v1408 = vsub.f32 %v1406, %v1407
      %v1409 = vand.u32 %v1408, 4294901760
      %1410 = vmatpush1.msra.mxu0 %v1409
      %1411 = vmatprep.subr.mxu0 0.0
      %v1412 = vand.u32 %v240, 4294901760
      %v1413 = vsub.f32 %v240, %v1412
      %v1414 = vand.u32 %v1413, 4294901760
      %v1415 = vsub.f32 %v1413, %v1414
      %v1416 = vand.u32 %v1415, 4294901760
      %1417 = vmatpush1.msra.mxu0 %v1416
      %1418 = vmatprep.subr.mxu0 0.0
      %v1419 = vand.u32 %v241, 4294901760
      %v1420 = vsub.f32 %v241, %v1419
      %v1421 = vand.u32 %v1420, 4294901760
      %v1422 = vsub.f32 %v1420, %v1421
      %v1423 = vand.u32 %v1422, 4294901760
      %1424 = vmatpush1.msra.mxu0 %v1423
      %1425 = vmatprep.subr.mxu0 0.0
      %v1426 = vand.u32 %v242, 4294901760
      %v1427 = vsub.f32 %v242, %v1426
      %v1428 = vand.u32 %v1427, 4294901760
      %v1429 = vsub.f32 %v1427, %v1428
      %v1430 = vand.u32 %v1429, 4294901760
      %1431 = vmatpush1.msra.mxu0 %v1430
      %1432 = vmatprep.subr.mxu0 0.0
      %v1433 = vand.u32 %v243, 4294901760
      %v1434 = vsub.f32 %v243, %v1433
      %v1435 = vand.u32 %v1434, 4294901760
      %v1436 = vsub.f32 %v1434, %v1435
      %v1437 = vand.u32 %v1436, 4294901760
      %1438 = vmatpush1.msra.mxu0 %v1437
      %1439 = vmatprep.subr.mxu0 0.0
      %v1440 = vand.u32 %v244, 4294901760
      %v1441 = vsub.f32 %v244, %v1440
      %v1442 = vand.u32 %v1441, 4294901760
      %v1443 = vsub.f32 %v1441, %v1442
      %v1444 = vand.u32 %v1443, 4294901760
      %1445 = vmatpush1.msra.mxu0 %v1444
      %1446 = vmatprep.subr.mxu0 0.0
      %v1447 = vand.u32 %v245, 4294901760
      %v1448 = vsub.f32 %v245, %v1447
      %v1449 = vand.u32 %v1448, 4294901760
      %v1450 = vsub.f32 %v1448, %v1449
      %v1451 = vand.u32 %v1450, 4294901760
      %1452 = vmatpush1.msra.mxu0 %v1451
      %1453 = vmatprep.subr.mxu0 0.0
      %v1454 = vand.u32 %v246, 4294901760
      %v1455 = vsub.f32 %v246, %v1454
      %v1456 = vand.u32 %v1455, 4294901760
      %v1457 = vsub.f32 %v1455, %v1456
      %v1458 = vand.u32 %v1457, 4294901760
      %1459 = vmatpush1.msra.mxu0 %v1458
      %1460 = vmatprep.subr.mxu0 0.0
      %v1461 = vand.u32 %v247, 4294901760
      %v1462 = vsub.f32 %v247, %v1461
      %v1463 = vand.u32 %v1462, 4294901760
      %v1464 = vsub.f32 %v1462, %v1463
      %v1465 = vand.u32 %v1464, 4294901760
      %1466 = vmatpush1.msra.mxu0 %v1465
      %1467 = vmatprep.subr.mxu0 0.0
      %v1468 = vand.u32 %v248, 4294901760
      %v1469 = vsub.f32 %v248, %v1468
      %v1470 = vand.u32 %v1469, 4294901760
      %v1471 = vsub.f32 %v1469, %v1470
      %v1472 = vand.u32 %v1471, 4294901760
      %1473 = vmatpush1.msra.mxu0 %v1472
      %1474 = vmatprep.subr.mxu0 0.0
      %v1475 = vand.u32 %v249, 4294901760
      %v1476 = vsub.f32 %v249, %v1475
      %v1477 = vand.u32 %v1476, 4294901760
      %v1478 = vsub.f32 %v1476, %v1477
      %v1479 = vand.u32 %v1478, 4294901760
      %1480 = vmatpush1.msra.mxu0 %v1479
      %1481 = vmatprep.subr.mxu0 0.0
      %v1482 = vand.u32 %v250, 4294901760
      %v1483 = vsub.f32 %v250, %v1482
      %v1484 = vand.u32 %v1483, 4294901760
      %v1485 = vsub.f32 %v1483, %v1484
      %v1486 = vand.u32 %v1485, 4294901760
      %1487 = vmatpush1.msra.mxu0 %v1486
      %1488 = vmatprep.subr.mxu0 0.0
      %v1489 = vand.u32 %v251, 4294901760
      %v1490 = vsub.f32 %v251, %v1489
      %v1491 = vand.u32 %v1490, 4294901760
      %v1492 = vsub.f32 %v1490, %v1491
      %v1493 = vand.u32 %v1492, 4294901760
      %1494 = vmatpush1.msra.mxu0 %v1493
      %1495 = vmatprep.subr.mxu0 0.0
      %v1496 = vand.u32 %v252, 4294901760
      %v1497 = vsub.f32 %v252, %v1496
      %v1498 = vand.u32 %v1497, 4294901760
      %v1499 = vsub.f32 %v1497, %v1498
      %v1500 = vand.u32 %v1499, 4294901760
      %1501 = vmatpush1.msra.mxu0 %v1500
      %1502 = vmatprep.subr.mxu0 0.0
      %v1503 = vand.u32 %v253, 4294901760
      %v1504 = vsub.f32 %v253, %v1503
      %v1505 = vand.u32 %v1504, 4294901760
      %v1506 = vsub.f32 %v1504, %v1505
      %v1507 = vand.u32 %v1506, 4294901760
      %1508 = vmatpush1.msra.mxu0 %v1507
      %1509 = vmatprep.subr.mxu0 0.0
      %v1510 = vand.u32 %v254, 4294901760
      %v1511 = vsub.f32 %v254, %v1510
      %v1512 = vand.u32 %v1511, 4294901760
      %v1513 = vsub.f32 %v1511, %v1512
      %v1514 = vand.u32 %v1513, 4294901760
      %1515 = vmatpush1.msra.mxu0 %v1514
      %1516 = vmatprep.subr.mxu0 0.0
      %v1517 = vand.u32 %v255, 4294901760
      %v1518 = vsub.f32 %v255, %v1517
      %v1519 = vand.u32 %v1518, 4294901760
      %v1520 = vsub.f32 %v1518, %v1519
      %v1521 = vand.u32 %v1520, 4294901760
      %1522 = vmatpush1.msra.mxu0 %v1521
      %1523 = vmatprep.subr.mxu0 0.0
      %v1524 = vand.u32 %v256, 4294901760
      %v1525 = vsub.f32 %v256, %v1524
      %v1526 = vand.u32 %v1525, 4294901760
      %v1527 = vsub.f32 %v1525, %v1526
      %v1528 = vand.u32 %v1527, 4294901760
      %1529 = vmatpush1.msra.mxu0 %v1528
      %1530 = vmatprep.subr.mxu0 0.0
      %v1531 = vand.u32 %v257, 4294901760
      %v1532 = vsub.f32 %v257, %v1531
      %v1533 = vand.u32 %v1532, 4294901760
      %v1534 = vsub.f32 %v1532, %v1533
      %v1535 = vand.u32 %v1534, 4294901760
      %1536 = vmatpush1.msra.mxu0 %v1535
      %1537 = vmatprep.subr.mxu0 0.0
      %v1538 = vand.u32 %v258, 4294901760
      %v1539 = vsub.f32 %v258, %v1538
      %v1540 = vand.u32 %v1539, 4294901760
      %v1541 = vsub.f32 %v1539, %v1540
      %v1542 = vand.u32 %v1541, 4294901760
      %1543 = vmatpush1.msra.mxu0 %v1542
      %1544 = vmatprep.subr.mxu0 0.0
      %v1545 = vand.u32 %v259, 4294901760
      %v1546 = vsub.f32 %v259, %v1545
      %v1547 = vand.u32 %v1546, 4294901760
      %v1548 = vsub.f32 %v1546, %v1547
      %v1549 = vand.u32 %v1548, 4294901760
      %1550 = vmatpush1.msra.mxu0 %v1549
      %1551 = vmatprep.subr.mxu0 0.0
      %v1552 = vand.u32 %v260, 4294901760
      %v1553 = vsub.f32 %v260, %v1552
      %v1554 = vand.u32 %v1553, 4294901760
      %v1555 = vsub.f32 %v1553, %v1554
      %v1556 = vand.u32 %v1555, 4294901760
      %1557 = vmatpush1.msra.mxu0 %v1556
      %1558 = vmatprep.subr.mxu0 0.0
      %v1559 = vand.u32 %v261, 4294901760
      %v1560 = vsub.f32 %v261, %v1559
      %v1561 = vand.u32 %v1560, 4294901760
      %v1562 = vsub.f32 %v1560, %v1561
      %v1563 = vand.u32 %v1562, 4294901760
      %1564 = vmatpush1.msra.mxu0 %v1563
      %1565 = vmatprep.subr.mxu0 0.0
      %v1566 = vand.u32 %v262, 4294901760
      %v1567 = vsub.f32 %v262, %v1566
      %v1568 = vand.u32 %v1567, 4294901760
      %v1569 = vsub.f32 %v1567, %v1568
      %v1570 = vand.u32 %v1569, 4294901760
      %1571 = vmatpush1.msra.mxu0 %v1570
      %1572 = vmatprep.subr.mxu0 0.0
      %v1573 = vand.u32 %v263, 4294901760
      %v1574 = vsub.f32 %v263, %v1573
      %v1575 = vand.u32 %v1574, 4294901760
      %v1576 = vsub.f32 %v1574, %v1575
      %v1577 = vand.u32 %v1576, 4294901760
      %1578 = vmatpush1.msra.mxu0 %v1577
      %1579 = vmatprep.subr.mxu0 0.0
      %v1580 = vand.u32 %v264, 4294901760
      %v1581 = vsub.f32 %v264, %v1580
      %v1582 = vand.u32 %v1581, 4294901760
      %v1583 = vsub.f32 %v1581, %v1582
      %v1584 = vand.u32 %v1583, 4294901760
      %1585 = vmatpush1.msra.mxu0 %v1584
      %1586 = vmatprep.subr.mxu0 0.0
      %v1587 = vand.u32 %v265, 4294901760
      %v1588 = vsub.f32 %v265, %v1587
      %v1589 = vand.u32 %v1588, 4294901760
      %v1590 = vsub.f32 %v1588, %v1589
      %v1591 = vand.u32 %v1590, 4294901760
      %1592 = vmatpush1.msra.mxu0 %v1591
      %1593 = vmatprep.subr.mxu0 0.0
      %v1594 = vand.u32 %v266, 4294901760
      %v1595 = vsub.f32 %v266, %v1594
      %v1596 = vand.u32 %v1595, 4294901760
      %v1597 = vsub.f32 %v1595, %v1596
      %v1598 = vand.u32 %v1597, 4294901760
      %1599 = vmatpush1.msra.mxu0 %v1598
      %v1600 = vand.u32 %v194, 4294901760
      %1601 = vmatprep.mubr.f32.mxu0 %v1600
      %v1602 = vand.u32 %v192, 4294901760
      %1603 = vmatmul.mubr.f32.gmra.mrb[0].mxu0 %v1602
      %v1604 = vpop.f32.mrb[0].mxu0
      %v1605 = vadd.f32 %v1358, %v1604
      %v1606 = vpop.f32.mrb[0].mxu0
      %v1607 = vand.u32 %v202, 4294901760
      %1608 = vmatprep.mubr.f32.mxu0 %v1607
      %v1609 = vand.u32 %v200, 4294901760
      %1610 = vmatmul.mubr.f32.gmra.mrb[0].mxu0 %v1609
      %v1611 = vpop.f32.mrb[0].mxu0
      %v1612 = vadd.f32 %v1373, %v1611
      %v1613 = vpop.f32.mrb[0].mxu0
      %1614 = vdwg.mxu0
      %1615 = vmatprep.subr.mxu0 0.0
      %v1616 = vand.u32 %v235, 4294901760
      %v1617 = vsub.f32 %v235, %v1616
      %1618 = vmatpush1.msra.mxu0 %v1617
      %1619 = vmatprep.subr.mxu0 0.0
      %v1620 = vand.u32 %v236, 4294901760
      %v1621 = vsub.f32 %v236, %v1620
      %1622 = vmatpush1.msra.mxu0 %v1621
      %1623 = vmatprep.subr.mxu0 0.0
      %v1624 = vand.u32 %v237, 4294901760
      %v1625 = vsub.f32 %v237, %v1624
      %1626 = vmatpush1.msra.mxu0 %v1625
      %1627 = vmatprep.subr.mxu0 0.0
      %v1628 = vand.u32 %v238, 4294901760
      %v1629 = vsub.f32 %v238, %v1628
      %1630 = vmatpush1.msra.mxu0 %v1629
      %1631 = vmatprep.subr.mxu0 0.0
      %v1632 = vand.u32 %v239, 4294901760
      %v1633 = vsub.f32 %v239, %v1632
      %1634 = vmatpush1.msra.mxu0 %v1633
      %1635 = vmatprep.subr.mxu0 0.0
      %v1636 = vand.u32 %v240, 4294901760
      %v1637 = vsub.f32 %v240, %v1636
      %1638 = vmatpush1.msra.mxu0 %v1637
      %1639 = vmatprep.subr.mxu0 0.0
      %v1640 = vand.u32 %v241, 4294901760
      %v1641 = vsub.f32 %v241, %v1640
      %1642 = vmatpush1.msra.mxu0 %v1641
      %1643 = vmatprep.subr.mxu0 0.0
      %v1644 = vand.u32 %v242, 4294901760
      %v1645 = vsub.f32 %v242, %v1644
      %1646 = vmatpush1.msra.mxu0 %v1645
      %1647 = vmatprep.subr.mxu0 0.0
      %v1648 = vand.u32 %v243, 4294901760
      %v1649 = vsub.f32 %v243, %v1648
      %1650 = vmatpush1.msra.mxu0 %v1649
      %1651 = vmatprep.subr.mxu0 0.0
      %v1652 = vand.u32 %v244, 4294901760
      %v1653 = vsub.f32 %v244, %v1652
      %1654 = vmatpush1.msra.mxu0 %v1653
      %1655 = vmatprep.subr.mxu0 0.0
      %v1656 = vand.u32 %v245, 4294901760
      %v1657 = vsub.f32 %v245, %v1656
      %1658 = vmatpush1.msra.mxu0 %v1657
      %1659 = vmatprep.subr.mxu0 0.0
      %v1660 = vand.u32 %v246, 4294901760
      %v1661 = vsub.f32 %v246, %v1660
      %1662 = vmatpush1.msra.mxu0 %v1661
      %1663 = vmatprep.subr.mxu0 0.0
      %v1664 = vand.u32 %v247, 4294901760
      %v1665 = vsub.f32 %v247, %v1664
      %1666 = vmatpush1.msra.mxu0 %v1665
      %1667 = vmatprep.subr.mxu0 0.0
      %v1668 = vand.u32 %v248, 4294901760
      %v1669 = vsub.f32 %v248, %v1668
      %1670 = vmatpush1.msra.mxu0 %v1669
      %1671 = vmatprep.subr.mxu0 0.0
      %v1672 = vand.u32 %v249, 4294901760
      %v1673 = vsub.f32 %v249, %v1672
      %1674 = vmatpush1.msra.mxu0 %v1673
      %1675 = vmatprep.subr.mxu0 0.0
      %v1676 = vand.u32 %v250, 4294901760
      %v1677 = vsub.f32 %v250, %v1676
      %1678 = vmatpush1.msra.mxu0 %v1677
      %1679 = vmatprep.subr.mxu0 0.0
      %v1680 = vand.u32 %v251, 4294901760
      %v1681 = vsub.f32 %v251, %v1680
      %1682 = vmatpush1.msra.mxu0 %v1681
      %1683 = vmatprep.subr.mxu0 0.0
      %v1684 = vand.u32 %v252, 4294901760
      %v1685 = vsub.f32 %v252, %v1684
      %1686 = vmatpush1.msra.mxu0 %v1685
      %1687 = vmatprep.subr.mxu0 0.0
      %v1688 = vand.u32 %v253, 4294901760
      %v1689 = vsub.f32 %v253, %v1688
      %1690 = vmatpush1.msra.mxu0 %v1689
      %1691 = vmatprep.subr.mxu0 0.0
      %v1692 = vand.u32 %v254, 4294901760
      %v1693 = vsub.f32 %v254, %v1692
      %1694 = vmatpush1.msra.mxu0 %v1693
      %1695 = vmatprep.subr.mxu0 0.0
      %v1696 = vand.u32 %v255, 4294901760
      %v1697 = vsub.f32 %v255, %v1696
      %1698 = vmatpush1.msra.mxu0 %v1697
      %1699 = vmatprep.subr.mxu0 0.0
      %v1700 = vand.u32 %v256, 4294901760
      %v1701 = vsub.f32 %v256, %v1700
      %1702 = vmatpush1.msra.mxu0 %v1701
      %1703 = vmatprep.subr.mxu0 0.0
      %v1704 = vand.u32 %v257, 4294901760
      %v1705 = vsub.f32 %v257, %v1704
      %1706 = vmatpush1.msra.mxu0 %v1705
      %1707 = vmatprep.subr.mxu0 0.0
      %v1708 = vand.u32 %v258, 4294901760
      %v1709 = vsub.f32 %v258, %v1708
      %1710 = vmatpush1.msra.mxu0 %v1709
      %1711 = vmatprep.subr.mxu0 0.0
      %v1712 = vand.u32 %v259, 4294901760
      %v1713 = vsub.f32 %v259, %v1712
      %1714 = vmatpush1.msra.mxu0 %v1713
      %1715 = vmatprep.subr.mxu0 0.0
      %v1716 = vand.u32 %v260, 4294901760
      %v1717 = vsub.f32 %v260, %v1716
      %1718 = vmatpush1.msra.mxu0 %v1717
      %1719 = vmatprep.subr.mxu0 0.0
      %v1720 = vand.u32 %v261, 4294901760
      %v1721 = vsub.f32 %v261, %v1720
      %1722 = vmatpush1.msra.mxu0 %v1721
      %1723 = vmatprep.subr.mxu0 0.0
      %v1724 = vand.u32 %v262, 4294901760
      %v1725 = vsub.f32 %v262, %v1724
      %1726 = vmatpush1.msra.mxu0 %v1725
      %1727 = vmatprep.subr.mxu0 0.0
      %v1728 = vand.u32 %v263, 4294901760
      %v1729 = vsub.f32 %v263, %v1728
      %1730 = vmatpush1.msra.mxu0 %v1729
      %1731 = vmatprep.subr.mxu0 0.0
      %v1732 = vand.u32 %v264, 4294901760
      %v1733 = vsub.f32 %v264, %v1732
      %1734 = vmatpush1.msra.mxu0 %v1733
      %1735 = vmatprep.subr.mxu0 0.0
      %v1736 = vand.u32 %v265, 4294901760
      %v1737 = vsub.f32 %v265, %v1736
      %1738 = vmatpush1.msra.mxu0 %v1737
      %1739 = vmatprep.subr.mxu0 0.0
      %v1740 = vand.u32 %v266, 4294901760
      %v1741 = vsub.f32 %v266, %v1740
      %1742 = vmatpush1.msra.mxu0 %v1741
      %v1743 = vand.u32 %v194, 4294901760
      %v1744 = vsub.f32 %v194, %v1743
      %1745 = vmatprep.mubr.f32.mxu0 %v1744
      %v1746 = vand.u32 %v192, 4294901760
      %v1747 = vsub.f32 %v192, %v1746
      %1748 = vmatmul.mubr.f32.gmra.mrb[0].mxu0 %v1747
      %v1749 = vpop.f32.mrb[0].mxu0
      %v1750 = vadd.f32 %v1605, %v1749
      %v1751 = vpop.f32.mrb[0].mxu0
      %v1752 = vand.u32 %v202, 4294901760
      %v1753 = vsub.f32 %v202, %v1752
      %1754 = vmatprep.mubr.f32.mxu0 %v1753
      %v1755 = vand.u32 %v200, 4294901760
      %v1756 = vsub.f32 %v200, %v1755
      %1757 = vmatmul.mubr.f32.gmra.mrb[0].mxu0 %v1756
      %v1758 = vpop.f32.mrb[0].mxu0
      %v1759 = vadd.f32 %v1612, %v1758
      %v1760 = vpop.f32.mrb[0].mxu0
      %1761 = vdwg.mxu0
      %1762 = vmatprep.subr.mxu0 0.0
      %v1763 = vand.u32 %v235, 4294901760
      %1764 = vmatpush1.msra.mxu0 %v1763
      %1765 = vmatprep.subr.mxu0 0.0
      %v1766 = vand.u32 %v236, 4294901760
      %1767 = vmatpush1.msra.mxu0 %v1766
      %1768 = vmatprep.subr.mxu0 0.0
      %v1769 = vand.u32 %v237, 4294901760
      %1770 = vmatpush1.msra.mxu0 %v1769
      %1771 = vmatprep.subr.mxu0 0.0
      %v1772 = vand.u32 %v238, 4294901760
      %1773 = vmatpush1.msra.mxu0 %v1772
      %1774 = vmatprep.subr.mxu0 0.0
      %v1775 = vand.u32 %v239, 4294901760
      %1776 = vmatpush1.msra.mxu0 %v1775
      %1777 = vmatprep.subr.mxu0 0.0
      %v1778 = vand.u32 %v240, 4294901760
      %1779 = vmatpush1.msra.mxu0 %v1778
      %1780 = vmatprep.subr.mxu0 0.0
      %v1781 = vand.u32 %v241, 4294901760
      %1782 = vmatpush1.msra.mxu0 %v1781
      %1783 = vmatprep.subr.mxu0 0.0
      %v1784 = vand.u32 %v242, 4294901760
      %1785 = vmatpush1.msra.mxu0 %v1784
      %1786 = vmatprep.subr.mxu0 0.0
      %v1787 = vand.u32 %v243, 4294901760
      %1788 = vmatpush1.msra.mxu0 %v1787
      %1789 = vmatprep.subr.mxu0 0.0
      %v1790 = vand.u32 %v244, 4294901760
      %1791 = vmatpush1.msra.mxu0 %v1790
      %1792 = vmatprep.subr.mxu0 0.0
      %v1793 = vand.u32 %v245, 4294901760
      %1794 = vmatpush1.msra.mxu0 %v1793
      %1795 = vmatprep.subr.mxu0 0.0
      %v1796 = vand.u32 %v246, 4294901760
      %1797 = vmatpush1.msra.mxu0 %v1796
      %1798 = vmatprep.subr.mxu0 0.0
      %v1799 = vand.u32 %v247, 4294901760
      %1800 = vmatpush1.msra.mxu0 %v1799
      %1801 = vmatprep.subr.mxu0 0.0
      %v1802 = vand.u32 %v248, 4294901760
      %1803 = vmatpush1.msra.mxu0 %v1802
      %1804 = vmatprep.subr.mxu0 0.0
      %v1805 = vand.u32 %v249, 4294901760
      %1806 = vmatpush1.msra.mxu0 %v1805
      %1807 = vmatprep.subr.mxu0 0.0
      %v1808 = vand.u32 %v250, 4294901760
      %1809 = vmatpush1.msra.mxu0 %v1808
      %1810 = vmatprep.subr.mxu0 0.0
      %v1811 = vand.u32 %v251, 4294901760
      %1812 = vmatpush1.msra.mxu0 %v1811
      %1813 = vmatprep.subr.mxu0 0.0
      %v1814 = vand.u32 %v252, 4294901760
      %1815 = vmatpush1.msra.mxu0 %v1814
      %1816 = vmatprep.subr.mxu0 0.0
      %v1817 = vand.u32 %v253, 4294901760
      %1818 = vmatpush1.msra.mxu0 %v1817
      %1819 = vmatprep.subr.mxu0 0.0
      %v1820 = vand.u32 %v254, 4294901760
      %1821 = vmatpush1.msra.mxu0 %v1820
      %1822 = vmatprep.subr.mxu0 0.0
      %v1823 = vand.u32 %v255, 4294901760
      %1824 = vmatpush1.msra.mxu0 %v1823
      %1825 = vmatprep.subr.mxu0 0.0
      %v1826 = vand.u32 %v256, 4294901760
      %1827 = vmatpush1.msra.mxu0 %v1826
      %1828 = vmatprep.subr.mxu0 0.0
      %v1829 = vand.u32 %v257, 4294901760
      %1830 = vmatpush1.msra.mxu0 %v1829
      %1831 = vmatprep.subr.mxu0 0.0
      %v1832 = vand.u32 %v258, 4294901760
      %1833 = vmatpush1.msra.mxu0 %v1832
      %1834 = vmatprep.subr.mxu0 0.0
      %v1835 = vand.u32 %v259, 4294901760
      %1836 = vmatpush1.msra.mxu0 %v1835
      %1837 = vmatprep.subr.mxu0 0.0
      %v1838 = vand.u32 %v260, 4294901760
      %1839 = vmatpush1.msra.mxu0 %v1838
      %1840 = vmatprep.subr.mxu0 0.0
      %v1841 = vand.u32 %v261, 4294901760
      %1842 = vmatpush1.msra.mxu0 %v1841
      %1843 = vmatprep.subr.mxu0 0.0
      %v1844 = vand.u32 %v262, 4294901760
      %1845 = vmatpush1.msra.mxu0 %v1844
      %1846 = vmatprep.subr.mxu0 0.0
      %v1847 = vand.u32 %v263, 4294901760
      %1848 = vmatpush1.msra.mxu0 %v1847
      %1849 = vmatprep.subr.mxu0 0.0
      %v1850 = vand.u32 %v264, 4294901760
      %1851 = vmatpush1.msra.mxu0 %v1850
      %1852 = vmatprep.subr.mxu0 0.0
      %v1853 = vand.u32 %v265, 4294901760
      %1854 = vmatpush1.msra.mxu0 %v1853
      %1855 = vmatprep.subr.mxu0 0.0
      %v1856 = vand.u32 %v266, 4294901760
      %1857 = vmatpush1.msra.mxu0 %v1856
      %v1858 = vand.u32 %v194, 4294901760
      %v1859 = vsub.f32 %v194, %v1858
      %v1860 = vand.u32 %v1859, 4294901760
      %1861 = vmatprep.mubr.f32.mxu0 %v1860
      %v1862 = vand.u32 %v192, 4294901760
      %v1863 = vsub.f32 %v192, %v1862
      %v1864 = vand.u32 %v1863, 4294901760
      %1865 = vmatmul.mubr.f32.gmra.mrb[0].mxu0 %v1864
      %v1866 = vpop.f32.mrb[0].mxu0
      %v1867 = vadd.f32 %v1750, %v1866
      %v1868 = vpop.f32.mrb[0].mxu0
      %v1869 = vand.u32 %v202, 4294901760
      %v1870 = vsub.f32 %v202, %v1869
      %v1871 = vand.u32 %v1870, 4294901760
      %1872 = vmatprep.mubr.f32.mxu0 %v1871
      %v1873 = vand.u32 %v200, 4294901760
      %v1874 = vsub.f32 %v200, %v1873
      %v1875 = vand.u32 %v1874, 4294901760
      %1876 = vmatmul.mubr.f32.gmra.mrb[0].mxu0 %v1875
      %v1877 = vpop.f32.mrb[0].mxu0
      %v1878 = vadd.f32 %v1759, %v1877
      %v1879 = vpop.f32.mrb[0].mxu0
      %1880 = vdwg.mxu0
      %1881 = vmatprep.subr.mxu0 0.0
      %v1882 = vand.u32 %v235, 4294901760
      %v1883 = vsub.f32 %v235, %v1882
      %v1884 = vand.u32 %v1883, 4294901760
      %1885 = vmatpush1.msra.mxu0 %v1884
      %1886 = vmatprep.subr.mxu0 0.0
      %v1887 = vand.u32 %v236, 4294901760
      %v1888 = vsub.f32 %v236, %v1887
      %v1889 = vand.u32 %v1888, 4294901760
      %1890 = vmatpush1.msra.mxu0 %v1889
      %1891 = vmatprep.subr.mxu0 0.0
      %v1892 = vand.u32 %v237, 4294901760
      %v1893 = vsub.f32 %v237, %v1892
      %v1894 = vand.u32 %v1893, 4294901760
      %1895 = vmatpush1.msra.mxu0 %v1894
      %1896 = vmatprep.subr.mxu0 0.0
      %v1897 = vand.u32 %v238, 4294901760
      %v1898 = vsub.f32 %v238, %v1897
      %v1899 = vand.u32 %v1898, 4294901760
      %1900 = vmatpush1.msra.mxu0 %v1899
      %1901 = vmatprep.subr.mxu0 0.0
      %v1902 = vand.u32 %v239, 4294901760
      %v1903 = vsub.f32 %v239, %v1902
      %v1904 = vand.u32 %v1903, 4294901760
      %1905 = vmatpush1.msra.mxu0 %v1904
      %1906 = vmatprep.subr.mxu0 0.0
      %v1907 = vand.u32 %v240, 4294901760
      %v1908 = vsub.f32 %v240, %v1907
      %v1909 = vand.u32 %v1908, 4294901760
      %1910 = vmatpush1.msra.mxu0 %v1909
      %1911 = vmatprep.subr.mxu0 0.0
      %v1912 = vand.u32 %v241, 4294901760
      %v1913 = vsub.f32 %v241, %v1912
      %v1914 = vand.u32 %v1913, 4294901760
      %1915 = vmatpush1.msra.mxu0 %v1914
      %1916 = vmatprep.subr.mxu0 0.0
      %v1917 = vand.u32 %v242, 4294901760
      %v1918 = vsub.f32 %v242, %v1917
      %v1919 = vand.u32 %v1918, 4294901760
      %1920 = vmatpush1.msra.mxu0 %v1919
      %1921 = vmatprep.subr.mxu0 0.0
      %v1922 = vand.u32 %v243, 4294901760
      %v1923 = vsub.f32 %v243, %v1922
      %v1924 = vand.u32 %v1923, 4294901760
      %1925 = vmatpush1.msra.mxu0 %v1924
      %1926 = vmatprep.subr.mxu0 0.0
      %v1927 = vand.u32 %v244, 4294901760
      %v1928 = vsub.f32 %v244, %v1927
      %v1929 = vand.u32 %v1928, 4294901760
      %1930 = vmatpush1.msra.mxu0 %v1929
      %1931 = vmatprep.subr.mxu0 0.0
      %v1932 = vand.u32 %v245, 4294901760
      %v1933 = vsub.f32 %v245, %v1932
      %v1934 = vand.u32 %v1933, 4294901760
      %1935 = vmatpush1.msra.mxu0 %v1934
      %1936 = vmatprep.subr.mxu0 0.0
      %v1937 = vand.u32 %v246, 4294901760
      %v1938 = vsub.f32 %v246, %v1937
      %v1939 = vand.u32 %v1938, 4294901760
      %1940 = vmatpush1.msra.mxu0 %v1939
      %1941 = vmatprep.subr.mxu0 0.0
      %v1942 = vand.u32 %v247, 4294901760
      %v1943 = vsub.f32 %v247, %v1942
      %v1944 = vand.u32 %v1943, 4294901760
      %1945 = vmatpush1.msra.mxu0 %v1944
      %1946 = vmatprep.subr.mxu0 0.0
      %v1947 = vand.u32 %v248, 4294901760
      %v1948 = vsub.f32 %v248, %v1947
      %v1949 = vand.u32 %v1948, 4294901760
      %1950 = vmatpush1.msra.mxu0 %v1949
      %1951 = vmatprep.subr.mxu0 0.0
      %v1952 = vand.u32 %v249, 4294901760
      %v1953 = vsub.f32 %v249, %v1952
      %v1954 = vand.u32 %v1953, 4294901760
      %1955 = vmatpush1.msra.mxu0 %v1954
      %1956 = vmatprep.subr.mxu0 0.0
      %v1957 = vand.u32 %v250, 4294901760
      %v1958 = vsub.f32 %v250, %v1957
      %v1959 = vand.u32 %v1958, 4294901760
      %1960 = vmatpush1.msra.mxu0 %v1959
      %1961 = vmatprep.subr.mxu0 0.0
      %v1962 = vand.u32 %v251, 4294901760
      %v1963 = vsub.f32 %v251, %v1962
      %v1964 = vand.u32 %v1963, 4294901760
      %1965 = vmatpush1.msra.mxu0 %v1964
      %1966 = vmatprep.subr.mxu0 0.0
      %v1967 = vand.u32 %v252, 4294901760
      %v1968 = vsub.f32 %v252, %v1967
      %v1969 = vand.u32 %v1968, 4294901760
      %1970 = vmatpush1.msra.mxu0 %v1969
      %1971 = vmatprep.subr.mxu0 0.0
      %v1972 = vand.u32 %v253, 4294901760
      %v1973 = vsub.f32 %v253, %v1972
      %v1974 = vand.u32 %v1973, 4294901760
      %1975 = vmatpush1.msra.mxu0 %v1974
      %1976 = vmatprep.subr.mxu0 0.0
      %v1977 = vand.u32 %v254, 4294901760
      %v1978 = vsub.f32 %v254, %v1977
      %v1979 = vand.u32 %v1978, 4294901760
      %1980 = vmatpush1.msra.mxu0 %v1979
      %1981 = vmatprep.subr.mxu0 0.0
      %v1982 = vand.u32 %v255, 4294901760
      %v1983 = vsub.f32 %v255, %v1982
      %v1984 = vand.u32 %v1983, 4294901760
      %1985 = vmatpush1.msra.mxu0 %v1984
      %1986 = vmatprep.subr.mxu0 0.0
      %v1987 = vand.u32 %v256, 4294901760
      %v1988 = vsub.f32 %v256, %v1987
      %v1989 = vand.u32 %v1988, 4294901760
      %1990 = vmatpush1.msra.mxu0 %v1989
      %1991 = vmatprep.subr.mxu0 0.0
      %v1992 = vand.u32 %v257, 4294901760
      %v1993 = vsub.f32 %v257, %v1992
      %v1994 = vand.u32 %v1993, 4294901760
      %1995 = vmatpush1.msra.mxu0 %v1994
      %1996 = vmatprep.subr.mxu0 0.0
      %v1997 = vand.u32 %v258, 4294901760
      %v1998 = vsub.f32 %v258, %v1997
      %v1999 = vand.u32 %v1998, 4294901760
      %2000 = vmatpush1.msra.mxu0 %v1999
      %2001 = vmatprep.subr.mxu0 0.0
      %v2002 = vand.u32 %v259, 4294901760
      %v2003 = vsub.f32 %v259, %v2002
      %v2004 = vand.u32 %v2003, 4294901760
      %2005 = vmatpush1.msra.mxu0 %v2004
      %2006 = vmatprep.subr.mxu0 0.0
      %v2007 = vand.u32 %v260, 4294901760
      %v2008 = vsub.f32 %v260, %v2007
      %v2009 = vand.u32 %v2008, 4294901760
      %2010 = vmatpush1.msra.mxu0 %v2009
      %2011 = vmatprep.subr.mxu0 0.0
      %v2012 = vand.u32 %v261, 4294901760
      %v2013 = vsub.f32 %v261, %v2012
      %v2014 = vand.u32 %v2013, 4294901760
      %2015 = vmatpush1.msra.mxu0 %v2014
      %2016 = vmatprep.subr.mxu0 0.0
      %v2017 = vand.u32 %v262, 4294901760
      %v2018 = vsub.f32 %v262, %v2017
      %v2019 = vand.u32 %v2018, 4294901760
      %2020 = vmatpush1.msra.mxu0 %v2019
      %2021 = vmatprep.subr.mxu0 0.0
      %v2022 = vand.u32 %v263, 4294901760
      %v2023 = vsub.f32 %v263, %v2022
      %v2024 = vand.u32 %v2023, 4294901760
      %2025 = vmatpush1.msra.mxu0 %v2024
      %2026 = vmatprep.subr.mxu0 0.0
      %v2027 = vand.u32 %v264, 4294901760
      %v2028 = vsub.f32 %v264, %v2027
      %v2029 = vand.u32 %v2028, 4294901760
      %2030 = vmatpush1.msra.mxu0 %v2029
      %2031 = vmatprep.subr.mxu0 0.0
      %v2032 = vand.u32 %v265, 4294901760
      %v2033 = vsub.f32 %v265, %v2032
      %v2034 = vand.u32 %v2033, 4294901760
      %2035 = vmatpush1.msra.mxu0 %v2034
      %2036 = vmatprep.subr.mxu0 0.0
      %v2037 = vand.u32 %v266, 4294901760
      %v2038 = vsub.f32 %v266, %v2037
      %v2039 = vand.u32 %v2038, 4294901760
      %2040 = vmatpush1.msra.mxu0 %v2039
      %v2041 = vand.u32 %v194, 4294901760
      %2042 = vmatprep.mubr.f32.mxu0 %v2041
      %v2043 = vand.u32 %v192, 4294901760
      %2044 = vmatmul.mubr.f32.gmra.mrb[0].mxu0 %v2043
      %v2045 = vpop.f32.mrb[0].mxu0
      %v2046 = vadd.f32 %v1867, %v2045
      %v2047 = vpop.f32.mrb[0].mxu0
      %v2048 = vand.u32 %v202, 4294901760
      %2049 = vmatprep.mubr.f32.mxu0 %v2048
      %v2050 = vand.u32 %v200, 4294901760
      %2051 = vmatmul.mubr.f32.gmra.mrb[0].mxu0 %v2050
      %v2052 = vpop.f32.mrb[0].mxu0
      %v2053 = vadd.f32 %v1878, %v2052
      %v2054 = vpop.f32.mrb[0].mxu0
      %2055 = vdwg.mxu0
      %2056 = vmatprep.subr.mxu0 0.0
      %v2057 = vand.u32 %v235, 4294901760
      %2058 = vmatpush1.msra.mxu0 %v2057
      %2059 = vmatprep.subr.mxu0 0.0
      %v2060 = vand.u32 %v236, 4294901760
      %2061 = vmatpush1.msra.mxu0 %v2060
      %2062 = vmatprep.subr.mxu0 0.0
      %v2063 = vand.u32 %v237, 4294901760
      %2064 = vmatpush1.msra.mxu0 %v2063
      %2065 = vmatprep.subr.mxu0 0.0
      %v2066 = vand.u32 %v238, 4294901760
      %2067 = vmatpush1.msra.mxu0 %v2066
      %2068 = vmatprep.subr.mxu0 0.0
      %v2069 = vand.u32 %v239, 4294901760
      %2070 = vmatpush1.msra.mxu0 %v2069
      %2071 = vmatprep.subr.mxu0 0.0
      %v2072 = vand.u32 %v240, 4294901760
      %2073 = vmatpush1.msra.mxu0 %v2072
      %2074 = vmatprep.subr.mxu0 0.0
      %v2075 = vand.u32 %v241, 4294901760
      %2076 = vmatpush1.msra.mxu0 %v2075
      %2077 = vmatprep.subr.mxu0 0.0
      %v2078 = vand.u32 %v242, 4294901760
      %2079 = vmatpush1.msra.mxu0 %v2078
      %2080 = vmatprep.subr.mxu0 0.0
      %v2081 = vand.u32 %v243, 4294901760
      %2082 = vmatpush1.msra.mxu0 %v2081
      %2083 = vmatprep.subr.mxu0 0.0
      %v2084 = vand.u32 %v244, 4294901760
      %2085 = vmatpush1.msra.mxu0 %v2084
      %2086 = vmatprep.subr.mxu0 0.0
      %v2087 = vand.u32 %v245, 4294901760
      %2088 = vmatpush1.msra.mxu0 %v2087
      %2089 = vmatprep.subr.mxu0 0.0
      %v2090 = vand.u32 %v246, 4294901760
      %2091 = vmatpush1.msra.mxu0 %v2090
      %2092 = vmatprep.subr.mxu0 0.0
      %v2093 = vand.u32 %v247, 4294901760
      %2094 = vmatpush1.msra.mxu0 %v2093
      %2095 = vmatprep.subr.mxu0 0.0
      %v2096 = vand.u32 %v248, 4294901760
      %2097 = vmatpush1.msra.mxu0 %v2096
      %2098 = vmatprep.subr.mxu0 0.0
      %v2099 = vand.u32 %v249, 4294901760
      %2100 = vmatpush1.msra.mxu0 %v2099
      %2101 = vmatprep.subr.mxu0 0.0
      %v2102 = vand.u32 %v250, 4294901760
      %2103 = vmatpush1.msra.mxu0 %v2102
      %2104 = vmatprep.subr.mxu0 0.0
      %v2105 = vand.u32 %v251, 4294901760
      %2106 = vmatpush1.msra.mxu0 %v2105
      %2107 = vmatprep.subr.mxu0 0.0
      %v2108 = vand.u32 %v252, 4294901760
      %2109 = vmatpush1.msra.mxu0 %v2108
      %2110 = vmatprep.subr.mxu0 0.0
      %v2111 = vand.u32 %v253, 4294901760
      %2112 = vmatpush1.msra.mxu0 %v2111
      %2113 = vmatprep.subr.mxu0 0.0
      %v2114 = vand.u32 %v254, 4294901760
      %2115 = vmatpush1.msra.mxu0 %v2114
      %2116 = vmatprep.subr.mxu0 0.0
      %v2117 = vand.u32 %v255, 4294901760
      %2118 = vmatpush1.msra.mxu0 %v2117
      %2119 = vmatprep.subr.mxu0 0.0
      %v2120 = vand.u32 %v256, 4294901760
      %2121 = vmatpush1.msra.mxu0 %v2120
      %2122 = vmatprep.subr.mxu0 0.0
      %v2123 = vand.u32 %v257, 4294901760
      %2124 = vmatpush1.msra.mxu0 %v2123
      %2125 = vmatprep.subr.mxu0 0.0
      %v2126 = vand.u32 %v258, 4294901760
      %2127 = vmatpush1.msra.mxu0 %v2126
      %2128 = vmatprep.subr.mxu0 0.0
      %v2129 = vand.u32 %v259, 4294901760
      %2130 = vmatpush1.msra.mxu0 %v2129
      %2131 = vmatprep.subr.mxu0 0.0
      %v2132 = vand.u32 %v260, 4294901760
      %2133 = vmatpush1.msra.mxu0 %v2132
      %2134 = vmatprep.subr.mxu0 0.0
      %v2135 = vand.u32 %v261, 4294901760
      %2136 = vmatpush1.msra.mxu0 %v2135
      %2137 = vmatprep.subr.mxu0 0.0
      %v2138 = vand.u32 %v262, 4294901760
      %2139 = vmatpush1.msra.mxu0 %v2138
      %2140 = vmatprep.subr.mxu0 0.0
      %v2141 = vand.u32 %v263, 4294901760
      %2142 = vmatpush1.msra.mxu0 %v2141
      %2143 = vmatprep.subr.mxu0 0.0
      %v2144 = vand.u32 %v264, 4294901760
      %2145 = vmatpush1.msra.mxu0 %v2144
      %2146 = vmatprep.subr.mxu0 0.0
      %v2147 = vand.u32 %v265, 4294901760
      %2148 = vmatpush1.msra.mxu0 %v2147
      %2149 = vmatprep.subr.mxu0 0.0
      %v2150 = vand.u32 %v266, 4294901760
      %2151 = vmatpush1.msra.mxu0 %v2150
      %v2152 = vand.u32 %v194, 4294901760
      %2153 = vmatprep.mubr.f32.mxu0 %v2152
      %v2154 = vand.u32 %v192, 4294901760
      %2155 = vmatmul.mubr.f32.gmra.mrb[0].mxu0 %v2154
      %v2156 = vpop.f32.mrb[0].mxu0
      %v2157 = vadd.f32 %v2046, %v2156
      %v2158 = vpop.f32.mrb[0].mxu0
      %v2159 = vand.u32 %v202, 4294901760
      %2160 = vmatprep.mubr.f32.mxu0 %v2159
      %v2161 = vand.u32 %v200, 4294901760
      %2162 = vmatmul.mubr.f32.gmra.mrb[0].mxu0 %v2161
      %v2163 = vpop.f32.mrb[0].mxu0
      %v2164 = vadd.f32 %v2053, %v2163
      %v2165 = vpop.f32.mrb[0].mxu0
      %2166 = vdwg.mxu0
      %v2167 = vmul.f32 %v2157, 0.0078125
      %v2168 = vmul.f32 %v2164, 0.0078125
      %v2169 = vand.u32 %v268, 4294901760
      %2170 = vmatprep.subr.mxu0 %v2169
      %v2171 = vand.u32 %v267, 4294901760
      %2172 = vmatpush1.msra.mxu0 %v2171
      %v2173 = vand.u32 %v272, 4294901760
      %2174 = vmatprep.subr.mxu0 %v2173
      %v2175 = vand.u32 %v271, 4294901760
      %2176 = vmatpush1.msra.mxu0 %v2175
      %v2177 = vand.u32 %v276, 4294901760
      %2178 = vmatprep.subr.mxu0 %v2177
      %v2179 = vand.u32 %v275, 4294901760
      %2180 = vmatpush1.msra.mxu0 %v2179
      %v2181 = vand.u32 %v280, 4294901760
      %2182 = vmatprep.subr.mxu0 %v2181
      %v2183 = vand.u32 %v279, 4294901760
      %2184 = vmatpush1.msra.mxu0 %v2183
      %v2185 = vand.u32 %v284, 4294901760
      %2186 = vmatprep.subr.mxu0 %v2185
      %v2187 = vand.u32 %v283, 4294901760
      %2188 = vmatpush1.msra.mxu0 %v2187
      %v2189 = vand.u32 %v288, 4294901760
      %2190 = vmatprep.subr.mxu0 %v2189
      %v2191 = vand.u32 %v287, 4294901760
      %2192 = vmatpush1.msra.mxu0 %v2191
      %v2193 = vand.u32 %v292, 4294901760
      %2194 = vmatprep.subr.mxu0 %v2193
      %v2195 = vand.u32 %v291, 4294901760
      %2196 = vmatpush1.msra.mxu0 %v2195
      %v2197 = vand.u32 %v296, 4294901760
      %2198 = vmatprep.subr.mxu0 %v2197
      %v2199 = vand.u32 %v295, 4294901760
      %2200 = vmatpush1.msra.mxu0 %v2199
      %v2201 = vand.u32 %v300, 4294901760
      %2202 = vmatprep.subr.mxu0 %v2201
      %v2203 = vand.u32 %v299, 4294901760
      %2204 = vmatpush1.msra.mxu0 %v2203
      %v2205 = vand.u32 %v304, 4294901760
      %2206 = vmatprep.subr.mxu0 %v2205
      %v2207 = vand.u32 %v303, 4294901760
      %2208 = vmatpush1.msra.mxu0 %v2207
      %v2209 = vand.u32 %v308, 4294901760
      %2210 = vmatprep.subr.mxu0 %v2209
      %v2211 = vand.u32 %v307, 4294901760
      %2212 = vmatpush1.msra.mxu0 %v2211
      %v2213 = vand.u32 %v312, 4294901760
      %2214 = vmatprep.subr.mxu0 %v2213
      %v2215 = vand.u32 %v311, 4294901760
      %2216 = vmatpush1.msra.mxu0 %v2215
      %v2217 = vand.u32 %v316, 4294901760
      %2218 = vmatprep.subr.mxu0 %v2217
      %v2219 = vand.u32 %v315, 4294901760
      %2220 = vmatpush1.msra.mxu0 %v2219
      %v2221 = vand.u32 %v320, 4294901760
      %2222 = vmatprep.subr.mxu0 %v2221
      %v2223 = vand.u32 %v319, 4294901760
      %2224 = vmatpush1.msra.mxu0 %v2223
      %v2225 = vand.u32 %v324, 4294901760
      %2226 = vmatprep.subr.mxu0 %v2225
      %v2227 = vand.u32 %v323, 4294901760
      %2228 = vmatpush1.msra.mxu0 %v2227
      %v2229 = vand.u32 %v328, 4294901760
      %2230 = vmatprep.subr.mxu0 %v2229
      %v2231 = vand.u32 %v327, 4294901760
      %2232 = vmatpush1.msra.mxu0 %v2231
      %2233 = vmatprep.subr.mxu0 0.0
      %2234 = vmatpush1.msra.mxu0 0.0
      %2235 = vmatprep.subr.mxu0 0.0
      %2236 = vmatpush1.msra.mxu0 0.0
      %2237 = vmatprep.subr.mxu0 0.0
      %2238 = vmatpush1.msra.mxu0 0.0
      %2239 = vmatprep.subr.mxu0 0.0
      %2240 = vmatpush1.msra.mxu0 0.0
      %2241 = vmatprep.subr.mxu0 0.0
      %2242 = vmatpush1.msra.mxu0 0.0
      %2243 = vmatprep.subr.mxu0 0.0
      %2244 = vmatpush1.msra.mxu0 0.0
      %2245 = vmatprep.subr.mxu0 0.0
      %2246 = vmatpush1.msra.mxu0 0.0
      %2247 = vmatprep.subr.mxu0 0.0
      %2248 = vmatpush1.msra.mxu0 0.0
      %2249 = vmatprep.subr.mxu0 0.0
      %2250 = vmatpush1.msra.mxu0 0.0
      %2251 = vmatprep.subr.mxu0 0.0
      %2252 = vmatpush1.msra.mxu0 0.0
      %2253 = vmatprep.subr.mxu0 0.0
      %2254 = vmatpush1.msra.mxu0 0.0
      %2255 = vmatprep.subr.mxu0 0.0
      %2256 = vmatpush1.msra.mxu0 0.0
      %2257 = vmatprep.subr.mxu0 0.0
      %2258 = vmatpush1.msra.mxu0 0.0
      %2259 = vmatprep.subr.mxu0 0.0
      %2260 = vmatpush1.msra.mxu0 0.0
      %2261 = vmatprep.subr.mxu0 0.0
      %2262 = vmatpush1.msra.mxu0 0.0
      %2263 = vmatprep.subr.mxu0 0.0
      %2264 = vmatpush1.msra.mxu0 0.0
      %2265 = vmatprep.mubr.f32.mxu0 0.0
      %v2266 = vand.u32 %v2167, 4294901760
      %v2267 = vsub.f32 %v2167, %v2266
      %v2268 = vand.u32 %v2267, 4294901760
      %v2269 = vsub.f32 %v2267, %v2268
      %v2270 = vand.u32 %v2269, 4294901760
      %2271 = vmatmul.mubr.f32.gmra.mrb[0].mxu0 %v2270
      %v2272 = vpop.f32.mrb[0].mxu0
      %v2273 = vadd.f32 0.0, %v2272
      %v2274 = vpop.f32.mrb[0].mxu0
      %v2275 = vadd.f32 0.0, %v2274
      %2276 = vmatprep.mubr.f32.mxu0 0.0
      %v2277 = vand.u32 %v2168, 4294901760
      %v2278 = vsub.f32 %v2168, %v2277
      %v2279 = vand.u32 %v2278, 4294901760
      %v2280 = vsub.f32 %v2278, %v2279
      %v2281 = vand.u32 %v2280, 4294901760
      %2282 = vmatmul.mubr.f32.gmra.mrb[0].mxu0 %v2281
      %v2283 = vpop.f32.mrb[0].mxu0
      %v2284 = vadd.f32 0.0, %v2283
      %v2285 = vpop.f32.mrb[0].mxu0
      %v2286 = vadd.f32 0.0, %v2285
      %2287 = vdwg.mxu0
      %v2288 = vand.u32 %v268, 4294901760
      %v2289 = vsub.f32 %v268, %v2288
      %v2290 = vand.u32 %v2289, 4294901760
      %v2291 = vsub.f32 %v2289, %v2290
      %v2292 = vand.u32 %v2291, 4294901760
      %2293 = vmatprep.subr.mxu0 %v2292
      %v2294 = vand.u32 %v267, 4294901760
      %v2295 = vsub.f32 %v267, %v2294
      %v2296 = vand.u32 %v2295, 4294901760
      %v2297 = vsub.f32 %v2295, %v2296
      %v2298 = vand.u32 %v2297, 4294901760
      %2299 = vmatpush1.msra.mxu0 %v2298
      %v2300 = vand.u32 %v272, 4294901760
      %v2301 = vsub.f32 %v272, %v2300
      %v2302 = vand.u32 %v2301, 4294901760
      %v2303 = vsub.f32 %v2301, %v2302
      %v2304 = vand.u32 %v2303, 4294901760
      %2305 = vmatprep.subr.mxu0 %v2304
      %v2306 = vand.u32 %v271, 4294901760
      %v2307 = vsub.f32 %v271, %v2306
      %v2308 = vand.u32 %v2307, 4294901760
      %v2309 = vsub.f32 %v2307, %v2308
      %v2310 = vand.u32 %v2309, 4294901760
      %2311 = vmatpush1.msra.mxu0 %v2310
      %v2312 = vand.u32 %v276, 4294901760
      %v2313 = vsub.f32 %v276, %v2312
      %v2314 = vand.u32 %v2313, 4294901760
      %v2315 = vsub.f32 %v2313, %v2314
      %v2316 = vand.u32 %v2315, 4294901760
      %2317 = vmatprep.subr.mxu0 %v2316
      %v2318 = vand.u32 %v275, 4294901760
      %v2319 = vsub.f32 %v275, %v2318
      %v2320 = vand.u32 %v2319, 4294901760
      %v2321 = vsub.f32 %v2319, %v2320
      %v2322 = vand.u32 %v2321, 4294901760
      %2323 = vmatpush1.msra.mxu0 %v2322
      %v2324 = vand.u32 %v280, 4294901760
      %v2325 = vsub.f32 %v280, %v2324
      %v2326 = vand.u32 %v2325, 4294901760
      %v2327 = vsub.f32 %v2325, %v2326
      %v2328 = vand.u32 %v2327, 4294901760
      %2329 = vmatprep.subr.mxu0 %v2328
      %v2330 = vand.u32 %v279, 4294901760
      %v2331 = vsub.f32 %v279, %v2330
      %v2332 = vand.u32 %v2331, 4294901760
      %v2333 = vsub.f32 %v2331, %v2332
      %v2334 = vand.u32 %v2333, 4294901760
      %2335 = vmatpush1.msra.mxu0 %v2334
      %v2336 = vand.u32 %v284, 4294901760
      %v2337 = vsub.f32 %v284, %v2336
      %v2338 = vand.u32 %v2337, 4294901760
      %v2339 = vsub.f32 %v2337, %v2338
      %v2340 = vand.u32 %v2339, 4294901760
      %2341 = vmatprep.subr.mxu0 %v2340
      %v2342 = vand.u32 %v283, 4294901760
      %v2343 = vsub.f32 %v283, %v2342
      %v2344 = vand.u32 %v2343, 4294901760
      %v2345 = vsub.f32 %v2343, %v2344
      %v2346 = vand.u32 %v2345, 4294901760
      %2347 = vmatpush1.msra.mxu0 %v2346
      %v2348 = vand.u32 %v288, 4294901760
      %v2349 = vsub.f32 %v288, %v2348
      %v2350 = vand.u32 %v2349, 4294901760
      %v2351 = vsub.f32 %v2349, %v2350
      %v2352 = vand.u32 %v2351, 4294901760
      %2353 = vmatprep.subr.mxu0 %v2352
      %v2354 = vand.u32 %v287, 4294901760
      %v2355 = vsub.f32 %v287, %v2354
      %v2356 = vand.u32 %v2355, 4294901760
      %v2357 = vsub.f32 %v2355, %v2356
      %v2358 = vand.u32 %v2357, 4294901760
      %2359 = vmatpush1.msra.mxu0 %v2358
      %v2360 = vand.u32 %v292, 4294901760
      %v2361 = vsub.f32 %v292, %v2360
      %v2362 = vand.u32 %v2361, 4294901760
      %v2363 = vsub.f32 %v2361, %v2362
      %v2364 = vand.u32 %v2363, 4294901760
      %2365 = vmatprep.subr.mxu0 %v2364
      %v2366 = vand.u32 %v291, 4294901760
      %v2367 = vsub.f32 %v291, %v2366
      %v2368 = vand.u32 %v2367, 4294901760
      %v2369 = vsub.f32 %v2367, %v2368
      %v2370 = vand.u32 %v2369, 4294901760
      %2371 = vmatpush1.msra.mxu0 %v2370
      %v2372 = vand.u32 %v296, 4294901760
      %v2373 = vsub.f32 %v296, %v2372
      %v2374 = vand.u32 %v2373, 4294901760
      %v2375 = vsub.f32 %v2373, %v2374
      %v2376 = vand.u32 %v2375, 4294901760
      %2377 = vmatprep.subr.mxu0 %v2376
      %v2378 = vand.u32 %v295, 4294901760
      %v2379 = vsub.f32 %v295, %v2378
      %v2380 = vand.u32 %v2379, 4294901760
      %v2381 = vsub.f32 %v2379, %v2380
      %v2382 = vand.u32 %v2381, 4294901760
      %2383 = vmatpush1.msra.mxu0 %v2382
      %v2384 = vand.u32 %v300, 4294901760
      %v2385 = vsub.f32 %v300, %v2384
      %v2386 = vand.u32 %v2385, 4294901760
      %v2387 = vsub.f32 %v2385, %v2386
      %v2388 = vand.u32 %v2387, 4294901760
      %2389 = vmatprep.subr.mxu0 %v2388
      %v2390 = vand.u32 %v299, 4294901760
      %v2391 = vsub.f32 %v299, %v2390
      %v2392 = vand.u32 %v2391, 4294901760
      %v2393 = vsub.f32 %v2391, %v2392
      %v2394 = vand.u32 %v2393, 4294901760
      %2395 = vmatpush1.msra.mxu0 %v2394
      %v2396 = vand.u32 %v304, 4294901760
      %v2397 = vsub.f32 %v304, %v2396
      %v2398 = vand.u32 %v2397, 4294901760
      %v2399 = vsub.f32 %v2397, %v2398
      %v2400 = vand.u32 %v2399, 4294901760
      %2401 = vmatprep.subr.mxu0 %v2400
      %v2402 = vand.u32 %v303, 4294901760
      %v2403 = vsub.f32 %v303, %v2402
      %v2404 = vand.u32 %v2403, 4294901760
      %v2405 = vsub.f32 %v2403, %v2404
      %v2406 = vand.u32 %v2405, 4294901760
      %2407 = vmatpush1.msra.mxu0 %v2406
      %v2408 = vand.u32 %v308, 4294901760
      %v2409 = vsub.f32 %v308, %v2408
      %v2410 = vand.u32 %v2409, 4294901760
      %v2411 = vsub.f32 %v2409, %v2410
      %v2412 = vand.u32 %v2411, 4294901760
      %2413 = vmatprep.subr.mxu0 %v2412
      %v2414 = vand.u32 %v307, 4294901760
      %v2415 = vsub.f32 %v307, %v2414
      %v2416 = vand.u32 %v2415, 4294901760
      %v2417 = vsub.f32 %v2415, %v2416
      %v2418 = vand.u32 %v2417, 4294901760
      %2419 = vmatpush1.msra.mxu0 %v2418
      %v2420 = vand.u32 %v312, 4294901760
      %v2421 = vsub.f32 %v312, %v2420
      %v2422 = vand.u32 %v2421, 4294901760
      %v2423 = vsub.f32 %v2421, %v2422
      %v2424 = vand.u32 %v2423, 4294901760
      %2425 = vmatprep.subr.mxu0 %v2424
      %v2426 = vand.u32 %v311, 4294901760
      %v2427 = vsub.f32 %v311, %v2426
      %v2428 = vand.u32 %v2427, 4294901760
      %v2429 = vsub.f32 %v2427, %v2428
      %v2430 = vand.u32 %v2429, 4294901760
      %2431 = vmatpush1.msra.mxu0 %v2430
      %v2432 = vand.u32 %v316, 4294901760
      %v2433 = vsub.f32 %v316, %v2432
      %v2434 = vand.u32 %v2433, 4294901760
      %v2435 = vsub.f32 %v2433, %v2434
      %v2436 = vand.u32 %v2435, 4294901760
      %2437 = vmatprep.subr.mxu0 %v2436
      %v2438 = vand.u32 %v315, 4294901760
      %v2439 = vsub.f32 %v315, %v2438
      %v2440 = vand.u32 %v2439, 4294901760
      %v2441 = vsub.f32 %v2439, %v2440
      %v2442 = vand.u32 %v2441, 4294901760
      %2443 = vmatpush1.msra.mxu0 %v2442
      %v2444 = vand.u32 %v320, 4294901760
      %v2445 = vsub.f32 %v320, %v2444
      %v2446 = vand.u32 %v2445, 4294901760
      %v2447 = vsub.f32 %v2445, %v2446
      %v2448 = vand.u32 %v2447, 4294901760
      %2449 = vmatprep.subr.mxu0 %v2448
      %v2450 = vand.u32 %v319, 4294901760
      %v2451 = vsub.f32 %v319, %v2450
      %v2452 = vand.u32 %v2451, 4294901760
      %v2453 = vsub.f32 %v2451, %v2452
      %v2454 = vand.u32 %v2453, 4294901760
      %2455 = vmatpush1.msra.mxu0 %v2454
      %v2456 = vand.u32 %v324, 4294901760
      %v2457 = vsub.f32 %v324, %v2456
      %v2458 = vand.u32 %v2457, 4294901760
      %v2459 = vsub.f32 %v2457, %v2458
      %v2460 = vand.u32 %v2459, 4294901760
      %2461 = vmatprep.subr.mxu0 %v2460
      %v2462 = vand.u32 %v323, 4294901760
      %v2463 = vsub.f32 %v323, %v2462
      %v2464 = vand.u32 %v2463, 4294901760
      %v2465 = vsub.f32 %v2463, %v2464
      %v2466 = vand.u32 %v2465, 4294901760
      %2467 = vmatpush1.msra.mxu0 %v2466
      %v2468 = vand.u32 %v328, 4294901760
      %v2469 = vsub.f32 %v328, %v2468
      %v2470 = vand.u32 %v2469, 4294901760
      %v2471 = vsub.f32 %v2469, %v2470
      %v2472 = vand.u32 %v2471, 4294901760
      %2473 = vmatprep.subr.mxu0 %v2472
      %v2474 = vand.u32 %v327, 4294901760
      %v2475 = vsub.f32 %v327, %v2474
      %v2476 = vand.u32 %v2475, 4294901760
      %v2477 = vsub.f32 %v2475, %v2476
      %v2478 = vand.u32 %v2477, 4294901760
      %2479 = vmatpush1.msra.mxu0 %v2478
      %2480 = vmatprep.subr.mxu0 0.0
      %2481 = vmatpush1.msra.mxu0 0.0
      %2482 = vmatprep.subr.mxu0 0.0
      %2483 = vmatpush1.msra.mxu0 0.0
      %2484 = vmatprep.subr.mxu0 0.0
      %2485 = vmatpush1.msra.mxu0 0.0
      %2486 = vmatprep.subr.mxu0 0.0
      %2487 = vmatpush1.msra.mxu0 0.0
      %2488 = vmatprep.subr.mxu0 0.0
      %2489 = vmatpush1.msra.mxu0 0.0
      %2490 = vmatprep.subr.mxu0 0.0
      %2491 = vmatpush1.msra.mxu0 0.0
      %2492 = vmatprep.subr.mxu0 0.0
      %2493 = vmatpush1.msra.mxu0 0.0
      %2494 = vmatprep.subr.mxu0 0.0
      %2495 = vmatpush1.msra.mxu0 0.0
      %2496 = vmatprep.subr.mxu0 0.0
      %2497 = vmatpush1.msra.mxu0 0.0
      %2498 = vmatprep.subr.mxu0 0.0
      %2499 = vmatpush1.msra.mxu0 0.0
      %2500 = vmatprep.subr.mxu0 0.0
      %2501 = vmatpush1.msra.mxu0 0.0
      %2502 = vmatprep.subr.mxu0 0.0
      %2503 = vmatpush1.msra.mxu0 0.0
      %2504 = vmatprep.subr.mxu0 0.0
      %2505 = vmatpush1.msra.mxu0 0.0
      %2506 = vmatprep.subr.mxu0 0.0
      %2507 = vmatpush1.msra.mxu0 0.0
      %2508 = vmatprep.subr.mxu0 0.0
      %2509 = vmatpush1.msra.mxu0 0.0
      %2510 = vmatprep.subr.mxu0 0.0
      %2511 = vmatpush1.msra.mxu0 0.0
      %2512 = vmatprep.mubr.f32.mxu0 0.0
      %v2513 = vand.u32 %v2167, 4294901760
      %2514 = vmatmul.mubr.f32.gmra.mrb[0].mxu0 %v2513
      %v2515 = vpop.f32.mrb[0].mxu0
      %v2516 = vadd.f32 %v2273, %v2515
      %v2517 = vpop.f32.mrb[0].mxu0
      %v2518 = vadd.f32 %v2275, %v2517
      %2519 = vmatprep.mubr.f32.mxu0 0.0
      %v2520 = vand.u32 %v2168, 4294901760
      %2521 = vmatmul.mubr.f32.gmra.mrb[0].mxu0 %v2520
      %v2522 = vpop.f32.mrb[0].mxu0
      %v2523 = vadd.f32 %v2284, %v2522
      %v2524 = vpop.f32.mrb[0].mxu0
      %v2525 = vadd.f32 %v2286, %v2524
      %2526 = vdwg.mxu0
      %v2527 = vand.u32 %v268, 4294901760
      %v2528 = vsub.f32 %v268, %v2527
      %2529 = vmatprep.subr.mxu0 %v2528
      %v2530 = vand.u32 %v267, 4294901760
      %v2531 = vsub.f32 %v267, %v2530
      %2532 = vmatpush1.msra.mxu0 %v2531
      %v2533 = vand.u32 %v272, 4294901760
      %v2534 = vsub.f32 %v272, %v2533
      %2535 = vmatprep.subr.mxu0 %v2534
      %v2536 = vand.u32 %v271, 4294901760
      %v2537 = vsub.f32 %v271, %v2536
      %2538 = vmatpush1.msra.mxu0 %v2537
      %v2539 = vand.u32 %v276, 4294901760
      %v2540 = vsub.f32 %v276, %v2539
      %2541 = vmatprep.subr.mxu0 %v2540
      %v2542 = vand.u32 %v275, 4294901760
      %v2543 = vsub.f32 %v275, %v2542
      %2544 = vmatpush1.msra.mxu0 %v2543
      %v2545 = vand.u32 %v280, 4294901760
      %v2546 = vsub.f32 %v280, %v2545
      %2547 = vmatprep.subr.mxu0 %v2546
      %v2548 = vand.u32 %v279, 4294901760
      %v2549 = vsub.f32 %v279, %v2548
      %2550 = vmatpush1.msra.mxu0 %v2549
      %v2551 = vand.u32 %v284, 4294901760
      %v2552 = vsub.f32 %v284, %v2551
      %2553 = vmatprep.subr.mxu0 %v2552
      %v2554 = vand.u32 %v283, 4294901760
      %v2555 = vsub.f32 %v283, %v2554
      %2556 = vmatpush1.msra.mxu0 %v2555
      %v2557 = vand.u32 %v288, 4294901760
      %v2558 = vsub.f32 %v288, %v2557
      %2559 = vmatprep.subr.mxu0 %v2558
      %v2560 = vand.u32 %v287, 4294901760
      %v2561 = vsub.f32 %v287, %v2560
      %2562 = vmatpush1.msra.mxu0 %v2561
      %v2563 = vand.u32 %v292, 4294901760
      %v2564 = vsub.f32 %v292, %v2563
      %2565 = vmatprep.subr.mxu0 %v2564
      %v2566 = vand.u32 %v291, 4294901760
      %v2567 = vsub.f32 %v291, %v2566
      %2568 = vmatpush1.msra.mxu0 %v2567
      %v2569 = vand.u32 %v296, 4294901760
      %v2570 = vsub.f32 %v296, %v2569
      %2571 = vmatprep.subr.mxu0 %v2570
      %v2572 = vand.u32 %v295, 4294901760
      %v2573 = vsub.f32 %v295, %v2572
      %2574 = vmatpush1.msra.mxu0 %v2573
      %v2575 = vand.u32 %v300, 4294901760
      %v2576 = vsub.f32 %v300, %v2575
      %2577 = vmatprep.subr.mxu0 %v2576
      %v2578 = vand.u32 %v299, 4294901760
      %v2579 = vsub.f32 %v299, %v2578
      %2580 = vmatpush1.msra.mxu0 %v2579
      %v2581 = vand.u32 %v304, 4294901760
      %v2582 = vsub.f32 %v304, %v2581
      %2583 = vmatprep.subr.mxu0 %v2582
      %v2584 = vand.u32 %v303, 4294901760
      %v2585 = vsub.f32 %v303, %v2584
      %2586 = vmatpush1.msra.mxu0 %v2585
      %v2587 = vand.u32 %v308, 4294901760
      %v2588 = vsub.f32 %v308, %v2587
      %2589 = vmatprep.subr.mxu0 %v2588
      %v2590 = vand.u32 %v307, 4294901760
      %v2591 = vsub.f32 %v307, %v2590
      %2592 = vmatpush1.msra.mxu0 %v2591
      %v2593 = vand.u32 %v312, 4294901760
      %v2594 = vsub.f32 %v312, %v2593
      %2595 = vmatprep.subr.mxu0 %v2594
      %v2596 = vand.u32 %v311, 4294901760
      %v2597 = vsub.f32 %v311, %v2596
      %2598 = vmatpush1.msra.mxu0 %v2597
      %v2599 = vand.u32 %v316, 4294901760
      %v2600 = vsub.f32 %v316, %v2599
      %2601 = vmatprep.subr.mxu0 %v2600
      %v2602 = vand.u32 %v315, 4294901760
      %v2603 = vsub.f32 %v315, %v2602
      %2604 = vmatpush1.msra.mxu0 %v2603
      %v2605 = vand.u32 %v320, 4294901760
      %v2606 = vsub.f32 %v320, %v2605
      %2607 = vmatprep.subr.mxu0 %v2606
      %v2608 = vand.u32 %v319, 4294901760
      %v2609 = vsub.f32 %v319, %v2608
      %2610 = vmatpush1.msra.mxu0 %v2609
      %v2611 = vand.u32 %v324, 4294901760
      %v2612 = vsub.f32 %v324, %v2611
      %2613 = vmatprep.subr.mxu0 %v2612
      %v2614 = vand.u32 %v323, 4294901760
      %v2615 = vsub.f32 %v323, %v2614
      %2616 = vmatpush1.msra.mxu0 %v2615
      %v2617 = vand.u32 %v328, 4294901760
      %v2618 = vsub.f32 %v328, %v2617
      %2619 = vmatprep.subr.mxu0 %v2618
      %v2620 = vand.u32 %v327, 4294901760
      %v2621 = vsub.f32 %v327, %v2620
      %2622 = vmatpush1.msra.mxu0 %v2621
      %2623 = vmatprep.subr.mxu0 0.0
      %2624 = vmatpush1.msra.mxu0 0.0
      %2625 = vmatprep.subr.mxu0 0.0
      %2626 = vmatpush1.msra.mxu0 0.0
      %2627 = vmatprep.subr.mxu0 0.0
      %2628 = vmatpush1.msra.mxu0 0.0
      %2629 = vmatprep.subr.mxu0 0.0
      %2630 = vmatpush1.msra.mxu0 0.0
      %2631 = vmatprep.subr.mxu0 0.0
      %2632 = vmatpush1.msra.mxu0 0.0
      %2633 = vmatprep.subr.mxu0 0.0
      %2634 = vmatpush1.msra.mxu0 0.0
      %2635 = vmatprep.subr.mxu0 0.0
      %2636 = vmatpush1.msra.mxu0 0.0
      %2637 = vmatprep.subr.mxu0 0.0
      %2638 = vmatpush1.msra.mxu0 0.0
      %2639 = vmatprep.subr.mxu0 0.0
      %2640 = vmatpush1.msra.mxu0 0.0
      %2641 = vmatprep.subr.mxu0 0.0
      %2642 = vmatpush1.msra.mxu0 0.0
      %2643 = vmatprep.subr.mxu0 0.0
      %2644 = vmatpush1.msra.mxu0 0.0
      %2645 = vmatprep.subr.mxu0 0.0
      %2646 = vmatpush1.msra.mxu0 0.0
      %2647 = vmatprep.subr.mxu0 0.0
      %2648 = vmatpush1.msra.mxu0 0.0
      %2649 = vmatprep.subr.mxu0 0.0
      %2650 = vmatpush1.msra.mxu0 0.0
      %2651 = vmatprep.subr.mxu0 0.0
      %2652 = vmatpush1.msra.mxu0 0.0
      %2653 = vmatprep.subr.mxu0 0.0
      %2654 = vmatpush1.msra.mxu0 0.0
      %2655 = vmatprep.mubr.f32.mxu0 0.0
      %v2656 = vand.u32 %v2167, 4294901760
      %v2657 = vsub.f32 %v2167, %v2656
      %2658 = vmatmul.mubr.f32.gmra.mrb[0].mxu0 %v2657
      %v2659 = vpop.f32.mrb[0].mxu0
      %v2660 = vadd.f32 %v2516, %v2659
      %v2661 = vpop.f32.mrb[0].mxu0
      %v2662 = vadd.f32 %v2518, %v2661
      %2663 = vmatprep.mubr.f32.mxu0 0.0
      %v2664 = vand.u32 %v2168, 4294901760
      %v2665 = vsub.f32 %v2168, %v2664
      %2666 = vmatmul.mubr.f32.gmra.mrb[0].mxu0 %v2665
      %v2667 = vpop.f32.mrb[0].mxu0
      %v2668 = vadd.f32 %v2523, %v2667
      %v2669 = vpop.f32.mrb[0].mxu0
      %v2670 = vadd.f32 %v2525, %v2669
      %2671 = vdwg.mxu0
      %v2672 = vand.u32 %v268, 4294901760
      %2673 = vmatprep.subr.mxu0 %v2672
      %v2674 = vand.u32 %v267, 4294901760
      %2675 = vmatpush1.msra.mxu0 %v2674
      %v2676 = vand.u32 %v272, 4294901760
      %2677 = vmatprep.subr.mxu0 %v2676
      %v2678 = vand.u32 %v271, 4294901760
      %2679 = vmatpush1.msra.mxu0 %v2678
      %v2680 = vand.u32 %v276, 4294901760
      %2681 = vmatprep.subr.mxu0 %v2680
      %v2682 = vand.u32 %v275, 4294901760
      %2683 = vmatpush1.msra.mxu0 %v2682
      %v2684 = vand.u32 %v280, 4294901760
      %2685 = vmatprep.subr.mxu0 %v2684
      %v2686 = vand.u32 %v279, 4294901760
      %2687 = vmatpush1.msra.mxu0 %v2686
      %v2688 = vand.u32 %v284, 4294901760
      %2689 = vmatprep.subr.mxu0 %v2688
      %v2690 = vand.u32 %v283, 4294901760
      %2691 = vmatpush1.msra.mxu0 %v2690
      %v2692 = vand.u32 %v288, 4294901760
      %2693 = vmatprep.subr.mxu0 %v2692
      %v2694 = vand.u32 %v287, 4294901760
      %2695 = vmatpush1.msra.mxu0 %v2694
      %v2696 = vand.u32 %v292, 4294901760
      %2697 = vmatprep.subr.mxu0 %v2696
      %v2698 = vand.u32 %v291, 4294901760
      %2699 = vmatpush1.msra.mxu0 %v2698
      %v2700 = vand.u32 %v296, 4294901760
      %2701 = vmatprep.subr.mxu0 %v2700
      %v2702 = vand.u32 %v295, 4294901760
      %2703 = vmatpush1.msra.mxu0 %v2702
      %v2704 = vand.u32 %v300, 4294901760
      %2705 = vmatprep.subr.mxu0 %v2704
      %v2706 = vand.u32 %v299, 4294901760
      %2707 = vmatpush1.msra.mxu0 %v2706
      %v2708 = vand.u32 %v304, 4294901760
      %2709 = vmatprep.subr.mxu0 %v2708
      %v2710 = vand.u32 %v303, 4294901760
      %2711 = vmatpush1.msra.mxu0 %v2710
      %v2712 = vand.u32 %v308, 4294901760
      %2713 = vmatprep.subr.mxu0 %v2712
      %v2714 = vand.u32 %v307, 4294901760
      %2715 = vmatpush1.msra.mxu0 %v2714
      %v2716 = vand.u32 %v312, 4294901760
      %2717 = vmatprep.subr.mxu0 %v2716
      %v2718 = vand.u32 %v311, 4294901760
      %2719 = vmatpush1.msra.mxu0 %v2718
      %v2720 = vand.u32 %v316, 4294901760
      %2721 = vmatprep.subr.mxu0 %v2720
      %v2722 = vand.u32 %v315, 4294901760
      %2723 = vmatpush1.msra.mxu0 %v2722
      %v2724 = vand.u32 %v320, 4294901760
      %2725 = vmatprep.subr.mxu0 %v2724
      %v2726 = vand.u32 %v319, 4294901760
      %2727 = vmatpush1.msra.mxu0 %v2726
      %v2728 = vand.u32 %v324, 4294901760
      %2729 = vmatprep.subr.mxu0 %v2728
      %v2730 = vand.u32 %v323, 4294901760
      %2731 = vmatpush1.msra.mxu0 %v2730
      %v2732 = vand.u32 %v328, 4294901760
      %2733 = vmatprep.subr.mxu0 %v2732
      %v2734 = vand.u32 %v327, 4294901760
      %2735 = vmatpush1.msra.mxu0 %v2734
      %2736 = vmatprep.subr.mxu0 0.0
      %2737 = vmatpush1.msra.mxu0 0.0
      %2738 = vmatprep.subr.mxu0 0.0
      %2739 = vmatpush1.msra.mxu0 0.0
      %2740 = vmatprep.subr.mxu0 0.0
      %2741 = vmatpush1.msra.mxu0 0.0
      %2742 = vmatprep.subr.mxu0 0.0
      %2743 = vmatpush1.msra.mxu0 0.0
      %2744 = vmatprep.subr.mxu0 0.0
      %2745 = vmatpush1.msra.mxu0 0.0
      %2746 = vmatprep.subr.mxu0 0.0
      %2747 = vmatpush1.msra.mxu0 0.0
      %2748 = vmatprep.subr.mxu0 0.0
      %2749 = vmatpush1.msra.mxu0 0.0
      %2750 = vmatprep.subr.mxu0 0.0
      %2751 = vmatpush1.msra.mxu0 0.0
      %2752 = vmatprep.subr.mxu0 0.0
      %2753 = vmatpush1.msra.mxu0 0.0
      %2754 = vmatprep.subr.mxu0 0.0
      %2755 = vmatpush1.msra.mxu0 0.0
      %2756 = vmatprep.subr.mxu0 0.0
      %2757 = vmatpush1.msra.mxu0 0.0
      %2758 = vmatprep.subr.mxu0 0.0
      %2759 = vmatpush1.msra.mxu0 0.0
      %2760 = vmatprep.subr.mxu0 0.0
      %2761 = vmatpush1.msra.mxu0 0.0
      %2762 = vmatprep.subr.mxu0 0.0
      %2763 = vmatpush1.msra.mxu0 0.0
      %2764 = vmatprep.subr.mxu0 0.0
      %2765 = vmatpush1.msra.mxu0 0.0
      %2766 = vmatprep.subr.mxu0 0.0
      %2767 = vmatpush1.msra.mxu0 0.0
      %2768 = vmatprep.mubr.f32.mxu0 0.0
      %v2769 = vand.u32 %v2167, 4294901760
      %v2770 = vsub.f32 %v2167, %v2769
      %v2771 = vand.u32 %v2770, 4294901760
      %2772 = vmatmul.mubr.f32.gmra.mrb[0].mxu0 %v2771
      %v2773 = vpop.f32.mrb[0].mxu0
      %v2774 = vadd.f32 %v2660, %v2773
      %v2775 = vpop.f32.mrb[0].mxu0
      %v2776 = vadd.f32 %v2662, %v2775
      %2777 = vmatprep.mubr.f32.mxu0 0.0
      %v2778 = vand.u32 %v2168, 4294901760
      %v2779 = vsub.f32 %v2168, %v2778
      %v2780 = vand.u32 %v2779, 4294901760
      %2781 = vmatmul.mubr.f32.gmra.mrb[0].mxu0 %v2780
      %v2782 = vpop.f32.mrb[0].mxu0
      %v2783 = vadd.f32 %v2668, %v2782
      %v2784 = vpop.f32.mrb[0].mxu0
      %v2785 = vadd.f32 %v2670, %v2784
      %2786 = vdwg.mxu0
      %v2787 = vand.u32 %v268, 4294901760
      %v2788 = vsub.f32 %v268, %v2787
      %v2789 = vand.u32 %v2788, 4294901760
      %2790 = vmatprep.subr.mxu0 %v2789
      %v2791 = vand.u32 %v267, 4294901760
      %v2792 = vsub.f32 %v267, %v2791
      %v2793 = vand.u32 %v2792, 4294901760
      %2794 = vmatpush1.msra.mxu0 %v2793
      %v2795 = vand.u32 %v272, 4294901760
      %v2796 = vsub.f32 %v272, %v2795
      %v2797 = vand.u32 %v2796, 4294901760
      %2798 = vmatprep.subr.mxu0 %v2797
      %v2799 = vand.u32 %v271, 4294901760
      %v2800 = vsub.f32 %v271, %v2799
      %v2801 = vand.u32 %v2800, 4294901760
      %2802 = vmatpush1.msra.mxu0 %v2801
      %v2803 = vand.u32 %v276, 4294901760
      %v2804 = vsub.f32 %v276, %v2803
      %v2805 = vand.u32 %v2804, 4294901760
      %2806 = vmatprep.subr.mxu0 %v2805
      %v2807 = vand.u32 %v275, 4294901760
      %v2808 = vsub.f32 %v275, %v2807
      %v2809 = vand.u32 %v2808, 4294901760
      %2810 = vmatpush1.msra.mxu0 %v2809
      %v2811 = vand.u32 %v280, 4294901760
      %v2812 = vsub.f32 %v280, %v2811
      %v2813 = vand.u32 %v2812, 4294901760
      %2814 = vmatprep.subr.mxu0 %v2813
      %v2815 = vand.u32 %v279, 4294901760
      %v2816 = vsub.f32 %v279, %v2815
      %v2817 = vand.u32 %v2816, 4294901760
      %2818 = vmatpush1.msra.mxu0 %v2817
      %v2819 = vand.u32 %v284, 4294901760
      %v2820 = vsub.f32 %v284, %v2819
      %v2821 = vand.u32 %v2820, 4294901760
      %2822 = vmatprep.subr.mxu0 %v2821
      %v2823 = vand.u32 %v283, 4294901760
      %v2824 = vsub.f32 %v283, %v2823
      %v2825 = vand.u32 %v2824, 4294901760
      %2826 = vmatpush1.msra.mxu0 %v2825
      %v2827 = vand.u32 %v288, 4294901760
      %v2828 = vsub.f32 %v288, %v2827
      %v2829 = vand.u32 %v2828, 4294901760
      %2830 = vmatprep.subr.mxu0 %v2829
      %v2831 = vand.u32 %v287, 4294901760
      %v2832 = vsub.f32 %v287, %v2831
      %v2833 = vand.u32 %v2832, 4294901760
      %2834 = vmatpush1.msra.mxu0 %v2833
      %v2835 = vand.u32 %v292, 4294901760
      %v2836 = vsub.f32 %v292, %v2835
      %v2837 = vand.u32 %v2836, 4294901760
      %2838 = vmatprep.subr.mxu0 %v2837
      %v2839 = vand.u32 %v291, 4294901760
      %v2840 = vsub.f32 %v291, %v2839
      %v2841 = vand.u32 %v2840, 4294901760
      %2842 = vmatpush1.msra.mxu0 %v2841
      %v2843 = vand.u32 %v296, 4294901760
      %v2844 = vsub.f32 %v296, %v2843
      %v2845 = vand.u32 %v2844, 4294901760
      %2846 = vmatprep.subr.mxu0 %v2845
      %v2847 = vand.u32 %v295, 4294901760
      %v2848 = vsub.f32 %v295, %v2847
      %v2849 = vand.u32 %v2848, 4294901760
      %2850 = vmatpush1.msra.mxu0 %v2849
      %v2851 = vand.u32 %v300, 4294901760
      %v2852 = vsub.f32 %v300, %v2851
      %v2853 = vand.u32 %v2852, 4294901760
      %2854 = vmatprep.subr.mxu0 %v2853
      %v2855 = vand.u32 %v299, 4294901760
      %v2856 = vsub.f32 %v299, %v2855
      %v2857 = vand.u32 %v2856, 4294901760
      %2858 = vmatpush1.msra.mxu0 %v2857
      %v2859 = vand.u32 %v304, 4294901760
      %v2860 = vsub.f32 %v304, %v2859
      %v2861 = vand.u32 %v2860, 4294901760
      %2862 = vmatprep.subr.mxu0 %v2861
      %v2863 = vand.u32 %v303, 4294901760
      %v2864 = vsub.f32 %v303, %v2863
      %v2865 = vand.u32 %v2864, 4294901760
      %2866 = vmatpush1.msra.mxu0 %v2865
      %v2867 = vand.u32 %v308, 4294901760
      %v2868 = vsub.f32 %v308, %v2867
      %v2869 = vand.u32 %v2868, 4294901760
      %2870 = vmatprep.subr.mxu0 %v2869
      %v2871 = vand.u32 %v307, 4294901760
      %v2872 = vsub.f32 %v307, %v2871
      %v2873 = vand.u32 %v2872, 4294901760
      %2874 = vmatpush1.msra.mxu0 %v2873
      %v2875 = vand.u32 %v312, 4294901760
      %v2876 = vsub.f32 %v312, %v2875
      %v2877 = vand.u32 %v2876, 4294901760
      %2878 = vmatprep.subr.mxu0 %v2877
      %v2879 = vand.u32 %v311, 4294901760
      %v2880 = vsub.f32 %v311, %v2879
      %v2881 = vand.u32 %v2880, 4294901760
      %2882 = vmatpush1.msra.mxu0 %v2881
      %v2883 = vand.u32 %v316, 4294901760
      %v2884 = vsub.f32 %v316, %v2883
      %v2885 = vand.u32 %v2884, 4294901760
      %2886 = vmatprep.subr.mxu0 %v2885
      %v2887 = vand.u32 %v315, 4294901760
      %v2888 = vsub.f32 %v315, %v2887
      %v2889 = vand.u32 %v2888, 4294901760
      %2890 = vmatpush1.msra.mxu0 %v2889
      %v2891 = vand.u32 %v320, 4294901760
      %v2892 = vsub.f32 %v320, %v2891
      %v2893 = vand.u32 %v2892, 4294901760
      %2894 = vmatprep.subr.mxu0 %v2893
      %v2895 = vand.u32 %v319, 4294901760
      %v2896 = vsub.f32 %v319, %v2895
      %v2897 = vand.u32 %v2896, 4294901760
      %2898 = vmatpush1.msra.mxu0 %v2897
      %v2899 = vand.u32 %v324, 4294901760
      %v2900 = vsub.f32 %v324, %v2899
      %v2901 = vand.u32 %v2900, 4294901760
      %2902 = vmatprep.subr.mxu0 %v2901
      %v2903 = vand.u32 %v323, 4294901760
      %v2904 = vsub.f32 %v323, %v2903
      %v2905 = vand.u32 %v2904, 4294901760
      %2906 = vmatpush1.msra.mxu0 %v2905
      %v2907 = vand.u32 %v328, 4294901760
      %v2908 = vsub.f32 %v328, %v2907
      %v2909 = vand.u32 %v2908, 4294901760
      %2910 = vmatprep.subr.mxu0 %v2909
      %v2911 = vand.u32 %v327, 4294901760
      %v2912 = vsub.f32 %v327, %v2911
      %v2913 = vand.u32 %v2912, 4294901760
      %2914 = vmatpush1.msra.mxu0 %v2913
      %2915 = vmatprep.subr.mxu0 0.0
      %2916 = vmatpush1.msra.mxu0 0.0
      %2917 = vmatprep.subr.mxu0 0.0
      %2918 = vmatpush1.msra.mxu0 0.0
      %2919 = vmatprep.subr.mxu0 0.0
      %2920 = vmatpush1.msra.mxu0 0.0
      %2921 = vmatprep.subr.mxu0 0.0
      %2922 = vmatpush1.msra.mxu0 0.0
      %2923 = vmatprep.subr.mxu0 0.0
      %2924 = vmatpush1.msra.mxu0 0.0
      %2925 = vmatprep.subr.mxu0 0.0
      %2926 = vmatpush1.msra.mxu0 0.0
      %2927 = vmatprep.subr.mxu0 0.0
      %2928 = vmatpush1.msra.mxu0 0.0
      %2929 = vmatprep.subr.mxu0 0.0
      %2930 = vmatpush1.msra.mxu0 0.0
      %2931 = vmatprep.subr.mxu0 0.0
      %2932 = vmatpush1.msra.mxu0 0.0
      %2933 = vmatprep.subr.mxu0 0.0
      %2934 = vmatpush1.msra.mxu0 0.0
      %2935 = vmatprep.subr.mxu0 0.0
      %2936 = vmatpush1.msra.mxu0 0.0
      %2937 = vmatprep.subr.mxu0 0.0
      %2938 = vmatpush1.msra.mxu0 0.0
      %2939 = vmatprep.subr.mxu0 0.0
      %2940 = vmatpush1.msra.mxu0 0.0
      %2941 = vmatprep.subr.mxu0 0.0
      %2942 = vmatpush1.msra.mxu0 0.0
      %2943 = vmatprep.subr.mxu0 0.0
      %2944 = vmatpush1.msra.mxu0 0.0
      %2945 = vmatprep.subr.mxu0 0.0
      %2946 = vmatpush1.msra.mxu0 0.0
      %2947 = vmatprep.mubr.f32.mxu0 0.0
      %v2948 = vand.u32 %v2167, 4294901760
      %2949 = vmatmul.mubr.f32.gmra.mrb[0].mxu0 %v2948
      %v2950 = vpop.f32.mrb[0].mxu0
      %v2951 = vadd.f32 %v2774, %v2950
      %v2952 = vpop.f32.mrb[0].mxu0
      %v2953 = vadd.f32 %v2776, %v2952
      %2954 = vmatprep.mubr.f32.mxu0 0.0
      %v2955 = vand.u32 %v2168, 4294901760
      %2956 = vmatmul.mubr.f32.gmra.mrb[0].mxu0 %v2955
      %v2957 = vpop.f32.mrb[0].mxu0
      %v2958 = vadd.f32 %v2783, %v2957
      %v2959 = vpop.f32.mrb[0].mxu0
      %v2960 = vadd.f32 %v2785, %v2959
      %2961 = vdwg.mxu0
      %v2962 = vand.u32 %v268, 4294901760
      %2963 = vmatprep.subr.mxu0 %v2962
      %v2964 = vand.u32 %v267, 4294901760
      %2965 = vmatpush1.msra.mxu0 %v2964
      %v2966 = vand.u32 %v272, 4294901760
      %2967 = vmatprep.subr.mxu0 %v2966
      %v2968 = vand.u32 %v271, 4294901760
      %2969 = vmatpush1.msra.mxu0 %v2968
      %v2970 = vand.u32 %v276, 4294901760
      %2971 = vmatprep.subr.mxu0 %v2970
      %v2972 = vand.u32 %v275, 4294901760
      %2973 = vmatpush1.msra.mxu0 %v2972
      %v2974 = vand.u32 %v280, 4294901760
      %2975 = vmatprep.subr.mxu0 %v2974
      %v2976 = vand.u32 %v279, 4294901760
      %2977 = vmatpush1.msra.mxu0 %v2976
      %v2978 = vand.u32 %v284, 4294901760
      %2979 = vmatprep.subr.mxu0 %v2978
      %v2980 = vand.u32 %v283, 4294901760
      %2981 = vmatpush1.msra.mxu0 %v2980
      %v2982 = vand.u32 %v288, 4294901760
      %2983 = vmatprep.subr.mxu0 %v2982
      %v2984 = vand.u32 %v287, 4294901760
      %2985 = vmatpush1.msra.mxu0 %v2984
      %v2986 = vand.u32 %v292, 4294901760
      %2987 = vmatprep.subr.mxu0 %v2986
      %v2988 = vand.u32 %v291, 4294901760
      %2989 = vmatpush1.msra.mxu0 %v2988
      %v2990 = vand.u32 %v296, 4294901760
      %2991 = vmatprep.subr.mxu0 %v2990
      %v2992 = vand.u32 %v295, 4294901760
      %2993 = vmatpush1.msra.mxu0 %v2992
      %v2994 = vand.u32 %v300, 4294901760
      %2995 = vmatprep.subr.mxu0 %v2994
      %v2996 = vand.u32 %v299, 4294901760
      %2997 = vmatpush1.msra.mxu0 %v2996
      %v2998 = vand.u32 %v304, 4294901760
      %2999 = vmatprep.subr.mxu0 %v2998
      %v3000 = vand.u32 %v303, 4294901760
      %3001 = vmatpush1.msra.mxu0 %v3000
      %v3002 = vand.u32 %v308, 4294901760
      %3003 = vmatprep.subr.mxu0 %v3002
      %v3004 = vand.u32 %v307, 4294901760
      %3005 = vmatpush1.msra.mxu0 %v3004
      %v3006 = vand.u32 %v312, 4294901760
      %3007 = vmatprep.subr.mxu0 %v3006
      %v3008 = vand.u32 %v311, 4294901760
      %3009 = vmatpush1.msra.mxu0 %v3008
      %v3010 = vand.u32 %v316, 4294901760
      %3011 = vmatprep.subr.mxu0 %v3010
      %v3012 = vand.u32 %v315, 4294901760
      %3013 = vmatpush1.msra.mxu0 %v3012
      %v3014 = vand.u32 %v320, 4294901760
      %3015 = vmatprep.subr.mxu0 %v3014
      %v3016 = vand.u32 %v319, 4294901760
      %3017 = vmatpush1.msra.mxu0 %v3016
      %v3018 = vand.u32 %v324, 4294901760
      %3019 = vmatprep.subr.mxu0 %v3018
      %v3020 = vand.u32 %v323, 4294901760
      %3021 = vmatpush1.msra.mxu0 %v3020
      %v3022 = vand.u32 %v328, 4294901760
      %3023 = vmatprep.subr.mxu0 %v3022
      %v3024 = vand.u32 %v327, 4294901760
      %3025 = vmatpush1.msra.mxu0 %v3024
      %3026 = vmatprep.subr.mxu0 0.0
      %3027 = vmatpush1.msra.mxu0 0.0
      %3028 = vmatprep.subr.mxu0 0.0
      %3029 = vmatpush1.msra.mxu0 0.0
      %3030 = vmatprep.subr.mxu0 0.0
      %3031 = vmatpush1.msra.mxu0 0.0
      %3032 = vmatprep.subr.mxu0 0.0
      %3033 = vmatpush1.msra.mxu0 0.0
      %3034 = vmatprep.subr.mxu0 0.0
      %3035 = vmatpush1.msra.mxu0 0.0
      %3036 = vmatprep.subr.mxu0 0.0
      %3037 = vmatpush1.msra.mxu0 0.0
      %3038 = vmatprep.subr.mxu0 0.0
      %3039 = vmatpush1.msra.mxu0 0.0
      %3040 = vmatprep.subr.mxu0 0.0
      %3041 = vmatpush1.msra.mxu0 0.0
      %3042 = vmatprep.subr.mxu0 0.0
      %3043 = vmatpush1.msra.mxu0 0.0
      %3044 = vmatprep.subr.mxu0 0.0
      %3045 = vmatpush1.msra.mxu0 0.0
      %3046 = vmatprep.subr.mxu0 0.0
      %3047 = vmatpush1.msra.mxu0 0.0
      %3048 = vmatprep.subr.mxu0 0.0
      %3049 = vmatpush1.msra.mxu0 0.0
      %3050 = vmatprep.subr.mxu0 0.0
      %3051 = vmatpush1.msra.mxu0 0.0
      %3052 = vmatprep.subr.mxu0 0.0
      %3053 = vmatpush1.msra.mxu0 0.0
      %3054 = vmatprep.subr.mxu0 0.0
      %3055 = vmatpush1.msra.mxu0 0.0
      %3056 = vmatprep.subr.mxu0 0.0
      %3057 = vmatpush1.msra.mxu0 0.0
      %3058 = vmatprep.mubr.f32.mxu0 0.0
      %v3059 = vand.u32 %v2167, 4294901760
      %3060 = vmatmul.mubr.f32.gmra.mrb[0].mxu0 %v3059
      %v3061 = vpop.f32.mrb[0].mxu0
      %v3062 = vadd.f32 %v2951, %v3061
      %v3063 = vpop.f32.mrb[0].mxu0
      %v3064 = vadd.f32 %v2953, %v3063
      %3065 = vmatprep.mubr.f32.mxu0 0.0
      %v3066 = vand.u32 %v2168, 4294901760
      %3067 = vmatmul.mubr.f32.gmra.mrb[0].mxu0 %v3066
      %v3068 = vpop.f32.mrb[0].mxu0
      %v3069 = vadd.f32 %v2958, %v3068
      %v3070 = vpop.f32.mrb[0].mxu0
      %v3071 = vadd.f32 %v2960, %v3070
      %3072 = vdwg.mxu0
      %v3073 = vand.u32 %v270, 4294901760
      %3074 = vmatprep.subr.mxu0 %v3073
      %v3075 = vand.u32 %v269, 4294901760
      %3076 = vmatpush1.msra.mxu0 %v3075
      %v3077 = vand.u32 %v274, 4294901760
      %3078 = vmatprep.subr.mxu0 %v3077
      %v3079 = vand.u32 %v273, 4294901760
      %3080 = vmatpush1.msra.mxu0 %v3079
      %v3081 = vand.u32 %v278, 4294901760
      %3082 = vmatprep.subr.mxu0 %v3081
      %v3083 = vand.u32 %v277, 4294901760
      %3084 = vmatpush1.msra.mxu0 %v3083
      %v3085 = vand.u32 %v282, 4294901760
      %3086 = vmatprep.subr.mxu0 %v3085
      %v3087 = vand.u32 %v281, 4294901760
      %3088 = vmatpush1.msra.mxu0 %v3087
      %v3089 = vand.u32 %v286, 4294901760
      %3090 = vmatprep.subr.mxu0 %v3089
      %v3091 = vand.u32 %v285, 4294901760
      %3092 = vmatpush1.msra.mxu0 %v3091
      %v3093 = vand.u32 %v290, 4294901760
      %3094 = vmatprep.subr.mxu0 %v3093
      %v3095 = vand.u32 %v289, 4294901760
      %3096 = vmatpush1.msra.mxu0 %v3095
      %v3097 = vand.u32 %v294, 4294901760
      %3098 = vmatprep.subr.mxu0 %v3097
      %v3099 = vand.u32 %v293, 4294901760
      %3100 = vmatpush1.msra.mxu0 %v3099
      %v3101 = vand.u32 %v298, 4294901760
      %3102 = vmatprep.subr.mxu0 %v3101
      %v3103 = vand.u32 %v297, 4294901760
      %3104 = vmatpush1.msra.mxu0 %v3103
      %v3105 = vand.u32 %v302, 4294901760
      %3106 = vmatprep.subr.mxu0 %v3105
      %v3107 = vand.u32 %v301, 4294901760
      %3108 = vmatpush1.msra.mxu0 %v3107
      %v3109 = vand.u32 %v306, 4294901760
      %3110 = vmatprep.subr.mxu0 %v3109
      %v3111 = vand.u32 %v305, 4294901760
      %3112 = vmatpush1.msra.mxu0 %v3111
      %v3113 = vand.u32 %v310, 4294901760
      %3114 = vmatprep.subr.mxu0 %v3113
      %v3115 = vand.u32 %v309, 4294901760
      %3116 = vmatpush1.msra.mxu0 %v3115
      %v3117 = vand.u32 %v314, 4294901760
      %3118 = vmatprep.subr.mxu0 %v3117
      %v3119 = vand.u32 %v313, 4294901760
      %3120 = vmatpush1.msra.mxu0 %v3119
      %v3121 = vand.u32 %v318, 4294901760
      %3122 = vmatprep.subr.mxu0 %v3121
      %v3123 = vand.u32 %v317, 4294901760
      %3124 = vmatpush1.msra.mxu0 %v3123
      %v3125 = vand.u32 %v322, 4294901760
      %3126 = vmatprep.subr.mxu0 %v3125
      %v3127 = vand.u32 %v321, 4294901760
      %3128 = vmatpush1.msra.mxu0 %v3127
      %v3129 = vand.u32 %v326, 4294901760
      %3130 = vmatprep.subr.mxu0 %v3129
      %v3131 = vand.u32 %v325, 4294901760
      %3132 = vmatpush1.msra.mxu0 %v3131
      %v3133 = vand.u32 %v330, 4294901760
      %3134 = vmatprep.subr.mxu0 %v3133
      %v3135 = vand.u32 %v329, 4294901760
      %3136 = vmatpush1.msra.mxu0 %v3135
      %3137 = vmatprep.subr.mxu0 0.0
      %3138 = vmatpush1.msra.mxu0 0.0
      %3139 = vmatprep.subr.mxu0 0.0
      %3140 = vmatpush1.msra.mxu0 0.0
      %3141 = vmatprep.subr.mxu0 0.0
      %3142 = vmatpush1.msra.mxu0 0.0
      %3143 = vmatprep.subr.mxu0 0.0
      %3144 = vmatpush1.msra.mxu0 0.0
      %3145 = vmatprep.subr.mxu0 0.0
      %3146 = vmatpush1.msra.mxu0 0.0
      %3147 = vmatprep.subr.mxu0 0.0
      %3148 = vmatpush1.msra.mxu0 0.0
      %3149 = vmatprep.subr.mxu0 0.0
      %3150 = vmatpush1.msra.mxu0 0.0
      %3151 = vmatprep.subr.mxu0 0.0
      %3152 = vmatpush1.msra.mxu0 0.0
      %3153 = vmatprep.subr.mxu0 0.0
      %3154 = vmatpush1.msra.mxu0 0.0
      %3155 = vmatprep.subr.mxu0 0.0
      %3156 = vmatpush1.msra.mxu0 0.0
      %3157 = vmatprep.subr.mxu0 0.0
      %3158 = vmatpush1.msra.mxu0 0.0
      %3159 = vmatprep.subr.mxu0 0.0
      %3160 = vmatpush1.msra.mxu0 0.0
      %3161 = vmatprep.subr.mxu0 0.0
      %3162 = vmatpush1.msra.mxu0 0.0
      %3163 = vmatprep.subr.mxu0 0.0
      %3164 = vmatpush1.msra.mxu0 0.0
      %3165 = vmatprep.subr.mxu0 0.0
      %3166 = vmatpush1.msra.mxu0 0.0
      %3167 = vmatprep.subr.mxu0 0.0
      %3168 = vmatpush1.msra.mxu0 0.0
      %3169 = vmatprep.mubr.f32.mxu0 0.0
      %v3170 = vand.u32 %v2167, 4294901760
      %v3171 = vsub.f32 %v2167, %v3170
      %v3172 = vand.u32 %v3171, 4294901760
      %v3173 = vsub.f32 %v3171, %v3172
      %v3174 = vand.u32 %v3173, 4294901760
      %3175 = vmatmul.mubr.f32.gmra.mrb[0].mxu0 %v3174
      %v3176 = vpop.f32.mrb[0].mxu0
      %v3177 = vadd.f32 0.0, %v3176
      %v3178 = vpop.f32.mrb[0].mxu0
      %v3179 = vadd.f32 0.0, %v3178
      %3180 = vmatprep.mubr.f32.mxu0 0.0
      %v3181 = vand.u32 %v2168, 4294901760
      %v3182 = vsub.f32 %v2168, %v3181
      %v3183 = vand.u32 %v3182, 4294901760
      %v3184 = vsub.f32 %v3182, %v3183
      %v3185 = vand.u32 %v3184, 4294901760
      %3186 = vmatmul.mubr.f32.gmra.mrb[0].mxu0 %v3185
      %v3187 = vpop.f32.mrb[0].mxu0
      %v3188 = vadd.f32 0.0, %v3187
      %v3189 = vpop.f32.mrb[0].mxu0
      %v3190 = vadd.f32 0.0, %v3189
      %3191 = vdwg.mxu0
      %v3192 = vand.u32 %v270, 4294901760
      %v3193 = vsub.f32 %v270, %v3192
      %v3194 = vand.u32 %v3193, 4294901760
      %v3195 = vsub.f32 %v3193, %v3194
      %v3196 = vand.u32 %v3195, 4294901760
      %3197 = vmatprep.subr.mxu0 %v3196
      %v3198 = vand.u32 %v269, 4294901760
      %v3199 = vsub.f32 %v269, %v3198
      %v3200 = vand.u32 %v3199, 4294901760
      %v3201 = vsub.f32 %v3199, %v3200
      %v3202 = vand.u32 %v3201, 4294901760
      %3203 = vmatpush1.msra.mxu0 %v3202
      %v3204 = vand.u32 %v274, 4294901760
      %v3205 = vsub.f32 %v274, %v3204
      %v3206 = vand.u32 %v3205, 4294901760
      %v3207 = vsub.f32 %v3205, %v3206
      %v3208 = vand.u32 %v3207, 4294901760
      %3209 = vmatprep.subr.mxu0 %v3208
      %v3210 = vand.u32 %v273, 4294901760
      %v3211 = vsub.f32 %v273, %v3210
      %v3212 = vand.u32 %v3211, 4294901760
      %v3213 = vsub.f32 %v3211, %v3212
      %v3214 = vand.u32 %v3213, 4294901760
      %3215 = vmatpush1.msra.mxu0 %v3214
      %v3216 = vand.u32 %v278, 4294901760
      %v3217 = vsub.f32 %v278, %v3216
      %v3218 = vand.u32 %v3217, 4294901760
      %v3219 = vsub.f32 %v3217, %v3218
      %v3220 = vand.u32 %v3219, 4294901760
      %3221 = vmatprep.subr.mxu0 %v3220
      %v3222 = vand.u32 %v277, 4294901760
      %v3223 = vsub.f32 %v277, %v3222
      %v3224 = vand.u32 %v3223, 4294901760
      %v3225 = vsub.f32 %v3223, %v3224
      %v3226 = vand.u32 %v3225, 4294901760
      %3227 = vmatpush1.msra.mxu0 %v3226
      %v3228 = vand.u32 %v282, 4294901760
      %v3229 = vsub.f32 %v282, %v3228
      %v3230 = vand.u32 %v3229, 4294901760
      %v3231 = vsub.f32 %v3229, %v3230
      %v3232 = vand.u32 %v3231, 4294901760
      %3233 = vmatprep.subr.mxu0 %v3232
      %v3234 = vand.u32 %v281, 4294901760
      %v3235 = vsub.f32 %v281, %v3234
      %v3236 = vand.u32 %v3235, 4294901760
      %v3237 = vsub.f32 %v3235, %v3236
      %v3238 = vand.u32 %v3237, 4294901760
      %3239 = vmatpush1.msra.mxu0 %v3238
      %v3240 = vand.u32 %v286, 4294901760
      %v3241 = vsub.f32 %v286, %v3240
      %v3242 = vand.u32 %v3241, 4294901760
      %v3243 = vsub.f32 %v3241, %v3242
      %v3244 = vand.u32 %v3243, 4294901760
      %3245 = vmatprep.subr.mxu0 %v3244
      %v3246 = vand.u32 %v285, 4294901760
      %v3247 = vsub.f32 %v285, %v3246
      %v3248 = vand.u32 %v3247, 4294901760
      %v3249 = vsub.f32 %v3247, %v3248
      %v3250 = vand.u32 %v3249, 4294901760
      %3251 = vmatpush1.msra.mxu0 %v3250
      %v3252 = vand.u32 %v290, 4294901760
      %v3253 = vsub.f32 %v290, %v3252
      %v3254 = vand.u32 %v3253, 4294901760
      %v3255 = vsub.f32 %v3253, %v3254
      %v3256 = vand.u32 %v3255, 4294901760
      %3257 = vmatprep.subr.mxu0 %v3256
      %v3258 = vand.u32 %v289, 4294901760
      %v3259 = vsub.f32 %v289, %v3258
      %v3260 = vand.u32 %v3259, 4294901760
      %v3261 = vsub.f32 %v3259, %v3260
      %v3262 = vand.u32 %v3261, 4294901760
      %3263 = vmatpush1.msra.mxu0 %v3262
      %v3264 = vand.u32 %v294, 4294901760
      %v3265 = vsub.f32 %v294, %v3264
      %v3266 = vand.u32 %v3265, 4294901760
      %v3267 = vsub.f32 %v3265, %v3266
      %v3268 = vand.u32 %v3267, 4294901760
      %3269 = vmatprep.subr.mxu0 %v3268
      %v3270 = vand.u32 %v293, 4294901760
      %v3271 = vsub.f32 %v293, %v3270
      %v3272 = vand.u32 %v3271, 4294901760
      %v3273 = vsub.f32 %v3271, %v3272
      %v3274 = vand.u32 %v3273, 4294901760
      %3275 = vmatpush1.msra.mxu0 %v3274
      %v3276 = vand.u32 %v298, 4294901760
      %v3277 = vsub.f32 %v298, %v3276
      %v3278 = vand.u32 %v3277, 4294901760
      %v3279 = vsub.f32 %v3277, %v3278
      %v3280 = vand.u32 %v3279, 4294901760
      %3281 = vmatprep.subr.mxu0 %v3280
      %v3282 = vand.u32 %v297, 4294901760
      %v3283 = vsub.f32 %v297, %v3282
      %v3284 = vand.u32 %v3283, 4294901760
      %v3285 = vsub.f32 %v3283, %v3284
      %v3286 = vand.u32 %v3285, 4294901760
      %3287 = vmatpush1.msra.mxu0 %v3286
      %v3288 = vand.u32 %v302, 4294901760
      %v3289 = vsub.f32 %v302, %v3288
      %v3290 = vand.u32 %v3289, 4294901760
      %v3291 = vsub.f32 %v3289, %v3290
      %v3292 = vand.u32 %v3291, 4294901760
      %3293 = vmatprep.subr.mxu0 %v3292
      %v3294 = vand.u32 %v301, 4294901760
      %v3295 = vsub.f32 %v301, %v3294
      %v3296 = vand.u32 %v3295, 4294901760
      %v3297 = vsub.f32 %v3295, %v3296
      %v3298 = vand.u32 %v3297, 4294901760
      %3299 = vmatpush1.msra.mxu0 %v3298
      %v3300 = vand.u32 %v306, 4294901760
      %v3301 = vsub.f32 %v306, %v3300
      %v3302 = vand.u32 %v3301, 4294901760
      %v3303 = vsub.f32 %v3301, %v3302
      %v3304 = vand.u32 %v3303, 4294901760
      %3305 = vmatprep.subr.mxu0 %v3304
      %v3306 = vand.u32 %v305, 4294901760
      %v3307 = vsub.f32 %v305, %v3306
      %v3308 = vand.u32 %v3307, 4294901760
      %v3309 = vsub.f32 %v3307, %v3308
      %v3310 = vand.u32 %v3309, 4294901760
      %3311 = vmatpush1.msra.mxu0 %v3310
      %v3312 = vand.u32 %v310, 4294901760
      %v3313 = vsub.f32 %v310, %v3312
      %v3314 = vand.u32 %v3313, 4294901760
      %v3315 = vsub.f32 %v3313, %v3314
      %v3316 = vand.u32 %v3315, 4294901760
      %3317 = vmatprep.subr.mxu0 %v3316
      %v3318 = vand.u32 %v309, 4294901760
      %v3319 = vsub.f32 %v309, %v3318
      %v3320 = vand.u32 %v3319, 4294901760
      %v3321 = vsub.f32 %v3319, %v3320
      %v3322 = vand.u32 %v3321, 4294901760
      %3323 = vmatpush1.msra.mxu0 %v3322
      %v3324 = vand.u32 %v314, 4294901760
      %v3325 = vsub.f32 %v314, %v3324
      %v3326 = vand.u32 %v3325, 4294901760
      %v3327 = vsub.f32 %v3325, %v3326
      %v3328 = vand.u32 %v3327, 4294901760
      %3329 = vmatprep.subr.mxu0 %v3328
      %v3330 = vand.u32 %v313, 4294901760
      %v3331 = vsub.f32 %v313, %v3330
      %v3332 = vand.u32 %v3331, 4294901760
      %v3333 = vsub.f32 %v3331, %v3332
      %v3334 = vand.u32 %v3333, 4294901760
      %3335 = vmatpush1.msra.mxu0 %v3334
      %v3336 = vand.u32 %v318, 4294901760
      %v3337 = vsub.f32 %v318, %v3336
      %v3338 = vand.u32 %v3337, 4294901760
      %v3339 = vsub.f32 %v3337, %v3338
      %v3340 = vand.u32 %v3339, 4294901760
      %3341 = vmatprep.subr.mxu0 %v3340
      %v3342 = vand.u32 %v317, 4294901760
      %v3343 = vsub.f32 %v317, %v3342
      %v3344 = vand.u32 %v3343, 4294901760
      %v3345 = vsub.f32 %v3343, %v3344
      %v3346 = vand.u32 %v3345, 4294901760
      %3347 = vmatpush1.msra.mxu0 %v3346
      %v3348 = vand.u32 %v322, 4294901760
      %v3349 = vsub.f32 %v322, %v3348
      %v3350 = vand.u32 %v3349, 4294901760
      %v3351 = vsub.f32 %v3349, %v3350
      %v3352 = vand.u32 %v3351, 4294901760
      %3353 = vmatprep.subr.mxu0 %v3352
      %v3354 = vand.u32 %v321, 4294901760
      %v3355 = vsub.f32 %v321, %v3354
      %v3356 = vand.u32 %v3355, 4294901760
      %v3357 = vsub.f32 %v3355, %v3356
      %v3358 = vand.u32 %v3357, 4294901760
      %3359 = vmatpush1.msra.mxu0 %v3358
      %v3360 = vand.u32 %v326, 4294901760
      %v3361 = vsub.f32 %v326, %v3360
      %v3362 = vand.u32 %v3361, 4294901760
      %v3363 = vsub.f32 %v3361, %v3362
      %v3364 = vand.u32 %v3363, 4294901760
      %3365 = vmatprep.subr.mxu0 %v3364
      %v3366 = vand.u32 %v325, 4294901760
      %v3367 = vsub.f32 %v325, %v3366
      %v3368 = vand.u32 %v3367, 4294901760
      %v3369 = vsub.f32 %v3367, %v3368
      %v3370 = vand.u32 %v3369, 4294901760
      %3371 = vmatpush1.msra.mxu0 %v3370
      %v3372 = vand.u32 %v330, 4294901760
      %v3373 = vsub.f32 %v330, %v3372
      %v3374 = vand.u32 %v3373, 4294901760
      %v3375 = vsub.f32 %v3373, %v3374
      %v3376 = vand.u32 %v3375, 4294901760
      %3377 = vmatprep.subr.mxu0 %v3376
      %v3378 = vand.u32 %v329, 4294901760
      %v3379 = vsub.f32 %v329, %v3378
      %v3380 = vand.u32 %v3379, 4294901760
      %v3381 = vsub.f32 %v3379, %v3380
      %v3382 = vand.u32 %v3381, 4294901760
      %3383 = vmatpush1.msra.mxu0 %v3382
      %3384 = vmatprep.subr.mxu0 0.0
      %3385 = vmatpush1.msra.mxu0 0.0
      %3386 = vmatprep.subr.mxu0 0.0
      %3387 = vmatpush1.msra.mxu0 0.0
      %3388 = vmatprep.subr.mxu0 0.0
      %3389 = vmatpush1.msra.mxu0 0.0
      %3390 = vmatprep.subr.mxu0 0.0
      %3391 = vmatpush1.msra.mxu0 0.0
      %3392 = vmatprep.subr.mxu0 0.0
      %3393 = vmatpush1.msra.mxu0 0.0
      %3394 = vmatprep.subr.mxu0 0.0
      %3395 = vmatpush1.msra.mxu0 0.0
      %3396 = vmatprep.subr.mxu0 0.0
      %3397 = vmatpush1.msra.mxu0 0.0
      %3398 = vmatprep.subr.mxu0 0.0
      %3399 = vmatpush1.msra.mxu0 0.0
      %3400 = vmatprep.subr.mxu0 0.0
      %3401 = vmatpush1.msra.mxu0 0.0
      %3402 = vmatprep.subr.mxu0 0.0
      %3403 = vmatpush1.msra.mxu0 0.0
      %3404 = vmatprep.subr.mxu0 0.0
      %3405 = vmatpush1.msra.mxu0 0.0
      %3406 = vmatprep.subr.mxu0 0.0
      %3407 = vmatpush1.msra.mxu0 0.0
      %3408 = vmatprep.subr.mxu0 0.0
      %3409 = vmatpush1.msra.mxu0 0.0
      %3410 = vmatprep.subr.mxu0 0.0
      %3411 = vmatpush1.msra.mxu0 0.0
      %3412 = vmatprep.subr.mxu0 0.0
      %3413 = vmatpush1.msra.mxu0 0.0
      %3414 = vmatprep.subr.mxu0 0.0
      %3415 = vmatpush1.msra.mxu0 0.0
      %3416 = vmatprep.mubr.f32.mxu0 0.0
      %v3417 = vand.u32 %v2167, 4294901760
      %3418 = vmatmul.mubr.f32.gmra.mrb[0].mxu0 %v3417
      %v3419 = vpop.f32.mrb[0].mxu0
      %v3420 = vadd.f32 %v3177, %v3419
      %v3421 = vpop.f32.mrb[0].mxu0
      %v3422 = vadd.f32 %v3179, %v3421
      %3423 = vmatprep.mubr.f32.mxu0 0.0
      %v3424 = vand.u32 %v2168, 4294901760
      %3425 = vmatmul.mubr.f32.gmra.mrb[0].mxu0 %v3424
      %v3426 = vpop.f32.mrb[0].mxu0
      %v3427 = vadd.f32 %v3188, %v3426
      %v3428 = vpop.f32.mrb[0].mxu0
      %v3429 = vadd.f32 %v3190, %v3428
      %3430 = vdwg.mxu0
      %v3431 = vand.u32 %v270, 4294901760
      %v3432 = vsub.f32 %v270, %v3431
      %3433 = vmatprep.subr.mxu0 %v3432
      %v3434 = vand.u32 %v269, 4294901760
      %v3435 = vsub.f32 %v269, %v3434
      %3436 = vmatpush1.msra.mxu0 %v3435
      %v3437 = vand.u32 %v274, 4294901760
      %v3438 = vsub.f32 %v274, %v3437
      %3439 = vmatprep.subr.mxu0 %v3438
      %v3440 = vand.u32 %v273, 4294901760
      %v3441 = vsub.f32 %v273, %v3440
      %3442 = vmatpush1.msra.mxu0 %v3441
      %v3443 = vand.u32 %v278, 4294901760
      %v3444 = vsub.f32 %v278, %v3443
      %3445 = vmatprep.subr.mxu0 %v3444
      %v3446 = vand.u32 %v277, 4294901760
      %v3447 = vsub.f32 %v277, %v3446
      %3448 = vmatpush1.msra.mxu0 %v3447
      %v3449 = vand.u32 %v282, 4294901760
      %v3450 = vsub.f32 %v282, %v3449
      %3451 = vmatprep.subr.mxu0 %v3450
      %v3452 = vand.u32 %v281, 4294901760
      %v3453 = vsub.f32 %v281, %v3452
      %3454 = vmatpush1.msra.mxu0 %v3453
      %v3455 = vand.u32 %v286, 4294901760
      %v3456 = vsub.f32 %v286, %v3455
      %3457 = vmatprep.subr.mxu0 %v3456
      %v3458 = vand.u32 %v285, 4294901760
      %v3459 = vsub.f32 %v285, %v3458
      %3460 = vmatpush1.msra.mxu0 %v3459
      %v3461 = vand.u32 %v290, 4294901760
      %v3462 = vsub.f32 %v290, %v3461
      %3463 = vmatprep.subr.mxu0 %v3462
      %v3464 = vand.u32 %v289, 4294901760
      %v3465 = vsub.f32 %v289, %v3464
      %3466 = vmatpush1.msra.mxu0 %v3465
      %v3467 = vand.u32 %v294, 4294901760
      %v3468 = vsub.f32 %v294, %v3467
      %3469 = vmatprep.subr.mxu0 %v3468
      %v3470 = vand.u32 %v293, 4294901760
      %v3471 = vsub.f32 %v293, %v3470
      %3472 = vmatpush1.msra.mxu0 %v3471
      %v3473 = vand.u32 %v298, 4294901760
      %v3474 = vsub.f32 %v298, %v3473
      %3475 = vmatprep.subr.mxu0 %v3474
      %v3476 = vand.u32 %v297, 4294901760
      %v3477 = vsub.f32 %v297, %v3476
      %3478 = vmatpush1.msra.mxu0 %v3477
      %v3479 = vand.u32 %v302, 4294901760
      %v3480 = vsub.f32 %v302, %v3479
      %3481 = vmatprep.subr.mxu0 %v3480
      %v3482 = vand.u32 %v301, 4294901760
      %v3483 = vsub.f32 %v301, %v3482
      %3484 = vmatpush1.msra.mxu0 %v3483
      %v3485 = vand.u32 %v306, 4294901760
      %v3486 = vsub.f32 %v306, %v3485
      %3487 = vmatprep.subr.mxu0 %v3486
      %v3488 = vand.u32 %v305, 4294901760
      %v3489 = vsub.f32 %v305, %v3488
      %3490 = vmatpush1.msra.mxu0 %v3489
      %v3491 = vand.u32 %v310, 4294901760
      %v3492 = vsub.f32 %v310, %v3491
      %3493 = vmatprep.subr.mxu0 %v3492
      %v3494 = vand.u32 %v309, 4294901760
      %v3495 = vsub.f32 %v309, %v3494
      %3496 = vmatpush1.msra.mxu0 %v3495
      %v3497 = vand.u32 %v314, 4294901760
      %v3498 = vsub.f32 %v314, %v3497
      %3499 = vmatprep.subr.mxu0 %v3498
      %v3500 = vand.u32 %v313, 4294901760
      %v3501 = vsub.f32 %v313, %v3500
      %3502 = vmatpush1.msra.mxu0 %v3501
      %v3503 = vand.u32 %v318, 4294901760
      %v3504 = vsub.f32 %v318, %v3503
      %3505 = vmatprep.subr.mxu0 %v3504
      %v3506 = vand.u32 %v317, 4294901760
      %v3507 = vsub.f32 %v317, %v3506
      %3508 = vmatpush1.msra.mxu0 %v3507
      %v3509 = vand.u32 %v322, 4294901760
      %v3510 = vsub.f32 %v322, %v3509
      %3511 = vmatprep.subr.mxu0 %v3510
      %v3512 = vand.u32 %v321, 4294901760
      %v3513 = vsub.f32 %v321, %v3512
      %3514 = vmatpush1.msra.mxu0 %v3513
      %v3515 = vand.u32 %v326, 4294901760
      %v3516 = vsub.f32 %v326, %v3515
      %3517 = vmatprep.subr.mxu0 %v3516
      %v3518 = vand.u32 %v325, 4294901760
      %v3519 = vsub.f32 %v325, %v3518
      %3520 = vmatpush1.msra.mxu0 %v3519
      %v3521 = vand.u32 %v330, 4294901760
      %v3522 = vsub.f32 %v330, %v3521
      %3523 = vmatprep.subr.mxu0 %v3522
      %v3524 = vand.u32 %v329, 4294901760
      %v3525 = vsub.f32 %v329, %v3524
      %3526 = vmatpush1.msra.mxu0 %v3525
      %3527 = vmatprep.subr.mxu0 0.0
      %3528 = vmatpush1.msra.mxu0 0.0
      %3529 = vmatprep.subr.mxu0 0.0
      %3530 = vmatpush1.msra.mxu0 0.0
      %3531 = vmatprep.subr.mxu0 0.0
      %3532 = vmatpush1.msra.mxu0 0.0
      %3533 = vmatprep.subr.mxu0 0.0
      %3534 = vmatpush1.msra.mxu0 0.0
      %3535 = vmatprep.subr.mxu0 0.0
      %3536 = vmatpush1.msra.mxu0 0.0
      %3537 = vmatprep.subr.mxu0 0.0
      %3538 = vmatpush1.msra.mxu0 0.0
      %3539 = vmatprep.subr.mxu0 0.0
      %3540 = vmatpush1.msra.mxu0 0.0
      %3541 = vmatprep.subr.mxu0 0.0
      %3542 = vmatpush1.msra.mxu0 0.0
      %3543 = vmatprep.subr.mxu0 0.0
      %3544 = vmatpush1.msra.mxu0 0.0
      %3545 = vmatprep.subr.mxu0 0.0
      %3546 = vmatpush1.msra.mxu0 0.0
      %3547 = vmatprep.subr.mxu0 0.0
      %3548 = vmatpush1.msra.mxu0 0.0
      %3549 = vmatprep.subr.mxu0 0.0
      %3550 = vmatpush1.msra.mxu0 0.0
      %3551 = vmatprep.subr.mxu0 0.0
      %3552 = vmatpush1.msra.mxu0 0.0
      %3553 = vmatprep.subr.mxu0 0.0
      %3554 = vmatpush1.msra.mxu0 0.0
      %3555 = vmatprep.subr.mxu0 0.0
      %3556 = vmatpush1.msra.mxu0 0.0
      %3557 = vmatprep.subr.mxu0 0.0
      %3558 = vmatpush1.msra.mxu0 0.0
      %3559 = vmatprep.mubr.f32.mxu0 0.0
      %v3560 = vand.u32 %v2167, 4294901760
      %v3561 = vsub.f32 %v2167, %v3560
      %3562 = vmatmul.mubr.f32.gmra.mrb[0].mxu0 %v3561
      %v3563 = vpop.f32.mrb[0].mxu0
      %v3564 = vadd.f32 %v3420, %v3563
      %v3565 = vpop.f32.mrb[0].mxu0
      %v3566 = vadd.f32 %v3422, %v3565
      %3567 = vmatprep.mubr.f32.mxu0 0.0
      %v3568 = vand.u32 %v2168, 4294901760
      %v3569 = vsub.f32 %v2168, %v3568
      %3570 = vmatmul.mubr.f32.gmra.mrb[0].mxu0 %v3569
      %v3571 = vpop.f32.mrb[0].mxu0
      %v3572 = vadd.f32 %v3427, %v3571
      %v3573 = vpop.f32.mrb[0].mxu0
      %v3574 = vadd.f32 %v3429, %v3573
      %3575 = vdwg.mxu0
      %v3576 = vand.u32 %v270, 4294901760
      %3577 = vmatprep.subr.mxu0 %v3576
      %v3578 = vand.u32 %v269, 4294901760
      %3579 = vmatpush1.msra.mxu0 %v3578
      %v3580 = vand.u32 %v274, 4294901760
      %3581 = vmatprep.subr.mxu0 %v3580
      %v3582 = vand.u32 %v273, 4294901760
      %3583 = vmatpush1.msra.mxu0 %v3582
      %v3584 = vand.u32 %v278, 4294901760
      %3585 = vmatprep.subr.mxu0 %v3584
      %v3586 = vand.u32 %v277, 4294901760
      %3587 = vmatpush1.msra.mxu0 %v3586
      %v3588 = vand.u32 %v282, 4294901760
      %3589 = vmatprep.subr.mxu0 %v3588
      %v3590 = vand.u32 %v281, 4294901760
      %3591 = vmatpush1.msra.mxu0 %v3590
      %v3592 = vand.u32 %v286, 4294901760
      %3593 = vmatprep.subr.mxu0 %v3592
      %v3594 = vand.u32 %v285, 4294901760
      %3595 = vmatpush1.msra.mxu0 %v3594
      %v3596 = vand.u32 %v290, 4294901760
      %3597 = vmatprep.subr.mxu0 %v3596
      %v3598 = vand.u32 %v289, 4294901760
      %3599 = vmatpush1.msra.mxu0 %v3598
      %v3600 = vand.u32 %v294, 4294901760
      %3601 = vmatprep.subr.mxu0 %v3600
      %v3602 = vand.u32 %v293, 4294901760
      %3603 = vmatpush1.msra.mxu0 %v3602
      %v3604 = vand.u32 %v298, 4294901760
      %3605 = vmatprep.subr.mxu0 %v3604
      %v3606 = vand.u32 %v297, 4294901760
      %3607 = vmatpush1.msra.mxu0 %v3606
      %v3608 = vand.u32 %v302, 4294901760
      %3609 = vmatprep.subr.mxu0 %v3608
      %v3610 = vand.u32 %v301, 4294901760
      %3611 = vmatpush1.msra.mxu0 %v3610
      %v3612 = vand.u32 %v306, 4294901760
      %3613 = vmatprep.subr.mxu0 %v3612
      %v3614 = vand.u32 %v305, 4294901760
      %3615 = vmatpush1.msra.mxu0 %v3614
      %v3616 = vand.u32 %v310, 4294901760
      %3617 = vmatprep.subr.mxu0 %v3616
      %v3618 = vand.u32 %v309, 4294901760
      %3619 = vmatpush1.msra.mxu0 %v3618
      %v3620 = vand.u32 %v314, 4294901760
      %3621 = vmatprep.subr.mxu0 %v3620
      %v3622 = vand.u32 %v313, 4294901760
      %3623 = vmatpush1.msra.mxu0 %v3622
      %v3624 = vand.u32 %v318, 4294901760
      %3625 = vmatprep.subr.mxu0 %v3624
      %v3626 = vand.u32 %v317, 4294901760
      %3627 = vmatpush1.msra.mxu0 %v3626
      %v3628 = vand.u32 %v322, 4294901760
      %3629 = vmatprep.subr.mxu0 %v3628
      %v3630 = vand.u32 %v321, 4294901760
      %3631 = vmatpush1.msra.mxu0 %v3630
      %v3632 = vand.u32 %v326, 4294901760
      %3633 = vmatprep.subr.mxu0 %v3632
      %v3634 = vand.u32 %v325, 4294901760
      %3635 = vmatpush1.msra.mxu0 %v3634
      %v3636 = vand.u32 %v330, 4294901760
      %3637 = vmatprep.subr.mxu0 %v3636
      %v3638 = vand.u32 %v329, 4294901760
      %3639 = vmatpush1.msra.mxu0 %v3638
      %3640 = vmatprep.subr.mxu0 0.0
      %3641 = vmatpush1.msra.mxu0 0.0
      %3642 = vmatprep.subr.mxu0 0.0
      %3643 = vmatpush1.msra.mxu0 0.0
      %3644 = vmatprep.subr.mxu0 0.0
      %3645 = vmatpush1.msra.mxu0 0.0
      %3646 = vmatprep.subr.mxu0 0.0
      %3647 = vmatpush1.msra.mxu0 0.0
      %3648 = vmatprep.subr.mxu0 0.0
      %3649 = vmatpush1.msra.mxu0 0.0
      %3650 = vmatprep.subr.mxu0 0.0
      %3651 = vmatpush1.msra.mxu0 0.0
      %3652 = vmatprep.subr.mxu0 0.0
      %3653 = vmatpush1.msra.mxu0 0.0
      %3654 = vmatprep.subr.mxu0 0.0
      %3655 = vmatpush1.msra.mxu0 0.0
      %3656 = vmatprep.subr.mxu0 0.0
      %3657 = vmatpush1.msra.mxu0 0.0
      %3658 = vmatprep.subr.mxu0 0.0
      %3659 = vmatpush1.msra.mxu0 0.0
      %3660 = vmatprep.subr.mxu0 0.0
      %3661 = vmatpush1.msra.mxu0 0.0
      %3662 = vmatprep.subr.mxu0 0.0
      %3663 = vmatpush1.msra.mxu0 0.0
      %3664 = vmatprep.subr.mxu0 0.0
      %3665 = vmatpush1.msra.mxu0 0.0
      %3666 = vmatprep.subr.mxu0 0.0
      %3667 = vmatpush1.msra.mxu0 0.0
      %3668 = vmatprep.subr.mxu0 0.0
      %3669 = vmatpush1.msra.mxu0 0.0
      %3670 = vmatprep.subr.mxu0 0.0
      %3671 = vmatpush1.msra.mxu0 0.0
      %3672 = vmatprep.mubr.f32.mxu0 0.0
      %v3673 = vand.u32 %v2167, 4294901760
      %v3674 = vsub.f32 %v2167, %v3673
      %v3675 = vand.u32 %v3674, 4294901760
      %3676 = vmatmul.mubr.f32.gmra.mrb[0].mxu0 %v3675
      %v3677 = vpop.f32.mrb[0].mxu0
      %v3678 = vadd.f32 %v3564, %v3677
      %v3679 = vpop.f32.mrb[0].mxu0
      %v3680 = vadd.f32 %v3566, %v3679
      %3681 = vmatprep.mubr.f32.mxu0 0.0
      %v3682 = vand.u32 %v2168, 4294901760
      %v3683 = vsub.f32 %v2168, %v3682
      %v3684 = vand.u32 %v3683, 4294901760
      %3685 = vmatmul.mubr.f32.gmra.mrb[0].mxu0 %v3684
      %v3686 = vpop.f32.mrb[0].mxu0
      %v3687 = vadd.f32 %v3572, %v3686
      %v3688 = vpop.f32.mrb[0].mxu0
      %v3689 = vadd.f32 %v3574, %v3688
      %3690 = vdwg.mxu0
      %v3691 = vand.u32 %v270, 4294901760
      %v3692 = vsub.f32 %v270, %v3691
      %v3693 = vand.u32 %v3692, 4294901760
      %3694 = vmatprep.subr.mxu0 %v3693
      %v3695 = vand.u32 %v269, 4294901760
      %v3696 = vsub.f32 %v269, %v3695
      %v3697 = vand.u32 %v3696, 4294901760
      %3698 = vmatpush1.msra.mxu0 %v3697
      %v3699 = vand.u32 %v274, 4294901760
      %v3700 = vsub.f32 %v274, %v3699
      %v3701 = vand.u32 %v3700, 4294901760
      %3702 = vmatprep.subr.mxu0 %v3701
      %v3703 = vand.u32 %v273, 4294901760
      %v3704 = vsub.f32 %v273, %v3703
      %v3705 = vand.u32 %v3704, 4294901760
      %3706 = vmatpush1.msra.mxu0 %v3705
      %v3707 = vand.u32 %v278, 4294901760
      %v3708 = vsub.f32 %v278, %v3707
      %v3709 = vand.u32 %v3708, 4294901760
      %3710 = vmatprep.subr.mxu0 %v3709
      %v3711 = vand.u32 %v277, 4294901760
      %v3712 = vsub.f32 %v277, %v3711
      %v3713 = vand.u32 %v3712, 4294901760
      %3714 = vmatpush1.msra.mxu0 %v3713
      %v3715 = vand.u32 %v282, 4294901760
      %v3716 = vsub.f32 %v282, %v3715
      %v3717 = vand.u32 %v3716, 4294901760
      %3718 = vmatprep.subr.mxu0 %v3717
      %v3719 = vand.u32 %v281, 4294901760
      %v3720 = vsub.f32 %v281, %v3719
      %v3721 = vand.u32 %v3720, 4294901760
      %3722 = vmatpush1.msra.mxu0 %v3721
      %v3723 = vand.u32 %v286, 4294901760
      %v3724 = vsub.f32 %v286, %v3723
      %v3725 = vand.u32 %v3724, 4294901760
      %3726 = vmatprep.subr.mxu0 %v3725
      %v3727 = vand.u32 %v285, 4294901760
      %v3728 = vsub.f32 %v285, %v3727
      %v3729 = vand.u32 %v3728, 4294901760
      %3730 = vmatpush1.msra.mxu0 %v3729
      %v3731 = vand.u32 %v290, 4294901760
      %v3732 = vsub.f32 %v290, %v3731
      %v3733 = vand.u32 %v3732, 4294901760
      %3734 = vmatprep.subr.mxu0 %v3733
      %v3735 = vand.u32 %v289, 4294901760
      %v3736 = vsub.f32 %v289, %v3735
      %v3737 = vand.u32 %v3736, 4294901760
      %3738 = vmatpush1.msra.mxu0 %v3737
      %v3739 = vand.u32 %v294, 4294901760
      %v3740 = vsub.f32 %v294, %v3739
      %v3741 = vand.u32 %v3740, 4294901760
      %3742 = vmatprep.subr.mxu0 %v3741
      %v3743 = vand.u32 %v293, 4294901760
      %v3744 = vsub.f32 %v293, %v3743
      %v3745 = vand.u32 %v3744, 4294901760
      %3746 = vmatpush1.msra.mxu0 %v3745
      %v3747 = vand.u32 %v298, 4294901760
      %v3748 = vsub.f32 %v298, %v3747
      %v3749 = vand.u32 %v3748, 4294901760
      %3750 = vmatprep.subr.mxu0 %v3749
      %v3751 = vand.u32 %v297, 4294901760
      %v3752 = vsub.f32 %v297, %v3751
      %v3753 = vand.u32 %v3752, 4294901760
      %3754 = vmatpush1.msra.mxu0 %v3753
      %v3755 = vand.u32 %v302, 4294901760
      %v3756 = vsub.f32 %v302, %v3755
      %v3757 = vand.u32 %v3756, 4294901760
      %3758 = vmatprep.subr.mxu0 %v3757
      %v3759 = vand.u32 %v301, 4294901760
      %v3760 = vsub.f32 %v301, %v3759
      %v3761 = vand.u32 %v3760, 4294901760
      %3762 = vmatpush1.msra.mxu0 %v3761
      %v3763 = vand.u32 %v306, 4294901760
      %v3764 = vsub.f32 %v306, %v3763
      %v3765 = vand.u32 %v3764, 4294901760
      %3766 = vmatprep.subr.mxu0 %v3765
      %v3767 = vand.u32 %v305, 4294901760
      %v3768 = vsub.f32 %v305, %v3767
      %v3769 = vand.u32 %v3768, 4294901760
      %3770 = vmatpush1.msra.mxu0 %v3769
      %v3771 = vand.u32 %v310, 4294901760
      %v3772 = vsub.f32 %v310, %v3771
      %v3773 = vand.u32 %v3772, 4294901760
      %3774 = vmatprep.subr.mxu0 %v3773
      %v3775 = vand.u32 %v309, 4294901760
      %v3776 = vsub.f32 %v309, %v3775
      %v3777 = vand.u32 %v3776, 4294901760
      %3778 = vmatpush1.msra.mxu0 %v3777
      %v3779 = vand.u32 %v314, 4294901760
      %v3780 = vsub.f32 %v314, %v3779
      %v3781 = vand.u32 %v3780, 4294901760
      %3782 = vmatprep.subr.mxu0 %v3781
      %v3783 = vand.u32 %v313, 4294901760
      %v3784 = vsub.f32 %v313, %v3783
      %v3785 = vand.u32 %v3784, 4294901760
      %3786 = vmatpush1.msra.mxu0 %v3785
      %v3787 = vand.u32 %v318, 4294901760
      %v3788 = vsub.f32 %v318, %v3787
      %v3789 = vand.u32 %v3788, 4294901760
      %3790 = vmatprep.subr.mxu0 %v3789
      %v3791 = vand.u32 %v317, 4294901760
      %v3792 = vsub.f32 %v317, %v3791
      %v3793 = vand.u32 %v3792, 4294901760
      %3794 = vmatpush1.msra.mxu0 %v3793
      %v3795 = vand.u32 %v322, 4294901760
      %v3796 = vsub.f32 %v322, %v3795
      %v3797 = vand.u32 %v3796, 4294901760
      %3798 = vmatprep.subr.mxu0 %v3797
      %v3799 = vand.u32 %v321, 4294901760
      %v3800 = vsub.f32 %v321, %v3799
      %v3801 = vand.u32 %v3800, 4294901760
      %3802 = vmatpush1.msra.mxu0 %v3801
      %v3803 = vand.u32 %v326, 4294901760
      %v3804 = vsub.f32 %v326, %v3803
      %v3805 = vand.u32 %v3804, 4294901760
      %3806 = vmatprep.subr.mxu0 %v3805
      %v3807 = vand.u32 %v325, 4294901760
      %v3808 = vsub.f32 %v325, %v3807
      %v3809 = vand.u32 %v3808, 4294901760
      %3810 = vmatpush1.msra.mxu0 %v3809
      %v3811 = vand.u32 %v330, 4294901760
      %v3812 = vsub.f32 %v330, %v3811
      %v3813 = vand.u32 %v3812, 4294901760
      %3814 = vmatprep.subr.mxu0 %v3813
      %v3815 = vand.u32 %v329, 4294901760
      %v3816 = vsub.f32 %v329, %v3815
      %v3817 = vand.u32 %v3816, 4294901760
      %3818 = vmatpush1.msra.mxu0 %v3817
      %3819 = vmatprep.subr.mxu0 0.0
      %3820 = vmatpush1.msra.mxu0 0.0
      %3821 = vmatprep.subr.mxu0 0.0
      %3822 = vmatpush1.msra.mxu0 0.0
      %3823 = vmatprep.subr.mxu0 0.0
      %3824 = vmatpush1.msra.mxu0 0.0
      %3825 = vmatprep.subr.mxu0 0.0
      %3826 = vmatpush1.msra.mxu0 0.0
      %3827 = vmatprep.subr.mxu0 0.0
      %3828 = vmatpush1.msra.mxu0 0.0
      %3829 = vmatprep.subr.mxu0 0.0
      %3830 = vmatpush1.msra.mxu0 0.0
      %3831 = vmatprep.subr.mxu0 0.0
      %3832 = vmatpush1.msra.mxu0 0.0
      %3833 = vmatprep.subr.mxu0 0.0
      %3834 = vmatpush1.msra.mxu0 0.0
      %3835 = vmatprep.subr.mxu0 0.0
      %3836 = vmatpush1.msra.mxu0 0.0
      %3837 = vmatprep.subr.mxu0 0.0
      %3838 = vmatpush1.msra.mxu0 0.0
      %3839 = vmatprep.subr.mxu0 0.0
      %3840 = vmatpush1.msra.mxu0 0.0
      %3841 = vmatprep.subr.mxu0 0.0
      %3842 = vmatpush1.msra.mxu0 0.0
      %3843 = vmatprep.subr.mxu0 0.0
      %3844 = vmatpush1.msra.mxu0 0.0
      %3845 = vmatprep.subr.mxu0 0.0
      %3846 = vmatpush1.msra.mxu0 0.0
      %3847 = vmatprep.subr.mxu0 0.0
      %3848 = vmatpush1.msra.mxu0 0.0
      %3849 = vmatprep.subr.mxu0 0.0
      %3850 = vmatpush1.msra.mxu0 0.0
      %3851 = vmatprep.mubr.f32.mxu0 0.0
      %v3852 = vand.u32 %v2167, 4294901760
      %3853 = vmatmul.mubr.f32.gmra.mrb[0].mxu0 %v3852
      %v3854 = vpop.f32.mrb[0].mxu0
      %v3855 = vadd.f32 %v3678, %v3854
      %v3856 = vpop.f32.mrb[0].mxu0
      %v3857 = vadd.f32 %v3680, %v3856
      %3858 = vmatprep.mubr.f32.mxu0 0.0
      %v3859 = vand.u32 %v2168, 4294901760
      %3860 = vmatmul.mubr.f32.gmra.mrb[0].mxu0 %v3859
      %v3861 = vpop.f32.mrb[0].mxu0
      %v3862 = vadd.f32 %v3687, %v3861
      %v3863 = vpop.f32.mrb[0].mxu0
      %v3864 = vadd.f32 %v3689, %v3863
      %3865 = vdwg.mxu0
      %v3866 = vand.u32 %v270, 4294901760
      %3867 = vmatprep.subr.mxu0 %v3866
      %v3868 = vand.u32 %v269, 4294901760
      %3869 = vmatpush1.msra.mxu0 %v3868
      %v3870 = vand.u32 %v274, 4294901760
      %3871 = vmatprep.subr.mxu0 %v3870
      %v3872 = vand.u32 %v273, 4294901760
      %3873 = vmatpush1.msra.mxu0 %v3872
      %v3874 = vand.u32 %v278, 4294901760
      %3875 = vmatprep.subr.mxu0 %v3874
      %v3876 = vand.u32 %v277, 4294901760
      %3877 = vmatpush1.msra.mxu0 %v3876
      %v3878 = vand.u32 %v282, 4294901760
      %3879 = vmatprep.subr.mxu0 %v3878
      %v3880 = vand.u32 %v281, 4294901760
      %3881 = vmatpush1.msra.mxu0 %v3880
      %v3882 = vand.u32 %v286, 4294901760
      %3883 = vmatprep.subr.mxu0 %v3882
      %v3884 = vand.u32 %v285, 4294901760
      %3885 = vmatpush1.msra.mxu0 %v3884
      %v3886 = vand.u32 %v290, 4294901760
      %3887 = vmatprep.subr.mxu0 %v3886
      %v3888 = vand.u32 %v289, 4294901760
      %3889 = vmatpush1.msra.mxu0 %v3888
      %v3890 = vand.u32 %v294, 4294901760
      %3891 = vmatprep.subr.mxu0 %v3890
      %v3892 = vand.u32 %v293, 4294901760
      %3893 = vmatpush1.msra.mxu0 %v3892
      %v3894 = vand.u32 %v298, 4294901760
      %3895 = vmatprep.subr.mxu0 %v3894
      %v3896 = vand.u32 %v297, 4294901760
      %3897 = vmatpush1.msra.mxu0 %v3896
      %v3898 = vand.u32 %v302, 4294901760
      %3899 = vmatprep.subr.mxu0 %v3898
      %v3900 = vand.u32 %v301, 4294901760
      %3901 = vmatpush1.msra.mxu0 %v3900
      %v3902 = vand.u32 %v306, 4294901760
      %3903 = vmatprep.subr.mxu0 %v3902
      %v3904 = vand.u32 %v305, 4294901760
      %3905 = vmatpush1.msra.mxu0 %v3904
      %v3906 = vand.u32 %v310, 4294901760
      %3907 = vmatprep.subr.mxu0 %v3906
      %v3908 = vand.u32 %v309, 4294901760
      %3909 = vmatpush1.msra.mxu0 %v3908
      %v3910 = vand.u32 %v314, 4294901760
      %3911 = vmatprep.subr.mxu0 %v3910
      %v3912 = vand.u32 %v313, 4294901760
      %3913 = vmatpush1.msra.mxu0 %v3912
      %v3914 = vand.u32 %v318, 4294901760
      %3915 = vmatprep.subr.mxu0 %v3914
      %v3916 = vand.u32 %v317, 4294901760
      %3917 = vmatpush1.msra.mxu0 %v3916
      %v3918 = vand.u32 %v322, 4294901760
      %3919 = vmatprep.subr.mxu0 %v3918
      %v3920 = vand.u32 %v321, 4294901760
      %3921 = vmatpush1.msra.mxu0 %v3920
      %v3922 = vand.u32 %v326, 4294901760
      %3923 = vmatprep.subr.mxu0 %v3922
      %v3924 = vand.u32 %v325, 4294901760
      %3925 = vmatpush1.msra.mxu0 %v3924
      %v3926 = vand.u32 %v330, 4294901760
      %3927 = vmatprep.subr.mxu0 %v3926
      %v3928 = vand.u32 %v329, 4294901760
      %3929 = vmatpush1.msra.mxu0 %v3928
      %3930 = vmatprep.subr.mxu0 0.0
      %3931 = vmatpush1.msra.mxu0 0.0
      %3932 = vmatprep.subr.mxu0 0.0
      %3933 = vmatpush1.msra.mxu0 0.0
      %3934 = vmatprep.subr.mxu0 0.0
      %3935 = vmatpush1.msra.mxu0 0.0
      %3936 = vmatprep.subr.mxu0 0.0
      %3937 = vmatpush1.msra.mxu0 0.0
      %3938 = vmatprep.subr.mxu0 0.0
      %3939 = vmatpush1.msra.mxu0 0.0
      %3940 = vmatprep.subr.mxu0 0.0
      %3941 = vmatpush1.msra.mxu0 0.0
      %3942 = vmatprep.subr.mxu0 0.0
      %3943 = vmatpush1.msra.mxu0 0.0
      %3944 = vmatprep.subr.mxu0 0.0
      %3945 = vmatpush1.msra.mxu0 0.0
      %3946 = vmatprep.subr.mxu0 0.0
      %3947 = vmatpush1.msra.mxu0 0.0
      %3948 = vmatprep.subr.mxu0 0.0
      %3949 = vmatpush1.msra.mxu0 0.0
      %3950 = vmatprep.subr.mxu0 0.0
      %3951 = vmatpush1.msra.mxu0 0.0
      %3952 = vmatprep.subr.mxu0 0.0
      %3953 = vmatpush1.msra.mxu0 0.0
      %3954 = vmatprep.subr.mxu0 0.0
      %3955 = vmatpush1.msra.mxu0 0.0
      %3956 = vmatprep.subr.mxu0 0.0
      %3957 = vmatpush1.msra.mxu0 0.0
      %3958 = vmatprep.subr.mxu0 0.0
      %3959 = vmatpush1.msra.mxu0 0.0
      %3960 = vmatprep.subr.mxu0 0.0
      %3961 = vmatpush1.msra.mxu0 0.0
      %3962 = vmatprep.mubr.f32.mxu0 0.0
      %v3963 = vand.u32 %v2167, 4294901760
      %3964 = vmatmul.mubr.f32.gmra.mrb[0].mxu0 %v3963
      %v3965 = vpop.f32.mrb[0].mxu0
      %v3966 = vadd.f32 %v3855, %v3965
      %v3967 = vpop.f32.mrb[0].mxu0
      %v3968 = vadd.f32 %v3857, %v3967
      %3969 = vmatprep.mubr.f32.mxu0 0.0
      %v3970 = vand.u32 %v2168, 4294901760
      %3971 = vmatmul.mubr.f32.gmra.mrb[0].mxu0 %v3970
      %v3972 = vpop.f32.mrb[0].mxu0
      %v3973 = vadd.f32 %v3862, %v3972
      %v3974 = vpop.f32.mrb[0].mxu0
      %v3975 = vadd.f32 %v3864, %v3974
      %3976 = vdwg.mxu0
      %v3977 = vsub.f32 %v188, %v3062
      %v3978 = vsub.f32 %v190, %v3064
      %v3979 = vsub.f32 %v192, %v3966
      %v3980 = vsub.f32 %v194, %v3968
      %v3981 = vsub.f32 %v196, %v3069
      %v3982 = vsub.f32 %v198, %v3071
      %v3983 = vsub.f32 %v200, %v3973
      %v3984 = vsub.f32 %v202, %v3975
      %v3985 = vmul.f32 %v3977, %v3977
      %v3986 = vmul.f32 %v3978, %v3978
      %v3987 = vmul.f32 %v3979, %v3979
      %v3988 = vmul.f32 %v3980, %v3980
      %v3989 = vmul.f32 %v3981, %v3981
      %v3990 = vmul.f32 %v3982, %v3982
      %v3991 = vmul.f32 %v3983, %v3983
      %v3992 = vmul.f32 %v3984, %v3984
      %3993 = vmatprep.subr.mxu0 0.0
      %v3994 = vand.u32 %v203, 4294901760
      %3995 = vmatpush1.msra.mxu0 %v3994
      %3996 = vmatprep.subr.mxu0 0.0
      %v3997 = vand.u32 %v204, 4294901760
      %3998 = vmatpush1.msra.mxu0 %v3997
      %3999 = vmatprep.subr.mxu0 0.0
      %v4000 = vand.u32 %v205, 4294901760
      %4001 = vmatpush1.msra.mxu0 %v4000
      %4002 = vmatprep.subr.mxu0 0.0
      %v4003 = vand.u32 %v206, 4294901760
      %4004 = vmatpush1.msra.mxu0 %v4003
      %4005 = vmatprep.subr.mxu0 0.0
      %v4006 = vand.u32 %v207, 4294901760
      %4007 = vmatpush1.msra.mxu0 %v4006
      %4008 = vmatprep.subr.mxu0 0.0
      %v4009 = vand.u32 %v208, 4294901760
      %4010 = vmatpush1.msra.mxu0 %v4009
      %4011 = vmatprep.subr.mxu0 0.0
      %v4012 = vand.u32 %v209, 4294901760
      %4013 = vmatpush1.msra.mxu0 %v4012
      %4014 = vmatprep.subr.mxu0 0.0
      %v4015 = vand.u32 %v210, 4294901760
      %4016 = vmatpush1.msra.mxu0 %v4015
      %4017 = vmatprep.subr.mxu0 0.0
      %v4018 = vand.u32 %v211, 4294901760
      %4019 = vmatpush1.msra.mxu0 %v4018
      %4020 = vmatprep.subr.mxu0 0.0
      %v4021 = vand.u32 %v212, 4294901760
      %4022 = vmatpush1.msra.mxu0 %v4021
      %4023 = vmatprep.subr.mxu0 0.0
      %v4024 = vand.u32 %v213, 4294901760
      %4025 = vmatpush1.msra.mxu0 %v4024
      %4026 = vmatprep.subr.mxu0 0.0
      %v4027 = vand.u32 %v214, 4294901760
      %4028 = vmatpush1.msra.mxu0 %v4027
      %4029 = vmatprep.subr.mxu0 0.0
      %v4030 = vand.u32 %v215, 4294901760
      %4031 = vmatpush1.msra.mxu0 %v4030
      %4032 = vmatprep.subr.mxu0 0.0
      %v4033 = vand.u32 %v216, 4294901760
      %4034 = vmatpush1.msra.mxu0 %v4033
      %4035 = vmatprep.subr.mxu0 0.0
      %v4036 = vand.u32 %v217, 4294901760
      %4037 = vmatpush1.msra.mxu0 %v4036
      %4038 = vmatprep.subr.mxu0 0.0
      %v4039 = vand.u32 %v218, 4294901760
      %4040 = vmatpush1.msra.mxu0 %v4039
      %4041 = vmatprep.subr.mxu0 0.0
      %v4042 = vand.u32 %v219, 4294901760
      %4043 = vmatpush1.msra.mxu0 %v4042
      %4044 = vmatprep.subr.mxu0 0.0
      %v4045 = vand.u32 %v220, 4294901760
      %4046 = vmatpush1.msra.mxu0 %v4045
      %4047 = vmatprep.subr.mxu0 0.0
      %v4048 = vand.u32 %v221, 4294901760
      %4049 = vmatpush1.msra.mxu0 %v4048
      %4050 = vmatprep.subr.mxu0 0.0
      %v4051 = vand.u32 %v222, 4294901760
      %4052 = vmatpush1.msra.mxu0 %v4051
      %4053 = vmatprep.subr.mxu0 0.0
      %v4054 = vand.u32 %v223, 4294901760
      %4055 = vmatpush1.msra.mxu0 %v4054
      %4056 = vmatprep.subr.mxu0 0.0
      %v4057 = vand.u32 %v224, 4294901760
      %4058 = vmatpush1.msra.mxu0 %v4057
      %4059 = vmatprep.subr.mxu0 0.0
      %v4060 = vand.u32 %v225, 4294901760
      %4061 = vmatpush1.msra.mxu0 %v4060
      %4062 = vmatprep.subr.mxu0 0.0
      %v4063 = vand.u32 %v226, 4294901760
      %4064 = vmatpush1.msra.mxu0 %v4063
      %4065 = vmatprep.subr.mxu0 0.0
      %v4066 = vand.u32 %v227, 4294901760
      %4067 = vmatpush1.msra.mxu0 %v4066
      %4068 = vmatprep.subr.mxu0 0.0
      %v4069 = vand.u32 %v228, 4294901760
      %4070 = vmatpush1.msra.mxu0 %v4069
      %4071 = vmatprep.subr.mxu0 0.0
      %v4072 = vand.u32 %v229, 4294901760
      %4073 = vmatpush1.msra.mxu0 %v4072
      %4074 = vmatprep.subr.mxu0 0.0
      %v4075 = vand.u32 %v230, 4294901760
      %4076 = vmatpush1.msra.mxu0 %v4075
      %4077 = vmatprep.subr.mxu0 0.0
      %v4078 = vand.u32 %v231, 4294901760
      %4079 = vmatpush1.msra.mxu0 %v4078
      %4080 = vmatprep.subr.mxu0 0.0
      %v4081 = vand.u32 %v232, 4294901760
      %4082 = vmatpush1.msra.mxu0 %v4081
      %4083 = vmatprep.subr.mxu0 0.0
      %v4084 = vand.u32 %v233, 4294901760
      %4085 = vmatpush1.msra.mxu0 %v4084
      %4086 = vmatprep.subr.mxu0 0.0
      %v4087 = vand.u32 %v234, 4294901760
      %4088 = vmatpush1.msra.mxu0 %v4087
      %v4089 = vand.u32 %v3986, 4294901760
      %v4090 = vsub.f32 %v3986, %v4089
      %v4091 = vand.u32 %v4090, 4294901760
      %v4092 = vsub.f32 %v4090, %v4091
      %v4093 = vand.u32 %v4092, 4294901760
      %4094 = vmatprep.mubr.f32.mxu0 %v4093
      %v4095 = vand.u32 %v3985, 4294901760
      %v4096 = vsub.f32 %v3985, %v4095
      %v4097 = vand.u32 %v4096, 4294901760
      %v4098 = vsub.f32 %v4096, %v4097
      %v4099 = vand.u32 %v4098, 4294901760
      %4100 = vmatmul.mubr.f32.gmra.mrb[0].mxu0 %v4099
      %v4101 = vpop.f32.mrb[0].mxu0
      %v4102 = vadd.f32 0.0, %v4101
      %v4103 = vpop.f32.mrb[0].mxu0
      %v4104 = vand.u32 %v3990, 4294901760
      %v4105 = vsub.f32 %v3990, %v4104
      %v4106 = vand.u32 %v4105, 4294901760
      %v4107 = vsub.f32 %v4105, %v4106
      %v4108 = vand.u32 %v4107, 4294901760
      %4109 = vmatprep.mubr.f32.mxu0 %v4108
      %v4110 = vand.u32 %v3989, 4294901760
      %v4111 = vsub.f32 %v3989, %v4110
      %v4112 = vand.u32 %v4111, 4294901760
      %v4113 = vsub.f32 %v4111, %v4112
      %v4114 = vand.u32 %v4113, 4294901760
      %4115 = vmatmul.mubr.f32.gmra.mrb[0].mxu0 %v4114
      %v4116 = vpop.f32.mrb[0].mxu0
      %v4117 = vadd.f32 0.0, %v4116
      %v4118 = vpop.f32.mrb[0].mxu0
      %4119 = vdwg.mxu0
      %4120 = vmatprep.subr.mxu0 0.0
      %v4121 = vand.u32 %v203, 4294901760
      %v4122 = vsub.f32 %v203, %v4121
      %v4123 = vand.u32 %v4122, 4294901760
      %v4124 = vsub.f32 %v4122, %v4123
      %v4125 = vand.u32 %v4124, 4294901760
      %4126 = vmatpush1.msra.mxu0 %v4125
      %4127 = vmatprep.subr.mxu0 0.0
      %v4128 = vand.u32 %v204, 4294901760
      %v4129 = vsub.f32 %v204, %v4128
      %v4130 = vand.u32 %v4129, 4294901760
      %v4131 = vsub.f32 %v4129, %v4130
      %v4132 = vand.u32 %v4131, 4294901760
      %4133 = vmatpush1.msra.mxu0 %v4132
      %4134 = vmatprep.subr.mxu0 0.0
      %v4135 = vand.u32 %v205, 4294901760
      %v4136 = vsub.f32 %v205, %v4135
      %v4137 = vand.u32 %v4136, 4294901760
      %v4138 = vsub.f32 %v4136, %v4137
      %v4139 = vand.u32 %v4138, 4294901760
      %4140 = vmatpush1.msra.mxu0 %v4139
      %4141 = vmatprep.subr.mxu0 0.0
      %v4142 = vand.u32 %v206, 4294901760
      %v4143 = vsub.f32 %v206, %v4142
      %v4144 = vand.u32 %v4143, 4294901760
      %v4145 = vsub.f32 %v4143, %v4144
      %v4146 = vand.u32 %v4145, 4294901760
      %4147 = vmatpush1.msra.mxu0 %v4146
      %4148 = vmatprep.subr.mxu0 0.0
      %v4149 = vand.u32 %v207, 4294901760
      %v4150 = vsub.f32 %v207, %v4149
      %v4151 = vand.u32 %v4150, 4294901760
      %v4152 = vsub.f32 %v4150, %v4151
      %v4153 = vand.u32 %v4152, 4294901760
      %4154 = vmatpush1.msra.mxu0 %v4153
      %4155 = vmatprep.subr.mxu0 0.0
      %v4156 = vand.u32 %v208, 4294901760
      %v4157 = vsub.f32 %v208, %v4156
      %v4158 = vand.u32 %v4157, 4294901760
      %v4159 = vsub.f32 %v4157, %v4158
      %v4160 = vand.u32 %v4159, 4294901760
      %4161 = vmatpush1.msra.mxu0 %v4160
      %4162 = vmatprep.subr.mxu0 0.0
      %v4163 = vand.u32 %v209, 4294901760
      %v4164 = vsub.f32 %v209, %v4163
      %v4165 = vand.u32 %v4164, 4294901760
      %v4166 = vsub.f32 %v4164, %v4165
      %v4167 = vand.u32 %v4166, 4294901760
      %4168 = vmatpush1.msra.mxu0 %v4167
      %4169 = vmatprep.subr.mxu0 0.0
      %v4170 = vand.u32 %v210, 4294901760
      %v4171 = vsub.f32 %v210, %v4170
      %v4172 = vand.u32 %v4171, 4294901760
      %v4173 = vsub.f32 %v4171, %v4172
      %v4174 = vand.u32 %v4173, 4294901760
      %4175 = vmatpush1.msra.mxu0 %v4174
      %4176 = vmatprep.subr.mxu0 0.0
      %v4177 = vand.u32 %v211, 4294901760
      %v4178 = vsub.f32 %v211, %v4177
      %v4179 = vand.u32 %v4178, 4294901760
      %v4180 = vsub.f32 %v4178, %v4179
      %v4181 = vand.u32 %v4180, 4294901760
      %4182 = vmatpush1.msra.mxu0 %v4181
      %4183 = vmatprep.subr.mxu0 0.0
      %v4184 = vand.u32 %v212, 4294901760
      %v4185 = vsub.f32 %v212, %v4184
      %v4186 = vand.u32 %v4185, 4294901760
      %v4187 = vsub.f32 %v4185, %v4186
      %v4188 = vand.u32 %v4187, 4294901760
      %4189 = vmatpush1.msra.mxu0 %v4188
      %4190 = vmatprep.subr.mxu0 0.0
      %v4191 = vand.u32 %v213, 4294901760
      %v4192 = vsub.f32 %v213, %v4191
      %v4193 = vand.u32 %v4192, 4294901760
      %v4194 = vsub.f32 %v4192, %v4193
      %v4195 = vand.u32 %v4194, 4294901760
      %4196 = vmatpush1.msra.mxu0 %v4195
      %4197 = vmatprep.subr.mxu0 0.0
      %v4198 = vand.u32 %v214, 4294901760
      %v4199 = vsub.f32 %v214, %v4198
      %v4200 = vand.u32 %v4199, 4294901760
      %v4201 = vsub.f32 %v4199, %v4200
      %v4202 = vand.u32 %v4201, 4294901760
      %4203 = vmatpush1.msra.mxu0 %v4202
      %4204 = vmatprep.subr.mxu0 0.0
      %v4205 = vand.u32 %v215, 4294901760
      %v4206 = vsub.f32 %v215, %v4205
      %v4207 = vand.u32 %v4206, 4294901760
      %v4208 = vsub.f32 %v4206, %v4207
      %v4209 = vand.u32 %v4208, 4294901760
      %4210 = vmatpush1.msra.mxu0 %v4209
      %4211 = vmatprep.subr.mxu0 0.0
      %v4212 = vand.u32 %v216, 4294901760
      %v4213 = vsub.f32 %v216, %v4212
      %v4214 = vand.u32 %v4213, 4294901760
      %v4215 = vsub.f32 %v4213, %v4214
      %v4216 = vand.u32 %v4215, 4294901760
      %4217 = vmatpush1.msra.mxu0 %v4216
      %4218 = vmatprep.subr.mxu0 0.0
      %v4219 = vand.u32 %v217, 4294901760
      %v4220 = vsub.f32 %v217, %v4219
      %v4221 = vand.u32 %v4220, 4294901760
      %v4222 = vsub.f32 %v4220, %v4221
      %v4223 = vand.u32 %v4222, 4294901760
      %4224 = vmatpush1.msra.mxu0 %v4223
      %4225 = vmatprep.subr.mxu0 0.0
      %v4226 = vand.u32 %v218, 4294901760
      %v4227 = vsub.f32 %v218, %v4226
      %v4228 = vand.u32 %v4227, 4294901760
      %v4229 = vsub.f32 %v4227, %v4228
      %v4230 = vand.u32 %v4229, 4294901760
      %4231 = vmatpush1.msra.mxu0 %v4230
      %4232 = vmatprep.subr.mxu0 0.0
      %v4233 = vand.u32 %v219, 4294901760
      %v4234 = vsub.f32 %v219, %v4233
      %v4235 = vand.u32 %v4234, 4294901760
      %v4236 = vsub.f32 %v4234, %v4235
      %v4237 = vand.u32 %v4236, 4294901760
      %4238 = vmatpush1.msra.mxu0 %v4237
      %4239 = vmatprep.subr.mxu0 0.0
      %v4240 = vand.u32 %v220, 4294901760
      %v4241 = vsub.f32 %v220, %v4240
      %v4242 = vand.u32 %v4241, 4294901760
      %v4243 = vsub.f32 %v4241, %v4242
      %v4244 = vand.u32 %v4243, 4294901760
      %4245 = vmatpush1.msra.mxu0 %v4244
      %4246 = vmatprep.subr.mxu0 0.0
      %v4247 = vand.u32 %v221, 4294901760
      %v4248 = vsub.f32 %v221, %v4247
      %v4249 = vand.u32 %v4248, 4294901760
      %v4250 = vsub.f32 %v4248, %v4249
      %v4251 = vand.u32 %v4250, 4294901760
      %4252 = vmatpush1.msra.mxu0 %v4251
      %4253 = vmatprep.subr.mxu0 0.0
      %v4254 = vand.u32 %v222, 4294901760
      %v4255 = vsub.f32 %v222, %v4254
      %v4256 = vand.u32 %v4255, 4294901760
      %v4257 = vsub.f32 %v4255, %v4256
      %v4258 = vand.u32 %v4257, 4294901760
      %4259 = vmatpush1.msra.mxu0 %v4258
      %4260 = vmatprep.subr.mxu0 0.0
      %v4261 = vand.u32 %v223, 4294901760
      %v4262 = vsub.f32 %v223, %v4261
      %v4263 = vand.u32 %v4262, 4294901760
      %v4264 = vsub.f32 %v4262, %v4263
      %v4265 = vand.u32 %v4264, 4294901760
      %4266 = vmatpush1.msra.mxu0 %v4265
      %4267 = vmatprep.subr.mxu0 0.0
      %v4268 = vand.u32 %v224, 4294901760
      %v4269 = vsub.f32 %v224, %v4268
      %v4270 = vand.u32 %v4269, 4294901760
      %v4271 = vsub.f32 %v4269, %v4270
      %v4272 = vand.u32 %v4271, 4294901760
      %4273 = vmatpush1.msra.mxu0 %v4272
      %4274 = vmatprep.subr.mxu0 0.0
      %v4275 = vand.u32 %v225, 4294901760
      %v4276 = vsub.f32 %v225, %v4275
      %v4277 = vand.u32 %v4276, 4294901760
      %v4278 = vsub.f32 %v4276, %v4277
      %v4279 = vand.u32 %v4278, 4294901760
      %4280 = vmatpush1.msra.mxu0 %v4279
      %4281 = vmatprep.subr.mxu0 0.0
      %v4282 = vand.u32 %v226, 4294901760
      %v4283 = vsub.f32 %v226, %v4282
      %v4284 = vand.u32 %v4283, 4294901760
      %v4285 = vsub.f32 %v4283, %v4284
      %v4286 = vand.u32 %v4285, 4294901760
      %4287 = vmatpush1.msra.mxu0 %v4286
      %4288 = vmatprep.subr.mxu0 0.0
      %v4289 = vand.u32 %v227, 4294901760
      %v4290 = vsub.f32 %v227, %v4289
      %v4291 = vand.u32 %v4290, 4294901760
      %v4292 = vsub.f32 %v4290, %v4291
      %v4293 = vand.u32 %v4292, 4294901760
      %4294 = vmatpush1.msra.mxu0 %v4293
      %4295 = vmatprep.subr.mxu0 0.0
      %v4296 = vand.u32 %v228, 4294901760
      %v4297 = vsub.f32 %v228, %v4296
      %v4298 = vand.u32 %v4297, 4294901760
      %v4299 = vsub.f32 %v4297, %v4298
      %v4300 = vand.u32 %v4299, 4294901760
      %4301 = vmatpush1.msra.mxu0 %v4300
      %4302 = vmatprep.subr.mxu0 0.0
      %v4303 = vand.u32 %v229, 4294901760
      %v4304 = vsub.f32 %v229, %v4303
      %v4305 = vand.u32 %v4304, 4294901760
      %v4306 = vsub.f32 %v4304, %v4305
      %v4307 = vand.u32 %v4306, 4294901760
      %4308 = vmatpush1.msra.mxu0 %v4307
      %4309 = vmatprep.subr.mxu0 0.0
      %v4310 = vand.u32 %v230, 4294901760
      %v4311 = vsub.f32 %v230, %v4310
      %v4312 = vand.u32 %v4311, 4294901760
      %v4313 = vsub.f32 %v4311, %v4312
      %v4314 = vand.u32 %v4313, 4294901760
      %4315 = vmatpush1.msra.mxu0 %v4314
      %4316 = vmatprep.subr.mxu0 0.0
      %v4317 = vand.u32 %v231, 4294901760
      %v4318 = vsub.f32 %v231, %v4317
      %v4319 = vand.u32 %v4318, 4294901760
      %v4320 = vsub.f32 %v4318, %v4319
      %v4321 = vand.u32 %v4320, 4294901760
      %4322 = vmatpush1.msra.mxu0 %v4321
      %4323 = vmatprep.subr.mxu0 0.0
      %v4324 = vand.u32 %v232, 4294901760
      %v4325 = vsub.f32 %v232, %v4324
      %v4326 = vand.u32 %v4325, 4294901760
      %v4327 = vsub.f32 %v4325, %v4326
      %v4328 = vand.u32 %v4327, 4294901760
      %4329 = vmatpush1.msra.mxu0 %v4328
      %4330 = vmatprep.subr.mxu0 0.0
      %v4331 = vand.u32 %v233, 4294901760
      %v4332 = vsub.f32 %v233, %v4331
      %v4333 = vand.u32 %v4332, 4294901760
      %v4334 = vsub.f32 %v4332, %v4333
      %v4335 = vand.u32 %v4334, 4294901760
      %4336 = vmatpush1.msra.mxu0 %v4335
      %4337 = vmatprep.subr.mxu0 0.0
      %v4338 = vand.u32 %v234, 4294901760
      %v4339 = vsub.f32 %v234, %v4338
      %v4340 = vand.u32 %v4339, 4294901760
      %v4341 = vsub.f32 %v4339, %v4340
      %v4342 = vand.u32 %v4341, 4294901760
      %4343 = vmatpush1.msra.mxu0 %v4342
      %v4344 = vand.u32 %v3986, 4294901760
      %4345 = vmatprep.mubr.f32.mxu0 %v4344
      %v4346 = vand.u32 %v3985, 4294901760
      %4347 = vmatmul.mubr.f32.gmra.mrb[0].mxu0 %v4346
      %v4348 = vpop.f32.mrb[0].mxu0
      %v4349 = vadd.f32 %v4102, %v4348
      %v4350 = vpop.f32.mrb[0].mxu0
      %v4351 = vand.u32 %v3990, 4294901760
      %4352 = vmatprep.mubr.f32.mxu0 %v4351
      %v4353 = vand.u32 %v3989, 4294901760
      %4354 = vmatmul.mubr.f32.gmra.mrb[0].mxu0 %v4353
      %v4355 = vpop.f32.mrb[0].mxu0
      %v4356 = vadd.f32 %v4117, %v4355
      %v4357 = vpop.f32.mrb[0].mxu0
      %4358 = vdwg.mxu0
      %4359 = vmatprep.subr.mxu0 0.0
      %v4360 = vand.u32 %v203, 4294901760
      %v4361 = vsub.f32 %v203, %v4360
      %4362 = vmatpush1.msra.mxu0 %v4361
      %4363 = vmatprep.subr.mxu0 0.0
      %v4364 = vand.u32 %v204, 4294901760
      %v4365 = vsub.f32 %v204, %v4364
      %4366 = vmatpush1.msra.mxu0 %v4365
      %4367 = vmatprep.subr.mxu0 0.0
      %v4368 = vand.u32 %v205, 4294901760
      %v4369 = vsub.f32 %v205, %v4368
      %4370 = vmatpush1.msra.mxu0 %v4369
      %4371 = vmatprep.subr.mxu0 0.0
      %v4372 = vand.u32 %v206, 4294901760
      %v4373 = vsub.f32 %v206, %v4372
      %4374 = vmatpush1.msra.mxu0 %v4373
      %4375 = vmatprep.subr.mxu0 0.0
      %v4376 = vand.u32 %v207, 4294901760
      %v4377 = vsub.f32 %v207, %v4376
      %4378 = vmatpush1.msra.mxu0 %v4377
      %4379 = vmatprep.subr.mxu0 0.0
      %v4380 = vand.u32 %v208, 4294901760
      %v4381 = vsub.f32 %v208, %v4380
      %4382 = vmatpush1.msra.mxu0 %v4381
      %4383 = vmatprep.subr.mxu0 0.0
      %v4384 = vand.u32 %v209, 4294901760
      %v4385 = vsub.f32 %v209, %v4384
      %4386 = vmatpush1.msra.mxu0 %v4385
      %4387 = vmatprep.subr.mxu0 0.0
      %v4388 = vand.u32 %v210, 4294901760
      %v4389 = vsub.f32 %v210, %v4388
      %4390 = vmatpush1.msra.mxu0 %v4389
      %4391 = vmatprep.subr.mxu0 0.0
      %v4392 = vand.u32 %v211, 4294901760
      %v4393 = vsub.f32 %v211, %v4392
      %4394 = vmatpush1.msra.mxu0 %v4393
      %4395 = vmatprep.subr.mxu0 0.0
      %v4396 = vand.u32 %v212, 4294901760
      %v4397 = vsub.f32 %v212, %v4396
      %4398 = vmatpush1.msra.mxu0 %v4397
      %4399 = vmatprep.subr.mxu0 0.0
      %v4400 = vand.u32 %v213, 4294901760
      %v4401 = vsub.f32 %v213, %v4400
      %4402 = vmatpush1.msra.mxu0 %v4401
      %4403 = vmatprep.subr.mxu0 0.0
      %v4404 = vand.u32 %v214, 4294901760
      %v4405 = vsub.f32 %v214, %v4404
      %4406 = vmatpush1.msra.mxu0 %v4405
      %4407 = vmatprep.subr.mxu0 0.0
      %v4408 = vand.u32 %v215, 4294901760
      %v4409 = vsub.f32 %v215, %v4408
      %4410 = vmatpush1.msra.mxu0 %v4409
      %4411 = vmatprep.subr.mxu0 0.0
      %v4412 = vand.u32 %v216, 4294901760
      %v4413 = vsub.f32 %v216, %v4412
      %4414 = vmatpush1.msra.mxu0 %v4413
      %4415 = vmatprep.subr.mxu0 0.0
      %v4416 = vand.u32 %v217, 4294901760
      %v4417 = vsub.f32 %v217, %v4416
      %4418 = vmatpush1.msra.mxu0 %v4417
      %4419 = vmatprep.subr.mxu0 0.0
      %v4420 = vand.u32 %v218, 4294901760
      %v4421 = vsub.f32 %v218, %v4420
      %4422 = vmatpush1.msra.mxu0 %v4421
      %4423 = vmatprep.subr.mxu0 0.0
      %v4424 = vand.u32 %v219, 4294901760
      %v4425 = vsub.f32 %v219, %v4424
      %4426 = vmatpush1.msra.mxu0 %v4425
      %4427 = vmatprep.subr.mxu0 0.0
      %v4428 = vand.u32 %v220, 4294901760
      %v4429 = vsub.f32 %v220, %v4428
      %4430 = vmatpush1.msra.mxu0 %v4429
      %4431 = vmatprep.subr.mxu0 0.0
      %v4432 = vand.u32 %v221, 4294901760
      %v4433 = vsub.f32 %v221, %v4432
      %4434 = vmatpush1.msra.mxu0 %v4433
      %4435 = vmatprep.subr.mxu0 0.0
      %v4436 = vand.u32 %v222, 4294901760
      %v4437 = vsub.f32 %v222, %v4436
      %4438 = vmatpush1.msra.mxu0 %v4437
      %4439 = vmatprep.subr.mxu0 0.0
      %v4440 = vand.u32 %v223, 4294901760
      %v4441 = vsub.f32 %v223, %v4440
      %4442 = vmatpush1.msra.mxu0 %v4441
      %4443 = vmatprep.subr.mxu0 0.0
      %v4444 = vand.u32 %v224, 4294901760
      %v4445 = vsub.f32 %v224, %v4444
      %4446 = vmatpush1.msra.mxu0 %v4445
      %4447 = vmatprep.subr.mxu0 0.0
      %v4448 = vand.u32 %v225, 4294901760
      %v4449 = vsub.f32 %v225, %v4448
      %4450 = vmatpush1.msra.mxu0 %v4449
      %4451 = vmatprep.subr.mxu0 0.0
      %v4452 = vand.u32 %v226, 4294901760
      %v4453 = vsub.f32 %v226, %v4452
      %4454 = vmatpush1.msra.mxu0 %v4453
      %4455 = vmatprep.subr.mxu0 0.0
      %v4456 = vand.u32 %v227, 4294901760
      %v4457 = vsub.f32 %v227, %v4456
      %4458 = vmatpush1.msra.mxu0 %v4457
      %4459 = vmatprep.subr.mxu0 0.0
      %v4460 = vand.u32 %v228, 4294901760
      %v4461 = vsub.f32 %v228, %v4460
      %4462 = vmatpush1.msra.mxu0 %v4461
      %4463 = vmatprep.subr.mxu0 0.0
      %v4464 = vand.u32 %v229, 4294901760
      %v4465 = vsub.f32 %v229, %v4464
      %4466 = vmatpush1.msra.mxu0 %v4465
      %4467 = vmatprep.subr.mxu0 0.0
      %v4468 = vand.u32 %v230, 4294901760
      %v4469 = vsub.f32 %v230, %v4468
      %4470 = vmatpush1.msra.mxu0 %v4469
      %4471 = vmatprep.subr.mxu0 0.0
      %v4472 = vand.u32 %v231, 4294901760
      %v4473 = vsub.f32 %v231, %v4472
      %4474 = vmatpush1.msra.mxu0 %v4473
      %4475 = vmatprep.subr.mxu0 0.0
      %v4476 = vand.u32 %v232, 4294901760
      %v4477 = vsub.f32 %v232, %v4476
      %4478 = vmatpush1.msra.mxu0 %v4477
      %4479 = vmatprep.subr.mxu0 0.0
      %v4480 = vand.u32 %v233, 4294901760
      %v4481 = vsub.f32 %v233, %v4480
      %4482 = vmatpush1.msra.mxu0 %v4481
      %4483 = vmatprep.subr.mxu0 0.0
      %v4484 = vand.u32 %v234, 4294901760
      %v4485 = vsub.f32 %v234, %v4484
      %4486 = vmatpush1.msra.mxu0 %v4485
      %v4487 = vand.u32 %v3986, 4294901760
      %v4488 = vsub.f32 %v3986, %v4487
      %4489 = vmatprep.mubr.f32.mxu0 %v4488
      %v4490 = vand.u32 %v3985, 4294901760
      %v4491 = vsub.f32 %v3985, %v4490
      %4492 = vmatmul.mubr.f32.gmra.mrb[0].mxu0 %v4491
      %v4493 = vpop.f32.mrb[0].mxu0
      %v4494 = vadd.f32 %v4349, %v4493
      %v4495 = vpop.f32.mrb[0].mxu0
      %v4496 = vand.u32 %v3990, 4294901760
      %v4497 = vsub.f32 %v3990, %v4496
      %4498 = vmatprep.mubr.f32.mxu0 %v4497
      %v4499 = vand.u32 %v3989, 4294901760
      %v4500 = vsub.f32 %v3989, %v4499
      %4501 = vmatmul.mubr.f32.gmra.mrb[0].mxu0 %v4500
      %v4502 = vpop.f32.mrb[0].mxu0
      %v4503 = vadd.f32 %v4356, %v4502
      %v4504 = vpop.f32.mrb[0].mxu0
      %4505 = vdwg.mxu0
      %4506 = vmatprep.subr.mxu0 0.0
      %v4507 = vand.u32 %v203, 4294901760
      %4508 = vmatpush1.msra.mxu0 %v4507
      %4509 = vmatprep.subr.mxu0 0.0
      %v4510 = vand.u32 %v204, 4294901760
      %4511 = vmatpush1.msra.mxu0 %v4510
      %4512 = vmatprep.subr.mxu0 0.0
      %v4513 = vand.u32 %v205, 4294901760
      %4514 = vmatpush1.msra.mxu0 %v4513
      %4515 = vmatprep.subr.mxu0 0.0
      %v4516 = vand.u32 %v206, 4294901760
      %4517 = vmatpush1.msra.mxu0 %v4516
      %4518 = vmatprep.subr.mxu0 0.0
      %v4519 = vand.u32 %v207, 4294901760
      %4520 = vmatpush1.msra.mxu0 %v4519
      %4521 = vmatprep.subr.mxu0 0.0
      %v4522 = vand.u32 %v208, 4294901760
      %4523 = vmatpush1.msra.mxu0 %v4522
      %4524 = vmatprep.subr.mxu0 0.0
      %v4525 = vand.u32 %v209, 4294901760
      %4526 = vmatpush1.msra.mxu0 %v4525
      %4527 = vmatprep.subr.mxu0 0.0
      %v4528 = vand.u32 %v210, 4294901760
      %4529 = vmatpush1.msra.mxu0 %v4528
      %4530 = vmatprep.subr.mxu0 0.0
      %v4531 = vand.u32 %v211, 4294901760
      %4532 = vmatpush1.msra.mxu0 %v4531
      %4533 = vmatprep.subr.mxu0 0.0
      %v4534 = vand.u32 %v212, 4294901760
      %4535 = vmatpush1.msra.mxu0 %v4534
      %4536 = vmatprep.subr.mxu0 0.0
      %v4537 = vand.u32 %v213, 4294901760
      %4538 = vmatpush1.msra.mxu0 %v4537
      %4539 = vmatprep.subr.mxu0 0.0
      %v4540 = vand.u32 %v214, 4294901760
      %4541 = vmatpush1.msra.mxu0 %v4540
      %4542 = vmatprep.subr.mxu0 0.0
      %v4543 = vand.u32 %v215, 4294901760
      %4544 = vmatpush1.msra.mxu0 %v4543
      %4545 = vmatprep.subr.mxu0 0.0
      %v4546 = vand.u32 %v216, 4294901760
      %4547 = vmatpush1.msra.mxu0 %v4546
      %4548 = vmatprep.subr.mxu0 0.0
      %v4549 = vand.u32 %v217, 4294901760
      %4550 = vmatpush1.msra.mxu0 %v4549
      %4551 = vmatprep.subr.mxu0 0.0
      %v4552 = vand.u32 %v218, 4294901760
      %4553 = vmatpush1.msra.mxu0 %v4552
      %4554 = vmatprep.subr.mxu0 0.0
      %v4555 = vand.u32 %v219, 4294901760
      %4556 = vmatpush1.msra.mxu0 %v4555
      %4557 = vmatprep.subr.mxu0 0.0
      %v4558 = vand.u32 %v220, 4294901760
      %4559 = vmatpush1.msra.mxu0 %v4558
      %4560 = vmatprep.subr.mxu0 0.0
      %v4561 = vand.u32 %v221, 4294901760
      %4562 = vmatpush1.msra.mxu0 %v4561
      %4563 = vmatprep.subr.mxu0 0.0
      %v4564 = vand.u32 %v222, 4294901760
      %4565 = vmatpush1.msra.mxu0 %v4564
      %4566 = vmatprep.subr.mxu0 0.0
      %v4567 = vand.u32 %v223, 4294901760
      %4568 = vmatpush1.msra.mxu0 %v4567
      %4569 = vmatprep.subr.mxu0 0.0
      %v4570 = vand.u32 %v224, 4294901760
      %4571 = vmatpush1.msra.mxu0 %v4570
      %4572 = vmatprep.subr.mxu0 0.0
      %v4573 = vand.u32 %v225, 4294901760
      %4574 = vmatpush1.msra.mxu0 %v4573
      %4575 = vmatprep.subr.mxu0 0.0
      %v4576 = vand.u32 %v226, 4294901760
      %4577 = vmatpush1.msra.mxu0 %v4576
      %4578 = vmatprep.subr.mxu0 0.0
      %v4579 = vand.u32 %v227, 4294901760
      %4580 = vmatpush1.msra.mxu0 %v4579
      %4581 = vmatprep.subr.mxu0 0.0
      %v4582 = vand.u32 %v228, 4294901760
      %4583 = vmatpush1.msra.mxu0 %v4582
      %4584 = vmatprep.subr.mxu0 0.0
      %v4585 = vand.u32 %v229, 4294901760
      %4586 = vmatpush1.msra.mxu0 %v4585
      %4587 = vmatprep.subr.mxu0 0.0
      %v4588 = vand.u32 %v230, 4294901760
      %4589 = vmatpush1.msra.mxu0 %v4588
      %4590 = vmatprep.subr.mxu0 0.0
      %v4591 = vand.u32 %v231, 4294901760
      %4592 = vmatpush1.msra.mxu0 %v4591
      %4593 = vmatprep.subr.mxu0 0.0
      %v4594 = vand.u32 %v232, 4294901760
      %4595 = vmatpush1.msra.mxu0 %v4594
      %4596 = vmatprep.subr.mxu0 0.0
      %v4597 = vand.u32 %v233, 4294901760
      %4598 = vmatpush1.msra.mxu0 %v4597
      %4599 = vmatprep.subr.mxu0 0.0
      %v4600 = vand.u32 %v234, 4294901760
      %4601 = vmatpush1.msra.mxu0 %v4600
      %v4602 = vand.u32 %v3986, 4294901760
      %v4603 = vsub.f32 %v3986, %v4602
      %v4604 = vand.u32 %v4603, 4294901760
      %4605 = vmatprep.mubr.f32.mxu0 %v4604
      %v4606 = vand.u32 %v3985, 4294901760
      %v4607 = vsub.f32 %v3985, %v4606
      %v4608 = vand.u32 %v4607, 4294901760
      %4609 = vmatmul.mubr.f32.gmra.mrb[0].mxu0 %v4608
      %v4610 = vpop.f32.mrb[0].mxu0
      %v4611 = vadd.f32 %v4494, %v4610
      %v4612 = vpop.f32.mrb[0].mxu0
      %v4613 = vand.u32 %v3990, 4294901760
      %v4614 = vsub.f32 %v3990, %v4613
      %v4615 = vand.u32 %v4614, 4294901760
      %4616 = vmatprep.mubr.f32.mxu0 %v4615
      %v4617 = vand.u32 %v3989, 4294901760
      %v4618 = vsub.f32 %v3989, %v4617
      %v4619 = vand.u32 %v4618, 4294901760
      %4620 = vmatmul.mubr.f32.gmra.mrb[0].mxu0 %v4619
      %v4621 = vpop.f32.mrb[0].mxu0
      %v4622 = vadd.f32 %v4503, %v4621
      %v4623 = vpop.f32.mrb[0].mxu0
      %4624 = vdwg.mxu0
      %4625 = vmatprep.subr.mxu0 0.0
      %v4626 = vand.u32 %v203, 4294901760
      %v4627 = vsub.f32 %v203, %v4626
      %v4628 = vand.u32 %v4627, 4294901760
      %4629 = vmatpush1.msra.mxu0 %v4628
      %4630 = vmatprep.subr.mxu0 0.0
      %v4631 = vand.u32 %v204, 4294901760
      %v4632 = vsub.f32 %v204, %v4631
      %v4633 = vand.u32 %v4632, 4294901760
      %4634 = vmatpush1.msra.mxu0 %v4633
      %4635 = vmatprep.subr.mxu0 0.0
      %v4636 = vand.u32 %v205, 4294901760
      %v4637 = vsub.f32 %v205, %v4636
      %v4638 = vand.u32 %v4637, 4294901760
      %4639 = vmatpush1.msra.mxu0 %v4638
      %4640 = vmatprep.subr.mxu0 0.0
      %v4641 = vand.u32 %v206, 4294901760
      %v4642 = vsub.f32 %v206, %v4641
      %v4643 = vand.u32 %v4642, 4294901760
      %4644 = vmatpush1.msra.mxu0 %v4643
      %4645 = vmatprep.subr.mxu0 0.0
      %v4646 = vand.u32 %v207, 4294901760
      %v4647 = vsub.f32 %v207, %v4646
      %v4648 = vand.u32 %v4647, 4294901760
      %4649 = vmatpush1.msra.mxu0 %v4648
      %4650 = vmatprep.subr.mxu0 0.0
      %v4651 = vand.u32 %v208, 4294901760
      %v4652 = vsub.f32 %v208, %v4651
      %v4653 = vand.u32 %v4652, 4294901760
      %4654 = vmatpush1.msra.mxu0 %v4653
      %4655 = vmatprep.subr.mxu0 0.0
      %v4656 = vand.u32 %v209, 4294901760
      %v4657 = vsub.f32 %v209, %v4656
      %v4658 = vand.u32 %v4657, 4294901760
      %4659 = vmatpush1.msra.mxu0 %v4658
      %4660 = vmatprep.subr.mxu0 0.0
      %v4661 = vand.u32 %v210, 4294901760
      %v4662 = vsub.f32 %v210, %v4661
      %v4663 = vand.u32 %v4662, 4294901760
      %4664 = vmatpush1.msra.mxu0 %v4663
      %4665 = vmatprep.subr.mxu0 0.0
      %v4666 = vand.u32 %v211, 4294901760
      %v4667 = vsub.f32 %v211, %v4666
      %v4668 = vand.u32 %v4667, 4294901760
      %4669 = vmatpush1.msra.mxu0 %v4668
      %4670 = vmatprep.subr.mxu0 0.0
      %v4671 = vand.u32 %v212, 4294901760
      %v4672 = vsub.f32 %v212, %v4671
      %v4673 = vand.u32 %v4672, 4294901760
      %4674 = vmatpush1.msra.mxu0 %v4673
      %4675 = vmatprep.subr.mxu0 0.0
      %v4676 = vand.u32 %v213, 4294901760
      %v4677 = vsub.f32 %v213, %v4676
      %v4678 = vand.u32 %v4677, 4294901760
      %4679 = vmatpush1.msra.mxu0 %v4678
      %4680 = vmatprep.subr.mxu0 0.0
      %v4681 = vand.u32 %v214, 4294901760
      %v4682 = vsub.f32 %v214, %v4681
      %v4683 = vand.u32 %v4682, 4294901760
      %4684 = vmatpush1.msra.mxu0 %v4683
      %4685 = vmatprep.subr.mxu0 0.0
      %v4686 = vand.u32 %v215, 4294901760
      %v4687 = vsub.f32 %v215, %v4686
      %v4688 = vand.u32 %v4687, 4294901760
      %4689 = vmatpush1.msra.mxu0 %v4688
      %4690 = vmatprep.subr.mxu0 0.0
      %v4691 = vand.u32 %v216, 4294901760
      %v4692 = vsub.f32 %v216, %v4691
      %v4693 = vand.u32 %v4692, 4294901760
      %4694 = vmatpush1.msra.mxu0 %v4693
      %4695 = vmatprep.subr.mxu0 0.0
      %v4696 = vand.u32 %v217, 4294901760
      %v4697 = vsub.f32 %v217, %v4696
      %v4698 = vand.u32 %v4697, 4294901760
      %4699 = vmatpush1.msra.mxu0 %v4698
      %4700 = vmatprep.subr.mxu0 0.0
      %v4701 = vand.u32 %v218, 4294901760
      %v4702 = vsub.f32 %v218, %v4701
      %v4703 = vand.u32 %v4702, 4294901760
      %4704 = vmatpush1.msra.mxu0 %v4703
      %4705 = vmatprep.subr.mxu0 0.0
      %v4706 = vand.u32 %v219, 4294901760
      %v4707 = vsub.f32 %v219, %v4706
      %v4708 = vand.u32 %v4707, 4294901760
      %4709 = vmatpush1.msra.mxu0 %v4708
      %4710 = vmatprep.subr.mxu0 0.0
      %v4711 = vand.u32 %v220, 4294901760
      %v4712 = vsub.f32 %v220, %v4711
      %v4713 = vand.u32 %v4712, 4294901760
      %4714 = vmatpush1.msra.mxu0 %v4713
      %4715 = vmatprep.subr.mxu0 0.0
      %v4716 = vand.u32 %v221, 4294901760
      %v4717 = vsub.f32 %v221, %v4716
      %v4718 = vand.u32 %v4717, 4294901760
      %4719 = vmatpush1.msra.mxu0 %v4718
      %4720 = vmatprep.subr.mxu0 0.0
      %v4721 = vand.u32 %v222, 4294901760
      %v4722 = vsub.f32 %v222, %v4721
      %v4723 = vand.u32 %v4722, 4294901760
      %4724 = vmatpush1.msra.mxu0 %v4723
      %4725 = vmatprep.subr.mxu0 0.0
      %v4726 = vand.u32 %v223, 4294901760
      %v4727 = vsub.f32 %v223, %v4726
      %v4728 = vand.u32 %v4727, 4294901760
      %4729 = vmatpush1.msra.mxu0 %v4728
      %4730 = vmatprep.subr.mxu0 0.0
      %v4731 = vand.u32 %v224, 4294901760
      %v4732 = vsub.f32 %v224, %v4731
      %v4733 = vand.u32 %v4732, 4294901760
      %4734 = vmatpush1.msra.mxu0 %v4733
      %4735 = vmatprep.subr.mxu0 0.0
      %v4736 = vand.u32 %v225, 4294901760
      %v4737 = vsub.f32 %v225, %v4736
      %v4738 = vand.u32 %v4737, 4294901760
      %4739 = vmatpush1.msra.mxu0 %v4738
      %4740 = vmatprep.subr.mxu0 0.0
      %v4741 = vand.u32 %v226, 4294901760
      %v4742 = vsub.f32 %v226, %v4741
      %v4743 = vand.u32 %v4742, 4294901760
      %4744 = vmatpush1.msra.mxu0 %v4743
      %4745 = vmatprep.subr.mxu0 0.0
      %v4746 = vand.u32 %v227, 4294901760
      %v4747 = vsub.f32 %v227, %v4746
      %v4748 = vand.u32 %v4747, 4294901760
      %4749 = vmatpush1.msra.mxu0 %v4748
      %4750 = vmatprep.subr.mxu0 0.0
      %v4751 = vand.u32 %v228, 4294901760
      %v4752 = vsub.f32 %v228, %v4751
      %v4753 = vand.u32 %v4752, 4294901760
      %4754 = vmatpush1.msra.mxu0 %v4753
      %4755 = vmatprep.subr.mxu0 0.0
      %v4756 = vand.u32 %v229, 4294901760
      %v4757 = vsub.f32 %v229, %v4756
      %v4758 = vand.u32 %v4757, 4294901760
      %4759 = vmatpush1.msra.mxu0 %v4758
      %4760 = vmatprep.subr.mxu0 0.0
      %v4761 = vand.u32 %v230, 4294901760
      %v4762 = vsub.f32 %v230, %v4761
      %v4763 = vand.u32 %v4762, 4294901760
      %4764 = vmatpush1.msra.mxu0 %v4763
      %4765 = vmatprep.subr.mxu0 0.0
      %v4766 = vand.u32 %v231, 4294901760
      %v4767 = vsub.f32 %v231, %v4766
      %v4768 = vand.u32 %v4767, 4294901760
      %4769 = vmatpush1.msra.mxu0 %v4768
      %4770 = vmatprep.subr.mxu0 0.0
      %v4771 = vand.u32 %v232, 4294901760
      %v4772 = vsub.f32 %v232, %v4771
      %v4773 = vand.u32 %v4772, 4294901760
      %4774 = vmatpush1.msra.mxu0 %v4773
      %4775 = vmatprep.subr.mxu0 0.0
      %v4776 = vand.u32 %v233, 4294901760
      %v4777 = vsub.f32 %v233, %v4776
      %v4778 = vand.u32 %v4777, 4294901760
      %4779 = vmatpush1.msra.mxu0 %v4778
      %4780 = vmatprep.subr.mxu0 0.0
      %v4781 = vand.u32 %v234, 4294901760
      %v4782 = vsub.f32 %v234, %v4781
      %v4783 = vand.u32 %v4782, 4294901760
      %4784 = vmatpush1.msra.mxu0 %v4783
      %v4785 = vand.u32 %v3986, 4294901760
      %4786 = vmatprep.mubr.f32.mxu0 %v4785
      %v4787 = vand.u32 %v3985, 4294901760
      %4788 = vmatmul.mubr.f32.gmra.mrb[0].mxu0 %v4787
      %v4789 = vpop.f32.mrb[0].mxu0
      %v4790 = vadd.f32 %v4611, %v4789
      %v4791 = vpop.f32.mrb[0].mxu0
      %v4792 = vand.u32 %v3990, 4294901760
      %4793 = vmatprep.mubr.f32.mxu0 %v4792
      %v4794 = vand.u32 %v3989, 4294901760
      %4795 = vmatmul.mubr.f32.gmra.mrb[0].mxu0 %v4794
      %v4796 = vpop.f32.mrb[0].mxu0
      %v4797 = vadd.f32 %v4622, %v4796
      %v4798 = vpop.f32.mrb[0].mxu0
      %4799 = vdwg.mxu0
      %4800 = vmatprep.subr.mxu0 0.0
      %v4801 = vand.u32 %v203, 4294901760
      %4802 = vmatpush1.msra.mxu0 %v4801
      %4803 = vmatprep.subr.mxu0 0.0
      %v4804 = vand.u32 %v204, 4294901760
      %4805 = vmatpush1.msra.mxu0 %v4804
      %4806 = vmatprep.subr.mxu0 0.0
      %v4807 = vand.u32 %v205, 4294901760
      %4808 = vmatpush1.msra.mxu0 %v4807
      %4809 = vmatprep.subr.mxu0 0.0
      %v4810 = vand.u32 %v206, 4294901760
      %4811 = vmatpush1.msra.mxu0 %v4810
      %4812 = vmatprep.subr.mxu0 0.0
      %v4813 = vand.u32 %v207, 4294901760
      %4814 = vmatpush1.msra.mxu0 %v4813
      %4815 = vmatprep.subr.mxu0 0.0
      %v4816 = vand.u32 %v208, 4294901760
      %4817 = vmatpush1.msra.mxu0 %v4816
      %4818 = vmatprep.subr.mxu0 0.0
      %v4819 = vand.u32 %v209, 4294901760
      %4820 = vmatpush1.msra.mxu0 %v4819
      %4821 = vmatprep.subr.mxu0 0.0
      %v4822 = vand.u32 %v210, 4294901760
      %4823 = vmatpush1.msra.mxu0 %v4822
      %4824 = vmatprep.subr.mxu0 0.0
      %v4825 = vand.u32 %v211, 4294901760
      %4826 = vmatpush1.msra.mxu0 %v4825
      %4827 = vmatprep.subr.mxu0 0.0
      %v4828 = vand.u32 %v212, 4294901760
      %4829 = vmatpush1.msra.mxu0 %v4828
      %4830 = vmatprep.subr.mxu0 0.0
      %v4831 = vand.u32 %v213, 4294901760
      %4832 = vmatpush1.msra.mxu0 %v4831
      %4833 = vmatprep.subr.mxu0 0.0
      %v4834 = vand.u32 %v214, 4294901760
      %4835 = vmatpush1.msra.mxu0 %v4834
      %4836 = vmatprep.subr.mxu0 0.0
      %v4837 = vand.u32 %v215, 4294901760
      %4838 = vmatpush1.msra.mxu0 %v4837
      %4839 = vmatprep.subr.mxu0 0.0
      %v4840 = vand.u32 %v216, 4294901760
      %4841 = vmatpush1.msra.mxu0 %v4840
      %4842 = vmatprep.subr.mxu0 0.0
      %v4843 = vand.u32 %v217, 4294901760
      %4844 = vmatpush1.msra.mxu0 %v4843
      %4845 = vmatprep.subr.mxu0 0.0
      %v4846 = vand.u32 %v218, 4294901760
      %4847 = vmatpush1.msra.mxu0 %v4846
      %4848 = vmatprep.subr.mxu0 0.0
      %v4849 = vand.u32 %v219, 4294901760
      %4850 = vmatpush1.msra.mxu0 %v4849
      %4851 = vmatprep.subr.mxu0 0.0
      %v4852 = vand.u32 %v220, 4294901760
      %4853 = vmatpush1.msra.mxu0 %v4852
      %4854 = vmatprep.subr.mxu0 0.0
      %v4855 = vand.u32 %v221, 4294901760
      %4856 = vmatpush1.msra.mxu0 %v4855
      %4857 = vmatprep.subr.mxu0 0.0
      %v4858 = vand.u32 %v222, 4294901760
      %4859 = vmatpush1.msra.mxu0 %v4858
      %4860 = vmatprep.subr.mxu0 0.0
      %v4861 = vand.u32 %v223, 4294901760
      %4862 = vmatpush1.msra.mxu0 %v4861
      %4863 = vmatprep.subr.mxu0 0.0
      %v4864 = vand.u32 %v224, 4294901760
      %4865 = vmatpush1.msra.mxu0 %v4864
      %4866 = vmatprep.subr.mxu0 0.0
      %v4867 = vand.u32 %v225, 4294901760
      %4868 = vmatpush1.msra.mxu0 %v4867
      %4869 = vmatprep.subr.mxu0 0.0
      %v4870 = vand.u32 %v226, 4294901760
      %4871 = vmatpush1.msra.mxu0 %v4870
      %4872 = vmatprep.subr.mxu0 0.0
      %v4873 = vand.u32 %v227, 4294901760
      %4874 = vmatpush1.msra.mxu0 %v4873
      %4875 = vmatprep.subr.mxu0 0.0
      %v4876 = vand.u32 %v228, 4294901760
      %4877 = vmatpush1.msra.mxu0 %v4876
      %4878 = vmatprep.subr.mxu0 0.0
      %v4879 = vand.u32 %v229, 4294901760
      %4880 = vmatpush1.msra.mxu0 %v4879
      %4881 = vmatprep.subr.mxu0 0.0
      %v4882 = vand.u32 %v230, 4294901760
      %4883 = vmatpush1.msra.mxu0 %v4882
      %4884 = vmatprep.subr.mxu0 0.0
      %v4885 = vand.u32 %v231, 4294901760
      %4886 = vmatpush1.msra.mxu0 %v4885
      %4887 = vmatprep.subr.mxu0 0.0
      %v4888 = vand.u32 %v232, 4294901760
      %4889 = vmatpush1.msra.mxu0 %v4888
      %4890 = vmatprep.subr.mxu0 0.0
      %v4891 = vand.u32 %v233, 4294901760
      %4892 = vmatpush1.msra.mxu0 %v4891
      %4893 = vmatprep.subr.mxu0 0.0
      %v4894 = vand.u32 %v234, 4294901760
      %4895 = vmatpush1.msra.mxu0 %v4894
      %v4896 = vand.u32 %v3986, 4294901760
      %4897 = vmatprep.mubr.f32.mxu0 %v4896
      %v4898 = vand.u32 %v3985, 4294901760
      %4899 = vmatmul.mubr.f32.gmra.mrb[0].mxu0 %v4898
      %v4900 = vpop.f32.mrb[0].mxu0
      %v4901 = vadd.f32 %v4790, %v4900
      %v4902 = vpop.f32.mrb[0].mxu0
      %v4903 = vand.u32 %v3990, 4294901760
      %4904 = vmatprep.mubr.f32.mxu0 %v4903
      %v4905 = vand.u32 %v3989, 4294901760
      %4906 = vmatmul.mubr.f32.gmra.mrb[0].mxu0 %v4905
      %v4907 = vpop.f32.mrb[0].mxu0
      %v4908 = vadd.f32 %v4797, %v4907
      %v4909 = vpop.f32.mrb[0].mxu0
      %4910 = vdwg.mxu0
      %4911 = vmatprep.subr.mxu0 0.0
      %v4912 = vand.u32 %v235, 4294901760
      %4913 = vmatpush1.msra.mxu0 %v4912
      %4914 = vmatprep.subr.mxu0 0.0
      %v4915 = vand.u32 %v236, 4294901760
      %4916 = vmatpush1.msra.mxu0 %v4915
      %4917 = vmatprep.subr.mxu0 0.0
      %v4918 = vand.u32 %v237, 4294901760
      %4919 = vmatpush1.msra.mxu0 %v4918
      %4920 = vmatprep.subr.mxu0 0.0
      %v4921 = vand.u32 %v238, 4294901760
      %4922 = vmatpush1.msra.mxu0 %v4921
      %4923 = vmatprep.subr.mxu0 0.0
      %v4924 = vand.u32 %v239, 4294901760
      %4925 = vmatpush1.msra.mxu0 %v4924
      %4926 = vmatprep.subr.mxu0 0.0
      %v4927 = vand.u32 %v240, 4294901760
      %4928 = vmatpush1.msra.mxu0 %v4927
      %4929 = vmatprep.subr.mxu0 0.0
      %v4930 = vand.u32 %v241, 4294901760
      %4931 = vmatpush1.msra.mxu0 %v4930
      %4932 = vmatprep.subr.mxu0 0.0
      %v4933 = vand.u32 %v242, 4294901760
      %4934 = vmatpush1.msra.mxu0 %v4933
      %4935 = vmatprep.subr.mxu0 0.0
      %v4936 = vand.u32 %v243, 4294901760
      %4937 = vmatpush1.msra.mxu0 %v4936
      %4938 = vmatprep.subr.mxu0 0.0
      %v4939 = vand.u32 %v244, 4294901760
      %4940 = vmatpush1.msra.mxu0 %v4939
      %4941 = vmatprep.subr.mxu0 0.0
      %v4942 = vand.u32 %v245, 4294901760
      %4943 = vmatpush1.msra.mxu0 %v4942
      %4944 = vmatprep.subr.mxu0 0.0
      %v4945 = vand.u32 %v246, 4294901760
      %4946 = vmatpush1.msra.mxu0 %v4945
      %4947 = vmatprep.subr.mxu0 0.0
      %v4948 = vand.u32 %v247, 4294901760
      %4949 = vmatpush1.msra.mxu0 %v4948
      %4950 = vmatprep.subr.mxu0 0.0
      %v4951 = vand.u32 %v248, 4294901760
      %4952 = vmatpush1.msra.mxu0 %v4951
      %4953 = vmatprep.subr.mxu0 0.0
      %v4954 = vand.u32 %v249, 4294901760
      %4955 = vmatpush1.msra.mxu0 %v4954
      %4956 = vmatprep.subr.mxu0 0.0
      %v4957 = vand.u32 %v250, 4294901760
      %4958 = vmatpush1.msra.mxu0 %v4957
      %4959 = vmatprep.subr.mxu0 0.0
      %v4960 = vand.u32 %v251, 4294901760
      %4961 = vmatpush1.msra.mxu0 %v4960
      %4962 = vmatprep.subr.mxu0 0.0
      %v4963 = vand.u32 %v252, 4294901760
      %4964 = vmatpush1.msra.mxu0 %v4963
      %4965 = vmatprep.subr.mxu0 0.0
      %v4966 = vand.u32 %v253, 4294901760
      %4967 = vmatpush1.msra.mxu0 %v4966
      %4968 = vmatprep.subr.mxu0 0.0
      %v4969 = vand.u32 %v254, 4294901760
      %4970 = vmatpush1.msra.mxu0 %v4969
      %4971 = vmatprep.subr.mxu0 0.0
      %v4972 = vand.u32 %v255, 4294901760
      %4973 = vmatpush1.msra.mxu0 %v4972
      %4974 = vmatprep.subr.mxu0 0.0
      %v4975 = vand.u32 %v256, 4294901760
      %4976 = vmatpush1.msra.mxu0 %v4975
      %4977 = vmatprep.subr.mxu0 0.0
      %v4978 = vand.u32 %v257, 4294901760
      %4979 = vmatpush1.msra.mxu0 %v4978
      %4980 = vmatprep.subr.mxu0 0.0
      %v4981 = vand.u32 %v258, 4294901760
      %4982 = vmatpush1.msra.mxu0 %v4981
      %4983 = vmatprep.subr.mxu0 0.0
      %v4984 = vand.u32 %v259, 4294901760
      %4985 = vmatpush1.msra.mxu0 %v4984
      %4986 = vmatprep.subr.mxu0 0.0
      %v4987 = vand.u32 %v260, 4294901760
      %4988 = vmatpush1.msra.mxu0 %v4987
      %4989 = vmatprep.subr.mxu0 0.0
      %v4990 = vand.u32 %v261, 4294901760
      %4991 = vmatpush1.msra.mxu0 %v4990
      %4992 = vmatprep.subr.mxu0 0.0
      %v4993 = vand.u32 %v262, 4294901760
      %4994 = vmatpush1.msra.mxu0 %v4993
      %4995 = vmatprep.subr.mxu0 0.0
      %v4996 = vand.u32 %v263, 4294901760
      %4997 = vmatpush1.msra.mxu0 %v4996
      %4998 = vmatprep.subr.mxu0 0.0
      %v4999 = vand.u32 %v264, 4294901760
      %5000 = vmatpush1.msra.mxu0 %v4999
      %5001 = vmatprep.subr.mxu0 0.0
      %v5002 = vand.u32 %v265, 4294901760
      %5003 = vmatpush1.msra.mxu0 %v5002
      %5004 = vmatprep.subr.mxu0 0.0
      %v5005 = vand.u32 %v266, 4294901760
      %5006 = vmatpush1.msra.mxu0 %v5005
      %v5007 = vand.u32 %v3988, 4294901760
      %v5008 = vsub.f32 %v3988, %v5007
      %v5009 = vand.u32 %v5008, 4294901760
      %v5010 = vsub.f32 %v5008, %v5009
      %v5011 = vand.u32 %v5010, 4294901760
      %5012 = vmatprep.mubr.f32.mxu0 %v5011
      %v5013 = vand.u32 %v3987, 4294901760
      %v5014 = vsub.f32 %v3987, %v5013
      %v5015 = vand.u32 %v5014, 4294901760
      %v5016 = vsub.f32 %v5014, %v5015
      %v5017 = vand.u32 %v5016, 4294901760
      %5018 = vmatmul.mubr.f32.gmra.mrb[0].mxu0 %v5017
      %v5019 = vpop.f32.mrb[0].mxu0
      %v5020 = vadd.f32 %v4901, %v5019
      %v5021 = vpop.f32.mrb[0].mxu0
      %v5022 = vand.u32 %v3992, 4294901760
      %v5023 = vsub.f32 %v3992, %v5022
      %v5024 = vand.u32 %v5023, 4294901760
      %v5025 = vsub.f32 %v5023, %v5024
      %v5026 = vand.u32 %v5025, 4294901760
      %5027 = vmatprep.mubr.f32.mxu0 %v5026
      %v5028 = vand.u32 %v3991, 4294901760
      %v5029 = vsub.f32 %v3991, %v5028
      %v5030 = vand.u32 %v5029, 4294901760
      %v5031 = vsub.f32 %v5029, %v5030
      %v5032 = vand.u32 %v5031, 4294901760
      %5033 = vmatmul.mubr.f32.gmra.mrb[0].mxu0 %v5032
      %v5034 = vpop.f32.mrb[0].mxu0
      %v5035 = vadd.f32 %v4908, %v5034
      %v5036 = vpop.f32.mrb[0].mxu0
      %5037 = vdwg.mxu0
      %5038 = vmatprep.subr.mxu0 0.0
      %v5039 = vand.u32 %v235, 4294901760
      %v5040 = vsub.f32 %v235, %v5039
      %v5041 = vand.u32 %v5040, 4294901760
      %v5042 = vsub.f32 %v5040, %v5041
      %v5043 = vand.u32 %v5042, 4294901760
      %5044 = vmatpush1.msra.mxu0 %v5043
      %5045 = vmatprep.subr.mxu0 0.0
      %v5046 = vand.u32 %v236, 4294901760
      %v5047 = vsub.f32 %v236, %v5046
      %v5048 = vand.u32 %v5047, 4294901760
      %v5049 = vsub.f32 %v5047, %v5048
      %v5050 = vand.u32 %v5049, 4294901760
      %5051 = vmatpush1.msra.mxu0 %v5050
      %5052 = vmatprep.subr.mxu0 0.0
      %v5053 = vand.u32 %v237, 4294901760
      %v5054 = vsub.f32 %v237, %v5053
      %v5055 = vand.u32 %v5054, 4294901760
      %v5056 = vsub.f32 %v5054, %v5055
      %v5057 = vand.u32 %v5056, 4294901760
      %5058 = vmatpush1.msra.mxu0 %v5057
      %5059 = vmatprep.subr.mxu0 0.0
      %v5060 = vand.u32 %v238, 4294901760
      %v5061 = vsub.f32 %v238, %v5060
      %v5062 = vand.u32 %v5061, 4294901760
      %v5063 = vsub.f32 %v5061, %v5062
      %v5064 = vand.u32 %v5063, 4294901760
      %5065 = vmatpush1.msra.mxu0 %v5064
      %5066 = vmatprep.subr.mxu0 0.0
      %v5067 = vand.u32 %v239, 4294901760
      %v5068 = vsub.f32 %v239, %v5067
      %v5069 = vand.u32 %v5068, 4294901760
      %v5070 = vsub.f32 %v5068, %v5069
      %v5071 = vand.u32 %v5070, 4294901760
      %5072 = vmatpush1.msra.mxu0 %v5071
      %5073 = vmatprep.subr.mxu0 0.0
      %v5074 = vand.u32 %v240, 4294901760
      %v5075 = vsub.f32 %v240, %v5074
      %v5076 = vand.u32 %v5075, 4294901760
      %v5077 = vsub.f32 %v5075, %v5076
      %v5078 = vand.u32 %v5077, 4294901760
      %5079 = vmatpush1.msra.mxu0 %v5078
      %5080 = vmatprep.subr.mxu0 0.0
      %v5081 = vand.u32 %v241, 4294901760
      %v5082 = vsub.f32 %v241, %v5081
      %v5083 = vand.u32 %v5082, 4294901760
      %v5084 = vsub.f32 %v5082, %v5083
      %v5085 = vand.u32 %v5084, 4294901760
      %5086 = vmatpush1.msra.mxu0 %v5085
      %5087 = vmatprep.subr.mxu0 0.0
      %v5088 = vand.u32 %v242, 4294901760
      %v5089 = vsub.f32 %v242, %v5088
      %v5090 = vand.u32 %v5089, 4294901760
      %v5091 = vsub.f32 %v5089, %v5090
      %v5092 = vand.u32 %v5091, 4294901760
      %5093 = vmatpush1.msra.mxu0 %v5092
      %5094 = vmatprep.subr.mxu0 0.0
      %v5095 = vand.u32 %v243, 4294901760
      %v5096 = vsub.f32 %v243, %v5095
      %v5097 = vand.u32 %v5096, 4294901760
      %v5098 = vsub.f32 %v5096, %v5097
      %v5099 = vand.u32 %v5098, 4294901760
      %5100 = vmatpush1.msra.mxu0 %v5099
      %5101 = vmatprep.subr.mxu0 0.0
      %v5102 = vand.u32 %v244, 4294901760
      %v5103 = vsub.f32 %v244, %v5102
      %v5104 = vand.u32 %v5103, 4294901760
      %v5105 = vsub.f32 %v5103, %v5104
      %v5106 = vand.u32 %v5105, 4294901760
      %5107 = vmatpush1.msra.mxu0 %v5106
      %5108 = vmatprep.subr.mxu0 0.0
      %v5109 = vand.u32 %v245, 4294901760
      %v5110 = vsub.f32 %v245, %v5109
      %v5111 = vand.u32 %v5110, 4294901760
      %v5112 = vsub.f32 %v5110, %v5111
      %v5113 = vand.u32 %v5112, 4294901760
      %5114 = vmatpush1.msra.mxu0 %v5113
      %5115 = vmatprep.subr.mxu0 0.0
      %v5116 = vand.u32 %v246, 4294901760
      %v5117 = vsub.f32 %v246, %v5116
      %v5118 = vand.u32 %v5117, 4294901760
      %v5119 = vsub.f32 %v5117, %v5118
      %v5120 = vand.u32 %v5119, 4294901760
      %5121 = vmatpush1.msra.mxu0 %v5120
      %5122 = vmatprep.subr.mxu0 0.0
      %v5123 = vand.u32 %v247, 4294901760
      %v5124 = vsub.f32 %v247, %v5123
      %v5125 = vand.u32 %v5124, 4294901760
      %v5126 = vsub.f32 %v5124, %v5125
      %v5127 = vand.u32 %v5126, 4294901760
      %5128 = vmatpush1.msra.mxu0 %v5127
      %5129 = vmatprep.subr.mxu0 0.0
      %v5130 = vand.u32 %v248, 4294901760
      %v5131 = vsub.f32 %v248, %v5130
      %v5132 = vand.u32 %v5131, 4294901760
      %v5133 = vsub.f32 %v5131, %v5132
      %v5134 = vand.u32 %v5133, 4294901760
      %5135 = vmatpush1.msra.mxu0 %v5134
      %5136 = vmatprep.subr.mxu0 0.0
      %v5137 = vand.u32 %v249, 4294901760
      %v5138 = vsub.f32 %v249, %v5137
      %v5139 = vand.u32 %v5138, 4294901760
      %v5140 = vsub.f32 %v5138, %v5139
      %v5141 = vand.u32 %v5140, 4294901760
      %5142 = vmatpush1.msra.mxu0 %v5141
      %5143 = vmatprep.subr.mxu0 0.0
      %v5144 = vand.u32 %v250, 4294901760
      %v5145 = vsub.f32 %v250, %v5144
      %v5146 = vand.u32 %v5145, 4294901760
      %v5147 = vsub.f32 %v5145, %v5146
      %v5148 = vand.u32 %v5147, 4294901760
      %5149 = vmatpush1.msra.mxu0 %v5148
      %5150 = vmatprep.subr.mxu0 0.0
      %v5151 = vand.u32 %v251, 4294901760
      %v5152 = vsub.f32 %v251, %v5151
      %v5153 = vand.u32 %v5152, 4294901760
      %v5154 = vsub.f32 %v5152, %v5153
      %v5155 = vand.u32 %v5154, 4294901760
      %5156 = vmatpush1.msra.mxu0 %v5155
      %5157 = vmatprep.subr.mxu0 0.0
      %v5158 = vand.u32 %v252, 4294901760
      %v5159 = vsub.f32 %v252, %v5158
      %v5160 = vand.u32 %v5159, 4294901760
      %v5161 = vsub.f32 %v5159, %v5160
      %v5162 = vand.u32 %v5161, 4294901760
      %5163 = vmatpush1.msra.mxu0 %v5162
      %5164 = vmatprep.subr.mxu0 0.0
      %v5165 = vand.u32 %v253, 4294901760
      %v5166 = vsub.f32 %v253, %v5165
      %v5167 = vand.u32 %v5166, 4294901760
      %v5168 = vsub.f32 %v5166, %v5167
      %v5169 = vand.u32 %v5168, 4294901760
      %5170 = vmatpush1.msra.mxu0 %v5169
      %5171 = vmatprep.subr.mxu0 0.0
      %v5172 = vand.u32 %v254, 4294901760
      %v5173 = vsub.f32 %v254, %v5172
      %v5174 = vand.u32 %v5173, 4294901760
      %v5175 = vsub.f32 %v5173, %v5174
      %v5176 = vand.u32 %v5175, 4294901760
      %5177 = vmatpush1.msra.mxu0 %v5176
      %5178 = vmatprep.subr.mxu0 0.0
      %v5179 = vand.u32 %v255, 4294901760
      %v5180 = vsub.f32 %v255, %v5179
      %v5181 = vand.u32 %v5180, 4294901760
      %v5182 = vsub.f32 %v5180, %v5181
      %v5183 = vand.u32 %v5182, 4294901760
      %5184 = vmatpush1.msra.mxu0 %v5183
      %5185 = vmatprep.subr.mxu0 0.0
      %v5186 = vand.u32 %v256, 4294901760
      %v5187 = vsub.f32 %v256, %v5186
      %v5188 = vand.u32 %v5187, 4294901760
      %v5189 = vsub.f32 %v5187, %v5188
      %v5190 = vand.u32 %v5189, 4294901760
      %5191 = vmatpush1.msra.mxu0 %v5190
      %5192 = vmatprep.subr.mxu0 0.0
      %v5193 = vand.u32 %v257, 4294901760
      %v5194 = vsub.f32 %v257, %v5193
      %v5195 = vand.u32 %v5194, 4294901760
      %v5196 = vsub.f32 %v5194, %v5195
      %v5197 = vand.u32 %v5196, 4294901760
      %5198 = vmatpush1.msra.mxu0 %v5197
      %5199 = vmatprep.subr.mxu0 0.0
      %v5200 = vand.u32 %v258, 4294901760
      %v5201 = vsub.f32 %v258, %v5200
      %v5202 = vand.u32 %v5201, 4294901760
      %v5203 = vsub.f32 %v5201, %v5202
      %v5204 = vand.u32 %v5203, 4294901760
      %5205 = vmatpush1.msra.mxu0 %v5204
      %5206 = vmatprep.subr.mxu0 0.0
      %v5207 = vand.u32 %v259, 4294901760
      %v5208 = vsub.f32 %v259, %v5207
      %v5209 = vand.u32 %v5208, 4294901760
      %v5210 = vsub.f32 %v5208, %v5209
      %v5211 = vand.u32 %v5210, 4294901760
      %5212 = vmatpush1.msra.mxu0 %v5211
      %5213 = vmatprep.subr.mxu0 0.0
      %v5214 = vand.u32 %v260, 4294901760
      %v5215 = vsub.f32 %v260, %v5214
      %v5216 = vand.u32 %v5215, 4294901760
      %v5217 = vsub.f32 %v5215, %v5216
      %v5218 = vand.u32 %v5217, 4294901760
      %5219 = vmatpush1.msra.mxu0 %v5218
      %5220 = vmatprep.subr.mxu0 0.0
      %v5221 = vand.u32 %v261, 4294901760
      %v5222 = vsub.f32 %v261, %v5221
      %v5223 = vand.u32 %v5222, 4294901760
      %v5224 = vsub.f32 %v5222, %v5223
      %v5225 = vand.u32 %v5224, 4294901760
      %5226 = vmatpush1.msra.mxu0 %v5225
      %5227 = vmatprep.subr.mxu0 0.0
      %v5228 = vand.u32 %v262, 4294901760
      %v5229 = vsub.f32 %v262, %v5228
      %v5230 = vand.u32 %v5229, 4294901760
      %v5231 = vsub.f32 %v5229, %v5230
      %v5232 = vand.u32 %v5231, 4294901760
      %5233 = vmatpush1.msra.mxu0 %v5232
      %5234 = vmatprep.subr.mxu0 0.0
      %v5235 = vand.u32 %v263, 4294901760
      %v5236 = vsub.f32 %v263, %v5235
      %v5237 = vand.u32 %v5236, 4294901760
      %v5238 = vsub.f32 %v5236, %v5237
      %v5239 = vand.u32 %v5238, 4294901760
      %5240 = vmatpush1.msra.mxu0 %v5239
      %5241 = vmatprep.subr.mxu0 0.0
      %v5242 = vand.u32 %v264, 4294901760
      %v5243 = vsub.f32 %v264, %v5242
      %v5244 = vand.u32 %v5243, 4294901760
      %v5245 = vsub.f32 %v5243, %v5244
      %v5246 = vand.u32 %v5245, 4294901760
      %5247 = vmatpush1.msra.mxu0 %v5246
      %5248 = vmatprep.subr.mxu0 0.0
      %v5249 = vand.u32 %v265, 4294901760
      %v5250 = vsub.f32 %v265, %v5249
      %v5251 = vand.u32 %v5250, 4294901760
      %v5252 = vsub.f32 %v5250, %v5251
      %v5253 = vand.u32 %v5252, 4294901760
      %5254 = vmatpush1.msra.mxu0 %v5253
      %5255 = vmatprep.subr.mxu0 0.0
      %v5256 = vand.u32 %v266, 4294901760
      %v5257 = vsub.f32 %v266, %v5256
      %v5258 = vand.u32 %v5257, 4294901760
      %v5259 = vsub.f32 %v5257, %v5258
      %v5260 = vand.u32 %v5259, 4294901760
      %5261 = vmatpush1.msra.mxu0 %v5260
      %v5262 = vand.u32 %v3988, 4294901760
      %5263 = vmatprep.mubr.f32.mxu0 %v5262
      %v5264 = vand.u32 %v3987, 4294901760
      %5265 = vmatmul.mubr.f32.gmra.mrb[0].mxu0 %v5264
      %v5266 = vpop.f32.mrb[0].mxu0
      %v5267 = vadd.f32 %v5020, %v5266
      %v5268 = vpop.f32.mrb[0].mxu0
      %v5269 = vand.u32 %v3992, 4294901760
      %5270 = vmatprep.mubr.f32.mxu0 %v5269
      %v5271 = vand.u32 %v3991, 4294901760
      %5272 = vmatmul.mubr.f32.gmra.mrb[0].mxu0 %v5271
      %v5273 = vpop.f32.mrb[0].mxu0
      %v5274 = vadd.f32 %v5035, %v5273
      %v5275 = vpop.f32.mrb[0].mxu0
      %5276 = vdwg.mxu0
      %5277 = vmatprep.subr.mxu0 0.0
      %v5278 = vand.u32 %v235, 4294901760
      %v5279 = vsub.f32 %v235, %v5278
      %5280 = vmatpush1.msra.mxu0 %v5279
      %5281 = vmatprep.subr.mxu0 0.0
      %v5282 = vand.u32 %v236, 4294901760
      %v5283 = vsub.f32 %v236, %v5282
      %5284 = vmatpush1.msra.mxu0 %v5283
      %5285 = vmatprep.subr.mxu0 0.0
      %v5286 = vand.u32 %v237, 4294901760
      %v5287 = vsub.f32 %v237, %v5286
      %5288 = vmatpush1.msra.mxu0 %v5287
      %5289 = vmatprep.subr.mxu0 0.0
      %v5290 = vand.u32 %v238, 4294901760
      %v5291 = vsub.f32 %v238, %v5290
      %5292 = vmatpush1.msra.mxu0 %v5291
      %5293 = vmatprep.subr.mxu0 0.0
      %v5294 = vand.u32 %v239, 4294901760
      %v5295 = vsub.f32 %v239, %v5294
      %5296 = vmatpush1.msra.mxu0 %v5295
      %5297 = vmatprep.subr.mxu0 0.0
      %v5298 = vand.u32 %v240, 4294901760
      %v5299 = vsub.f32 %v240, %v5298
      %5300 = vmatpush1.msra.mxu0 %v5299
      %5301 = vmatprep.subr.mxu0 0.0
      %v5302 = vand.u32 %v241, 4294901760
      %v5303 = vsub.f32 %v241, %v5302
      %5304 = vmatpush1.msra.mxu0 %v5303
      %5305 = vmatprep.subr.mxu0 0.0
      %v5306 = vand.u32 %v242, 4294901760
      %v5307 = vsub.f32 %v242, %v5306
      %5308 = vmatpush1.msra.mxu0 %v5307
      %5309 = vmatprep.subr.mxu0 0.0
      %v5310 = vand.u32 %v243, 4294901760
      %v5311 = vsub.f32 %v243, %v5310
      %5312 = vmatpush1.msra.mxu0 %v5311
      %5313 = vmatprep.subr.mxu0 0.0
      %v5314 = vand.u32 %v244, 4294901760
      %v5315 = vsub.f32 %v244, %v5314
      %5316 = vmatpush1.msra.mxu0 %v5315
      %5317 = vmatprep.subr.mxu0 0.0
      %v5318 = vand.u32 %v245, 4294901760
      %v5319 = vsub.f32 %v245, %v5318
      %5320 = vmatpush1.msra.mxu0 %v5319
      %5321 = vmatprep.subr.mxu0 0.0
      %v5322 = vand.u32 %v246, 4294901760
      %v5323 = vsub.f32 %v246, %v5322
      %5324 = vmatpush1.msra.mxu0 %v5323
      %5325 = vmatprep.subr.mxu0 0.0
      %v5326 = vand.u32 %v247, 4294901760
      %v5327 = vsub.f32 %v247, %v5326
      %5328 = vmatpush1.msra.mxu0 %v5327
      %5329 = vmatprep.subr.mxu0 0.0
      %v5330 = vand.u32 %v248, 4294901760
      %v5331 = vsub.f32 %v248, %v5330
      %5332 = vmatpush1.msra.mxu0 %v5331
      %5333 = vmatprep.subr.mxu0 0.0
      %v5334 = vand.u32 %v249, 4294901760
      %v5335 = vsub.f32 %v249, %v5334
      %5336 = vmatpush1.msra.mxu0 %v5335
      %5337 = vmatprep.subr.mxu0 0.0
      %v5338 = vand.u32 %v250, 4294901760
      %v5339 = vsub.f32 %v250, %v5338
      %5340 = vmatpush1.msra.mxu0 %v5339
      %5341 = vmatprep.subr.mxu0 0.0
      %v5342 = vand.u32 %v251, 4294901760
      %v5343 = vsub.f32 %v251, %v5342
      %5344 = vmatpush1.msra.mxu0 %v5343
      %5345 = vmatprep.subr.mxu0 0.0
      %v5346 = vand.u32 %v252, 4294901760
      %v5347 = vsub.f32 %v252, %v5346
      %5348 = vmatpush1.msra.mxu0 %v5347
      %5349 = vmatprep.subr.mxu0 0.0
      %v5350 = vand.u32 %v253, 4294901760
      %v5351 = vsub.f32 %v253, %v5350
      %5352 = vmatpush1.msra.mxu0 %v5351
      %5353 = vmatprep.subr.mxu0 0.0
      %v5354 = vand.u32 %v254, 4294901760
      %v5355 = vsub.f32 %v254, %v5354
      %5356 = vmatpush1.msra.mxu0 %v5355
      %5357 = vmatprep.subr.mxu0 0.0
      %v5358 = vand.u32 %v255, 4294901760
      %v5359 = vsub.f32 %v255, %v5358
      %5360 = vmatpush1.msra.mxu0 %v5359
      %5361 = vmatprep.subr.mxu0 0.0
      %v5362 = vand.u32 %v256, 4294901760
      %v5363 = vsub.f32 %v256, %v5362
      %5364 = vmatpush1.msra.mxu0 %v5363
      %5365 = vmatprep.subr.mxu0 0.0
      %v5366 = vand.u32 %v257, 4294901760
      %v5367 = vsub.f32 %v257, %v5366
      %5368 = vmatpush1.msra.mxu0 %v5367
      %5369 = vmatprep.subr.mxu0 0.0
      %v5370 = vand.u32 %v258, 4294901760
      %v5371 = vsub.f32 %v258, %v5370
      %5372 = vmatpush1.msra.mxu0 %v5371
      %5373 = vmatprep.subr.mxu0 0.0
      %v5374 = vand.u32 %v259, 4294901760
      %v5375 = vsub.f32 %v259, %v5374
      %5376 = vmatpush1.msra.mxu0 %v5375
      %5377 = vmatprep.subr.mxu0 0.0
      %v5378 = vand.u32 %v260, 4294901760
      %v5379 = vsub.f32 %v260, %v5378
      %5380 = vmatpush1.msra.mxu0 %v5379
      %5381 = vmatprep.subr.mxu0 0.0
      %v5382 = vand.u32 %v261, 4294901760
      %v5383 = vsub.f32 %v261, %v5382
      %5384 = vmatpush1.msra.mxu0 %v5383
      %5385 = vmatprep.subr.mxu0 0.0
      %v5386 = vand.u32 %v262, 4294901760
      %v5387 = vsub.f32 %v262, %v5386
      %5388 = vmatpush1.msra.mxu0 %v5387
      %5389 = vmatprep.subr.mxu0 0.0
      %v5390 = vand.u32 %v263, 4294901760
      %v5391 = vsub.f32 %v263, %v5390
      %5392 = vmatpush1.msra.mxu0 %v5391
      %5393 = vmatprep.subr.mxu0 0.0
      %v5394 = vand.u32 %v264, 4294901760
      %v5395 = vsub.f32 %v264, %v5394
      %5396 = vmatpush1.msra.mxu0 %v5395
      %5397 = vmatprep.subr.mxu0 0.0
      %v5398 = vand.u32 %v265, 4294901760
      %v5399 = vsub.f32 %v265, %v5398
      %5400 = vmatpush1.msra.mxu0 %v5399
      %5401 = vmatprep.subr.mxu0 0.0
      %v5402 = vand.u32 %v266, 4294901760
      %v5403 = vsub.f32 %v266, %v5402
      %5404 = vmatpush1.msra.mxu0 %v5403
      %v5405 = vand.u32 %v3988, 4294901760
      %v5406 = vsub.f32 %v3988, %v5405
      %5407 = vmatprep.mubr.f32.mxu0 %v5406
      %v5408 = vand.u32 %v3987, 4294901760
      %v5409 = vsub.f32 %v3987, %v5408
      %5410 = vmatmul.mubr.f32.gmra.mrb[0].mxu0 %v5409
      %v5411 = vpop.f32.mrb[0].mxu0
      %v5412 = vadd.f32 %v5267, %v5411
      %v5413 = vpop.f32.mrb[0].mxu0
      %v5414 = vand.u32 %v3992, 4294901760
      %v5415 = vsub.f32 %v3992, %v5414
      %5416 = vmatprep.mubr.f32.mxu0 %v5415
      %v5417 = vand.u32 %v3991, 4294901760
      %v5418 = vsub.f32 %v3991, %v5417
      %5419 = vmatmul.mubr.f32.gmra.mrb[0].mxu0 %v5418
      %v5420 = vpop.f32.mrb[0].mxu0
      %v5421 = vadd.f32 %v5274, %v5420
      %v5422 = vpop.f32.mrb[0].mxu0
      %5423 = vdwg.mxu0
      %5424 = vmatprep.subr.mxu0 0.0
      %v5425 = vand.u32 %v235, 4294901760
      %5426 = vmatpush1.msra.mxu0 %v5425
      %5427 = vmatprep.subr.mxu0 0.0
      %v5428 = vand.u32 %v236, 4294901760
      %5429 = vmatpush1.msra.mxu0 %v5428
      %5430 = vmatprep.subr.mxu0 0.0
      %v5431 = vand.u32 %v237, 4294901760
      %5432 = vmatpush1.msra.mxu0 %v5431
      %5433 = vmatprep.subr.mxu0 0.0
      %v5434 = vand.u32 %v238, 4294901760
      %5435 = vmatpush1.msra.mxu0 %v5434
      %5436 = vmatprep.subr.mxu0 0.0
      %v5437 = vand.u32 %v239, 4294901760
      %5438 = vmatpush1.msra.mxu0 %v5437
      %5439 = vmatprep.subr.mxu0 0.0
      %v5440 = vand.u32 %v240, 4294901760
      %5441 = vmatpush1.msra.mxu0 %v5440
      %5442 = vmatprep.subr.mxu0 0.0
      %v5443 = vand.u32 %v241, 4294901760
      %5444 = vmatpush1.msra.mxu0 %v5443
      %5445 = vmatprep.subr.mxu0 0.0
      %v5446 = vand.u32 %v242, 4294901760
      %5447 = vmatpush1.msra.mxu0 %v5446
      %5448 = vmatprep.subr.mxu0 0.0
      %v5449 = vand.u32 %v243, 4294901760
      %5450 = vmatpush1.msra.mxu0 %v5449
      %5451 = vmatprep.subr.mxu0 0.0
      %v5452 = vand.u32 %v244, 4294901760
      %5453 = vmatpush1.msra.mxu0 %v5452
      %5454 = vmatprep.subr.mxu0 0.0
      %v5455 = vand.u32 %v245, 4294901760
      %5456 = vmatpush1.msra.mxu0 %v5455
      %5457 = vmatprep.subr.mxu0 0.0
      %v5458 = vand.u32 %v246, 4294901760
      %5459 = vmatpush1.msra.mxu0 %v5458
      %5460 = vmatprep.subr.mxu0 0.0
      %v5461 = vand.u32 %v247, 4294901760
      %5462 = vmatpush1.msra.mxu0 %v5461
      %5463 = vmatprep.subr.mxu0 0.0
      %v5464 = vand.u32 %v248, 4294901760
      %5465 = vmatpush1.msra.mxu0 %v5464
      %5466 = vmatprep.subr.mxu0 0.0
      %v5467 = vand.u32 %v249, 4294901760
      %5468 = vmatpush1.msra.mxu0 %v5467
      %5469 = vmatprep.subr.mxu0 0.0
      %v5470 = vand.u32 %v250, 4294901760
      %5471 = vmatpush1.msra.mxu0 %v5470
      %5472 = vmatprep.subr.mxu0 0.0
      %v5473 = vand.u32 %v251, 4294901760
      %5474 = vmatpush1.msra.mxu0 %v5473
      %5475 = vmatprep.subr.mxu0 0.0
      %v5476 = vand.u32 %v252, 4294901760
      %5477 = vmatpush1.msra.mxu0 %v5476
      %5478 = vmatprep.subr.mxu0 0.0
      %v5479 = vand.u32 %v253, 4294901760
      %5480 = vmatpush1.msra.mxu0 %v5479
      %5481 = vmatprep.subr.mxu0 0.0
      %v5482 = vand.u32 %v254, 4294901760
      %5483 = vmatpush1.msra.mxu0 %v5482
      %5484 = vmatprep.subr.mxu0 0.0
      %v5485 = vand.u32 %v255, 4294901760
      %5486 = vmatpush1.msra.mxu0 %v5485
      %5487 = vmatprep.subr.mxu0 0.0
      %v5488 = vand.u32 %v256, 4294901760
      %5489 = vmatpush1.msra.mxu0 %v5488
      %5490 = vmatprep.subr.mxu0 0.0
      %v5491 = vand.u32 %v257, 4294901760
      %5492 = vmatpush1.msra.mxu0 %v5491
      %5493 = vmatprep.subr.mxu0 0.0
      %v5494 = vand.u32 %v258, 4294901760
      %5495 = vmatpush1.msra.mxu0 %v5494
      %5496 = vmatprep.subr.mxu0 0.0
      %v5497 = vand.u32 %v259, 4294901760
      %5498 = vmatpush1.msra.mxu0 %v5497
      %5499 = vmatprep.subr.mxu0 0.0
      %v5500 = vand.u32 %v260, 4294901760
      %5501 = vmatpush1.msra.mxu0 %v5500
      %5502 = vmatprep.subr.mxu0 0.0
      %v5503 = vand.u32 %v261, 4294901760
      %5504 = vmatpush1.msra.mxu0 %v5503
      %5505 = vmatprep.subr.mxu0 0.0
      %v5506 = vand.u32 %v262, 4294901760
      %5507 = vmatpush1.msra.mxu0 %v5506
      %5508 = vmatprep.subr.mxu0 0.0
      %v5509 = vand.u32 %v263, 4294901760
      %5510 = vmatpush1.msra.mxu0 %v5509
      %5511 = vmatprep.subr.mxu0 0.0
      %v5512 = vand.u32 %v264, 4294901760
      %5513 = vmatpush1.msra.mxu0 %v5512
      %5514 = vmatprep.subr.mxu0 0.0
      %v5515 = vand.u32 %v265, 4294901760
      %5516 = vmatpush1.msra.mxu0 %v5515
      %5517 = vmatprep.subr.mxu0 0.0
      %v5518 = vand.u32 %v266, 4294901760
      %5519 = vmatpush1.msra.mxu0 %v5518
      %v5520 = vand.u32 %v3988, 4294901760
      %v5521 = vsub.f32 %v3988, %v5520
      %v5522 = vand.u32 %v5521, 4294901760
      %5523 = vmatprep.mubr.f32.mxu0 %v5522
      %v5524 = vand.u32 %v3987, 4294901760
      %v5525 = vsub.f32 %v3987, %v5524
      %v5526 = vand.u32 %v5525, 4294901760
      %5527 = vmatmul.mubr.f32.gmra.mrb[0].mxu0 %v5526
      %v5528 = vpop.f32.mrb[0].mxu0
      %v5529 = vadd.f32 %v5412, %v5528
      %v5530 = vpop.f32.mrb[0].mxu0
      %v5531 = vand.u32 %v3992, 4294901760
      %v5532 = vsub.f32 %v3992, %v5531
      %v5533 = vand.u32 %v5532, 4294901760
      %5534 = vmatprep.mubr.f32.mxu0 %v5533
      %v5535 = vand.u32 %v3991, 4294901760
      %v5536 = vsub.f32 %v3991, %v5535
      %v5537 = vand.u32 %v5536, 4294901760
      %5538 = vmatmul.mubr.f32.gmra.mrb[0].mxu0 %v5537
      %v5539 = vpop.f32.mrb[0].mxu0
      %v5540 = vadd.f32 %v5421, %v5539
      %v5541 = vpop.f32.mrb[0].mxu0
      %5542 = vdwg.mxu0
      %5543 = vmatprep.subr.mxu0 0.0
      %v5544 = vand.u32 %v235, 4294901760
      %v5545 = vsub.f32 %v235, %v5544
      %v5546 = vand.u32 %v5545, 4294901760
      %5547 = vmatpush1.msra.mxu0 %v5546
      %5548 = vmatprep.subr.mxu0 0.0
      %v5549 = vand.u32 %v236, 4294901760
      %v5550 = vsub.f32 %v236, %v5549
      %v5551 = vand.u32 %v5550, 4294901760
      %5552 = vmatpush1.msra.mxu0 %v5551
      %5553 = vmatprep.subr.mxu0 0.0
      %v5554 = vand.u32 %v237, 4294901760
      %v5555 = vsub.f32 %v237, %v5554
      %v5556 = vand.u32 %v5555, 4294901760
      %5557 = vmatpush1.msra.mxu0 %v5556
      %5558 = vmatprep.subr.mxu0 0.0
      %v5559 = vand.u32 %v238, 4294901760
      %v5560 = vsub.f32 %v238, %v5559
      %v5561 = vand.u32 %v5560, 4294901760
      %5562 = vmatpush1.msra.mxu0 %v5561
      %5563 = vmatprep.subr.mxu0 0.0
      %v5564 = vand.u32 %v239, 4294901760
      %v5565 = vsub.f32 %v239, %v5564
      %v5566 = vand.u32 %v5565, 4294901760
      %5567 = vmatpush1.msra.mxu0 %v5566
      %5568 = vmatprep.subr.mxu0 0.0
      %v5569 = vand.u32 %v240, 4294901760
      %v5570 = vsub.f32 %v240, %v5569
      %v5571 = vand.u32 %v5570, 4294901760
      %5572 = vmatpush1.msra.mxu0 %v5571
      %5573 = vmatprep.subr.mxu0 0.0
      %v5574 = vand.u32 %v241, 4294901760
      %v5575 = vsub.f32 %v241, %v5574
      %v5576 = vand.u32 %v5575, 4294901760
      %5577 = vmatpush1.msra.mxu0 %v5576
      %5578 = vmatprep.subr.mxu0 0.0
      %v5579 = vand.u32 %v242, 4294901760
      %v5580 = vsub.f32 %v242, %v5579
      %v5581 = vand.u32 %v5580, 4294901760
      %5582 = vmatpush1.msra.mxu0 %v5581
      %5583 = vmatprep.subr.mxu0 0.0
      %v5584 = vand.u32 %v243, 4294901760
      %v5585 = vsub.f32 %v243, %v5584
      %v5586 = vand.u32 %v5585, 4294901760
      %5587 = vmatpush1.msra.mxu0 %v5586
      %5588 = vmatprep.subr.mxu0 0.0
      %v5589 = vand.u32 %v244, 4294901760
      %v5590 = vsub.f32 %v244, %v5589
      %v5591 = vand.u32 %v5590, 4294901760
      %5592 = vmatpush1.msra.mxu0 %v5591
      %5593 = vmatprep.subr.mxu0 0.0
      %v5594 = vand.u32 %v245, 4294901760
      %v5595 = vsub.f32 %v245, %v5594
      %v5596 = vand.u32 %v5595, 4294901760
      %5597 = vmatpush1.msra.mxu0 %v5596
      %5598 = vmatprep.subr.mxu0 0.0
      %v5599 = vand.u32 %v246, 4294901760
      %v5600 = vsub.f32 %v246, %v5599
      %v5601 = vand.u32 %v5600, 4294901760
      %5602 = vmatpush1.msra.mxu0 %v5601
      %5603 = vmatprep.subr.mxu0 0.0
      %v5604 = vand.u32 %v247, 4294901760
      %v5605 = vsub.f32 %v247, %v5604
      %v5606 = vand.u32 %v5605, 4294901760
      %5607 = vmatpush1.msra.mxu0 %v5606
      %5608 = vmatprep.subr.mxu0 0.0
      %v5609 = vand.u32 %v248, 4294901760
      %v5610 = vsub.f32 %v248, %v5609
      %v5611 = vand.u32 %v5610, 4294901760
      %5612 = vmatpush1.msra.mxu0 %v5611
      %5613 = vmatprep.subr.mxu0 0.0
      %v5614 = vand.u32 %v249, 4294901760
      %v5615 = vsub.f32 %v249, %v5614
      %v5616 = vand.u32 %v5615, 4294901760
      %5617 = vmatpush1.msra.mxu0 %v5616
      %5618 = vmatprep.subr.mxu0 0.0
      %v5619 = vand.u32 %v250, 4294901760
      %v5620 = vsub.f32 %v250, %v5619
      %v5621 = vand.u32 %v5620, 4294901760
      %5622 = vmatpush1.msra.mxu0 %v5621
      %5623 = vmatprep.subr.mxu0 0.0
      %v5624 = vand.u32 %v251, 4294901760
      %v5625 = vsub.f32 %v251, %v5624
      %v5626 = vand.u32 %v5625, 4294901760
      %5627 = vmatpush1.msra.mxu0 %v5626
      %5628 = vmatprep.subr.mxu0 0.0
      %v5629 = vand.u32 %v252, 4294901760
      %v5630 = vsub.f32 %v252, %v5629
      %v5631 = vand.u32 %v5630, 4294901760
      %5632 = vmatpush1.msra.mxu0 %v5631
      %5633 = vmatprep.subr.mxu0 0.0
      %v5634 = vand.u32 %v253, 4294901760
      %v5635 = vsub.f32 %v253, %v5634
      %v5636 = vand.u32 %v5635, 4294901760
      %5637 = vmatpush1.msra.mxu0 %v5636
      %5638 = vmatprep.subr.mxu0 0.0
      %v5639 = vand.u32 %v254, 4294901760
      %v5640 = vsub.f32 %v254, %v5639
      %v5641 = vand.u32 %v5640, 4294901760
      %5642 = vmatpush1.msra.mxu0 %v5641
      %5643 = vmatprep.subr.mxu0 0.0
      %v5644 = vand.u32 %v255, 4294901760
      %v5645 = vsub.f32 %v255, %v5644
      %v5646 = vand.u32 %v5645, 4294901760
      %5647 = vmatpush1.msra.mxu0 %v5646
      %5648 = vmatprep.subr.mxu0 0.0
      %v5649 = vand.u32 %v256, 4294901760
      %v5650 = vsub.f32 %v256, %v5649
      %v5651 = vand.u32 %v5650, 4294901760
      %5652 = vmatpush1.msra.mxu0 %v5651
      %5653 = vmatprep.subr.mxu0 0.0
      %v5654 = vand.u32 %v257, 4294901760
      %v5655 = vsub.f32 %v257, %v5654
      %v5656 = vand.u32 %v5655, 4294901760
      %5657 = vmatpush1.msra.mxu0 %v5656
      %5658 = vmatprep.subr.mxu0 0.0
      %v5659 = vand.u32 %v258, 4294901760
      %v5660 = vsub.f32 %v258, %v5659
      %v5661 = vand.u32 %v5660, 4294901760
      %5662 = vmatpush1.msra.mxu0 %v5661
      %5663 = vmatprep.subr.mxu0 0.0
      %v5664 = vand.u32 %v259, 4294901760
      %v5665 = vsub.f32 %v259, %v5664
      %v5666 = vand.u32 %v5665, 4294901760
      %5667 = vmatpush1.msra.mxu0 %v5666
      %5668 = vmatprep.subr.mxu0 0.0
      %v5669 = vand.u32 %v260, 4294901760
      %v5670 = vsub.f32 %v260, %v5669
      %v5671 = vand.u32 %v5670, 4294901760
      %5672 = vmatpush1.msra.mxu0 %v5671
      %5673 = vmatprep.subr.mxu0 0.0
      %v5674 = vand.u32 %v261, 4294901760
      %v5675 = vsub.f32 %v261, %v5674
      %v5676 = vand.u32 %v5675, 4294901760
      %5677 = vmatpush1.msra.mxu0 %v5676
      %5678 = vmatprep.subr.mxu0 0.0
      %v5679 = vand.u32 %v262, 4294901760
      %v5680 = vsub.f32 %v262, %v5679
      %v5681 = vand.u32 %v5680, 4294901760
      %5682 = vmatpush1.msra.mxu0 %v5681
      %5683 = vmatprep.subr.mxu0 0.0
      %v5684 = vand.u32 %v263, 4294901760
      %v5685 = vsub.f32 %v263, %v5684
      %v5686 = vand.u32 %v5685, 4294901760
      %5687 = vmatpush1.msra.mxu0 %v5686
      %5688 = vmatprep.subr.mxu0 0.0
      %v5689 = vand.u32 %v264, 4294901760
      %v5690 = vsub.f32 %v264, %v5689
      %v5691 = vand.u32 %v5690, 4294901760
      %5692 = vmatpush1.msra.mxu0 %v5691
      %5693 = vmatprep.subr.mxu0 0.0
      %v5694 = vand.u32 %v265, 4294901760
      %v5695 = vsub.f32 %v265, %v5694
      %v5696 = vand.u32 %v5695, 4294901760
      %5697 = vmatpush1.msra.mxu0 %v5696
      %5698 = vmatprep.subr.mxu0 0.0
      %v5699 = vand.u32 %v266, 4294901760
      %v5700 = vsub.f32 %v266, %v5699
      %v5701 = vand.u32 %v5700, 4294901760
      %5702 = vmatpush1.msra.mxu0 %v5701
      %v5703 = vand.u32 %v3988, 4294901760
      %5704 = vmatprep.mubr.f32.mxu0 %v5703
      %v5705 = vand.u32 %v3987, 4294901760
      %5706 = vmatmul.mubr.f32.gmra.mrb[0].mxu0 %v5705
      %v5707 = vpop.f32.mrb[0].mxu0
      %v5708 = vadd.f32 %v5529, %v5707
      %v5709 = vpop.f32.mrb[0].mxu0
      %v5710 = vand.u32 %v3992, 4294901760
      %5711 = vmatprep.mubr.f32.mxu0 %v5710
      %v5712 = vand.u32 %v3991, 4294901760
      %5713 = vmatmul.mubr.f32.gmra.mrb[0].mxu0 %v5712
      %v5714 = vpop.f32.mrb[0].mxu0
      %v5715 = vadd.f32 %v5540, %v5714
      %v5716 = vpop.f32.mrb[0].mxu0
      %5717 = vdwg.mxu0
      %5718 = vmatprep.subr.mxu0 0.0
      %v5719 = vand.u32 %v235, 4294901760
      %5720 = vmatpush1.msra.mxu0 %v5719
      %5721 = vmatprep.subr.mxu0 0.0
      %v5722 = vand.u32 %v236, 4294901760
      %5723 = vmatpush1.msra.mxu0 %v5722
      %5724 = vmatprep.subr.mxu0 0.0
      %v5725 = vand.u32 %v237, 4294901760
      %5726 = vmatpush1.msra.mxu0 %v5725
      %5727 = vmatprep.subr.mxu0 0.0
      %v5728 = vand.u32 %v238, 4294901760
      %5729 = vmatpush1.msra.mxu0 %v5728
      %5730 = vmatprep.subr.mxu0 0.0
      %v5731 = vand.u32 %v239, 4294901760
      %5732 = vmatpush1.msra.mxu0 %v5731
      %5733 = vmatprep.subr.mxu0 0.0
      %v5734 = vand.u32 %v240, 4294901760
      %5735 = vmatpush1.msra.mxu0 %v5734
      %5736 = vmatprep.subr.mxu0 0.0
      %v5737 = vand.u32 %v241, 4294901760
      %5738 = vmatpush1.msra.mxu0 %v5737
      %5739 = vmatprep.subr.mxu0 0.0
      %v5740 = vand.u32 %v242, 4294901760
      %5741 = vmatpush1.msra.mxu0 %v5740
      %5742 = vmatprep.subr.mxu0 0.0
      %v5743 = vand.u32 %v243, 4294901760
      %5744 = vmatpush1.msra.mxu0 %v5743
      %5745 = vmatprep.subr.mxu0 0.0
      %v5746 = vand.u32 %v244, 4294901760
      %5747 = vmatpush1.msra.mxu0 %v5746
      %5748 = vmatprep.subr.mxu0 0.0
      %v5749 = vand.u32 %v245, 4294901760
      %5750 = vmatpush1.msra.mxu0 %v5749
      %5751 = vmatprep.subr.mxu0 0.0
      %v5752 = vand.u32 %v246, 4294901760
      %5753 = vmatpush1.msra.mxu0 %v5752
      %5754 = vmatprep.subr.mxu0 0.0
      %v5755 = vand.u32 %v247, 4294901760
      %5756 = vmatpush1.msra.mxu0 %v5755
      %5757 = vmatprep.subr.mxu0 0.0
      %v5758 = vand.u32 %v248, 4294901760
      %5759 = vmatpush1.msra.mxu0 %v5758
      %5760 = vmatprep.subr.mxu0 0.0
      %v5761 = vand.u32 %v249, 4294901760
      %5762 = vmatpush1.msra.mxu0 %v5761
      %5763 = vmatprep.subr.mxu0 0.0
      %v5764 = vand.u32 %v250, 4294901760
      %5765 = vmatpush1.msra.mxu0 %v5764
      %5766 = vmatprep.subr.mxu0 0.0
      %v5767 = vand.u32 %v251, 4294901760
      %5768 = vmatpush1.msra.mxu0 %v5767
      %5769 = vmatprep.subr.mxu0 0.0
      %v5770 = vand.u32 %v252, 4294901760
      %5771 = vmatpush1.msra.mxu0 %v5770
      %5772 = vmatprep.subr.mxu0 0.0
      %v5773 = vand.u32 %v253, 4294901760
      %5774 = vmatpush1.msra.mxu0 %v5773
      %5775 = vmatprep.subr.mxu0 0.0
      %v5776 = vand.u32 %v254, 4294901760
      %5777 = vmatpush1.msra.mxu0 %v5776
      %5778 = vmatprep.subr.mxu0 0.0
      %v5779 = vand.u32 %v255, 4294901760
      %5780 = vmatpush1.msra.mxu0 %v5779
      %5781 = vmatprep.subr.mxu0 0.0
      %v5782 = vand.u32 %v256, 4294901760
      %5783 = vmatpush1.msra.mxu0 %v5782
      %5784 = vmatprep.subr.mxu0 0.0
      %v5785 = vand.u32 %v257, 4294901760
      %5786 = vmatpush1.msra.mxu0 %v5785
      %5787 = vmatprep.subr.mxu0 0.0
      %v5788 = vand.u32 %v258, 4294901760
      %5789 = vmatpush1.msra.mxu0 %v5788
      %5790 = vmatprep.subr.mxu0 0.0
      %v5791 = vand.u32 %v259, 4294901760
      %5792 = vmatpush1.msra.mxu0 %v5791
      %5793 = vmatprep.subr.mxu0 0.0
      %v5794 = vand.u32 %v260, 4294901760
      %5795 = vmatpush1.msra.mxu0 %v5794
      %5796 = vmatprep.subr.mxu0 0.0
      %v5797 = vand.u32 %v261, 4294901760
      %5798 = vmatpush1.msra.mxu0 %v5797
      %5799 = vmatprep.subr.mxu0 0.0
      %v5800 = vand.u32 %v262, 4294901760
      %5801 = vmatpush1.msra.mxu0 %v5800
      %5802 = vmatprep.subr.mxu0 0.0
      %v5803 = vand.u32 %v263, 4294901760
      %5804 = vmatpush1.msra.mxu0 %v5803
      %5805 = vmatprep.subr.mxu0 0.0
      %v5806 = vand.u32 %v264, 4294901760
      %5807 = vmatpush1.msra.mxu0 %v5806
      %5808 = vmatprep.subr.mxu0 0.0
      %v5809 = vand.u32 %v265, 4294901760
      %5810 = vmatpush1.msra.mxu0 %v5809
      %5811 = vmatprep.subr.mxu0 0.0
      %v5812 = vand.u32 %v266, 4294901760
      %5813 = vmatpush1.msra.mxu0 %v5812
      %v5814 = vand.u32 %v3988, 4294901760
      %5815 = vmatprep.mubr.f32.mxu0 %v5814
      %v5816 = vand.u32 %v3987, 4294901760
      %5817 = vmatmul.mubr.f32.gmra.mrb[0].mxu0 %v5816
      %v5818 = vpop.f32.mrb[0].mxu0
      %v5819 = vadd.f32 %v5708, %v5818
      %v5820 = vpop.f32.mrb[0].mxu0
      %v5821 = vand.u32 %v3992, 4294901760
      %5822 = vmatprep.mubr.f32.mxu0 %v5821
      %v5823 = vand.u32 %v3991, 4294901760
      %5824 = vmatmul.mubr.f32.gmra.mrb[0].mxu0 %v5823
      %v5825 = vpop.f32.mrb[0].mxu0
      %v5826 = vadd.f32 %v5715, %v5825
      %v5827 = vpop.f32.mrb[0].mxu0
      %5828 = vdwg.mxu0
      %v5829 = vmul.f32 %v5819, 0.007874016
      %v5830 = vmul.f32 %v5826, 0.007874016
      %vm5831 = vcmp.ge.f32.partialorder %v5829, 1e-16
      %vm5832 = vcmp.ge.f32.partialorder %v5830, 1e-16
      %v5833 = vrsqrt.pop %v5829
      %v5834 = vrsqrt.pop %v5830
      %v5835 = vsel %vm5831, %v5833, 1.0
      %v5836 = vsel %vm5832, %v5834, 1.0
      %v5837 = vand.u32 %v268, 4294901760
      %5838 = vmatprep.subr.mxu0 %v5837
      %v5839 = vand.u32 %v267, 4294901760
      %5840 = vmatpush1.msra.mxu0 %v5839
      %v5841 = vand.u32 %v272, 4294901760
      %5842 = vmatprep.subr.mxu0 %v5841
      %v5843 = vand.u32 %v271, 4294901760
      %5844 = vmatpush1.msra.mxu0 %v5843
      %v5845 = vand.u32 %v276, 4294901760
      %5846 = vmatprep.subr.mxu0 %v5845
      %v5847 = vand.u32 %v275, 4294901760
      %5848 = vmatpush1.msra.mxu0 %v5847
      %v5849 = vand.u32 %v280, 4294901760
      %5850 = vmatprep.subr.mxu0 %v5849
      %v5851 = vand.u32 %v279, 4294901760
      %5852 = vmatpush1.msra.mxu0 %v5851
      %v5853 = vand.u32 %v284, 4294901760
      %5854 = vmatprep.subr.mxu0 %v5853
      %v5855 = vand.u32 %v283, 4294901760
      %5856 = vmatpush1.msra.mxu0 %v5855
      %v5857 = vand.u32 %v288, 4294901760
      %5858 = vmatprep.subr.mxu0 %v5857
      %v5859 = vand.u32 %v287, 4294901760
      %5860 = vmatpush1.msra.mxu0 %v5859
      %v5861 = vand.u32 %v292, 4294901760
      %5862 = vmatprep.subr.mxu0 %v5861
      %v5863 = vand.u32 %v291, 4294901760
      %5864 = vmatpush1.msra.mxu0 %v5863
      %v5865 = vand.u32 %v296, 4294901760
      %5866 = vmatprep.subr.mxu0 %v5865
      %v5867 = vand.u32 %v295, 4294901760
      %5868 = vmatpush1.msra.mxu0 %v5867
      %v5869 = vand.u32 %v300, 4294901760
      %5870 = vmatprep.subr.mxu0 %v5869
      %v5871 = vand.u32 %v299, 4294901760
      %5872 = vmatpush1.msra.mxu0 %v5871
      %v5873 = vand.u32 %v304, 4294901760
      %5874 = vmatprep.subr.mxu0 %v5873
      %v5875 = vand.u32 %v303, 4294901760
      %5876 = vmatpush1.msra.mxu0 %v5875
      %v5877 = vand.u32 %v308, 4294901760
      %5878 = vmatprep.subr.mxu0 %v5877
      %v5879 = vand.u32 %v307, 4294901760
      %5880 = vmatpush1.msra.mxu0 %v5879
      %v5881 = vand.u32 %v312, 4294901760
      %5882 = vmatprep.subr.mxu0 %v5881
      %v5883 = vand.u32 %v311, 4294901760
      %5884 = vmatpush1.msra.mxu0 %v5883
      %v5885 = vand.u32 %v316, 4294901760
      %5886 = vmatprep.subr.mxu0 %v5885
      %v5887 = vand.u32 %v315, 4294901760
      %5888 = vmatpush1.msra.mxu0 %v5887
      %v5889 = vand.u32 %v320, 4294901760
      %5890 = vmatprep.subr.mxu0 %v5889
      %v5891 = vand.u32 %v319, 4294901760
      %5892 = vmatpush1.msra.mxu0 %v5891
      %v5893 = vand.u32 %v324, 4294901760
      %5894 = vmatprep.subr.mxu0 %v5893
      %v5895 = vand.u32 %v323, 4294901760
      %5896 = vmatpush1.msra.mxu0 %v5895
      %v5897 = vand.u32 %v328, 4294901760
      %5898 = vmatprep.subr.mxu0 %v5897
      %v5899 = vand.u32 %v327, 4294901760
      %5900 = vmatpush1.msra.mxu0 %v5899
      %5901 = vmatprep.subr.mxu0 0.0
      %5902 = vmatpush1.msra.mxu0 0.0
      %5903 = vmatprep.subr.mxu0 0.0
      %5904 = vmatpush1.msra.mxu0 0.0
      %5905 = vmatprep.subr.mxu0 0.0
      %5906 = vmatpush1.msra.mxu0 0.0
      %5907 = vmatprep.subr.mxu0 0.0
      %5908 = vmatpush1.msra.mxu0 0.0
      %5909 = vmatprep.subr.mxu0 0.0
      %5910 = vmatpush1.msra.mxu0 0.0
      %5911 = vmatprep.subr.mxu0 0.0
      %5912 = vmatpush1.msra.mxu0 0.0
      %5913 = vmatprep.subr.mxu0 0.0
      %5914 = vmatpush1.msra.mxu0 0.0
      %5915 = vmatprep.subr.mxu0 0.0
      %5916 = vmatpush1.msra.mxu0 0.0
      %5917 = vmatprep.subr.mxu0 0.0
      %5918 = vmatpush1.msra.mxu0 0.0
      %5919 = vmatprep.subr.mxu0 0.0
      %5920 = vmatpush1.msra.mxu0 0.0
      %5921 = vmatprep.subr.mxu0 0.0
      %5922 = vmatpush1.msra.mxu0 0.0
      %5923 = vmatprep.subr.mxu0 0.0
      %5924 = vmatpush1.msra.mxu0 0.0
      %5925 = vmatprep.subr.mxu0 0.0
      %5926 = vmatpush1.msra.mxu0 0.0
      %5927 = vmatprep.subr.mxu0 0.0
      %5928 = vmatpush1.msra.mxu0 0.0
      %5929 = vmatprep.subr.mxu0 0.0
      %5930 = vmatpush1.msra.mxu0 0.0
      %5931 = vmatprep.subr.mxu0 0.0
      %5932 = vmatpush1.msra.mxu0 0.0
      %5933 = vmatprep.mubr.f32.mxu0 0.0
      %v5934 = vand.u32 %v5835, 4294901760
      %v5935 = vsub.f32 %v5835, %v5934
      %v5936 = vand.u32 %v5935, 4294901760
      %v5937 = vsub.f32 %v5935, %v5936
      %v5938 = vand.u32 %v5937, 4294901760
      %5939 = vmatmul.mubr.f32.gmra.mrb[0].mxu0 %v5938
      %v5940 = vpop.f32.mrb[0].mxu0
      %v5941 = vadd.f32 0.0, %v5940
      %v5942 = vpop.f32.mrb[0].mxu0
      %v5943 = vadd.f32 0.0, %v5942
      %5944 = vmatprep.mubr.f32.mxu0 0.0
      %v5945 = vand.u32 %v5836, 4294901760
      %v5946 = vsub.f32 %v5836, %v5945
      %v5947 = vand.u32 %v5946, 4294901760
      %v5948 = vsub.f32 %v5946, %v5947
      %v5949 = vand.u32 %v5948, 4294901760
      %5950 = vmatmul.mubr.f32.gmra.mrb[0].mxu0 %v5949
      %v5951 = vpop.f32.mrb[0].mxu0
      %v5952 = vadd.f32 0.0, %v5951
      %v5953 = vpop.f32.mrb[0].mxu0
      %v5954 = vadd.f32 0.0, %v5953
      %5955 = vdwg.mxu0
      %v5956 = vand.u32 %v268, 4294901760
      %v5957 = vsub.f32 %v268, %v5956
      %v5958 = vand.u32 %v5957, 4294901760
      %v5959 = vsub.f32 %v5957, %v5958
      %v5960 = vand.u32 %v5959, 4294901760
      %5961 = vmatprep.subr.mxu0 %v5960
      %v5962 = vand.u32 %v267, 4294901760
      %v5963 = vsub.f32 %v267, %v5962
      %v5964 = vand.u32 %v5963, 4294901760
      %v5965 = vsub.f32 %v5963, %v5964
      %v5966 = vand.u32 %v5965, 4294901760
      %5967 = vmatpush1.msra.mxu0 %v5966
      %v5968 = vand.u32 %v272, 4294901760
      %v5969 = vsub.f32 %v272, %v5968
      %v5970 = vand.u32 %v5969, 4294901760
      %v5971 = vsub.f32 %v5969, %v5970
      %v5972 = vand.u32 %v5971, 4294901760
      %5973 = vmatprep.subr.mxu0 %v5972
      %v5974 = vand.u32 %v271, 4294901760
      %v5975 = vsub.f32 %v271, %v5974
      %v5976 = vand.u32 %v5975, 4294901760
      %v5977 = vsub.f32 %v5975, %v5976
      %v5978 = vand.u32 %v5977, 4294901760
      %5979 = vmatpush1.msra.mxu0 %v5978
      %v5980 = vand.u32 %v276, 4294901760
      %v5981 = vsub.f32 %v276, %v5980
      %v5982 = vand.u32 %v5981, 4294901760
      %v5983 = vsub.f32 %v5981, %v5982
      %v5984 = vand.u32 %v5983, 4294901760
      %5985 = vmatprep.subr.mxu0 %v5984
      %v5986 = vand.u32 %v275, 4294901760
      %v5987 = vsub.f32 %v275, %v5986
      %v5988 = vand.u32 %v5987, 4294901760
      %v5989 = vsub.f32 %v5987, %v5988
      %v5990 = vand.u32 %v5989, 4294901760
      %5991 = vmatpush1.msra.mxu0 %v5990
      %v5992 = vand.u32 %v280, 4294901760
      %v5993 = vsub.f32 %v280, %v5992
      %v5994 = vand.u32 %v5993, 4294901760
      %v5995 = vsub.f32 %v5993, %v5994
      %v5996 = vand.u32 %v5995, 4294901760
      %5997 = vmatprep.subr.mxu0 %v5996
      %v5998 = vand.u32 %v279, 4294901760
      %v5999 = vsub.f32 %v279, %v5998
      %v6000 = vand.u32 %v5999, 4294901760
      %v6001 = vsub.f32 %v5999, %v6000
      %v6002 = vand.u32 %v6001, 4294901760
      %6003 = vmatpush1.msra.mxu0 %v6002
      %v6004 = vand.u32 %v284, 4294901760
      %v6005 = vsub.f32 %v284, %v6004
      %v6006 = vand.u32 %v6005, 4294901760
      %v6007 = vsub.f32 %v6005, %v6006
      %v6008 = vand.u32 %v6007, 4294901760
      %6009 = vmatprep.subr.mxu0 %v6008
      %v6010 = vand.u32 %v283, 4294901760
      %v6011 = vsub.f32 %v283, %v6010
      %v6012 = vand.u32 %v6011, 4294901760
      %v6013 = vsub.f32 %v6011, %v6012
      %v6014 = vand.u32 %v6013, 4294901760
      %6015 = vmatpush1.msra.mxu0 %v6014
      %v6016 = vand.u32 %v288, 4294901760
      %v6017 = vsub.f32 %v288, %v6016
      %v6018 = vand.u32 %v6017, 4294901760
      %v6019 = vsub.f32 %v6017, %v6018
      %v6020 = vand.u32 %v6019, 4294901760
      %6021 = vmatprep.subr.mxu0 %v6020
      %v6022 = vand.u32 %v287, 4294901760
      %v6023 = vsub.f32 %v287, %v6022
      %v6024 = vand.u32 %v6023, 4294901760
      %v6025 = vsub.f32 %v6023, %v6024
      %v6026 = vand.u32 %v6025, 4294901760
      %6027 = vmatpush1.msra.mxu0 %v6026
      %v6028 = vand.u32 %v292, 4294901760
      %v6029 = vsub.f32 %v292, %v6028
      %v6030 = vand.u32 %v6029, 4294901760
      %v6031 = vsub.f32 %v6029, %v6030
      %v6032 = vand.u32 %v6031, 4294901760
      %6033 = vmatprep.subr.mxu0 %v6032
      %v6034 = vand.u32 %v291, 4294901760
      %v6035 = vsub.f32 %v291, %v6034
      %v6036 = vand.u32 %v6035, 4294901760
      %v6037 = vsub.f32 %v6035, %v6036
      %v6038 = vand.u32 %v6037, 4294901760
      %6039 = vmatpush1.msra.mxu0 %v6038
      %v6040 = vand.u32 %v296, 4294901760
      %v6041 = vsub.f32 %v296, %v6040
      %v6042 = vand.u32 %v6041, 4294901760
      %v6043 = vsub.f32 %v6041, %v6042
      %v6044 = vand.u32 %v6043, 4294901760
      %6045 = vmatprep.subr.mxu0 %v6044
      %v6046 = vand.u32 %v295, 4294901760
      %v6047 = vsub.f32 %v295, %v6046
      %v6048 = vand.u32 %v6047, 4294901760
      %v6049 = vsub.f32 %v6047, %v6048
      %v6050 = vand.u32 %v6049, 4294901760
      %6051 = vmatpush1.msra.mxu0 %v6050
      %v6052 = vand.u32 %v300, 4294901760
      %v6053 = vsub.f32 %v300, %v6052
      %v6054 = vand.u32 %v6053, 4294901760
      %v6055 = vsub.f32 %v6053, %v6054
      %v6056 = vand.u32 %v6055, 4294901760
      %6057 = vmatprep.subr.mxu0 %v6056
      %v6058 = vand.u32 %v299, 4294901760
      %v6059 = vsub.f32 %v299, %v6058
      %v6060 = vand.u32 %v6059, 4294901760
      %v6061 = vsub.f32 %v6059, %v6060
      %v6062 = vand.u32 %v6061, 4294901760
      %6063 = vmatpush1.msra.mxu0 %v6062
      %v6064 = vand.u32 %v304, 4294901760
      %v6065 = vsub.f32 %v304, %v6064
      %v6066 = vand.u32 %v6065, 4294901760
      %v6067 = vsub.f32 %v6065, %v6066
      %v6068 = vand.u32 %v6067, 4294901760
      %6069 = vmatprep.subr.mxu0 %v6068
      %v6070 = vand.u32 %v303, 4294901760
      %v6071 = vsub.f32 %v303, %v6070
      %v6072 = vand.u32 %v6071, 4294901760
      %v6073 = vsub.f32 %v6071, %v6072
      %v6074 = vand.u32 %v6073, 4294901760
      %6075 = vmatpush1.msra.mxu0 %v6074
      %v6076 = vand.u32 %v308, 4294901760
      %v6077 = vsub.f32 %v308, %v6076
      %v6078 = vand.u32 %v6077, 4294901760
      %v6079 = vsub.f32 %v6077, %v6078
      %v6080 = vand.u32 %v6079, 4294901760
      %6081 = vmatprep.subr.mxu0 %v6080
      %v6082 = vand.u32 %v307, 4294901760
      %v6083 = vsub.f32 %v307, %v6082
      %v6084 = vand.u32 %v6083, 4294901760
      %v6085 = vsub.f32 %v6083, %v6084
      %v6086 = vand.u32 %v6085, 4294901760
      %6087 = vmatpush1.msra.mxu0 %v6086
      %v6088 = vand.u32 %v312, 4294901760
      %v6089 = vsub.f32 %v312, %v6088
      %v6090 = vand.u32 %v6089, 4294901760
      %v6091 = vsub.f32 %v6089, %v6090
      %v6092 = vand.u32 %v6091, 4294901760
      %6093 = vmatprep.subr.mxu0 %v6092
      %v6094 = vand.u32 %v311, 4294901760
      %v6095 = vsub.f32 %v311, %v6094
      %v6096 = vand.u32 %v6095, 4294901760
      %v6097 = vsub.f32 %v6095, %v6096
      %v6098 = vand.u32 %v6097, 4294901760
      %6099 = vmatpush1.msra.mxu0 %v6098
      %v6100 = vand.u32 %v316, 4294901760
      %v6101 = vsub.f32 %v316, %v6100
      %v6102 = vand.u32 %v6101, 4294901760
      %v6103 = vsub.f32 %v6101, %v6102
      %v6104 = vand.u32 %v6103, 4294901760
      %6105 = vmatprep.subr.mxu0 %v6104
      %v6106 = vand.u32 %v315, 4294901760
      %v6107 = vsub.f32 %v315, %v6106
      %v6108 = vand.u32 %v6107, 4294901760
      %v6109 = vsub.f32 %v6107, %v6108
      %v6110 = vand.u32 %v6109, 4294901760
      %6111 = vmatpush1.msra.mxu0 %v6110
      %v6112 = vand.u32 %v320, 4294901760
      %v6113 = vsub.f32 %v320, %v6112
      %v6114 = vand.u32 %v6113, 4294901760
      %v6115 = vsub.f32 %v6113, %v6114
      %v6116 = vand.u32 %v6115, 4294901760
      %6117 = vmatprep.subr.mxu0 %v6116
      %v6118 = vand.u32 %v319, 4294901760
      %v6119 = vsub.f32 %v319, %v6118
      %v6120 = vand.u32 %v6119, 4294901760
      %v6121 = vsub.f32 %v6119, %v6120
      %v6122 = vand.u32 %v6121, 4294901760
      %6123 = vmatpush1.msra.mxu0 %v6122
      %v6124 = vand.u32 %v324, 4294901760
      %v6125 = vsub.f32 %v324, %v6124
      %v6126 = vand.u32 %v6125, 4294901760
      %v6127 = vsub.f32 %v6125, %v6126
      %v6128 = vand.u32 %v6127, 4294901760
      %6129 = vmatprep.subr.mxu0 %v6128
      %v6130 = vand.u32 %v323, 4294901760
      %v6131 = vsub.f32 %v323, %v6130
      %v6132 = vand.u32 %v6131, 4294901760
      %v6133 = vsub.f32 %v6131, %v6132
      %v6134 = vand.u32 %v6133, 4294901760
      %6135 = vmatpush1.msra.mxu0 %v6134
      %v6136 = vand.u32 %v328, 4294901760
      %v6137 = vsub.f32 %v328, %v6136
      %v6138 = vand.u32 %v6137, 4294901760
      %v6139 = vsub.f32 %v6137, %v6138
      %v6140 = vand.u32 %v6139, 4294901760
      %6141 = vmatprep.subr.mxu0 %v6140
      %v6142 = vand.u32 %v327, 4294901760
      %v6143 = vsub.f32 %v327, %v6142
      %v6144 = vand.u32 %v6143, 4294901760
      %v6145 = vsub.f32 %v6143, %v6144
      %v6146 = vand.u32 %v6145, 4294901760
      %6147 = vmatpush1.msra.mxu0 %v6146
      %6148 = vmatprep.subr.mxu0 0.0
      %6149 = vmatpush1.msra.mxu0 0.0
      %6150 = vmatprep.subr.mxu0 0.0
      %6151 = vmatpush1.msra.mxu0 0.0
      %6152 = vmatprep.subr.mxu0 0.0
      %6153 = vmatpush1.msra.mxu0 0.0
      %6154 = vmatprep.subr.mxu0 0.0
      %6155 = vmatpush1.msra.mxu0 0.0
      %6156 = vmatprep.subr.mxu0 0.0
      %6157 = vmatpush1.msra.mxu0 0.0
      %6158 = vmatprep.subr.mxu0 0.0
      %6159 = vmatpush1.msra.mxu0 0.0
      %6160 = vmatprep.subr.mxu0 0.0
      %6161 = vmatpush1.msra.mxu0 0.0
      %6162 = vmatprep.subr.mxu0 0.0
      %6163 = vmatpush1.msra.mxu0 0.0
      %6164 = vmatprep.subr.mxu0 0.0
      %6165 = vmatpush1.msra.mxu0 0.0
      %6166 = vmatprep.subr.mxu0 0.0
      %6167 = vmatpush1.msra.mxu0 0.0
      %6168 = vmatprep.subr.mxu0 0.0
      %6169 = vmatpush1.msra.mxu0 0.0
      %6170 = vmatprep.subr.mxu0 0.0
      %6171 = vmatpush1.msra.mxu0 0.0
      %6172 = vmatprep.subr.mxu0 0.0
      %6173 = vmatpush1.msra.mxu0 0.0
      %6174 = vmatprep.subr.mxu0 0.0
      %6175 = vmatpush1.msra.mxu0 0.0
      %6176 = vmatprep.subr.mxu0 0.0
      %6177 = vmatpush1.msra.mxu0 0.0
      %6178 = vmatprep.subr.mxu0 0.0
      %6179 = vmatpush1.msra.mxu0 0.0
      %6180 = vmatprep.mubr.f32.mxu0 0.0
      %v6181 = vand.u32 %v5835, 4294901760
      %6182 = vmatmul.mubr.f32.gmra.mrb[0].mxu0 %v6181
      %v6183 = vpop.f32.mrb[0].mxu0
      %v6184 = vadd.f32 %v5941, %v6183
      %v6185 = vpop.f32.mrb[0].mxu0
      %v6186 = vadd.f32 %v5943, %v6185
      %6187 = vmatprep.mubr.f32.mxu0 0.0
      %v6188 = vand.u32 %v5836, 4294901760
      %6189 = vmatmul.mubr.f32.gmra.mrb[0].mxu0 %v6188
      %v6190 = vpop.f32.mrb[0].mxu0
      %v6191 = vadd.f32 %v5952, %v6190
      %v6192 = vpop.f32.mrb[0].mxu0
      %v6193 = vadd.f32 %v5954, %v6192
      %6194 = vdwg.mxu0
      %v6195 = vand.u32 %v268, 4294901760
      %v6196 = vsub.f32 %v268, %v6195
      %6197 = vmatprep.subr.mxu0 %v6196
      %v6198 = vand.u32 %v267, 4294901760
      %v6199 = vsub.f32 %v267, %v6198
      %6200 = vmatpush1.msra.mxu0 %v6199
      %v6201 = vand.u32 %v272, 4294901760
      %v6202 = vsub.f32 %v272, %v6201
      %6203 = vmatprep.subr.mxu0 %v6202
      %v6204 = vand.u32 %v271, 4294901760
      %v6205 = vsub.f32 %v271, %v6204
      %6206 = vmatpush1.msra.mxu0 %v6205
      %v6207 = vand.u32 %v276, 4294901760
      %v6208 = vsub.f32 %v276, %v6207
      %6209 = vmatprep.subr.mxu0 %v6208
      %v6210 = vand.u32 %v275, 4294901760
      %v6211 = vsub.f32 %v275, %v6210
      %6212 = vmatpush1.msra.mxu0 %v6211
      %v6213 = vand.u32 %v280, 4294901760
      %v6214 = vsub.f32 %v280, %v6213
      %6215 = vmatprep.subr.mxu0 %v6214
      %v6216 = vand.u32 %v279, 4294901760
      %v6217 = vsub.f32 %v279, %v6216
      %6218 = vmatpush1.msra.mxu0 %v6217
      %v6219 = vand.u32 %v284, 4294901760
      %v6220 = vsub.f32 %v284, %v6219
      %6221 = vmatprep.subr.mxu0 %v6220
      %v6222 = vand.u32 %v283, 4294901760
      %v6223 = vsub.f32 %v283, %v6222
      %6224 = vmatpush1.msra.mxu0 %v6223
      %v6225 = vand.u32 %v288, 4294901760
      %v6226 = vsub.f32 %v288, %v6225
      %6227 = vmatprep.subr.mxu0 %v6226
      %v6228 = vand.u32 %v287, 4294901760
      %v6229 = vsub.f32 %v287, %v6228
      %6230 = vmatpush1.msra.mxu0 %v6229
      %v6231 = vand.u32 %v292, 4294901760
      %v6232 = vsub.f32 %v292, %v6231
      %6233 = vmatprep.subr.mxu0 %v6232
      %v6234 = vand.u32 %v291, 4294901760
      %v6235 = vsub.f32 %v291, %v6234
      %6236 = vmatpush1.msra.mxu0 %v6235
      %v6237 = vand.u32 %v296, 4294901760
      %v6238 = vsub.f32 %v296, %v6237
      %6239 = vmatprep.subr.mxu0 %v6238
      %v6240 = vand.u32 %v295, 4294901760
      %v6241 = vsub.f32 %v295, %v6240
      %6242 = vmatpush1.msra.mxu0 %v6241
      %v6243 = vand.u32 %v300, 4294901760
      %v6244 = vsub.f32 %v300, %v6243
      %6245 = vmatprep.subr.mxu0 %v6244
      %v6246 = vand.u32 %v299, 4294901760
      %v6247 = vsub.f32 %v299, %v6246
      %6248 = vmatpush1.msra.mxu0 %v6247
      %v6249 = vand.u32 %v304, 4294901760
      %v6250 = vsub.f32 %v304, %v6249
      %6251 = vmatprep.subr.mxu0 %v6250
      %v6252 = vand.u32 %v303, 4294901760
      %v6253 = vsub.f32 %v303, %v6252
      %6254 = vmatpush1.msra.mxu0 %v6253
      %v6255 = vand.u32 %v308, 4294901760
      %v6256 = vsub.f32 %v308, %v6255
      %6257 = vmatprep.subr.mxu0 %v6256
      %v6258 = vand.u32 %v307, 4294901760
      %v6259 = vsub.f32 %v307, %v6258
      %6260 = vmatpush1.msra.mxu0 %v6259
      %v6261 = vand.u32 %v312, 4294901760
      %v6262 = vsub.f32 %v312, %v6261
      %6263 = vmatprep.subr.mxu0 %v6262
      %v6264 = vand.u32 %v311, 4294901760
      %v6265 = vsub.f32 %v311, %v6264
      %6266 = vmatpush1.msra.mxu0 %v6265
      %v6267 = vand.u32 %v316, 4294901760
      %v6268 = vsub.f32 %v316, %v6267
      %6269 = vmatprep.subr.mxu0 %v6268
      %v6270 = vand.u32 %v315, 4294901760
      %v6271 = vsub.f32 %v315, %v6270
      %6272 = vmatpush1.msra.mxu0 %v6271
      %v6273 = vand.u32 %v320, 4294901760
      %v6274 = vsub.f32 %v320, %v6273
      %6275 = vmatprep.subr.mxu0 %v6274
      %v6276 = vand.u32 %v319, 4294901760
      %v6277 = vsub.f32 %v319, %v6276
      %6278 = vmatpush1.msra.mxu0 %v6277
      %v6279 = vand.u32 %v324, 4294901760
      %v6280 = vsub.f32 %v324, %v6279
      %6281 = vmatprep.subr.mxu0 %v6280
      %v6282 = vand.u32 %v323, 4294901760
      %v6283 = vsub.f32 %v323, %v6282
      %6284 = vmatpush1.msra.mxu0 %v6283
      %v6285 = vand.u32 %v328, 4294901760
      %v6286 = vsub.f32 %v328, %v6285
      %6287 = vmatprep.subr.mxu0 %v6286
      %v6288 = vand.u32 %v327, 4294901760
      %v6289 = vsub.f32 %v327, %v6288
      %6290 = vmatpush1.msra.mxu0 %v6289
      %6291 = vmatprep.subr.mxu0 0.0
      %6292 = vmatpush1.msra.mxu0 0.0
      %6293 = vmatprep.subr.mxu0 0.0
      %6294 = vmatpush1.msra.mxu0 0.0
      %6295 = vmatprep.subr.mxu0 0.0
      %6296 = vmatpush1.msra.mxu0 0.0
      %6297 = vmatprep.subr.mxu0 0.0
      %6298 = vmatpush1.msra.mxu0 0.0
      %6299 = vmatprep.subr.mxu0 0.0
      %6300 = vmatpush1.msra.mxu0 0.0
      %6301 = vmatprep.subr.mxu0 0.0
      %6302 = vmatpush1.msra.mxu0 0.0
      %6303 = vmatprep.subr.mxu0 0.0
      %6304 = vmatpush1.msra.mxu0 0.0
      %6305 = vmatprep.subr.mxu0 0.0
      %6306 = vmatpush1.msra.mxu0 0.0
      %6307 = vmatprep.subr.mxu0 0.0
      %6308 = vmatpush1.msra.mxu0 0.0
      %6309 = vmatprep.subr.mxu0 0.0
      %6310 = vmatpush1.msra.mxu0 0.0
      %6311 = vmatprep.subr.mxu0 0.0
      %6312 = vmatpush1.msra.mxu0 0.0
      %6313 = vmatprep.subr.mxu0 0.0
      %6314 = vmatpush1.msra.mxu0 0.0
      %6315 = vmatprep.subr.mxu0 0.0
      %6316 = vmatpush1.msra.mxu0 0.0
      %6317 = vmatprep.subr.mxu0 0.0
      %6318 = vmatpush1.msra.mxu0 0.0
      %6319 = vmatprep.subr.mxu0 0.0
      %6320 = vmatpush1.msra.mxu0 0.0
      %6321 = vmatprep.subr.mxu0 0.0
      %6322 = vmatpush1.msra.mxu0 0.0
      %6323 = vmatprep.mubr.f32.mxu0 0.0
      %v6324 = vand.u32 %v5835, 4294901760
      %v6325 = vsub.f32 %v5835, %v6324
      %6326 = vmatmul.mubr.f32.gmra.mrb[0].mxu0 %v6325
      %v6327 = vpop.f32.mrb[0].mxu0
      %v6328 = vadd.f32 %v6184, %v6327
      %v6329 = vpop.f32.mrb[0].mxu0
      %v6330 = vadd.f32 %v6186, %v6329
      %6331 = vmatprep.mubr.f32.mxu0 0.0
      %v6332 = vand.u32 %v5836, 4294901760
      %v6333 = vsub.f32 %v5836, %v6332
      %6334 = vmatmul.mubr.f32.gmra.mrb[0].mxu0 %v6333
      %v6335 = vpop.f32.mrb[0].mxu0
      %v6336 = vadd.f32 %v6191, %v6335
      %v6337 = vpop.f32.mrb[0].mxu0
      %v6338 = vadd.f32 %v6193, %v6337
      %6339 = vdwg.mxu0
      %v6340 = vand.u32 %v268, 4294901760
      %6341 = vmatprep.subr.mxu0 %v6340
      %v6342 = vand.u32 %v267, 4294901760
      %6343 = vmatpush1.msra.mxu0 %v6342
      %v6344 = vand.u32 %v272, 4294901760
      %6345 = vmatprep.subr.mxu0 %v6344
      %v6346 = vand.u32 %v271, 4294901760
      %6347 = vmatpush1.msra.mxu0 %v6346
      %v6348 = vand.u32 %v276, 4294901760
      %6349 = vmatprep.subr.mxu0 %v6348
      %v6350 = vand.u32 %v275, 4294901760
      %6351 = vmatpush1.msra.mxu0 %v6350
      %v6352 = vand.u32 %v280, 4294901760
      %6353 = vmatprep.subr.mxu0 %v6352
      %v6354 = vand.u32 %v279, 4294901760
      %6355 = vmatpush1.msra.mxu0 %v6354
      %v6356 = vand.u32 %v284, 4294901760
      %6357 = vmatprep.subr.mxu0 %v6356
      %v6358 = vand.u32 %v283, 4294901760
      %6359 = vmatpush1.msra.mxu0 %v6358
      %v6360 = vand.u32 %v288, 4294901760
      %6361 = vmatprep.subr.mxu0 %v6360
      %v6362 = vand.u32 %v287, 4294901760
      %6363 = vmatpush1.msra.mxu0 %v6362
      %v6364 = vand.u32 %v292, 4294901760
      %6365 = vmatprep.subr.mxu0 %v6364
      %v6366 = vand.u32 %v291, 4294901760
      %6367 = vmatpush1.msra.mxu0 %v6366
      %v6368 = vand.u32 %v296, 4294901760
      %6369 = vmatprep.subr.mxu0 %v6368
      %v6370 = vand.u32 %v295, 4294901760
      %6371 = vmatpush1.msra.mxu0 %v6370
      %v6372 = vand.u32 %v300, 4294901760
      %6373 = vmatprep.subr.mxu0 %v6372
      %v6374 = vand.u32 %v299, 4294901760
      %6375 = vmatpush1.msra.mxu0 %v6374
      %v6376 = vand.u32 %v304, 4294901760
      %6377 = vmatprep.subr.mxu0 %v6376
      %v6378 = vand.u32 %v303, 4294901760
      %6379 = vmatpush1.msra.mxu0 %v6378
      %v6380 = vand.u32 %v308, 4294901760
      %6381 = vmatprep.subr.mxu0 %v6380
      %v6382 = vand.u32 %v307, 4294901760
      %6383 = vmatpush1.msra.mxu0 %v6382
      %v6384 = vand.u32 %v312, 4294901760
      %6385 = vmatprep.subr.mxu0 %v6384
      %v6386 = vand.u32 %v311, 4294901760
      %6387 = vmatpush1.msra.mxu0 %v6386
      %v6388 = vand.u32 %v316, 4294901760
      %6389 = vmatprep.subr.mxu0 %v6388
      %v6390 = vand.u32 %v315, 4294901760
      %6391 = vmatpush1.msra.mxu0 %v6390
      %v6392 = vand.u32 %v320, 4294901760
      %6393 = vmatprep.subr.mxu0 %v6392
      %v6394 = vand.u32 %v319, 4294901760
      %6395 = vmatpush1.msra.mxu0 %v6394
      %v6396 = vand.u32 %v324, 4294901760
      %6397 = vmatprep.subr.mxu0 %v6396
      %v6398 = vand.u32 %v323, 4294901760
      %6399 = vmatpush1.msra.mxu0 %v6398
      %v6400 = vand.u32 %v328, 4294901760
      %6401 = vmatprep.subr.mxu0 %v6400
      %v6402 = vand.u32 %v327, 4294901760
      %6403 = vmatpush1.msra.mxu0 %v6402
      %6404 = vmatprep.subr.mxu0 0.0
      %6405 = vmatpush1.msra.mxu0 0.0
      %6406 = vmatprep.subr.mxu0 0.0
      %6407 = vmatpush1.msra.mxu0 0.0
      %6408 = vmatprep.subr.mxu0 0.0
      %6409 = vmatpush1.msra.mxu0 0.0
      %6410 = vmatprep.subr.mxu0 0.0
      %6411 = vmatpush1.msra.mxu0 0.0
      %6412 = vmatprep.subr.mxu0 0.0
      %6413 = vmatpush1.msra.mxu0 0.0
      %6414 = vmatprep.subr.mxu0 0.0
      %6415 = vmatpush1.msra.mxu0 0.0
      %6416 = vmatprep.subr.mxu0 0.0
      %6417 = vmatpush1.msra.mxu0 0.0
      %6418 = vmatprep.subr.mxu0 0.0
      %6419 = vmatpush1.msra.mxu0 0.0
      %6420 = vmatprep.subr.mxu0 0.0
      %6421 = vmatpush1.msra.mxu0 0.0
      %6422 = vmatprep.subr.mxu0 0.0
      %6423 = vmatpush1.msra.mxu0 0.0
      %6424 = vmatprep.subr.mxu0 0.0
      %6425 = vmatpush1.msra.mxu0 0.0
      %6426 = vmatprep.subr.mxu0 0.0
      %6427 = vmatpush1.msra.mxu0 0.0
      %6428 = vmatprep.subr.mxu0 0.0
      %6429 = vmatpush1.msra.mxu0 0.0
      %6430 = vmatprep.subr.mxu0 0.0
      %6431 = vmatpush1.msra.mxu0 0.0
      %6432 = vmatprep.subr.mxu0 0.0
      %6433 = vmatpush1.msra.mxu0 0.0
      %6434 = vmatprep.subr.mxu0 0.0
      %6435 = vmatpush1.msra.mxu0 0.0
      %6436 = vmatprep.mubr.f32.mxu0 0.0
      %v6437 = vand.u32 %v5835, 4294901760
      %v6438 = vsub.f32 %v5835, %v6437
      %v6439 = vand.u32 %v6438, 4294901760
      %6440 = vmatmul.mubr.f32.gmra.mrb[0].mxu0 %v6439
      %v6441 = vpop.f32.mrb[0].mxu0
      %v6442 = vadd.f32 %v6328, %v6441
      %v6443 = vpop.f32.mrb[0].mxu0
      %v6444 = vadd.f32 %v6330, %v6443
      %6445 = vmatprep.mubr.f32.mxu0 0.0
      %v6446 = vand.u32 %v5836, 4294901760
      %v6447 = vsub.f32 %v5836, %v6446
      %v6448 = vand.u32 %v6447, 4294901760
      %6449 = vmatmul.mubr.f32.gmra.mrb[0].mxu0 %v6448
      %v6450 = vpop.f32.mrb[0].mxu0
      %v6451 = vadd.f32 %v6336, %v6450
      %v6452 = vpop.f32.mrb[0].mxu0
      %v6453 = vadd.f32 %v6338, %v6452
      %6454 = vdwg.mxu0
      %v6455 = vand.u32 %v268, 4294901760
      %v6456 = vsub.f32 %v268, %v6455
      %v6457 = vand.u32 %v6456, 4294901760
      %6458 = vmatprep.subr.mxu0 %v6457
      %v6459 = vand.u32 %v267, 4294901760
      %v6460 = vsub.f32 %v267, %v6459
      %v6461 = vand.u32 %v6460, 4294901760
      %6462 = vmatpush1.msra.mxu0 %v6461
      %v6463 = vand.u32 %v272, 4294901760
      %v6464 = vsub.f32 %v272, %v6463
      %v6465 = vand.u32 %v6464, 4294901760
      %6466 = vmatprep.subr.mxu0 %v6465
      %v6467 = vand.u32 %v271, 4294901760
      %v6468 = vsub.f32 %v271, %v6467
      %v6469 = vand.u32 %v6468, 4294901760
      %6470 = vmatpush1.msra.mxu0 %v6469
      %v6471 = vand.u32 %v276, 4294901760
      %v6472 = vsub.f32 %v276, %v6471
      %v6473 = vand.u32 %v6472, 4294901760
      %6474 = vmatprep.subr.mxu0 %v6473
      %v6475 = vand.u32 %v275, 4294901760
      %v6476 = vsub.f32 %v275, %v6475
      %v6477 = vand.u32 %v6476, 4294901760
      %6478 = vmatpush1.msra.mxu0 %v6477
      %v6479 = vand.u32 %v280, 4294901760
      %v6480 = vsub.f32 %v280, %v6479
      %v6481 = vand.u32 %v6480, 4294901760
      %6482 = vmatprep.subr.mxu0 %v6481
      %v6483 = vand.u32 %v279, 4294901760
      %v6484 = vsub.f32 %v279, %v6483
      %v6485 = vand.u32 %v6484, 4294901760
      %6486 = vmatpush1.msra.mxu0 %v6485
      %v6487 = vand.u32 %v284, 4294901760
      %v6488 = vsub.f32 %v284, %v6487
      %v6489 = vand.u32 %v6488, 4294901760
      %6490 = vmatprep.subr.mxu0 %v6489
      %v6491 = vand.u32 %v283, 4294901760
      %v6492 = vsub.f32 %v283, %v6491
      %v6493 = vand.u32 %v6492, 4294901760
      %6494 = vmatpush1.msra.mxu0 %v6493
      %v6495 = vand.u32 %v288, 4294901760
      %v6496 = vsub.f32 %v288, %v6495
      %v6497 = vand.u32 %v6496, 4294901760
      %6498 = vmatprep.subr.mxu0 %v6497
      %v6499 = vand.u32 %v287, 4294901760
      %v6500 = vsub.f32 %v287, %v6499
      %v6501 = vand.u32 %v6500, 4294901760
      %6502 = vmatpush1.msra.mxu0 %v6501
      %v6503 = vand.u32 %v292, 4294901760
      %v6504 = vsub.f32 %v292, %v6503
      %v6505 = vand.u32 %v6504, 4294901760
      %6506 = vmatprep.subr.mxu0 %v6505
      %v6507 = vand.u32 %v291, 4294901760
      %v6508 = vsub.f32 %v291, %v6507
      %v6509 = vand.u32 %v6508, 4294901760
      %6510 = vmatpush1.msra.mxu0 %v6509
      %v6511 = vand.u32 %v296, 4294901760
      %v6512 = vsub.f32 %v296, %v6511
      %v6513 = vand.u32 %v6512, 4294901760
      %6514 = vmatprep.subr.mxu0 %v6513
      %v6515 = vand.u32 %v295, 4294901760
      %v6516 = vsub.f32 %v295, %v6515
      %v6517 = vand.u32 %v6516, 4294901760
      %6518 = vmatpush1.msra.mxu0 %v6517
      %v6519 = vand.u32 %v300, 4294901760
      %v6520 = vsub.f32 %v300, %v6519
      %v6521 = vand.u32 %v6520, 4294901760
      %6522 = vmatprep.subr.mxu0 %v6521
      %v6523 = vand.u32 %v299, 4294901760
      %v6524 = vsub.f32 %v299, %v6523
      %v6525 = vand.u32 %v6524, 4294901760
      %6526 = vmatpush1.msra.mxu0 %v6525
      %v6527 = vand.u32 %v304, 4294901760
      %v6528 = vsub.f32 %v304, %v6527
      %v6529 = vand.u32 %v6528, 4294901760
      %6530 = vmatprep.subr.mxu0 %v6529
      %v6531 = vand.u32 %v303, 4294901760
      %v6532 = vsub.f32 %v303, %v6531
      %v6533 = vand.u32 %v6532, 4294901760
      %6534 = vmatpush1.msra.mxu0 %v6533
      %v6535 = vand.u32 %v308, 4294901760
      %v6536 = vsub.f32 %v308, %v6535
      %v6537 = vand.u32 %v6536, 4294901760
      %6538 = vmatprep.subr.mxu0 %v6537
      %v6539 = vand.u32 %v307, 4294901760
      %v6540 = vsub.f32 %v307, %v6539
      %v6541 = vand.u32 %v6540, 4294901760
      %6542 = vmatpush1.msra.mxu0 %v6541
      %v6543 = vand.u32 %v312, 4294901760
      %v6544 = vsub.f32 %v312, %v6543
      %v6545 = vand.u32 %v6544, 4294901760
      %6546 = vmatprep.subr.mxu0 %v6545
      %v6547 = vand.u32 %v311, 4294901760
      %v6548 = vsub.f32 %v311, %v6547
      %v6549 = vand.u32 %v6548, 4294901760
      %6550 = vmatpush1.msra.mxu0 %v6549
      %v6551 = vand.u32 %v316, 4294901760
      %v6552 = vsub.f32 %v316, %v6551
      %v6553 = vand.u32 %v6552, 4294901760
      %6554 = vmatprep.subr.mxu0 %v6553
      %v6555 = vand.u32 %v315, 4294901760
      %v6556 = vsub.f32 %v315, %v6555
      %v6557 = vand.u32 %v6556, 4294901760
      %6558 = vmatpush1.msra.mxu0 %v6557
      %v6559 = vand.u32 %v320, 4294901760
      %v6560 = vsub.f32 %v320, %v6559
      %v6561 = vand.u32 %v6560, 4294901760
      %6562 = vmatprep.subr.mxu0 %v6561
      %v6563 = vand.u32 %v319, 4294901760
      %v6564 = vsub.f32 %v319, %v6563
      %v6565 = vand.u32 %v6564, 4294901760
      %6566 = vmatpush1.msra.mxu0 %v6565
      %v6567 = vand.u32 %v324, 4294901760
      %v6568 = vsub.f32 %v324, %v6567
      %v6569 = vand.u32 %v6568, 4294901760
      %6570 = vmatprep.subr.mxu0 %v6569
      %v6571 = vand.u32 %v323, 4294901760
      %v6572 = vsub.f32 %v323, %v6571
      %v6573 = vand.u32 %v6572, 4294901760
      %6574 = vmatpush1.msra.mxu0 %v6573
      %v6575 = vand.u32 %v328, 4294901760
      %v6576 = vsub.f32 %v328, %v6575
      %v6577 = vand.u32 %v6576, 4294901760
      %6578 = vmatprep.subr.mxu0 %v6577
      %v6579 = vand.u32 %v327, 4294901760
      %v6580 = vsub.f32 %v327, %v6579
      %v6581 = vand.u32 %v6580, 4294901760
      %6582 = vmatpush1.msra.mxu0 %v6581
      %6583 = vmatprep.subr.mxu0 0.0
      %6584 = vmatpush1.msra.mxu0 0.0
      %6585 = vmatprep.subr.mxu0 0.0
      %6586 = vmatpush1.msra.mxu0 0.0
      %6587 = vmatprep.subr.mxu0 0.0
      %6588 = vmatpush1.msra.mxu0 0.0
      %6589 = vmatprep.subr.mxu0 0.0
      %6590 = vmatpush1.msra.mxu0 0.0
      %6591 = vmatprep.subr.mxu0 0.0
      %6592 = vmatpush1.msra.mxu0 0.0
      %6593 = vmatprep.subr.mxu0 0.0
      %6594 = vmatpush1.msra.mxu0 0.0
      %6595 = vmatprep.subr.mxu0 0.0
      %6596 = vmatpush1.msra.mxu0 0.0
      %6597 = vmatprep.subr.mxu0 0.0
      %6598 = vmatpush1.msra.mxu0 0.0
      %6599 = vmatprep.subr.mxu0 0.0
      %6600 = vmatpush1.msra.mxu0 0.0
      %6601 = vmatprep.subr.mxu0 0.0
      %6602 = vmatpush1.msra.mxu0 0.0
      %6603 = vmatprep.subr.mxu0 0.0
      %6604 = vmatpush1.msra.mxu0 0.0
      %6605 = vmatprep.subr.mxu0 0.0
      %6606 = vmatpush1.msra.mxu0 0.0
      %6607 = vmatprep.subr.mxu0 0.0
      %6608 = vmatpush1.msra.mxu0 0.0
      %6609 = vmatprep.subr.mxu0 0.0
      %6610 = vmatpush1.msra.mxu0 0.0
      %6611 = vmatprep.subr.mxu0 0.0
      %6612 = vmatpush1.msra.mxu0 0.0
      %6613 = vmatprep.subr.mxu0 0.0
      %6614 = vmatpush1.msra.mxu0 0.0
      %6615 = vmatprep.mubr.f32.mxu0 0.0
      %v6616 = vand.u32 %v5835, 4294901760
      %6617 = vmatmul.mubr.f32.gmra.mrb[0].mxu0 %v6616
      %v6618 = vpop.f32.mrb[0].mxu0
      %v6619 = vadd.f32 %v6442, %v6618
      %v6620 = vpop.f32.mrb[0].mxu0
      %v6621 = vadd.f32 %v6444, %v6620
      %6622 = vmatprep.mubr.f32.mxu0 0.0
      %v6623 = vand.u32 %v5836, 4294901760
      %6624 = vmatmul.mubr.f32.gmra.mrb[0].mxu0 %v6623
      %v6625 = vpop.f32.mrb[0].mxu0
      %v6626 = vadd.f32 %v6451, %v6625
      %v6627 = vpop.f32.mrb[0].mxu0
      %v6628 = vadd.f32 %v6453, %v6627
      %6629 = vdwg.mxu0
      %v6630 = vand.u32 %v268, 4294901760
      %6631 = vmatprep.subr.mxu0 %v6630
      %v6632 = vand.u32 %v267, 4294901760
      %6633 = vmatpush1.msra.mxu0 %v6632
      %v6634 = vand.u32 %v272, 4294901760
      %6635 = vmatprep.subr.mxu0 %v6634
      %v6636 = vand.u32 %v271, 4294901760
      %6637 = vmatpush1.msra.mxu0 %v6636
      %v6638 = vand.u32 %v276, 4294901760
      %6639 = vmatprep.subr.mxu0 %v6638
      %v6640 = vand.u32 %v275, 4294901760
      %6641 = vmatpush1.msra.mxu0 %v6640
      %v6642 = vand.u32 %v280, 4294901760
      %6643 = vmatprep.subr.mxu0 %v6642
      %v6644 = vand.u32 %v279, 4294901760
      %6645 = vmatpush1.msra.mxu0 %v6644
      %v6646 = vand.u32 %v284, 4294901760
      %6647 = vmatprep.subr.mxu0 %v6646
      %v6648 = vand.u32 %v283, 4294901760
      %6649 = vmatpush1.msra.mxu0 %v6648
      %v6650 = vand.u32 %v288, 4294901760
      %6651 = vmatprep.subr.mxu0 %v6650
      %v6652 = vand.u32 %v287, 4294901760
      %6653 = vmatpush1.msra.mxu0 %v6652
      %v6654 = vand.u32 %v292, 4294901760
      %6655 = vmatprep.subr.mxu0 %v6654
      %v6656 = vand.u32 %v291, 4294901760
      %6657 = vmatpush1.msra.mxu0 %v6656
      %v6658 = vand.u32 %v296, 4294901760
      %6659 = vmatprep.subr.mxu0 %v6658
      %v6660 = vand.u32 %v295, 4294901760
      %6661 = vmatpush1.msra.mxu0 %v6660
      %v6662 = vand.u32 %v300, 4294901760
      %6663 = vmatprep.subr.mxu0 %v6662
      %v6664 = vand.u32 %v299, 4294901760
      %6665 = vmatpush1.msra.mxu0 %v6664
      %v6666 = vand.u32 %v304, 4294901760
      %6667 = vmatprep.subr.mxu0 %v6666
      %v6668 = vand.u32 %v303, 4294901760
      %6669 = vmatpush1.msra.mxu0 %v6668
      %v6670 = vand.u32 %v308, 4294901760
      %6671 = vmatprep.subr.mxu0 %v6670
      %v6672 = vand.u32 %v307, 4294901760
      %6673 = vmatpush1.msra.mxu0 %v6672
      %v6674 = vand.u32 %v312, 4294901760
      %6675 = vmatprep.subr.mxu0 %v6674
      %v6676 = vand.u32 %v311, 4294901760
      %6677 = vmatpush1.msra.mxu0 %v6676
      %v6678 = vand.u32 %v316, 4294901760
      %6679 = vmatprep.subr.mxu0 %v6678
      %v6680 = vand.u32 %v315, 4294901760
      %6681 = vmatpush1.msra.mxu0 %v6680
      %v6682 = vand.u32 %v320, 4294901760
      %6683 = vmatprep.subr.mxu0 %v6682
      %v6684 = vand.u32 %v319, 4294901760
      %6685 = vmatpush1.msra.mxu0 %v6684
      %v6686 = vand.u32 %v324, 4294901760
      %6687 = vmatprep.subr.mxu0 %v6686
      %v6688 = vand.u32 %v323, 4294901760
      %6689 = vmatpush1.msra.mxu0 %v6688
      %v6690 = vand.u32 %v328, 4294901760
      %6691 = vmatprep.subr.mxu0 %v6690
      %v6692 = vand.u32 %v327, 4294901760
      %6693 = vmatpush1.msra.mxu0 %v6692
      %6694 = vmatprep.subr.mxu0 0.0
      %6695 = vmatpush1.msra.mxu0 0.0
      %6696 = vmatprep.subr.mxu0 0.0
      %6697 = vmatpush1.msra.mxu0 0.0
      %6698 = vmatprep.subr.mxu0 0.0
      %6699 = vmatpush1.msra.mxu0 0.0
      %6700 = vmatprep.subr.mxu0 0.0
      %6701 = vmatpush1.msra.mxu0 0.0
      %6702 = vmatprep.subr.mxu0 0.0
      %6703 = vmatpush1.msra.mxu0 0.0
      %6704 = vmatprep.subr.mxu0 0.0
      %6705 = vmatpush1.msra.mxu0 0.0
      %6706 = vmatprep.subr.mxu0 0.0
      %6707 = vmatpush1.msra.mxu0 0.0
      %6708 = vmatprep.subr.mxu0 0.0
      %6709 = vmatpush1.msra.mxu0 0.0
      %6710 = vmatprep.subr.mxu0 0.0
      %6711 = vmatpush1.msra.mxu0 0.0
      %6712 = vmatprep.subr.mxu0 0.0
      %6713 = vmatpush1.msra.mxu0 0.0
      %6714 = vmatprep.subr.mxu0 0.0
      %6715 = vmatpush1.msra.mxu0 0.0
      %6716 = vmatprep.subr.mxu0 0.0
      %6717 = vmatpush1.msra.mxu0 0.0
      %6718 = vmatprep.subr.mxu0 0.0
      %6719 = vmatpush1.msra.mxu0 0.0
      %6720 = vmatprep.subr.mxu0 0.0
      %6721 = vmatpush1.msra.mxu0 0.0
      %6722 = vmatprep.subr.mxu0 0.0
      %6723 = vmatpush1.msra.mxu0 0.0
      %6724 = vmatprep.subr.mxu0 0.0
      %6725 = vmatpush1.msra.mxu0 0.0
      %6726 = vmatprep.mubr.f32.mxu0 0.0
      %v6727 = vand.u32 %v5835, 4294901760
      %6728 = vmatmul.mubr.f32.gmra.mrb[0].mxu0 %v6727
      %v6729 = vpop.f32.mrb[0].mxu0
      %v6730 = vadd.f32 %v6619, %v6729
      %v6731 = vpop.f32.mrb[0].mxu0
      %v6732 = vadd.f32 %v6621, %v6731
      %6733 = vmatprep.mubr.f32.mxu0 0.0
      %v6734 = vand.u32 %v5836, 4294901760
      %6735 = vmatmul.mubr.f32.gmra.mrb[0].mxu0 %v6734
      %v6736 = vpop.f32.mrb[0].mxu0
      %v6737 = vadd.f32 %v6626, %v6736
      %v6738 = vpop.f32.mrb[0].mxu0
      %v6739 = vadd.f32 %v6628, %v6738
      %6740 = vdwg.mxu0
      %v6741 = vand.u32 %v270, 4294901760
      %6742 = vmatprep.subr.mxu0 %v6741
      %v6743 = vand.u32 %v269, 4294901760
      %6744 = vmatpush1.msra.mxu0 %v6743
      %v6745 = vand.u32 %v274, 4294901760
      %6746 = vmatprep.subr.mxu0 %v6745
      %v6747 = vand.u32 %v273, 4294901760
      %6748 = vmatpush1.msra.mxu0 %v6747
      %v6749 = vand.u32 %v278, 4294901760
      %6750 = vmatprep.subr.mxu0 %v6749
      %v6751 = vand.u32 %v277, 4294901760
      %6752 = vmatpush1.msra.mxu0 %v6751
      %v6753 = vand.u32 %v282, 4294901760
      %6754 = vmatprep.subr.mxu0 %v6753
      %v6755 = vand.u32 %v281, 4294901760
      %6756 = vmatpush1.msra.mxu0 %v6755
      %v6757 = vand.u32 %v286, 4294901760
      %6758 = vmatprep.subr.mxu0 %v6757
      %v6759 = vand.u32 %v285, 4294901760
      %6760 = vmatpush1.msra.mxu0 %v6759
      %v6761 = vand.u32 %v290, 4294901760
      %6762 = vmatprep.subr.mxu0 %v6761
      %v6763 = vand.u32 %v289, 4294901760
      %6764 = vmatpush1.msra.mxu0 %v6763
      %v6765 = vand.u32 %v294, 4294901760
      %6766 = vmatprep.subr.mxu0 %v6765
      %v6767 = vand.u32 %v293, 4294901760
      %6768 = vmatpush1.msra.mxu0 %v6767
      %v6769 = vand.u32 %v298, 4294901760
      %6770 = vmatprep.subr.mxu0 %v6769
      %v6771 = vand.u32 %v297, 4294901760
      %6772 = vmatpush1.msra.mxu0 %v6771
      %v6773 = vand.u32 %v302, 4294901760
      %6774 = vmatprep.subr.mxu0 %v6773
      %v6775 = vand.u32 %v301, 4294901760
      %6776 = vmatpush1.msra.mxu0 %v6775
      %v6777 = vand.u32 %v306, 4294901760
      %6778 = vmatprep.subr.mxu0 %v6777
      %v6779 = vand.u32 %v305, 4294901760
      %6780 = vmatpush1.msra.mxu0 %v6779
      %v6781 = vand.u32 %v310, 4294901760
      %6782 = vmatprep.subr.mxu0 %v6781
      %v6783 = vand.u32 %v309, 4294901760
      %6784 = vmatpush1.msra.mxu0 %v6783
      %v6785 = vand.u32 %v314, 4294901760
      %6786 = vmatprep.subr.mxu0 %v6785
      %v6787 = vand.u32 %v313, 4294901760
      %6788 = vmatpush1.msra.mxu0 %v6787
      %v6789 = vand.u32 %v318, 4294901760
      %6790 = vmatprep.subr.mxu0 %v6789
      %v6791 = vand.u32 %v317, 4294901760
      %6792 = vmatpush1.msra.mxu0 %v6791
      %v6793 = vand.u32 %v322, 4294901760
      %6794 = vmatprep.subr.mxu0 %v6793
      %v6795 = vand.u32 %v321, 4294901760
      %6796 = vmatpush1.msra.mxu0 %v6795
      %v6797 = vand.u32 %v326, 4294901760
      %6798 = vmatprep.subr.mxu0 %v6797
      %v6799 = vand.u32 %v325, 4294901760
      %6800 = vmatpush1.msra.mxu0 %v6799
      %v6801 = vand.u32 %v330, 4294901760
      %6802 = vmatprep.subr.mxu0 %v6801
      %v6803 = vand.u32 %v329, 4294901760
      %6804 = vmatpush1.msra.mxu0 %v6803
      %6805 = vmatprep.subr.mxu0 0.0
      %6806 = vmatpush1.msra.mxu0 0.0
      %6807 = vmatprep.subr.mxu0 0.0
      %6808 = vmatpush1.msra.mxu0 0.0
      %6809 = vmatprep.subr.mxu0 0.0
      %6810 = vmatpush1.msra.mxu0 0.0
      %6811 = vmatprep.subr.mxu0 0.0
      %6812 = vmatpush1.msra.mxu0 0.0
      %6813 = vmatprep.subr.mxu0 0.0
      %6814 = vmatpush1.msra.mxu0 0.0
      %6815 = vmatprep.subr.mxu0 0.0
      %6816 = vmatpush1.msra.mxu0 0.0
      %6817 = vmatprep.subr.mxu0 0.0
      %6818 = vmatpush1.msra.mxu0 0.0
      %6819 = vmatprep.subr.mxu0 0.0
      %6820 = vmatpush1.msra.mxu0 0.0
      %6821 = vmatprep.subr.mxu0 0.0
      %6822 = vmatpush1.msra.mxu0 0.0
      %6823 = vmatprep.subr.mxu0 0.0
      %6824 = vmatpush1.msra.mxu0 0.0
      %6825 = vmatprep.subr.mxu0 0.0
      %6826 = vmatpush1.msra.mxu0 0.0
      %6827 = vmatprep.subr.mxu0 0.0
      %6828 = vmatpush1.msra.mxu0 0.0
      %6829 = vmatprep.subr.mxu0 0.0
      %6830 = vmatpush1.msra.mxu0 0.0
      %6831 = vmatprep.subr.mxu0 0.0
      %6832 = vmatpush1.msra.mxu0 0.0
      %6833 = vmatprep.subr.mxu0 0.0
      %6834 = vmatpush1.msra.mxu0 0.0
      %6835 = vmatprep.subr.mxu0 0.0
      %6836 = vmatpush1.msra.mxu0 0.0
      %6837 = vmatprep.mubr.f32.mxu0 0.0
      %v6838 = vand.u32 %v5835, 4294901760
      %v6839 = vsub.f32 %v5835, %v6838
      %v6840 = vand.u32 %v6839, 4294901760
      %v6841 = vsub.f32 %v6839, %v6840
      %v6842 = vand.u32 %v6841, 4294901760
      %6843 = vmatmul.mubr.f32.gmra.mrb[0].mxu0 %v6842
      %v6844 = vpop.f32.mrb[0].mxu0
      %v6845 = vadd.f32 0.0, %v6844
      %v6846 = vpop.f32.mrb[0].mxu0
      %v6847 = vadd.f32 0.0, %v6846
      %6848 = vmatprep.mubr.f32.mxu0 0.0
      %v6849 = vand.u32 %v5836, 4294901760
      %v6850 = vsub.f32 %v5836, %v6849
      %v6851 = vand.u32 %v6850, 4294901760
      %v6852 = vsub.f32 %v6850, %v6851
      %v6853 = vand.u32 %v6852, 4294901760
      %6854 = vmatmul.mubr.f32.gmra.mrb[0].mxu0 %v6853
      %v6855 = vpop.f32.mrb[0].mxu0
      %v6856 = vadd.f32 0.0, %v6855
      %v6857 = vpop.f32.mrb[0].mxu0
      %v6858 = vadd.f32 0.0, %v6857
      %6859 = vdwg.mxu0
      %v6860 = vand.u32 %v270, 4294901760
      %v6861 = vsub.f32 %v270, %v6860
      %v6862 = vand.u32 %v6861, 4294901760
      %v6863 = vsub.f32 %v6861, %v6862
      %v6864 = vand.u32 %v6863, 4294901760
      %6865 = vmatprep.subr.mxu0 %v6864
      %v6866 = vand.u32 %v269, 4294901760
      %v6867 = vsub.f32 %v269, %v6866
      %v6868 = vand.u32 %v6867, 4294901760
      %v6869 = vsub.f32 %v6867, %v6868
      %v6870 = vand.u32 %v6869, 4294901760
      %6871 = vmatpush1.msra.mxu0 %v6870
      %v6872 = vand.u32 %v274, 4294901760
      %v6873 = vsub.f32 %v274, %v6872
      %v6874 = vand.u32 %v6873, 4294901760
      %v6875 = vsub.f32 %v6873, %v6874
      %v6876 = vand.u32 %v6875, 4294901760
      %6877 = vmatprep.subr.mxu0 %v6876
      %v6878 = vand.u32 %v273, 4294901760
      %v6879 = vsub.f32 %v273, %v6878
      %v6880 = vand.u32 %v6879, 4294901760
      %v6881 = vsub.f32 %v6879, %v6880
      %v6882 = vand.u32 %v6881, 4294901760
      %6883 = vmatpush1.msra.mxu0 %v6882
      %v6884 = vand.u32 %v278, 4294901760
      %v6885 = vsub.f32 %v278, %v6884
      %v6886 = vand.u32 %v6885, 4294901760
      %v6887 = vsub.f32 %v6885, %v6886
      %v6888 = vand.u32 %v6887, 4294901760
      %6889 = vmatprep.subr.mxu0 %v6888
      %v6890 = vand.u32 %v277, 4294901760
      %v6891 = vsub.f32 %v277, %v6890
      %v6892 = vand.u32 %v6891, 4294901760
      %v6893 = vsub.f32 %v6891, %v6892
      %v6894 = vand.u32 %v6893, 4294901760
      %6895 = vmatpush1.msra.mxu0 %v6894
      %v6896 = vand.u32 %v282, 4294901760
      %v6897 = vsub.f32 %v282, %v6896
      %v6898 = vand.u32 %v6897, 4294901760
      %v6899 = vsub.f32 %v6897, %v6898
      %v6900 = vand.u32 %v6899, 4294901760
      %6901 = vmatprep.subr.mxu0 %v6900
      %v6902 = vand.u32 %v281, 4294901760
      %v6903 = vsub.f32 %v281, %v6902
      %v6904 = vand.u32 %v6903, 4294901760
      %v6905 = vsub.f32 %v6903, %v6904
      %v6906 = vand.u32 %v6905, 4294901760
      %6907 = vmatpush1.msra.mxu0 %v6906
      %v6908 = vand.u32 %v286, 4294901760
      %v6909 = vsub.f32 %v286, %v6908
      %v6910 = vand.u32 %v6909, 4294901760
      %v6911 = vsub.f32 %v6909, %v6910
      %v6912 = vand.u32 %v6911, 4294901760
      %6913 = vmatprep.subr.mxu0 %v6912
      %v6914 = vand.u32 %v285, 4294901760
      %v6915 = vsub.f32 %v285, %v6914
      %v6916 = vand.u32 %v6915, 4294901760
      %v6917 = vsub.f32 %v6915, %v6916
      %v6918 = vand.u32 %v6917, 4294901760
      %6919 = vmatpush1.msra.mxu0 %v6918
      %v6920 = vand.u32 %v290, 4294901760
      %v6921 = vsub.f32 %v290, %v6920
      %v6922 = vand.u32 %v6921, 4294901760
      %v6923 = vsub.f32 %v6921, %v6922
      %v6924 = vand.u32 %v6923, 4294901760
      %6925 = vmatprep.subr.mxu0 %v6924
      %v6926 = vand.u32 %v289, 4294901760
      %v6927 = vsub.f32 %v289, %v6926
      %v6928 = vand.u32 %v6927, 4294901760
      %v6929 = vsub.f32 %v6927, %v6928
      %v6930 = vand.u32 %v6929, 4294901760
      %6931 = vmatpush1.msra.mxu0 %v6930
      %v6932 = vand.u32 %v294, 4294901760
      %v6933 = vsub.f32 %v294, %v6932
      %v6934 = vand.u32 %v6933, 4294901760
      %v6935 = vsub.f32 %v6933, %v6934
      %v6936 = vand.u32 %v6935, 4294901760
      %6937 = vmatprep.subr.mxu0 %v6936
      %v6938 = vand.u32 %v293, 4294901760
      %v6939 = vsub.f32 %v293, %v6938
      %v6940 = vand.u32 %v6939, 4294901760
      %v6941 = vsub.f32 %v6939, %v6940
      %v6942 = vand.u32 %v6941, 4294901760
      %6943 = vmatpush1.msra.mxu0 %v6942
      %v6944 = vand.u32 %v298, 4294901760
      %v6945 = vsub.f32 %v298, %v6944
      %v6946 = vand.u32 %v6945, 4294901760
      %v6947 = vsub.f32 %v6945, %v6946
      %v6948 = vand.u32 %v6947, 4294901760
      %6949 = vmatprep.subr.mxu0 %v6948
      %v6950 = vand.u32 %v297, 4294901760
      %v6951 = vsub.f32 %v297, %v6950
      %v6952 = vand.u32 %v6951, 4294901760
      %v6953 = vsub.f32 %v6951, %v6952
      %v6954 = vand.u32 %v6953, 4294901760
      %6955 = vmatpush1.msra.mxu0 %v6954
      %v6956 = vand.u32 %v302, 4294901760
      %v6957 = vsub.f32 %v302, %v6956
      %v6958 = vand.u32 %v6957, 4294901760
      %v6959 = vsub.f32 %v6957, %v6958
      %v6960 = vand.u32 %v6959, 4294901760
      %6961 = vmatprep.subr.mxu0 %v6960
      %v6962 = vand.u32 %v301, 4294901760
      %v6963 = vsub.f32 %v301, %v6962
      %v6964 = vand.u32 %v6963, 4294901760
      %v6965 = vsub.f32 %v6963, %v6964
      %v6966 = vand.u32 %v6965, 4294901760
      %6967 = vmatpush1.msra.mxu0 %v6966
      %v6968 = vand.u32 %v306, 4294901760
      %v6969 = vsub.f32 %v306, %v6968
      %v6970 = vand.u32 %v6969, 4294901760
      %v6971 = vsub.f32 %v6969, %v6970
      %v6972 = vand.u32 %v6971, 4294901760
      %6973 = vmatprep.subr.mxu0 %v6972
      %v6974 = vand.u32 %v305, 4294901760
      %v6975 = vsub.f32 %v305, %v6974
      %v6976 = vand.u32 %v6975, 4294901760
      %v6977 = vsub.f32 %v6975, %v6976
      %v6978 = vand.u32 %v6977, 4294901760
      %6979 = vmatpush1.msra.mxu0 %v6978
      %v6980 = vand.u32 %v310, 4294901760
      %v6981 = vsub.f32 %v310, %v6980
      %v6982 = vand.u32 %v6981, 4294901760
      %v6983 = vsub.f32 %v6981, %v6982
      %v6984 = vand.u32 %v6983, 4294901760
      %6985 = vmatprep.subr.mxu0 %v6984
      %v6986 = vand.u32 %v309, 4294901760
      %v6987 = vsub.f32 %v309, %v6986
      %v6988 = vand.u32 %v6987, 4294901760
      %v6989 = vsub.f32 %v6987, %v6988
      %v6990 = vand.u32 %v6989, 4294901760
      %6991 = vmatpush1.msra.mxu0 %v6990
      %v6992 = vand.u32 %v314, 4294901760
      %v6993 = vsub.f32 %v314, %v6992
      %v6994 = vand.u32 %v6993, 4294901760
      %v6995 = vsub.f32 %v6993, %v6994
      %v6996 = vand.u32 %v6995, 4294901760
      %6997 = vmatprep.subr.mxu0 %v6996
      %v6998 = vand.u32 %v313, 4294901760
      %v6999 = vsub.f32 %v313, %v6998
      %v7000 = vand.u32 %v6999, 4294901760
      %v7001 = vsub.f32 %v6999, %v7000
      %v7002 = vand.u32 %v7001, 4294901760
      %7003 = vmatpush1.msra.mxu0 %v7002
      %v7004 = vand.u32 %v318, 4294901760
      %v7005 = vsub.f32 %v318, %v7004
      %v7006 = vand.u32 %v7005, 4294901760
      %v7007 = vsub.f32 %v7005, %v7006
      %v7008 = vand.u32 %v7007, 4294901760
      %7009 = vmatprep.subr.mxu0 %v7008
      %v7010 = vand.u32 %v317, 4294901760
      %v7011 = vsub.f32 %v317, %v7010
      %v7012 = vand.u32 %v7011, 4294901760
      %v7013 = vsub.f32 %v7011, %v7012
      %v7014 = vand.u32 %v7013, 4294901760
      %7015 = vmatpush1.msra.mxu0 %v7014
      %v7016 = vand.u32 %v322, 4294901760
      %v7017 = vsub.f32 %v322, %v7016
      %v7018 = vand.u32 %v7017, 4294901760
      %v7019 = vsub.f32 %v7017, %v7018
      %v7020 = vand.u32 %v7019, 4294901760
      %7021 = vmatprep.subr.mxu0 %v7020
      %v7022 = vand.u32 %v321, 4294901760
      %v7023 = vsub.f32 %v321, %v7022
      %v7024 = vand.u32 %v7023, 4294901760
      %v7025 = vsub.f32 %v7023, %v7024
      %v7026 = vand.u32 %v7025, 4294901760
      %7027 = vmatpush1.msra.mxu0 %v7026
      %v7028 = vand.u32 %v326, 4294901760
      %v7029 = vsub.f32 %v326, %v7028
      %v7030 = vand.u32 %v7029, 4294901760
      %v7031 = vsub.f32 %v7029, %v7030
      %v7032 = vand.u32 %v7031, 4294901760
      %7033 = vmatprep.subr.mxu0 %v7032
      %v7034 = vand.u32 %v325, 4294901760
      %v7035 = vsub.f32 %v325, %v7034
      %v7036 = vand.u32 %v7035, 4294901760
      %v7037 = vsub.f32 %v7035, %v7036
      %v7038 = vand.u32 %v7037, 4294901760
      %7039 = vmatpush1.msra.mxu0 %v7038
      %v7040 = vand.u32 %v330, 4294901760
      %v7041 = vsub.f32 %v330, %v7040
      %v7042 = vand.u32 %v7041, 4294901760
      %v7043 = vsub.f32 %v7041, %v7042
      %v7044 = vand.u32 %v7043, 4294901760
      %7045 = vmatprep.subr.mxu0 %v7044
      %v7046 = vand.u32 %v329, 4294901760
      %v7047 = vsub.f32 %v329, %v7046
      %v7048 = vand.u32 %v7047, 4294901760
      %v7049 = vsub.f32 %v7047, %v7048
      %v7050 = vand.u32 %v7049, 4294901760
      %7051 = vmatpush1.msra.mxu0 %v7050
      %7052 = vmatprep.subr.mxu0 0.0
      %7053 = vmatpush1.msra.mxu0 0.0
      %7054 = vmatprep.subr.mxu0 0.0
      %7055 = vmatpush1.msra.mxu0 0.0
      %7056 = vmatprep.subr.mxu0 0.0
      %7057 = vmatpush1.msra.mxu0 0.0
      %7058 = vmatprep.subr.mxu0 0.0
      %7059 = vmatpush1.msra.mxu0 0.0
      %7060 = vmatprep.subr.mxu0 0.0
      %7061 = vmatpush1.msra.mxu0 0.0
      %7062 = vmatprep.subr.mxu0 0.0
      %7063 = vmatpush1.msra.mxu0 0.0
      %7064 = vmatprep.subr.mxu0 0.0
      %7065 = vmatpush1.msra.mxu0 0.0
      %7066 = vmatprep.subr.mxu0 0.0
      %7067 = vmatpush1.msra.mxu0 0.0
      %7068 = vmatprep.subr.mxu0 0.0
      %7069 = vmatpush1.msra.mxu0 0.0
      %7070 = vmatprep.subr.mxu0 0.0
      %7071 = vmatpush1.msra.mxu0 0.0
      %7072 = vmatprep.subr.mxu0 0.0
      %7073 = vmatpush1.msra.mxu0 0.0
      %7074 = vmatprep.subr.mxu0 0.0
      %7075 = vmatpush1.msra.mxu0 0.0
      %7076 = vmatprep.subr.mxu0 0.0
      %7077 = vmatpush1.msra.mxu0 0.0
      %7078 = vmatprep.subr.mxu0 0.0
      %7079 = vmatpush1.msra.mxu0 0.0
      %7080 = vmatprep.subr.mxu0 0.0
      %7081 = vmatpush1.msra.mxu0 0.0
      %7082 = vmatprep.subr.mxu0 0.0
      %7083 = vmatpush1.msra.mxu0 0.0
      %7084 = vmatprep.mubr.f32.mxu0 0.0
      %v7085 = vand.u32 %v5835, 4294901760
      %7086 = vmatmul.mubr.f32.gmra.mrb[0].mxu0 %v7085
      %v7087 = vpop.f32.mrb[0].mxu0
      %v7088 = vadd.f32 %v6845, %v7087
      %v7089 = vpop.f32.mrb[0].mxu0
      %v7090 = vadd.f32 %v6847, %v7089
      %7091 = vmatprep.mubr.f32.mxu0 0.0
      %v7092 = vand.u32 %v5836, 4294901760
      %7093 = vmatmul.mubr.f32.gmra.mrb[0].mxu0 %v7092
      %v7094 = vpop.f32.mrb[0].mxu0
      %v7095 = vadd.f32 %v6856, %v7094
      %v7096 = vpop.f32.mrb[0].mxu0
      %v7097 = vadd.f32 %v6858, %v7096
      %7098 = vdwg.mxu0
      %v7099 = vand.u32 %v270, 4294901760
      %v7100 = vsub.f32 %v270, %v7099
      %7101 = vmatprep.subr.mxu0 %v7100
      %v7102 = vand.u32 %v269, 4294901760
      %v7103 = vsub.f32 %v269, %v7102
      %7104 = vmatpush1.msra.mxu0 %v7103
      %v7105 = vand.u32 %v274, 4294901760
      %v7106 = vsub.f32 %v274, %v7105
      %7107 = vmatprep.subr.mxu0 %v7106
      %v7108 = vand.u32 %v273, 4294901760
      %v7109 = vsub.f32 %v273, %v7108
      %7110 = vmatpush1.msra.mxu0 %v7109
      %v7111 = vand.u32 %v278, 4294901760
      %v7112 = vsub.f32 %v278, %v7111
      %7113 = vmatprep.subr.mxu0 %v7112
      %v7114 = vand.u32 %v277, 4294901760
      %v7115 = vsub.f32 %v277, %v7114
      %7116 = vmatpush1.msra.mxu0 %v7115
      %v7117 = vand.u32 %v282, 4294901760
      %v7118 = vsub.f32 %v282, %v7117
      %7119 = vmatprep.subr.mxu0 %v7118
      %v7120 = vand.u32 %v281, 4294901760
      %v7121 = vsub.f32 %v281, %v7120
      %7122 = vmatpush1.msra.mxu0 %v7121
      %v7123 = vand.u32 %v286, 4294901760
      %v7124 = vsub.f32 %v286, %v7123
      %7125 = vmatprep.subr.mxu0 %v7124
      %v7126 = vand.u32 %v285, 4294901760
      %v7127 = vsub.f32 %v285, %v7126
      %7128 = vmatpush1.msra.mxu0 %v7127
      %v7129 = vand.u32 %v290, 4294901760
      %v7130 = vsub.f32 %v290, %v7129
      %7131 = vmatprep.subr.mxu0 %v7130
      %v7132 = vand.u32 %v289, 4294901760
      %v7133 = vsub.f32 %v289, %v7132
      %7134 = vmatpush1.msra.mxu0 %v7133
      %v7135 = vand.u32 %v294, 4294901760
      %v7136 = vsub.f32 %v294, %v7135
      %7137 = vmatprep.subr.mxu0 %v7136
      %v7138 = vand.u32 %v293, 4294901760
      %v7139 = vsub.f32 %v293, %v7138
      %7140 = vmatpush1.msra.mxu0 %v7139
      %v7141 = vand.u32 %v298, 4294901760
      %v7142 = vsub.f32 %v298, %v7141
      %7143 = vmatprep.subr.mxu0 %v7142
      %v7144 = vand.u32 %v297, 4294901760
      %v7145 = vsub.f32 %v297, %v7144
      %7146 = vmatpush1.msra.mxu0 %v7145
      %v7147 = vand.u32 %v302, 4294901760
      %v7148 = vsub.f32 %v302, %v7147
      %7149 = vmatprep.subr.mxu0 %v7148
      %v7150 = vand.u32 %v301, 4294901760
      %v7151 = vsub.f32 %v301, %v7150
      %7152 = vmatpush1.msra.mxu0 %v7151
      %v7153 = vand.u32 %v306, 4294901760
      %v7154 = vsub.f32 %v306, %v7153
      %7155 = vmatprep.subr.mxu0 %v7154
      %v7156 = vand.u32 %v305, 4294901760
      %v7157 = vsub.f32 %v305, %v7156
      %7158 = vmatpush1.msra.mxu0 %v7157
      %v7159 = vand.u32 %v310, 4294901760
      %v7160 = vsub.f32 %v310, %v7159
      %7161 = vmatprep.subr.mxu0 %v7160
      %v7162 = vand.u32 %v309, 4294901760
      %v7163 = vsub.f32 %v309, %v7162
      %7164 = vmatpush1.msra.mxu0 %v7163
      %v7165 = vand.u32 %v314, 4294901760
      %v7166 = vsub.f32 %v314, %v7165
      %7167 = vmatprep.subr.mxu0 %v7166
      %v7168 = vand.u32 %v313, 4294901760
      %v7169 = vsub.f32 %v313, %v7168
      %7170 = vmatpush1.msra.mxu0 %v7169
      %v7171 = vand.u32 %v318, 4294901760
      %v7172 = vsub.f32 %v318, %v7171
      %7173 = vmatprep.subr.mxu0 %v7172
      %v7174 = vand.u32 %v317, 4294901760
      %v7175 = vsub.f32 %v317, %v7174
      %7176 = vmatpush1.msra.mxu0 %v7175
      %v7177 = vand.u32 %v322, 4294901760
      %v7178 = vsub.f32 %v322, %v7177
      %7179 = vmatprep.subr.mxu0 %v7178
      %v7180 = vand.u32 %v321, 4294901760
      %v7181 = vsub.f32 %v321, %v7180
      %7182 = vmatpush1.msra.mxu0 %v7181
      %v7183 = vand.u32 %v326, 4294901760
      %v7184 = vsub.f32 %v326, %v7183
      %7185 = vmatprep.subr.mxu0 %v7184
      %v7186 = vand.u32 %v325, 4294901760
      %v7187 = vsub.f32 %v325, %v7186
      %7188 = vmatpush1.msra.mxu0 %v7187
      %v7189 = vand.u32 %v330, 4294901760
      %v7190 = vsub.f32 %v330, %v7189
      %7191 = vmatprep.subr.mxu0 %v7190
      %v7192 = vand.u32 %v329, 4294901760
      %v7193 = vsub.f32 %v329, %v7192
      %7194 = vmatpush1.msra.mxu0 %v7193
      %7195 = vmatprep.subr.mxu0 0.0
      %7196 = vmatpush1.msra.mxu0 0.0
      %7197 = vmatprep.subr.mxu0 0.0
      %7198 = vmatpush1.msra.mxu0 0.0
      %7199 = vmatprep.subr.mxu0 0.0
      %7200 = vmatpush1.msra.mxu0 0.0
      %7201 = vmatprep.subr.mxu0 0.0
      %7202 = vmatpush1.msra.mxu0 0.0
      %7203 = vmatprep.subr.mxu0 0.0
      %7204 = vmatpush1.msra.mxu0 0.0
      %7205 = vmatprep.subr.mxu0 0.0
      %7206 = vmatpush1.msra.mxu0 0.0
      %7207 = vmatprep.subr.mxu0 0.0
      %7208 = vmatpush1.msra.mxu0 0.0
      %7209 = vmatprep.subr.mxu0 0.0
      %7210 = vmatpush1.msra.mxu0 0.0
      %7211 = vmatprep.subr.mxu0 0.0
      %7212 = vmatpush1.msra.mxu0 0.0
      %7213 = vmatprep.subr.mxu0 0.0
      %7214 = vmatpush1.msra.mxu0 0.0
      %7215 = vmatprep.subr.mxu0 0.0
      %7216 = vmatpush1.msra.mxu0 0.0
      %7217 = vmatprep.subr.mxu0 0.0
      %7218 = vmatpush1.msra.mxu0 0.0
      %7219 = vmatprep.subr.mxu0 0.0
      %7220 = vmatpush1.msra.mxu0 0.0
      %7221 = vmatprep.subr.mxu0 0.0
      %7222 = vmatpush1.msra.mxu0 0.0
      %7223 = vmatprep.subr.mxu0 0.0
      %7224 = vmatpush1.msra.mxu0 0.0
      %7225 = vmatprep.subr.mxu0 0.0
      %7226 = vmatpush1.msra.mxu0 0.0
      %7227 = vmatprep.mubr.f32.mxu0 0.0
      %v7228 = vand.u32 %v5835, 4294901760
      %v7229 = vsub.f32 %v5835, %v7228
      %7230 = vmatmul.mubr.f32.gmra.mrb[0].mxu0 %v7229
      %v7231 = vpop.f32.mrb[0].mxu0
      %v7232 = vadd.f32 %v7088, %v7231
      %v7233 = vpop.f32.mrb[0].mxu0
      %v7234 = vadd.f32 %v7090, %v7233
      %7235 = vmatprep.mubr.f32.mxu0 0.0
      %v7236 = vand.u32 %v5836, 4294901760
      %v7237 = vsub.f32 %v5836, %v7236
      %7238 = vmatmul.mubr.f32.gmra.mrb[0].mxu0 %v7237
      %v7239 = vpop.f32.mrb[0].mxu0
      %v7240 = vadd.f32 %v7095, %v7239
      %v7241 = vpop.f32.mrb[0].mxu0
      %v7242 = vadd.f32 %v7097, %v7241
      %7243 = vdwg.mxu0
      %v7244 = vand.u32 %v270, 4294901760
      %7245 = vmatprep.subr.mxu0 %v7244
      %v7246 = vand.u32 %v269, 4294901760
      %7247 = vmatpush1.msra.mxu0 %v7246
      %v7248 = vand.u32 %v274, 4294901760
      %7249 = vmatprep.subr.mxu0 %v7248
      %v7250 = vand.u32 %v273, 4294901760
      %7251 = vmatpush1.msra.mxu0 %v7250
      %v7252 = vand.u32 %v278, 4294901760
      %7253 = vmatprep.subr.mxu0 %v7252
      %v7254 = vand.u32 %v277, 4294901760
      %7255 = vmatpush1.msra.mxu0 %v7254
      %v7256 = vand.u32 %v282, 4294901760
      %7257 = vmatprep.subr.mxu0 %v7256
      %v7258 = vand.u32 %v281, 4294901760
      %7259 = vmatpush1.msra.mxu0 %v7258
      %v7260 = vand.u32 %v286, 4294901760
      %7261 = vmatprep.subr.mxu0 %v7260
      %v7262 = vand.u32 %v285, 4294901760
      %7263 = vmatpush1.msra.mxu0 %v7262
      %v7264 = vand.u32 %v290, 4294901760
      %7265 = vmatprep.subr.mxu0 %v7264
      %v7266 = vand.u32 %v289, 4294901760
      %7267 = vmatpush1.msra.mxu0 %v7266
      %v7268 = vand.u32 %v294, 4294901760
      %7269 = vmatprep.subr.mxu0 %v7268
      %v7270 = vand.u32 %v293, 4294901760
      %7271 = vmatpush1.msra.mxu0 %v7270
      %v7272 = vand.u32 %v298, 4294901760
      %7273 = vmatprep.subr.mxu0 %v7272
      %v7274 = vand.u32 %v297, 4294901760
      %7275 = vmatpush1.msra.mxu0 %v7274
      %v7276 = vand.u32 %v302, 4294901760
      %7277 = vmatprep.subr.mxu0 %v7276
      %v7278 = vand.u32 %v301, 4294901760
      %7279 = vmatpush1.msra.mxu0 %v7278
      %v7280 = vand.u32 %v306, 4294901760
      %7281 = vmatprep.subr.mxu0 %v7280
      %v7282 = vand.u32 %v305, 4294901760
      %7283 = vmatpush1.msra.mxu0 %v7282
      %v7284 = vand.u32 %v310, 4294901760
      %7285 = vmatprep.subr.mxu0 %v7284
      %v7286 = vand.u32 %v309, 4294901760
      %7287 = vmatpush1.msra.mxu0 %v7286
      %v7288 = vand.u32 %v314, 4294901760
      %7289 = vmatprep.subr.mxu0 %v7288
      %v7290 = vand.u32 %v313, 4294901760
      %7291 = vmatpush1.msra.mxu0 %v7290
      %v7292 = vand.u32 %v318, 4294901760
      %7293 = vmatprep.subr.mxu0 %v7292
      %v7294 = vand.u32 %v317, 4294901760
      %7295 = vmatpush1.msra.mxu0 %v7294
      %v7296 = vand.u32 %v322, 4294901760
      %7297 = vmatprep.subr.mxu0 %v7296
      %v7298 = vand.u32 %v321, 4294901760
      %7299 = vmatpush1.msra.mxu0 %v7298
      %v7300 = vand.u32 %v326, 4294901760
      %7301 = vmatprep.subr.mxu0 %v7300
      %v7302 = vand.u32 %v325, 4294901760
      %7303 = vmatpush1.msra.mxu0 %v7302
      %v7304 = vand.u32 %v330, 4294901760
      %7305 = vmatprep.subr.mxu0 %v7304
      %v7306 = vand.u32 %v329, 4294901760
      %7307 = vmatpush1.msra.mxu0 %v7306
      %7308 = vmatprep.subr.mxu0 0.0
      %7309 = vmatpush1.msra.mxu0 0.0
      %7310 = vmatprep.subr.mxu0 0.0
      %7311 = vmatpush1.msra.mxu0 0.0
      %7312 = vmatprep.subr.mxu0 0.0
      %7313 = vmatpush1.msra.mxu0 0.0
      %7314 = vmatprep.subr.mxu0 0.0
      %7315 = vmatpush1.msra.mxu0 0.0
      %7316 = vmatprep.subr.mxu0 0.0
      %7317 = vmatpush1.msra.mxu0 0.0
      %7318 = vmatprep.subr.mxu0 0.0
      %7319 = vmatpush1.msra.mxu0 0.0
      %7320 = vmatprep.subr.mxu0 0.0
      %7321 = vmatpush1.msra.mxu0 0.0
      %7322 = vmatprep.subr.mxu0 0.0
      %7323 = vmatpush1.msra.mxu0 0.0
      %7324 = vmatprep.subr.mxu0 0.0
      %7325 = vmatpush1.msra.mxu0 0.0
      %7326 = vmatprep.subr.mxu0 0.0
      %7327 = vmatpush1.msra.mxu0 0.0
      %7328 = vmatprep.subr.mxu0 0.0
      %7329 = vmatpush1.msra.mxu0 0.0
      %7330 = vmatprep.subr.mxu0 0.0
      %7331 = vmatpush1.msra.mxu0 0.0
      %7332 = vmatprep.subr.mxu0 0.0
      %7333 = vmatpush1.msra.mxu0 0.0
      %7334 = vmatprep.subr.mxu0 0.0
      %7335 = vmatpush1.msra.mxu0 0.0
      %7336 = vmatprep.subr.mxu0 0.0
      %7337 = vmatpush1.msra.mxu0 0.0
      %7338 = vmatprep.subr.mxu0 0.0
      %7339 = vmatpush1.msra.mxu0 0.0
      %7340 = vmatprep.mubr.f32.mxu0 0.0
      %v7341 = vand.u32 %v5835, 4294901760
      %v7342 = vsub.f32 %v5835, %v7341
      %v7343 = vand.u32 %v7342, 4294901760
      %7344 = vmatmul.mubr.f32.gmra.mrb[0].mxu0 %v7343
      %v7345 = vpop.f32.mrb[0].mxu0
      %v7346 = vadd.f32 %v7232, %v7345
      %v7347 = vpop.f32.mrb[0].mxu0
      %v7348 = vadd.f32 %v7234, %v7347
      %7349 = vmatprep.mubr.f32.mxu0 0.0
      %v7350 = vand.u32 %v5836, 4294901760
      %v7351 = vsub.f32 %v5836, %v7350
      %v7352 = vand.u32 %v7351, 4294901760
      %7353 = vmatmul.mubr.f32.gmra.mrb[0].mxu0 %v7352
      %v7354 = vpop.f32.mrb[0].mxu0
      %v7355 = vadd.f32 %v7240, %v7354
      %v7356 = vpop.f32.mrb[0].mxu0
      %v7357 = vadd.f32 %v7242, %v7356
      %7358 = vdwg.mxu0
      %v7359 = vand.u32 %v270, 4294901760
      %v7360 = vsub.f32 %v270, %v7359
      %v7361 = vand.u32 %v7360, 4294901760
      %7362 = vmatprep.subr.mxu0 %v7361
      %v7363 = vand.u32 %v269, 4294901760
      %v7364 = vsub.f32 %v269, %v7363
      %v7365 = vand.u32 %v7364, 4294901760
      %7366 = vmatpush1.msra.mxu0 %v7365
      %v7367 = vand.u32 %v274, 4294901760
      %v7368 = vsub.f32 %v274, %v7367
      %v7369 = vand.u32 %v7368, 4294901760
      %7370 = vmatprep.subr.mxu0 %v7369
      %v7371 = vand.u32 %v273, 4294901760
      %v7372 = vsub.f32 %v273, %v7371
      %v7373 = vand.u32 %v7372, 4294901760
      %7374 = vmatpush1.msra.mxu0 %v7373
      %v7375 = vand.u32 %v278, 4294901760
      %v7376 = vsub.f32 %v278, %v7375
      %v7377 = vand.u32 %v7376, 4294901760
      %7378 = vmatprep.subr.mxu0 %v7377
      %v7379 = vand.u32 %v277, 4294901760
      %v7380 = vsub.f32 %v277, %v7379
      %v7381 = vand.u32 %v7380, 4294901760
      %7382 = vmatpush1.msra.mxu0 %v7381
      %v7383 = vand.u32 %v282, 4294901760
      %v7384 = vsub.f32 %v282, %v7383
      %v7385 = vand.u32 %v7384, 4294901760
      %7386 = vmatprep.subr.mxu0 %v7385
      %v7387 = vand.u32 %v281, 4294901760
      %v7388 = vsub.f32 %v281, %v7387
      %v7389 = vand.u32 %v7388, 4294901760
      %7390 = vmatpush1.msra.mxu0 %v7389
      %v7391 = vand.u32 %v286, 4294901760
      %v7392 = vsub.f32 %v286, %v7391
      %v7393 = vand.u32 %v7392, 4294901760
      %7394 = vmatprep.subr.mxu0 %v7393
      %v7395 = vand.u32 %v285, 4294901760
      %v7396 = vsub.f32 %v285, %v7395
      %v7397 = vand.u32 %v7396, 4294901760
      %7398 = vmatpush1.msra.mxu0 %v7397
      %v7399 = vand.u32 %v290, 4294901760
      %v7400 = vsub.f32 %v290, %v7399
      %v7401 = vand.u32 %v7400, 4294901760
      %7402 = vmatprep.subr.mxu0 %v7401
      %v7403 = vand.u32 %v289, 4294901760
      %v7404 = vsub.f32 %v289, %v7403
      %v7405 = vand.u32 %v7404, 4294901760
      %7406 = vmatpush1.msra.mxu0 %v7405
      %v7407 = vand.u32 %v294, 4294901760
      %v7408 = vsub.f32 %v294, %v7407
      %v7409 = vand.u32 %v7408, 4294901760
      %7410 = vmatprep.subr.mxu0 %v7409
      %v7411 = vand.u32 %v293, 4294901760
      %v7412 = vsub.f32 %v293, %v7411
      %v7413 = vand.u32 %v7412, 4294901760
      %7414 = vmatpush1.msra.mxu0 %v7413
      %v7415 = vand.u32 %v298, 4294901760
      %v7416 = vsub.f32 %v298, %v7415
      %v7417 = vand.u32 %v7416, 4294901760
      %7418 = vmatprep.subr.mxu0 %v7417
      %v7419 = vand.u32 %v297, 4294901760
      %v7420 = vsub.f32 %v297, %v7419
      %v7421 = vand.u32 %v7420, 4294901760
      %7422 = vmatpush1.msra.mxu0 %v7421
      %v7423 = vand.u32 %v302, 4294901760
      %v7424 = vsub.f32 %v302, %v7423
      %v7425 = vand.u32 %v7424, 4294901760
      %7426 = vmatprep.subr.mxu0 %v7425
      %v7427 = vand.u32 %v301, 4294901760
      %v7428 = vsub.f32 %v301, %v7427
      %v7429 = vand.u32 %v7428, 4294901760
      %7430 = vmatpush1.msra.mxu0 %v7429
      %v7431 = vand.u32 %v306, 4294901760
      %v7432 = vsub.f32 %v306, %v7431
      %v7433 = vand.u32 %v7432, 4294901760
      %7434 = vmatprep.subr.mxu0 %v7433
      %v7435 = vand.u32 %v305, 4294901760
      %v7436 = vsub.f32 %v305, %v7435
      %v7437 = vand.u32 %v7436, 4294901760
      %7438 = vmatpush1.msra.mxu0 %v7437
      %v7439 = vand.u32 %v310, 4294901760
      %v7440 = vsub.f32 %v310, %v7439
      %v7441 = vand.u32 %v7440, 4294901760
      %7442 = vmatprep.subr.mxu0 %v7441
      %v7443 = vand.u32 %v309, 4294901760
      %v7444 = vsub.f32 %v309, %v7443
      %v7445 = vand.u32 %v7444, 4294901760
      %7446 = vmatpush1.msra.mxu0 %v7445
      %v7447 = vand.u32 %v314, 4294901760
      %v7448 = vsub.f32 %v314, %v7447
      %v7449 = vand.u32 %v7448, 4294901760
      %7450 = vmatprep.subr.mxu0 %v7449
      %v7451 = vand.u32 %v313, 4294901760
      %v7452 = vsub.f32 %v313, %v7451
      %v7453 = vand.u32 %v7452, 4294901760
      %7454 = vmatpush1.msra.mxu0 %v7453
      %v7455 = vand.u32 %v318, 4294901760
      %v7456 = vsub.f32 %v318, %v7455
      %v7457 = vand.u32 %v7456, 4294901760
      %7458 = vmatprep.subr.mxu0 %v7457
      %v7459 = vand.u32 %v317, 4294901760
      %v7460 = vsub.f32 %v317, %v7459
      %v7461 = vand.u32 %v7460, 4294901760
      %7462 = vmatpush1.msra.mxu0 %v7461
      %v7463 = vand.u32 %v322, 4294901760
      %v7464 = vsub.f32 %v322, %v7463
      %v7465 = vand.u32 %v7464, 4294901760
      %7466 = vmatprep.subr.mxu0 %v7465
      %v7467 = vand.u32 %v321, 4294901760
      %v7468 = vsub.f32 %v321, %v7467
      %v7469 = vand.u32 %v7468, 4294901760
      %7470 = vmatpush1.msra.mxu0 %v7469
      %v7471 = vand.u32 %v326, 4294901760
      %v7472 = vsub.f32 %v326, %v7471
      %v7473 = vand.u32 %v7472, 4294901760
      %7474 = vmatprep.subr.mxu0 %v7473
      %v7475 = vand.u32 %v325, 4294901760
      %v7476 = vsub.f32 %v325, %v7475
      %v7477 = vand.u32 %v7476, 4294901760
      %7478 = vmatpush1.msra.mxu0 %v7477
      %v7479 = vand.u32 %v330, 4294901760
      %v7480 = vsub.f32 %v330, %v7479
      %v7481 = vand.u32 %v7480, 4294901760
      %7482 = vmatprep.subr.mxu0 %v7481
      %v7483 = vand.u32 %v329, 4294901760
      %v7484 = vsub.f32 %v329, %v7483
      %v7485 = vand.u32 %v7484, 4294901760
      %7486 = vmatpush1.msra.mxu0 %v7485
      %7487 = vmatprep.subr.mxu0 0.0
      %7488 = vmatpush1.msra.mxu0 0.0
      %7489 = vmatprep.subr.mxu0 0.0
      %7490 = vmatpush1.msra.mxu0 0.0
      %7491 = vmatprep.subr.mxu0 0.0
      %7492 = vmatpush1.msra.mxu0 0.0
      %7493 = vmatprep.subr.mxu0 0.0
      %7494 = vmatpush1.msra.mxu0 0.0
      %7495 = vmatprep.subr.mxu0 0.0
      %7496 = vmatpush1.msra.mxu0 0.0
      %7497 = vmatprep.subr.mxu0 0.0
      %7498 = vmatpush1.msra.mxu0 0.0
      %7499 = vmatprep.subr.mxu0 0.0
      %7500 = vmatpush1.msra.mxu0 0.0
      %7501 = vmatprep.subr.mxu0 0.0
      %7502 = vmatpush1.msra.mxu0 0.0
      %7503 = vmatprep.subr.mxu0 0.0
      %7504 = vmatpush1.msra.mxu0 0.0
      %7505 = vmatprep.subr.mxu0 0.0
      %7506 = vmatpush1.msra.mxu0 0.0
      %7507 = vmatprep.subr.mxu0 0.0
      %7508 = vmatpush1.msra.mxu0 0.0
      %7509 = vmatprep.subr.mxu0 0.0
      %7510 = vmatpush1.msra.mxu0 0.0
      %7511 = vmatprep.subr.mxu0 0.0
      %7512 = vmatpush1.msra.mxu0 0.0
      %7513 = vmatprep.subr.mxu0 0.0
      %7514 = vmatpush1.msra.mxu0 0.0
      %7515 = vmatprep.subr.mxu0 0.0
      %7516 = vmatpush1.msra.mxu0 0.0
      %7517 = vmatprep.subr.mxu0 0.0
      %7518 = vmatpush1.msra.mxu0 0.0
      %7519 = vmatprep.mubr.f32.mxu0 0.0
      %v7520 = vand.u32 %v5835, 4294901760
      %7521 = vmatmul.mubr.f32.gmra.mrb[0].mxu0 %v7520
      %v7522 = vpop.f32.mrb[0].mxu0
      %v7523 = vadd.f32 %v7346, %v7522
      %v7524 = vpop.f32.mrb[0].mxu0
      %v7525 = vadd.f32 %v7348, %v7524
      %7526 = vmatprep.mubr.f32.mxu0 0.0
      %v7527 = vand.u32 %v5836, 4294901760
      %7528 = vmatmul.mubr.f32.gmra.mrb[0].mxu0 %v7527
      %v7529 = vpop.f32.mrb[0].mxu0
      %v7530 = vadd.f32 %v7355, %v7529
      %v7531 = vpop.f32.mrb[0].mxu0
      %v7532 = vadd.f32 %v7357, %v7531
      %7533 = vdwg.mxu0
      %v7534 = vand.u32 %v270, 4294901760
      %7535 = vmatprep.subr.mxu0 %v7534
      %v7536 = vand.u32 %v269, 4294901760
      %7537 = vmatpush1.msra.mxu0 %v7536
      %v7538 = vand.u32 %v274, 4294901760
      %7539 = vmatprep.subr.mxu0 %v7538
      %v7540 = vand.u32 %v273, 4294901760
      %7541 = vmatpush1.msra.mxu0 %v7540
      %v7542 = vand.u32 %v278, 4294901760
      %7543 = vmatprep.subr.mxu0 %v7542
      %v7544 = vand.u32 %v277, 4294901760
      %7545 = vmatpush1.msra.mxu0 %v7544
      %v7546 = vand.u32 %v282, 4294901760
      %7547 = vmatprep.subr.mxu0 %v7546
      %v7548 = vand.u32 %v281, 4294901760
      %7549 = vmatpush1.msra.mxu0 %v7548
      %v7550 = vand.u32 %v286, 4294901760
      %7551 = vmatprep.subr.mxu0 %v7550
      %v7552 = vand.u32 %v285, 4294901760
      %7553 = vmatpush1.msra.mxu0 %v7552
      %v7554 = vand.u32 %v290, 4294901760
      %7555 = vmatprep.subr.mxu0 %v7554
      %v7556 = vand.u32 %v289, 4294901760
      %7557 = vmatpush1.msra.mxu0 %v7556
      %v7558 = vand.u32 %v294, 4294901760
      %7559 = vmatprep.subr.mxu0 %v7558
      %v7560 = vand.u32 %v293, 4294901760
      %7561 = vmatpush1.msra.mxu0 %v7560
      %v7562 = vand.u32 %v298, 4294901760
      %7563 = vmatprep.subr.mxu0 %v7562
      %v7564 = vand.u32 %v297, 4294901760
      %7565 = vmatpush1.msra.mxu0 %v7564
      %v7566 = vand.u32 %v302, 4294901760
      %7567 = vmatprep.subr.mxu0 %v7566
      %v7568 = vand.u32 %v301, 4294901760
      %7569 = vmatpush1.msra.mxu0 %v7568
      %v7570 = vand.u32 %v306, 4294901760
      %7571 = vmatprep.subr.mxu0 %v7570
      %v7572 = vand.u32 %v305, 4294901760
      %7573 = vmatpush1.msra.mxu0 %v7572
      %v7574 = vand.u32 %v310, 4294901760
      %7575 = vmatprep.subr.mxu0 %v7574
      %v7576 = vand.u32 %v309, 4294901760
      %7577 = vmatpush1.msra.mxu0 %v7576
      %v7578 = vand.u32 %v314, 4294901760
      %7579 = vmatprep.subr.mxu0 %v7578
      %v7580 = vand.u32 %v313, 4294901760
      %7581 = vmatpush1.msra.mxu0 %v7580
      %v7582 = vand.u32 %v318, 4294901760
      %7583 = vmatprep.subr.mxu0 %v7582
      %v7584 = vand.u32 %v317, 4294901760
      %7585 = vmatpush1.msra.mxu0 %v7584
      %v7586 = vand.u32 %v322, 4294901760
      %7587 = vmatprep.subr.mxu0 %v7586
      %v7588 = vand.u32 %v321, 4294901760
      %7589 = vmatpush1.msra.mxu0 %v7588
      %v7590 = vand.u32 %v326, 4294901760
      %7591 = vmatprep.subr.mxu0 %v7590
      %v7592 = vand.u32 %v325, 4294901760
      %7593 = vmatpush1.msra.mxu0 %v7592
      %v7594 = vand.u32 %v330, 4294901760
      %7595 = vmatprep.subr.mxu0 %v7594
      %v7596 = vand.u32 %v329, 4294901760
      %7597 = vmatpush1.msra.mxu0 %v7596
      %7598 = vmatprep.subr.mxu0 0.0
      %7599 = vmatpush1.msra.mxu0 0.0
      %7600 = vmatprep.subr.mxu0 0.0
      %7601 = vmatpush1.msra.mxu0 0.0
      %7602 = vmatprep.subr.mxu0 0.0
      %7603 = vmatpush1.msra.mxu0 0.0
      %7604 = vmatprep.subr.mxu0 0.0
      %7605 = vmatpush1.msra.mxu0 0.0
      %7606 = vmatprep.subr.mxu0 0.0
      %7607 = vmatpush1.msra.mxu0 0.0
      %7608 = vmatprep.subr.mxu0 0.0
      %7609 = vmatpush1.msra.mxu0 0.0
      %7610 = vmatprep.subr.mxu0 0.0
      %7611 = vmatpush1.msra.mxu0 0.0
      %7612 = vmatprep.subr.mxu0 0.0
      %7613 = vmatpush1.msra.mxu0 0.0
      %7614 = vmatprep.subr.mxu0 0.0
      %7615 = vmatpush1.msra.mxu0 0.0
      %7616 = vmatprep.subr.mxu0 0.0
      %7617 = vmatpush1.msra.mxu0 0.0
      %7618 = vmatprep.subr.mxu0 0.0
      %7619 = vmatpush1.msra.mxu0 0.0
      %7620 = vmatprep.subr.mxu0 0.0
      %7621 = vmatpush1.msra.mxu0 0.0
      %7622 = vmatprep.subr.mxu0 0.0
      %7623 = vmatpush1.msra.mxu0 0.0
      %7624 = vmatprep.subr.mxu0 0.0
      %7625 = vmatpush1.msra.mxu0 0.0
      %7626 = vmatprep.subr.mxu0 0.0
      %7627 = vmatpush1.msra.mxu0 0.0
      %7628 = vmatprep.subr.mxu0 0.0
      %7629 = vmatpush1.msra.mxu0 0.0
      %7630 = vmatprep.mubr.f32.mxu0 0.0
      %v7631 = vand.u32 %v5835, 4294901760
      %7632 = vmatmul.mubr.f32.gmra.mrb[0].mxu0 %v7631
      %v7633 = vpop.f32.mrb[0].mxu0
      %v7634 = vadd.f32 %v7523, %v7633
      %v7635 = vpop.f32.mrb[0].mxu0
      %v7636 = vadd.f32 %v7525, %v7635
      %7637 = vmatprep.mubr.f32.mxu0 0.0
      %v7638 = vand.u32 %v5836, 4294901760
      %7639 = vmatmul.mubr.f32.gmra.mrb[0].mxu0 %v7638
      %v7640 = vpop.f32.mrb[0].mxu0
      %v7641 = vadd.f32 %v7530, %v7640
      %v7642 = vpop.f32.mrb[0].mxu0
      %v7643 = vadd.f32 %v7532, %v7642
      %7644 = vdwg.mxu0
      %v7645 = vmul.f32 %v3977, %v6730
      %v7646 = vmul.f32 %v3978, %v6732
      %v7647 = vmul.f32 %v3979, %v7634
      %v7648 = vmul.f32 %v3980, %v7636
      %v7649 = vmul.f32 %v3981, %v6737
      %v7650 = vmul.f32 %v3982, %v6739
      %v7651 = vmul.f32 %v3983, %v7641
      %v7652 = vmul.f32 %v3984, %v7643
      %7653 = vst [vmem:[%s177] sm:$0xff] %v7645
      %7654 = vst [vmem:[%s177 + $0x8] sm:$0xff] %v7646
      %7655 = vst [vmem:[%s177 + $0x10] sm:$0xff] %v7647
      %7656 = vst [vmem:[%s177 + $0x18] sm:$0xff] %v7648
      %7657 = vst [vmem:[%s177 + $0x20] sm:$0xff] %v7649
      %7658 = vst [vmem:[%s177 + $0x28] sm:$0xff] %v7650
      %7659 = vst [vmem:[%s177 + $0x30] sm:$0xff] %v7651
      %7660 = vst [vmem:[%s177 + $0x38] sm:$0xff] %v7652
      %s7661 = smul.u32 2, %s14
      %p7662 = scmp.lt.s32.totalorder %s7661, 7
      %s7663 = scalar_select %p7662, %s7661, 7
      %s7664 = smul.addr %s7663, 4
      %s7665 = smul.addr %s7664, 8
      %s7666 = scalar_lea.vmem %s3, %s7665
      // Predicated region
      $region33: #{chained_log_standardize.1} parent=31 // pred_check
        %p7667 = pneg %p100
      $region34: #{chained_log_standardize.1} parent=31 // pred_check_branch
        %7669 = sbr.rel (%p7667) target = $region36
      $region35: #{chained_log_standardize.1} parent=31 // pred_region
        %s7670 = smul.u32 2, %s14
      $region36: #{chained_log_standardize.1} parent=31 // pred_fallthru
        _
    $region32: #{chained_log_standardize.1} parent=5 // pred_fallthru
      _
    %p7671 = scmp.le.s32.totalorder 2, %s9
    // Predicated region
    $region37: #{chained_log_standardize.1} parent=5 // pred_check
      %p7672 = pneg %p7671
    $region38: #{chained_log_standardize.1} parent=5 // pred_check_branch
      %7674 = sbr.rel (%p7672) target = $region40
    $region39: #{chained_log_standardize.1} parent=5 // pred_region
      %s7675 = ssub.s32 %s9, 2
      // Predicated region
      $region41: #{chained_log_standardize.1} parent=39 // pred_check
        %p7676 = pneg %p106
      $region42: #{chained_log_standardize.1} parent=39 // pred_check_branch
        %7678 = sbr.rel (%p7676) target = $region44
      $region43: #{chained_log_standardize.1} parent=39 // pred_region
        %s7679 = smul.u32 2, %s15
        %p7680 = scmp.lt.s32.totalorder %s7679, 7
        %s7681 = scalar_select %p7680, %s7679, 7
        %s7682 = smul.addr %s7681, 4
        %s7683 = smul.addr %s7682, 8
        %s7684 = scalar_lea.vmem %s3, %s7683
      $region44: #{chained_log_standardize.1} parent=39 // pred_fallthru
        _
    $region40: #{chained_log_standardize.1} parent=5 // pred_fallthru
      _
  $region6: #{chained_log_standardize.1} parent=0 // loop_footer
    %s13 = sadd.s32 1, %s9
  $region7: #{chained_log_standardize.1} parent=0 // loop_footer_branch
    %8 = sbr.rel target = $region3
  $region8: #{chained_log_standardize.1} parent=0 // loop_exit
    _

</llo_original>
